<compile_context>
chip_gen: v6e
topology: v6e:2x2x1
jax: 0.10.0
libtpu: 0.0.40
codegen_flags: <defaults>
</compile_context>

<pallas_src>
import functools

import jax
import jax.numpy as jnp
from jax.experimental import pallas as pl
from jax.experimental.pallas import tpu as pltpu


K = 5                      # depthwise kernel size (both depthwise convs)
DIL = 3                    # dilation of conv_spatial
P0 = (K - 1) // 2          # = 2, padding of conv0
P1 = DIL * (K - 1) // 2    # = 6, padding of conv_spatial
PL = 8                     # over-padded top/left halo -> aligned interior stores
ROWS = 8                   # register-blocked output rows per stripe


# ----------------------------------------------------------------------------
# Fused Pallas kernel: one (packed) batch image per grid step, NHWC layout.
# ----------------------------------------------------------------------------
def _lka_kernel(x_ref, w0_ref, b0_ref, w1_ref, b1_ref, w2_ref, b2_ref,
                o_ref, xp0_ref, xp1_ref, a_ref, *, H, W, C):
    """x_ref  : (H, W, C)   f32   input image block (C = packed channel width)
       w0_ref : (K*K, C)    f32   depthwise 5x5 weights, index (kh*K+kw, c)
       w1_ref : (K*K, C)    f32   depthwise 5x5 dilated weights
       w2_ref : (C, C)      bf16  1x1 conv weights, index (ci, co)
       b*_ref : (1, C)      f32   biases
       o_ref  : (H*W, C)    f32   output  u * attn
       xp0_ref: (PL+H+P0, PL+W+P0, C) f32 VMEM scratch (padded conv0 input)
       xp1_ref: (PL+H+P1, PL+W+P1, C) f32 VMEM scratch (padded conv_spatial in)
       a_ref  : (H*W, C)    bf16  VMEM scratch (matmul LHS)
    """
    # ---- zero the padded scratches ONCE; only the halo must stay zero --------
    @pl.when(pl.program_id(0) == 0)
    def _():
        xp0_ref[...] = jnp.zeros(xp0_ref.shape, jnp.float32)
        xp1_ref[...] = jnp.zeros(xp1_ref.shape, jnp.float32)

    # interior write, W-offset PL=8 -> sublane-aligned, unmasked store
    xp0_ref[PL:PL + H, PL:PL + W, :] = x_ref[...]

    R0 = PL - P0   # read offset base for conv0 taps        (= 6)
    R1 = PL - P1   # read offset base for conv_spatial taps (= 2)

    # ---- depthwise conv0: 5x5, pad 2, groups=C  (VPU, register-blocked) ------
    # one store per 8-row stripe, directly into xp1's interior
    for h0 in range(0, H, ROWS):
        rows = min(ROWS, H - h0)
        acc = jnp.zeros((rows, W, C), jnp.float32)
        for kh in range(K):
            for kw in range(K):
                t = kh * K + kw
                acc = acc + (xp0_ref[R0 + h0 + kh:R0 + h0 + kh + rows,
                                     R0 + kw:R0 + kw + W, :]
                             * w0_ref[t:t + 1, :])          # per-channel bcast
        xp1_ref[PL + h0:PL + h0 + rows, PL:PL + W, :] = acc + b0_ref[...]

    # ---- depthwise conv_spatial: 5x5, dilation 3, pad 6, groups=C ------------
    # one bf16 store per stripe into the matmul-LHS slab
    for h0 in range(0, H, ROWS):
        rows = min(ROWS, H - h0)
        acc = jnp.zeros((rows, W, C), jnp.float32)
        for kh in range(K):
            for kw in range(K):
                t = kh * K + kw
                acc = acc + (xp1_ref[R1 + h0 + kh * DIL:R1 + h0 + kh * DIL + rows,
                                     R1 + kw * DIL:R1 + kw * DIL + W, :]
                             * w1_ref[t:t + 1, :])
        y = acc + b1_ref[...]
        # reshape (rows, W, C) -> (rows*W, C) is free because W % 8 == 0
        a_ref[h0 * W:(h0 + rows) * W, :] = (
            y.reshape(rows * W, C).astype(jnp.bfloat16))

    # ---- conv1 (1x1): one bf16 MXU matmul per image, then the gate u * attn --
    attn = jnp.dot(a_ref[...], w2_ref[...], preferred_element_type=jnp.float32)
    attn = attn + b2_ref[...]
    u = x_ref[...].reshape(H * W, C)                         # free (W % 8 == 0)
    o_ref[...] = (u * attn).astype(o_ref.dtype)


# ----------------------------------------------------------------------------
# Wrapper: NCHW (PyTorch) <-> packed NHWC plumbing + weight flattening.
# ----------------------------------------------------------------------------
def lka_forward(x_nchw, params):
    N, C, H, W = x_nchw.shape
    # TODO(synk): for stages with W % 8 != 0 (14x14 / 7x7), pad W to a multiple
    # of 8 so the (H, W, C) -> (H*W, C) reshape stays a free relabelling.
    assert W % 8 == 0, "W must be a multiple of 8 for the free flatten"

    # Lane-density: for C < 128 pack G=2 images along the channel/lane dim so
    # every vreg / store is fully lane-occupied (depthwise weights replicated,
    # 1x1 weight block-diagonal).
    G = 2 if (C < 128 and N % 2 == 0) else 1
    Ng, Cp = N // G, G * C

    # x[N,C,H,W] -> x_p[Ng,H,W,G*C]  with packed channel j = g*C + c
    x_p = (x_nchw.reshape(Ng, G, C, H, W)
           .transpose(0, 3, 4, 1, 2)
           .reshape(Ng, H, W, Cp))

    # (C,1,K,K) depthwise weights -> (K*K, C); (Co,Ci,1,1) -> (Ci, Co)
    w0 = jnp.transpose(params["w0"].reshape(C, K * K), (1, 0))
    w1 = jnp.transpose(params["w1"].reshape(C, K * K), (1, 0))
    w2 = jnp.transpose(params["w2"].reshape(C, C), (1, 0))

    def tile_c(a):                       # replicate along packed channel groups
        return jnp.concatenate([a] * G, axis=-1) if G > 1 else a

    w0p, w1p = tile_c(w0), tile_c(w1)
    b0p = tile_c(params["b0"].reshape(1, C))
    b1p = tile_c(params["b1"].reshape(1, C))
    b2p = tile_c(params["b2"].reshape(1, C))

    # block-diagonal 1x1 weight so packed images stay independent; bf16 for MXU
    w2p = jnp.zeros((Cp, Cp), w2.dtype)
    for g in range(G):
        w2p = w2p.at[g * C:(g + 1) * C, g * C:(g + 1) * C].set(w2)
    w2p = w2p.astype(jnp.bfloat16)

    kern = functools.partial(_lka_kernel, H=H, W=W, C=Cp)

    flops = Ng * H * W * (2 * Cp * Cp + 4 * K * K * Cp + 2 * Cp)
    bytes_accessed = (2 * Ng * H * W * Cp * 4
                      + (2 * K * K * Cp + 3 * Cp) * 4 + Cp * Cp * 2)

    out = pl.pallas_call(
        kern,
        out_shape=jax.ShapeDtypeStruct((Ng, H * W, Cp), x_nchw.dtype),
        grid=(Ng,),
        in_specs=[
            pl.BlockSpec((None, H, W, Cp), lambda n: (n, 0, 0, 0)),
            pl.BlockSpec((K * K, Cp), lambda n: (0, 0)),
            pl.BlockSpec((1, Cp), lambda n: (0, 0)),
            pl.BlockSpec((K * K, Cp), lambda n: (0, 0)),
            pl.BlockSpec((1, Cp), lambda n: (0, 0)),
            pl.BlockSpec((Cp, Cp), lambda n: (0, 0)),
            pl.BlockSpec((1, Cp), lambda n: (0, 0)),
        ],
        out_specs=pl.BlockSpec((None, H * W, Cp), lambda n: (n, 0, 0)),
        scratch_shapes=[
            pltpu.VMEM((PL + H + P0, PL + W + P0, Cp), jnp.float32),
            pltpu.VMEM((PL + H + P1, PL + W + P1, Cp), jnp.float32),
            pltpu.VMEM((H * W, Cp), jnp.bfloat16),
        ],
        compiler_params=pltpu.CompilerParams(
            # "arbitrary": the halo-init-once guard relies on a single core
            # walking the whole grid; v7x multi-core split should come from an
            # H-stripe axis at production sizes (see TODO at top).
            dimension_semantics=("arbitrary",),
            vmem_limit_bytes=64 * 1024 * 1024),
        cost_estimate=pl.CostEstimate(flops=flops, transcendentals=0,
                                      bytes_accessed=bytes_accessed),
    )(x_p, w0p, b0p, w1p, b1p, w2p, b2p)

    # unpack: (Ng, H*W, G*C) -> (N, C, H, W)
    out = (out.reshape(Ng, H, W, G, C)
           .transpose(0, 3, 4, 1, 2)
           .reshape(N, C, H, W))
    return out


# ----------------------------------------------------------------------------
# Pure-JAX (XLA conv, f32) reference for the correctness cross-check.
# ----------------------------------------------------------------------------
def lka_reference(x, p):
    C = x.shape[1]

    def dwconv(z, w, b, pad, dil):
        y = jax.lax.conv_general_dilated(
            z, w, window_strides=(1, 1),
            padding=((pad, pad), (pad, pad)),
            rhs_dilation=(dil, dil),
            dimension_numbers=("NCHW", "OIHW", "NCHW"),
            feature_group_count=C)
        return y + b[None, :, None, None]

    attn = dwconv(x, p["w0"], p["b0"], P0, 1)
    attn = dwconv(attn, p["w1"], p["b1"], P1, DIL)
    attn = jax.lax.conv_general_dilated(
        attn, p["w2"], (1, 1), ((0, 0), (0, 0)),
        dimension_numbers=("NCHW", "OIHW", "NCHW")) + p["b2"][None, :, None, None]
    return x * attn


if __name__ == "__main__":
    dim, N, H, W = 64, 2, 16, 16

    key = jax.random.PRNGKey(0)
    k = jax.random.split(key, 7)
    x = jax.random.normal(k[0], (N, dim, H, W), jnp.float32)
    params = dict(
        w0=0.1 * jax.random.normal(k[1], (dim, 1, K, K), jnp.float32),
        b0=0.1 * jax.random.normal(k[2], (dim,), jnp.float32),
        w1=0.1 * jax.random.normal(k[3], (dim, 1, K, K), jnp.float32),
        b1=0.1 * jax.random.normal(k[4], (dim,), jnp.float32),
        w2=0.1 * jax.random.normal(k[5], (dim, dim, 1, 1), jnp.float32),
        b2=0.1 * jax.random.normal(k[6], (dim,), jnp.float32),
    )

    out = jax.block_until_ready(jax.jit(lka_forward)(x, params))
    assert out.shape == (N, dim, H, W), out.shape

    ref = lka_reference(x, params)
    err = float(jnp.max(jnp.abs(out - ref)))
    # tolerance loosened vs. the f32 reference because the 1x1 conv now runs
    # bf16 on the MXU (intentional, per review); real indexing/packing bugs
    # would produce O(0.1 - 1) errors and still trip this check.
    assert jnp.allclose(out, ref, atol=5e-2, rtol=5e-2), err

    print("KERNEL_OK")
</pallas_src>

<mosaic_0001>
module attributes {stable_mosaic.version = 11 : i64} {
  func.func @_lka_kernel(%arg0: i32, %arg1: memref<1x16x16x128xf32, #tpu.memory_space<vmem>>, %arg2: memref<25x128xf32, #tpu.memory_space<vmem>>, %arg3: memref<1x128xf32, #tpu.memory_space<vmem>>, %arg4: memref<25x128xf32, #tpu.memory_space<vmem>>, %arg5: memref<1x128xf32, #tpu.memory_space<vmem>>, %arg6: memref<128x128xbf16, #tpu.memory_space<vmem>>, %arg7: memref<1x128xf32, #tpu.memory_space<vmem>>, %arg8: memref<1x256x128xf32, #tpu.memory_space<vmem>>, %arg9: memref<26x26x128xf32, #tpu.memory_space<vmem>>, %arg10: memref<30x30x128xf32, #tpu.memory_space<vmem>>, %arg11: memref<256x128xbf16, #tpu.memory_space<vmem>>) attributes {dimension_semantics = [#tpu.dimension_semantics<arbitrary>], iteration_bounds = array<i64: 1>, scalar_prefetch = 0 : i64, scratch_operands = 3 : i64, tpu.core_type = #tpu.core_type<tc>, window_params = [{transform_indices = @transform_0, window_bounds = array<i64: 1, 16, 16, 128>}, {pipeline_mode = #tpu.pipeline_mode<synchronous>, transform_indices = @transform_1, window_bounds = array<i64: 25, 128>}, {pipeline_mode = #tpu.pipeline_mode<synchronous>, transform_indices = @transform_2, window_bounds = array<i64: 1, 128>}, {pipeline_mode = #tpu.pipeline_mode<synchronous>, transform_indices = @transform_3, window_bounds = array<i64: 25, 128>}, {pipeline_mode = #tpu.pipeline_mode<synchronous>, transform_indices = @transform_4, window_bounds = array<i64: 1, 128>}, {pipeline_mode = #tpu.pipeline_mode<synchronous>, transform_indices = @transform_5, window_bounds = array<i64: 128, 128>}, {pipeline_mode = #tpu.pipeline_mode<synchronous>, transform_indices = @transform_6, window_bounds = array<i64: 1, 128>}, {transform_indices = @transform_7, window_bounds = array<i64: 1, 256, 128>}]} {
    %c0_i32 = arith.constant 0 : i32
    %0 = arith.cmpi eq, %arg0, %c0_i32 : i32
    %1 = arith.extui %0 : i1 to i32
    %c0_i32_0 = arith.constant 0 : i32
    %2 = arith.cmpi ne, %1, %c0_i32_0 : i32
    scf.if %2 {
      %cst_517 = arith.constant 0.000000e+00 : f32
      %647 = vector.broadcast %cst_517 : f32 to vector<26x26x128xf32>
      %c0_518 = arith.constant 0 : index
      %c0_519 = arith.constant 0 : index
      %c0_520 = arith.constant 0 : index
      %648 = vector.load %arg9[%c0_518, %c0_519, %c0_520] : memref<26x26x128xf32, #tpu.memory_space<vmem>>, vector<26x26x128xf32>
      tpu.vector_store %arg9[%c0_518, %c0_519, %c0_520], %647 {strides = array<i32>} : memref<26x26x128xf32, #tpu.memory_space<vmem>>, vector<26x26x128xf32>,
      %cst_521 = arith.constant 0.000000e+00 : f32
      %649 = vector.broadcast %cst_521 : f32 to vector<30x30x128xf32>
      %c0_522 = arith.constant 0 : index
      %c0_523 = arith.constant 0 : index
      %c0_524 = arith.constant 0 : index
      %650 = vector.load %arg10[%c0_522, %c0_523, %c0_524] : memref<30x30x128xf32, #tpu.memory_space<vmem>>, vector<30x30x128xf32>
      tpu.vector_store %arg10[%c0_522, %c0_523, %c0_524], %649 {strides = array<i32>} : memref<30x30x128xf32, #tpu.memory_space<vmem>>, vector<30x30x128xf32>,
    } else {
    }
    %c0 = arith.constant 0 : index
    %c0_1 = arith.constant 0 : index
    %c0_2 = arith.constant 0 : index
    %c0_3 = arith.constant 0 : index
    %3 = vector.load %arg1[%c0, %c0_1, %c0_2, %c0_3] : memref<1x16x16x128xf32, #tpu.memory_space<vmem>>, vector<1x16x16x128xf32>
    %4 = vector.shape_cast %3 : vector<1x16x16x128xf32> to vector<16x16x128xf32>
    %c8 = arith.constant 8 : index
    %c8_4 = arith.constant 8 : index
    %c0_5 = arith.constant 0 : index
    %5 = vector.load %arg9[%c8, %c8_4, %c0_5] : memref<26x26x128xf32, #tpu.memory_space<vmem>>, vector<16x16x128xf32>
    tpu.vector_store %arg9[%c8, %c8_4, %c0_5], %4 {strides = array<i32>} : memref<26x26x128xf32, #tpu.memory_space<vmem>>, vector<16x16x128xf32>,
    %cst = arith.constant 0.000000e+00 : f32
    %6 = vector.broadcast %cst : f32 to vector<8x16x128xf32>
    %c6 = arith.constant 6 : index
    %c6_6 = arith.constant 6 : index
    %c0_7 = arith.constant 0 : index
    %7 = vector.load %arg9[%c6, %c6_6, %c0_7] : memref<26x26x128xf32, #tpu.memory_space<vmem>>, vector<8x16x128xf32>
    %c0_8 = arith.constant 0 : index
    %c0_9 = arith.constant 0 : index
    %8 = vector.load %arg2[%c0_8, %c0_9] : memref<25x128xf32, #tpu.memory_space<vmem>>, vector<1x128xf32>
    %9 = vector.shape_cast %8 : vector<1x128xf32> to vector<1x1x128xf32>
    %10 = vector.broadcast %9 : vector<1x1x128xf32> to vector<8x16x128xf32>
    %11 = arith.mulf %7, %10 : vector<8x16x128xf32>
    %12 = arith.addf %6, %11 : vector<8x16x128xf32>
    %c6_10 = arith.constant 6 : index
    %c7 = arith.constant 7 : index
    %c0_11 = arith.constant 0 : index
    %13 = vector.load %arg9[%c6_10, %c7, %c0_11] : memref<26x26x128xf32, #tpu.memory_space<vmem>>, vector<8x16x128xf32>
    %c1 = arith.constant 1 : index
    %c0_12 = arith.constant 0 : index
    %14 = vector.load %arg2[%c1, %c0_12] : memref<25x128xf32, #tpu.memory_space<vmem>>, vector<1x128xf32>
    %15 = vector.shape_cast %14 : vector<1x128xf32> to vector<1x1x128xf32>
    %16 = vector.broadcast %15 : vector<1x1x128xf32> to vector<8x16x128xf32>
    %17 = arith.mulf %13, %16 : vector<8x16x128xf32>
    %18 = arith.addf %12, %17 : vector<8x16x128xf32>
    %c6_13 = arith.constant 6 : index
    %c8_14 = arith.constant 8 : index
    %c0_15 = arith.constant 0 : index
    %19 = vector.load %arg9[%c6_13, %c8_14, %c0_15] : memref<26x26x128xf32, #tpu.memory_space<vmem>>, vector<8x16x128xf32>
    %c2 = arith.constant 2 : index
    %c0_16 = arith.constant 0 : index
    %20 = vector.load %arg2[%c2, %c0_16] : memref<25x128xf32, #tpu.memory_space<vmem>>, vector<1x128xf32>
    %21 = vector.shape_cast %20 : vector<1x128xf32> to vector<1x1x128xf32>
    %22 = vector.broadcast %21 : vector<1x1x128xf32> to vector<8x16x128xf32>
    %23 = arith.mulf %19, %22 : vector<8x16x128xf32>
    %24 = arith.addf %18, %23 : vector<8x16x128xf32>
    %c6_17 = arith.constant 6 : index
    %c9 = arith.constant 9 : index
    %c0_18 = arith.constant 0 : index
    %25 = vector.load %arg9[%c6_17, %c9, %c0_18] : memref<26x26x128xf32, #tpu.memory_space<vmem>>, vector<8x16x128xf32>
    %c3 = arith.constant 3 : index
    %c0_19 = arith.constant 0 : index
    %26 = vector.load %arg2[%c3, %c0_19] : memref<25x128xf32, #tpu.memory_space<vmem>>, vector<1x128xf32>
    %27 = vector.shape_cast %26 : vector<1x128xf32> to vector<1x1x128xf32>
    %28 = vector.broadcast %27 : vector<1x1x128xf32> to vector<8x16x128xf32>
    %29 = arith.mulf %25, %28 : vector<8x16x128xf32>
    %30 = arith.addf %24, %29 : vector<8x16x128xf32>
    %c6_20 = arith.constant 6 : index
    %c10 = arith.constant 10 : index
    %c0_21 = arith.constant 0 : index
    %31 = vector.load %arg9[%c6_20, %c10, %c0_21] : memref<26x26x128xf32, #tpu.memory_space<vmem>>, vector<8x16x128xf32>
    %c4 = arith.constant 4 : index
    %c0_22 = arith.constant 0 : index
    %32 = vector.load %arg2[%c4, %c0_22] : memref<25x128xf32, #tpu.memory_space<vmem>>, vector<1x128xf32>
    %33 = vector.shape_cast %32 : vector<1x128xf32> to vector<1x1x128xf32>
    %34 = vector.broadcast %33 : vector<1x1x128xf32> to vector<8x16x128xf32>
    %35 = arith.mulf %31, %34 : vector<8x16x128xf32>
    %36 = arith.addf %30, %35 : vector<8x16x128xf32>
    %c7_23 = arith.constant 7 : index
    %c6_24 = arith.constant 6 : index
    %c0_25 = arith.constant 0 : index
    %37 = vector.load %arg9[%c7_23, %c6_24, %c0_25] : memref<26x26x128xf32, #tpu.memory_space<vmem>>, vector<8x16x128xf32>
    %c5 = arith.constant 5 : index
    %c0_26 = arith.constant 0 : index
    %38 = vector.load %arg2[%c5, %c0_26] : memref<25x128xf32, #tpu.memory_space<vmem>>, vector<1x128xf32>
    %39 = vector.shape_cast %38 : vector<1x128xf32> to vector<1x1x128xf32>
    %40 = vector.broadcast %39 : vector<1x1x128xf32> to vector<8x16x128xf32>
    %41 = arith.mulf %37, %40 : vector<8x16x128xf32>
    %42 = arith.addf %36, %41 : vector<8x16x128xf32>
    %c7_27 = arith.constant 7 : index
    %c7_28 = arith.constant 7 : index
    %c0_29 = arith.constant 0 : index
    %43 = vector.load %arg9[%c7_27, %c7_28, %c0_29] : memref<26x26x128xf32, #tpu.memory_space<vmem>>, vector<8x16x128xf32>
    %c6_30 = arith.constant 6 : index
    %c0_31 = arith.constant 0 : index
    %44 = vector.load %arg2[%c6_30, %c0_31] : memref<25x128xf32, #tpu.memory_space<vmem>>, vector<1x128xf32>
    %45 = vector.shape_cast %44 : vector<1x128xf32> to vector<1x1x128xf32>
    %46 = vector.broadcast %45 : vector<1x1x128xf32> to vector<8x16x128xf32>
    %47 = arith.mulf %43, %46 : vector<8x16x128xf32>
    %48 = arith.addf %42, %47 : vector<8x16x128xf32>
    %c7_32 = arith.constant 7 : index
    %c8_33 = arith.constant 8 : index
    %c0_34 = arith.constant 0 : index
    %49 = vector.load %arg9[%c7_32, %c8_33, %c0_34] : memref<26x26x128xf32, #tpu.memory_space<vmem>>, vector<8x16x128xf32>
    %c7_35 = arith.constant 7 : index
    %c0_36 = arith.constant 0 : index
    %50 = vector.load %arg2[%c7_35, %c0_36] : memref<25x128xf32, #tpu.memory_space<vmem>>, vector<1x128xf32>
    %51 = vector.shape_cast %50 : vector<1x128xf32> to vector<1x1x128xf32>
    %52 = vector.broadcast %51 : vector<1x1x128xf32> to vector<8x16x128xf32>
    %53 = arith.mulf %49, %52 : vector<8x16x128xf32>
    %54 = arith.addf %48, %53 : vector<8x16x128xf32>
    %c7_37 = arith.constant 7 : index
    %c9_38 = arith.constant 9 : index
    %c0_39 = arith.constant 0 : index
    %55 = vector.load %arg9[%c7_37, %c9_38, %c0_39] : memref<26x26x128xf32, #tpu.memory_space<vmem>>, vector<8x16x128xf32>
    %c8_40 = arith.constant 8 : index
    %c0_41 = arith.constant 0 : index
    %56 = vector.load %arg2[%c8_40, %c0_41] : memref<25x128xf32, #tpu.memory_space<vmem>>, vector<1x128xf32>
    %57 = vector.shape_cast %56 : vector<1x128xf32> to vector<1x1x128xf32>
    %58 = vector.broadcast %57 : vector<1x1x128xf32> to vector<8x16x128xf32>
    %59 = arith.mulf %55, %58 : vector<8x16x128xf32>
    %60 = arith.addf %54, %59 : vector<8x16x128xf32>
    %c7_42 = arith.constant 7 : index
    %c10_43 = arith.constant 10 : index
    %c0_44 = arith.constant 0 : index
    %61 = vector.load %arg9[%c7_42, %c10_43, %c0_44] : memref<26x26x128xf32, #tpu.memory_space<vmem>>, vector<8x16x128xf32>
    %c9_45 = arith.constant 9 : index
    %c0_46 = arith.constant 0 : index
    %62 = vector.load %arg2[%c9_45, %c0_46] : memref<25x128xf32, #tpu.memory_space<vmem>>, vector<1x128xf32>
    %63 = vector.shape_cast %62 : vector<1x128xf32> to vector<1x1x128xf32>
    %64 = vector.broadcast %63 : vector<1x1x128xf32> to vector<8x16x128xf32>
    %65 = arith.mulf %61, %64 : vector<8x16x128xf32>
    %66 = arith.addf %60, %65 : vector<8x16x128xf32>
    %c8_47 = arith.constant 8 : index
    %c6_48 = arith.constant 6 : index
    %c0_49 = arith.constant 0 : index
    %67 = vector.load %arg9[%c8_47, %c6_48, %c0_49] : memref<26x26x128xf32, #tpu.memory_space<vmem>>, vector<8x16x128xf32>
    %c10_50 = arith.constant 10 : index
    %c0_51 = arith.constant 0 : index
    %68 = vector.load %arg2[%c10_50, %c0_51] : memref<25x128xf32, #tpu.memory_space<vmem>>, vector<1x128xf32>
    %69 = vector.shape_cast %68 : vector<1x128xf32> to vector<1x1x128xf32>
    %70 = vector.broadcast %69 : vector<1x1x128xf32> to vector<8x16x128xf32>
    %71 = arith.mulf %67, %70 : vector<8x16x128xf32>
    %72 = arith.addf %66, %71 : vector<8x16x128xf32>
    %c8_52 = arith.constant 8 : index
    %c7_53 = arith.constant 7 : index
    %c0_54 = arith.constant 0 : index
    %73 = vector.load %arg9[%c8_52, %c7_53, %c0_54] : memref<26x26x128xf32, #tpu.memory_space<vmem>>, vector<8x16x128xf32>
    %c11 = arith.constant 11 : index
    %c0_55 = arith.constant 0 : index
    %74 = vector.load %arg2[%c11, %c0_55] : memref<25x128xf32, #tpu.memory_space<vmem>>, vector<1x128xf32>
    %75 = vector.shape_cast %74 : vector<1x128xf32> to vector<1x1x128xf32>
    %76 = vector.broadcast %75 : vector<1x1x128xf32> to vector<8x16x128xf32>
    %77 = arith.mulf %73, %76 : vector<8x16x128xf32>
    %78 = arith.addf %72, %77 : vector<8x16x128xf32>
    %c8_56 = arith.constant 8 : index
    %c8_57 = arith.constant 8 : index
    %c0_58 = arith.constant 0 : index
    %79 = vector.load %arg9[%c8_56, %c8_57, %c0_58] : memref<26x26x128xf32, #tpu.memory_space<vmem>>, vector<8x16x128xf32>
    %c12 = arith.constant 12 : index
    %c0_59 = arith.constant 0 : index
    %80 = vector.load %arg2[%c12, %c0_59] : memref<25x128xf32, #tpu.memory_space<vmem>>, vector<1x128xf32>
    %81 = vector.shape_cast %80 : vector<1x128xf32> to vector<1x1x128xf32>
    %82 = vector.broadcast %81 : vector<1x1x128xf32> to vector<8x16x128xf32>
    %83 = arith.mulf %79, %82 : vector<8x16x128xf32>
    %84 = arith.addf %78, %83 : vector<8x16x128xf32>
    %c8_60 = arith.constant 8 : index
    %c9_61 = arith.constant 9 : index
    %c0_62 = arith.constant 0 : index
    %85 = vector.load %arg9[%c8_60, %c9_61, %c0_62] : memref<26x26x128xf32, #tpu.memory_space<vmem>>, vector<8x16x128xf32>
    %c13 = arith.constant 13 : index
    %c0_63 = arith.constant 0 : index
    %86 = vector.load %arg2[%c13, %c0_63] : memref<25x128xf32, #tpu.memory_space<vmem>>, vector<1x128xf32>
    %87 = vector.shape_cast %86 : vector<1x128xf32> to vector<1x1x128xf32>
    %88 = vector.broadcast %87 : vector<1x1x128xf32> to vector<8x16x128xf32>
    %89 = arith.mulf %85, %88 : vector<8x16x128xf32>
    %90 = arith.addf %84, %89 : vector<8x16x128xf32>
    %c8_64 = arith.constant 8 : index
    %c10_65 = arith.constant 10 : index
    %c0_66 = arith.constant 0 : index
    %91 = vector.load %arg9[%c8_64, %c10_65, %c0_66] : memref<26x26x128xf32, #tpu.memory_space<vmem>>, vector<8x16x128xf32>
    %c14 = arith.constant 14 : index
    %c0_67 = arith.constant 0 : index
    %92 = vector.load %arg2[%c14, %c0_67] : memref<25x128xf32, #tpu.memory_space<vmem>>, vector<1x128xf32>
    %93 = vector.shape_cast %92 : vector<1x128xf32> to vector<1x1x128xf32>
    %94 = vector.broadcast %93 : vector<1x1x128xf32> to vector<8x16x128xf32>
    %95 = arith.mulf %91, %94 : vector<8x16x128xf32>
    %96 = arith.addf %90, %95 : vector<8x16x128xf32>
    %c9_68 = arith.constant 9 : index
    %c6_69 = arith.constant 6 : index
    %c0_70 = arith.constant 0 : index
    %97 = vector.load %arg9[%c9_68, %c6_69, %c0_70] : memref<26x26x128xf32, #tpu.memory_space<vmem>>, vector<8x16x128xf32>
    %c15 = arith.constant 15 : index
    %c0_71 = arith.constant 0 : index
    %98 = vector.load %arg2[%c15, %c0_71] : memref<25x128xf32, #tpu.memory_space<vmem>>, vector<1x128xf32>
    %99 = vector.shape_cast %98 : vector<1x128xf32> to vector<1x1x128xf32>
    %100 = vector.broadcast %99 : vector<1x1x128xf32> to vector<8x16x128xf32>
    %101 = arith.mulf %97, %100 : vector<8x16x128xf32>
    %102 = arith.addf %96, %101 : vector<8x16x128xf32>
    %c9_72 = arith.constant 9 : index
    %c7_73 = arith.constant 7 : index
    %c0_74 = arith.constant 0 : index
    %103 = vector.load %arg9[%c9_72, %c7_73, %c0_74] : memref<26x26x128xf32, #tpu.memory_space<vmem>>, vector<8x16x128xf32>
    %c16 = arith.constant 16 : index
    %c0_75 = arith.constant 0 : index
    %104 = vector.load %arg2[%c16, %c0_75] : memref<25x128xf32, #tpu.memory_space<vmem>>, vector<1x128xf32>
    %105 = vector.shape_cast %104 : vector<1x128xf32> to vector<1x1x128xf32>
    %106 = vector.broadcast %105 : vector<1x1x128xf32> to vector<8x16x128xf32>
    %107 = arith.mulf %103, %106 : vector<8x16x128xf32>
    %108 = arith.addf %102, %107 : vector<8x16x128xf32>
    %c9_76 = arith.constant 9 : index
    %c8_77 = arith.constant 8 : index
    %c0_78 = arith.constant 0 : index
    %109 = vector.load %arg9[%c9_76, %c8_77, %c0_78] : memref<26x26x128xf32, #tpu.memory_space<vmem>>, vector<8x16x128xf32>
    %c17 = arith.constant 17 : index
    %c0_79 = arith.constant 0 : index
    %110 = vector.load %arg2[%c17, %c0_79] : memref<25x128xf32, #tpu.memory_space<vmem>>, vector<1x128xf32>
    %111 = vector.shape_cast %110 : vector<1x128xf32> to vector<1x1x128xf32>
    %112 = vector.broadcast %111 : vector<1x1x128xf32> to vector<8x16x128xf32>
    %113 = arith.mulf %109, %112 : vector<8x16x128xf32>
    %114 = arith.addf %108, %113 : vector<8x16x128xf32>
    %c9_80 = arith.constant 9 : index
    %c9_81 = arith.constant 9 : index
    %c0_82 = arith.constant 0 : index
    %115 = vector.load %arg9[%c9_80, %c9_81, %c0_82] : memref<26x26x128xf32, #tpu.memory_space<vmem>>, vector<8x16x128xf32>
    %c18 = arith.constant 18 : index
    %c0_83 = arith.constant 0 : index
    %116 = vector.load %arg2[%c18, %c0_83] : memref<25x128xf32, #tpu.memory_space<vmem>>, vector<1x128xf32>
    %117 = vector.shape_cast %116 : vector<1x128xf32> to vector<1x1x128xf32>
    %118 = vector.broadcast %117 : vector<1x1x128xf32> to vector<8x16x128xf32>
    %119 = arith.mulf %115, %118 : vector<8x16x128xf32>
    %120 = arith.addf %114, %119 : vector<8x16x128xf32>
    %c9_84 = arith.constant 9 : index
    %c10_85 = arith.constant 10 : index
    %c0_86 = arith.constant 0 : index
    %121 = vector.load %arg9[%c9_84, %c10_85, %c0_86] : memref<26x26x128xf32, #tpu.memory_space<vmem>>, vector<8x16x128xf32>
    %c19 = arith.constant 19 : index
    %c0_87 = arith.constant 0 : index
    %122 = vector.load %arg2[%c19, %c0_87] : memref<25x128xf32, #tpu.memory_space<vmem>>, vector<1x128xf32>
    %123 = vector.shape_cast %122 : vector<1x128xf32> to vector<1x1x128xf32>
    %124 = vector.broadcast %123 : vector<1x1x128xf32> to vector<8x16x128xf32>
    %125 = arith.mulf %121, %124 : vector<8x16x128xf32>
    %126 = arith.addf %120, %125 : vector<8x16x128xf32>
    %c10_88 = arith.constant 10 : index
    %c6_89 = arith.constant 6 : index
    %c0_90 = arith.constant 0 : index
    %127 = vector.load %arg9[%c10_88, %c6_89, %c0_90] : memref<26x26x128xf32, #tpu.memory_space<vmem>>, vector<8x16x128xf32>
    %c20 = arith.constant 20 : index
    %c0_91 = arith.constant 0 : index
    %128 = vector.load %arg2[%c20, %c0_91] : memref<25x128xf32, #tpu.memory_space<vmem>>, vector<1x128xf32>
    %129 = vector.shape_cast %128 : vector<1x128xf32> to vector<1x1x128xf32>
    %130 = vector.broadcast %129 : vector<1x1x128xf32> to vector<8x16x128xf32>
    %131 = arith.mulf %127, %130 : vector<8x16x128xf32>
    %132 = arith.addf %126, %131 : vector<8x16x128xf32>
    %c10_92 = arith.constant 10 : index
    %c7_93 = arith.constant 7 : index
    %c0_94 = arith.constant 0 : index
    %133 = vector.load %arg9[%c10_92, %c7_93, %c0_94] : memref<26x26x128xf32, #tpu.memory_space<vmem>>, vector<8x16x128xf32>
    %c21 = arith.constant 21 : index
    %c0_95 = arith.constant 0 : index
    %134 = vector.load %arg2[%c21, %c0_95] : memref<25x128xf32, #tpu.memory_space<vmem>>, vector<1x128xf32>
    %135 = vector.shape_cast %134 : vector<1x128xf32> to vector<1x1x128xf32>
    %136 = vector.broadcast %135 : vector<1x1x128xf32> to vector<8x16x128xf32>
    %137 = arith.mulf %133, %136 : vector<8x16x128xf32>
    %138 = arith.addf %132, %137 : vector<8x16x128xf32>
    %c10_96 = arith.constant 10 : index
    %c8_97 = arith.constant 8 : index
    %c0_98 = arith.constant 0 : index
    %139 = vector.load %arg9[%c10_96, %c8_97, %c0_98] : memref<26x26x128xf32, #tpu.memory_space<vmem>>, vector<8x16x128xf32>
    %c22 = arith.constant 22 : index
    %c0_99 = arith.constant 0 : index
    %140 = vector.load %arg2[%c22, %c0_99] : memref<25x128xf32, #tpu.memory_space<vmem>>, vector<1x128xf32>
    %141 = vector.shape_cast %140 : vector<1x128xf32> to vector<1x1x128xf32>
    %142 = vector.broadcast %141 : vector<1x1x128xf32> to vector<8x16x128xf32>
    %143 = arith.mulf %139, %142 : vector<8x16x128xf32>
    %144 = arith.addf %138, %143 : vector<8x16x128xf32>
    %c10_100 = arith.constant 10 : index
    %c9_101 = arith.constant 9 : index
    %c0_102 = arith.constant 0 : index
    %145 = vector.load %arg9[%c10_100, %c9_101, %c0_102] : memref<26x26x128xf32, #tpu.memory_space<vmem>>, vector<8x16x128xf32>
    %c23 = arith.constant 23 : index
    %c0_103 = arith.constant 0 : index
    %146 = vector.load %arg2[%c23, %c0_103] : memref<25x128xf32, #tpu.memory_space<vmem>>, vector<1x128xf32>
    %147 = vector.shape_cast %146 : vector<1x128xf32> to vector<1x1x128xf32>
    %148 = vector.broadcast %147 : vector<1x1x128xf32> to vector<8x16x128xf32>
    %149 = arith.mulf %145, %148 : vector<8x16x128xf32>
    %150 = arith.addf %144, %149 : vector<8x16x128xf32>
    %c10_104 = arith.constant 10 : index
    %c10_105 = arith.constant 10 : index
    %c0_106 = arith.constant 0 : index
    %151 = vector.load %arg9[%c10_104, %c10_105, %c0_106] : memref<26x26x128xf32, #tpu.memory_space<vmem>>, vector<8x16x128xf32>
    %c24 = arith.constant 24 : index
    %c0_107 = arith.constant 0 : index
    %152 = vector.load %arg2[%c24, %c0_107] : memref<25x128xf32, #tpu.memory_space<vmem>>, vector<1x128xf32>
    %153 = vector.shape_cast %152 : vector<1x128xf32> to vector<1x1x128xf32>
    %154 = vector.broadcast %153 : vector<1x1x128xf32> to vector<8x16x128xf32>
    %155 = arith.mulf %151, %154 : vector<8x16x128xf32>
    %156 = arith.addf %150, %155 : vector<8x16x128xf32>
    %c0_108 = arith.constant 0 : index
    %c0_109 = arith.constant 0 : index
    %157 = vector.load %arg3[%c0_108, %c0_109] : memref<1x128xf32, #tpu.memory_space<vmem>>, vector<1x128xf32>
    %158 = vector.shape_cast %157 : vector<1x128xf32> to vector<1x1x128xf32>
    %159 = vector.broadcast %158 : vector<1x1x128xf32> to vector<8x16x128xf32>
    %160 = arith.addf %156, %159 : vector<8x16x128xf32>
    %c8_110 = arith.constant 8 : index
    %c8_111 = arith.constant 8 : index
    %c0_112 = arith.constant 0 : index
    %161 = vector.load %arg10[%c8_110, %c8_111, %c0_112] : memref<30x30x128xf32, #tpu.memory_space<vmem>>, vector<8x16x128xf32>
    tpu.vector_store %arg10[%c8_110, %c8_111, %c0_112], %160 {strides = array<i32>} : memref<30x30x128xf32, #tpu.memory_space<vmem>>, vector<8x16x128xf32>,
    %cst_113 = arith.constant 0.000000e+00 : f32
    %162 = vector.broadcast %cst_113 : f32 to vector<8x16x128xf32>
    %c14_114 = arith.constant 14 : index
    %c6_115 = arith.constant 6 : index
    %c0_116 = arith.constant 0 : index
    %163 = vector.load %arg9[%c14_114, %c6_115, %c0_116] : memref<26x26x128xf32, #tpu.memory_space<vmem>>, vector<8x16x128xf32>
    %c0_117 = arith.constant 0 : index
    %c0_118 = arith.constant 0 : index
    %164 = vector.load %arg2[%c0_117, %c0_118] : memref<25x128xf32, #tpu.memory_space<vmem>>, vector<1x128xf32>
    %165 = vector.shape_cast %164 : vector<1x128xf32> to vector<1x1x128xf32>
    %166 = vector.broadcast %165 : vector<1x1x128xf32> to vector<8x16x128xf32>
    %167 = arith.mulf %163, %166 : vector<8x16x128xf32>
    %168 = arith.addf %162, %167 : vector<8x16x128xf32>
    %c14_119 = arith.constant 14 : index
    %c7_120 = arith.constant 7 : index
    %c0_121 = arith.constant 0 : index
    %169 = vector.load %arg9[%c14_119, %c7_120, %c0_121] : memref<26x26x128xf32, #tpu.memory_space<vmem>>, vector<8x16x128xf32>
    %c1_122 = arith.constant 1 : index
    %c0_123 = arith.constant 0 : index
    %170 = vector.load %arg2[%c1_122, %c0_123] : memref<25x128xf32, #tpu.memory_space<vmem>>, vector<1x128xf32>
    %171 = vector.shape_cast %170 : vector<1x128xf32> to vector<1x1x128xf32>
    %172 = vector.broadcast %171 : vector<1x1x128xf32> to vector<8x16x128xf32>
    %173 = arith.mulf %169, %172 : vector<8x16x128xf32>
    %174 = arith.addf %168, %173 : vector<8x16x128xf32>
    %c14_124 = arith.constant 14 : index
    %c8_125 = arith.constant 8 : index
    %c0_126 = arith.constant 0 : index
    %175 = vector.load %arg9[%c14_124, %c8_125, %c0_126] : memref<26x26x128xf32, #tpu.memory_space<vmem>>, vector<8x16x128xf32>
    %c2_127 = arith.constant 2 : index
    %c0_128 = arith.constant 0 : index
    %176 = vector.load %arg2[%c2_127, %c0_128] : memref<25x128xf32, #tpu.memory_space<vmem>>, vector<1x128xf32>
    %177 = vector.shape_cast %176 : vector<1x128xf32> to vector<1x1x128xf32>
    %178 = vector.broadcast %177 : vector<1x1x128xf32> to vector<8x16x128xf32>
    %179 = arith.mulf %175, %178 : vector<8x16x128xf32>
    %180 = arith.addf %174, %179 : vector<8x16x128xf32>
    %c14_129 = arith.constant 14 : index
    %c9_130 = arith.constant 9 : index
    %c0_131 = arith.constant 0 : index
    %181 = vector.load %arg9[%c14_129, %c9_130, %c0_131] : memref<26x26x128xf32, #tpu.memory_space<vmem>>, vector<8x16x128xf32>
    %c3_132 = arith.constant 3 : index
    %c0_133 = arith.constant 0 : index
    %182 = vector.load %arg2[%c3_132, %c0_133] : memref<25x128xf32, #tpu.memory_space<vmem>>, vector<1x128xf32>
    %183 = vector.shape_cast %182 : vector<1x128xf32> to vector<1x1x128xf32>
    %184 = vector.broadcast %183 : vector<1x1x128xf32> to vector<8x16x128xf32>
    %185 = arith.mulf %181, %184 : vector<8x16x128xf32>
    %186 = arith.addf %180, %185 : vector<8x16x128xf32>
    %c14_134 = arith.constant 14 : index
    %c10_135 = arith.constant 10 : index
    %c0_136 = arith.constant 0 : index
    %187 = vector.load %arg9[%c14_134, %c10_135, %c0_136] : memref<26x26x128xf32, #tpu.memory_space<vmem>>, vector<8x16x128xf32>
    %c4_137 = arith.constant 4 : index
    %c0_138 = arith.constant 0 : index
    %188 = vector.load %arg2[%c4_137, %c0_138] : memref<25x128xf32, #tpu.memory_space<vmem>>, vector<1x128xf32>
    %189 = vector.shape_cast %188 : vector<1x128xf32> to vector<1x1x128xf32>
    %190 = vector.broadcast %189 : vector<1x1x128xf32> to vector<8x16x128xf32>
    %191 = arith.mulf %187, %190 : vector<8x16x128xf32>
    %192 = arith.addf %186, %191 : vector<8x16x128xf32>
    %c15_139 = arith.constant 15 : index
    %c6_140 = arith.constant 6 : index
    %c0_141 = arith.constant 0 : index
    %193 = vector.load %arg9[%c15_139, %c6_140, %c0_141] : memref<26x26x128xf32, #tpu.memory_space<vmem>>, vector<8x16x128xf32>
    %c5_142 = arith.constant 5 : index
    %c0_143 = arith.constant 0 : index
    %194 = vector.load %arg2[%c5_142, %c0_143] : memref<25x128xf32, #tpu.memory_space<vmem>>, vector<1x128xf32>
    %195 = vector.shape_cast %194 : vector<1x128xf32> to vector<1x1x128xf32>
    %196 = vector.broadcast %195 : vector<1x1x128xf32> to vector<8x16x128xf32>
    %197 = arith.mulf %193, %196 : vector<8x16x128xf32>
    %198 = arith.addf %192, %197 : vector<8x16x128xf32>
    %c15_144 = arith.constant 15 : index
    %c7_145 = arith.constant 7 : index
    %c0_146 = arith.constant 0 : index
    %199 = vector.load %arg9[%c15_144, %c7_145, %c0_146] : memref<26x26x128xf32, #tpu.memory_space<vmem>>, vector<8x16x128xf32>
    %c6_147 = arith.constant 6 : index
    %c0_148 = arith.constant 0 : index
    %200 = vector.load %arg2[%c6_147, %c0_148] : memref<25x128xf32, #tpu.memory_space<vmem>>, vector<1x128xf32>
    %201 = vector.shape_cast %200 : vector<1x128xf32> to vector<1x1x128xf32>
    %202 = vector.broadcast %201 : vector<1x1x128xf32> to vector<8x16x128xf32>
    %203 = arith.mulf %199, %202 : vector<8x16x128xf32>
    %204 = arith.addf %198, %203 : vector<8x16x128xf32>
    %c15_149 = arith.constant 15 : index
    %c8_150 = arith.constant 8 : index
    %c0_151 = arith.constant 0 : index
    %205 = vector.load %arg9[%c15_149, %c8_150, %c0_151] : memref<26x26x128xf32, #tpu.memory_space<vmem>>, vector<8x16x128xf32>
    %c7_152 = arith.constant 7 : index
    %c0_153 = arith.constant 0 : index
    %206 = vector.load %arg2[%c7_152, %c0_153] : memref<25x128xf32, #tpu.memory_space<vmem>>, vector<1x128xf32>
    %207 = vector.shape_cast %206 : vector<1x128xf32> to vector<1x1x128xf32>
    %208 = vector.broadcast %207 : vector<1x1x128xf32> to vector<8x16x128xf32>
    %209 = arith.mulf %205, %208 : vector<8x16x128xf32>
    %210 = arith.addf %204, %209 : vector<8x16x128xf32>
    %c15_154 = arith.constant 15 : index
    %c9_155 = arith.constant 9 : index
    %c0_156 = arith.constant 0 : index
    %211 = vector.load %arg9[%c15_154, %c9_155, %c0_156] : memref<26x26x128xf32, #tpu.memory_space<vmem>>, vector<8x16x128xf32>
    %c8_157 = arith.constant 8 : index
    %c0_158 = arith.constant 0 : index
    %212 = vector.load %arg2[%c8_157, %c0_158] : memref<25x128xf32, #tpu.memory_space<vmem>>, vector<1x128xf32>
    %213 = vector.shape_cast %212 : vector<1x128xf32> to vector<1x1x128xf32>
    %214 = vector.broadcast %213 : vector<1x1x128xf32> to vector<8x16x128xf32>
    %215 = arith.mulf %211, %214 : vector<8x16x128xf32>
    %216 = arith.addf %210, %215 : vector<8x16x128xf32>
    %c15_159 = arith.constant 15 : index
    %c10_160 = arith.constant 10 : index
    %c0_161 = arith.constant 0 : index
    %217 = vector.load %arg9[%c15_159, %c10_160, %c0_161] : memref<26x26x128xf32, #tpu.memory_space<vmem>>, vector<8x16x128xf32>
    %c9_162 = arith.constant 9 : index
    %c0_163 = arith.constant 0 : index
    %218 = vector.load %arg2[%c9_162, %c0_163] : memref<25x128xf32, #tpu.memory_space<vmem>>, vector<1x128xf32>
    %219 = vector.shape_cast %218 : vector<1x128xf32> to vector<1x1x128xf32>
    %220 = vector.broadcast %219 : vector<1x1x128xf32> to vector<8x16x128xf32>
    %221 = arith.mulf %217, %220 : vector<8x16x128xf32>
    %222 = arith.addf %216, %221 : vector<8x16x128xf32>
    %c16_164 = arith.constant 16 : index
    %c6_165 = arith.constant 6 : index
    %c0_166 = arith.constant 0 : index
    %223 = vector.load %arg9[%c16_164, %c6_165, %c0_166] : memref<26x26x128xf32, #tpu.memory_space<vmem>>, vector<8x16x128xf32>
    %c10_167 = arith.constant 10 : index
    %c0_168 = arith.constant 0 : index
    %224 = vector.load %arg2[%c10_167, %c0_168] : memref<25x128xf32, #tpu.memory_space<vmem>>, vector<1x128xf32>
    %225 = vector.shape_cast %224 : vector<1x128xf32> to vector<1x1x128xf32>
    %226 = vector.broadcast %225 : vector<1x1x128xf32> to vector<8x16x128xf32>
    %227 = arith.mulf %223, %226 : vector<8x16x128xf32>
    %228 = arith.addf %222, %227 : vector<8x16x128xf32>
    %c16_169 = arith.constant 16 : index
    %c7_170 = arith.constant 7 : index
    %c0_171 = arith.constant 0 : index
    %229 = vector.load %arg9[%c16_169, %c7_170, %c0_171] : memref<26x26x128xf32, #tpu.memory_space<vmem>>, vector<8x16x128xf32>
    %c11_172 = arith.constant 11 : index
    %c0_173 = arith.constant 0 : index
    %230 = vector.load %arg2[%c11_172, %c0_173] : memref<25x128xf32, #tpu.memory_space<vmem>>, vector<1x128xf32>
    %231 = vector.shape_cast %230 : vector<1x128xf32> to vector<1x1x128xf32>
    %232 = vector.broadcast %231 : vector<1x1x128xf32> to vector<8x16x128xf32>
    %233 = arith.mulf %229, %232 : vector<8x16x128xf32>
    %234 = arith.addf %228, %233 : vector<8x16x128xf32>
    %c16_174 = arith.constant 16 : index
    %c8_175 = arith.constant 8 : index
    %c0_176 = arith.constant 0 : index
    %235 = vector.load %arg9[%c16_174, %c8_175, %c0_176] : memref<26x26x128xf32, #tpu.memory_space<vmem>>, vector<8x16x128xf32>
    %c12_177 = arith.constant 12 : index
    %c0_178 = arith.constant 0 : index
    %236 = vector.load %arg2[%c12_177, %c0_178] : memref<25x128xf32, #tpu.memory_space<vmem>>, vector<1x128xf32>
    %237 = vector.shape_cast %236 : vector<1x128xf32> to vector<1x1x128xf32>
    %238 = vector.broadcast %237 : vector<1x1x128xf32> to vector<8x16x128xf32>
    %239 = arith.mulf %235, %238 : vector<8x16x128xf32>
    %240 = arith.addf %234, %239 : vector<8x16x128xf32>
    %c16_179 = arith.constant 16 : index
    %c9_180 = arith.constant 9 : index
    %c0_181 = arith.constant 0 : index
    %241 = vector.load %arg9[%c16_179, %c9_180, %c0_181] : memref<26x26x128xf32, #tpu.memory_space<vmem>>, vector<8x16x128xf32>
    %c13_182 = arith.constant 13 : index
    %c0_183 = arith.constant 0 : index
    %242 = vector.load %arg2[%c13_182, %c0_183] : memref<25x128xf32, #tpu.memory_space<vmem>>, vector<1x128xf32>
    %243 = vector.shape_cast %242 : vector<1x128xf32> to vector<1x1x128xf32>
    %244 = vector.broadcast %243 : vector<1x1x128xf32> to vector<8x16x128xf32>
    %245 = arith.mulf %241, %244 : vector<8x16x128xf32>
    %246 = arith.addf %240, %245 : vector<8x16x128xf32>
    %c16_184 = arith.constant 16 : index
    %c10_185 = arith.constant 10 : index
    %c0_186 = arith.constant 0 : index
    %247 = vector.load %arg9[%c16_184, %c10_185, %c0_186] : memref<26x26x128xf32, #tpu.memory_space<vmem>>, vector<8x16x128xf32>
    %c14_187 = arith.constant 14 : index
    %c0_188 = arith.constant 0 : index
    %248 = vector.load %arg2[%c14_187, %c0_188] : memref<25x128xf32, #tpu.memory_space<vmem>>, vector<1x128xf32>
    %249 = vector.shape_cast %248 : vector<1x128xf32> to vector<1x1x128xf32>
    %250 = vector.broadcast %249 : vector<1x1x128xf32> to vector<8x16x128xf32>
    %251 = arith.mulf %247, %250 : vector<8x16x128xf32>
    %252 = arith.addf %246, %251 : vector<8x16x128xf32>
    %c17_189 = arith.constant 17 : index
    %c6_190 = arith.constant 6 : index
    %c0_191 = arith.constant 0 : index
    %253 = vector.load %arg9[%c17_189, %c6_190, %c0_191] : memref<26x26x128xf32, #tpu.memory_space<vmem>>, vector<8x16x128xf32>
    %c15_192 = arith.constant 15 : index
    %c0_193 = arith.constant 0 : index
    %254 = vector.load %arg2[%c15_192, %c0_193] : memref<25x128xf32, #tpu.memory_space<vmem>>, vector<1x128xf32>
    %255 = vector.shape_cast %254 : vector<1x128xf32> to vector<1x1x128xf32>
    %256 = vector.broadcast %255 : vector<1x1x128xf32> to vector<8x16x128xf32>
    %257 = arith.mulf %253, %256 : vector<8x16x128xf32>
    %258 = arith.addf %252, %257 : vector<8x16x128xf32>
    %c17_194 = arith.constant 17 : index
    %c7_195 = arith.constant 7 : index
    %c0_196 = arith.constant 0 : index
    %259 = vector.load %arg9[%c17_194, %c7_195, %c0_196] : memref<26x26x128xf32, #tpu.memory_space<vmem>>, vector<8x16x128xf32>
    %c16_197 = arith.constant 16 : index
    %c0_198 = arith.constant 0 : index
    %260 = vector.load %arg2[%c16_197, %c0_198] : memref<25x128xf32, #tpu.memory_space<vmem>>, vector<1x128xf32>
    %261 = vector.shape_cast %260 : vector<1x128xf32> to vector<1x1x128xf32>
    %262 = vector.broadcast %261 : vector<1x1x128xf32> to vector<8x16x128xf32>
    %263 = arith.mulf %259, %262 : vector<8x16x128xf32>
    %264 = arith.addf %258, %263 : vector<8x16x128xf32>
    %c17_199 = arith.constant 17 : index
    %c8_200 = arith.constant 8 : index
    %c0_201 = arith.constant 0 : index
    %265 = vector.load %arg9[%c17_199, %c8_200, %c0_201] : memref<26x26x128xf32, #tpu.memory_space<vmem>>, vector<8x16x128xf32>
    %c17_202 = arith.constant 17 : index
    %c0_203 = arith.constant 0 : index
    %266 = vector.load %arg2[%c17_202, %c0_203] : memref<25x128xf32, #tpu.memory_space<vmem>>, vector<1x128xf32>
    %267 = vector.shape_cast %266 : vector<1x128xf32> to vector<1x1x128xf32>
    %268 = vector.broadcast %267 : vector<1x1x128xf32> to vector<8x16x128xf32>
    %269 = arith.mulf %265, %268 : vector<8x16x128xf32>
    %270 = arith.addf %264, %269 : vector<8x16x128xf32>
    %c17_204 = arith.constant 17 : index
    %c9_205 = arith.constant 9 : index
    %c0_206 = arith.constant 0 : index
    %271 = vector.load %arg9[%c17_204, %c9_205, %c0_206] : memref<26x26x128xf32, #tpu.memory_space<vmem>>, vector<8x16x128xf32>
    %c18_207 = arith.constant 18 : index
    %c0_208 = arith.constant 0 : index
    %272 = vector.load %arg2[%c18_207, %c0_208] : memref<25x128xf32, #tpu.memory_space<vmem>>, vector<1x128xf32>
    %273 = vector.shape_cast %272 : vector<1x128xf32> to vector<1x1x128xf32>
    %274 = vector.broadcast %273 : vector<1x1x128xf32> to vector<8x16x128xf32>
    %275 = arith.mulf %271, %274 : vector<8x16x128xf32>
    %276 = arith.addf %270, %275 : vector<8x16x128xf32>
    %c17_209 = arith.constant 17 : index
    %c10_210 = arith.constant 10 : index
    %c0_211 = arith.constant 0 : index
    %277 = vector.load %arg9[%c17_209, %c10_210, %c0_211] : memref<26x26x128xf32, #tpu.memory_space<vmem>>, vector<8x16x128xf32>
    %c19_212 = arith.constant 19 : index
    %c0_213 = arith.constant 0 : index
    %278 = vector.load %arg2[%c19_212, %c0_213] : memref<25x128xf32, #tpu.memory_space<vmem>>, vector<1x128xf32>
    %279 = vector.shape_cast %278 : vector<1x128xf32> to vector<1x1x128xf32>
    %280 = vector.broadcast %279 : vector<1x1x128xf32> to vector<8x16x128xf32>
    %281 = arith.mulf %277, %280 : vector<8x16x128xf32>
    %282 = arith.addf %276, %281 : vector<8x16x128xf32>
    %c18_214 = arith.constant 18 : index
    %c6_215 = arith.constant 6 : index
    %c0_216 = arith.constant 0 : index
    %283 = vector.load %arg9[%c18_214, %c6_215, %c0_216] : memref<26x26x128xf32, #tpu.memory_space<vmem>>, vector<8x16x128xf32>
    %c20_217 = arith.constant 20 : index
    %c0_218 = arith.constant 0 : index
    %284 = vector.load %arg2[%c20_217, %c0_218] : memref<25x128xf32, #tpu.memory_space<vmem>>, vector<1x128xf32>
    %285 = vector.shape_cast %284 : vector<1x128xf32> to vector<1x1x128xf32>
    %286 = vector.broadcast %285 : vector<1x1x128xf32> to vector<8x16x128xf32>
    %287 = arith.mulf %283, %286 : vector<8x16x128xf32>
    %288 = arith.addf %282, %287 : vector<8x16x128xf32>
    %c18_219 = arith.constant 18 : index
    %c7_220 = arith.constant 7 : index
    %c0_221 = arith.constant 0 : index
    %289 = vector.load %arg9[%c18_219, %c7_220, %c0_221] : memref<26x26x128xf32, #tpu.memory_space<vmem>>, vector<8x16x128xf32>
    %c21_222 = arith.constant 21 : index
    %c0_223 = arith.constant 0 : index
    %290 = vector.load %arg2[%c21_222, %c0_223] : memref<25x128xf32, #tpu.memory_space<vmem>>, vector<1x128xf32>
    %291 = vector.shape_cast %290 : vector<1x128xf32> to vector<1x1x128xf32>
    %292 = vector.broadcast %291 : vector<1x1x128xf32> to vector<8x16x128xf32>
    %293 = arith.mulf %289, %292 : vector<8x16x128xf32>
    %294 = arith.addf %288, %293 : vector<8x16x128xf32>
    %c18_224 = arith.constant 18 : index
    %c8_225 = arith.constant 8 : index
    %c0_226 = arith.constant 0 : index
    %295 = vector.load %arg9[%c18_224, %c8_225, %c0_226] : memref<26x26x128xf32, #tpu.memory_space<vmem>>, vector<8x16x128xf32>
    %c22_227 = arith.constant 22 : index
    %c0_228 = arith.constant 0 : index
    %296 = vector.load %arg2[%c22_227, %c0_228] : memref<25x128xf32, #tpu.memory_space<vmem>>, vector<1x128xf32>
    %297 = vector.shape_cast %296 : vector<1x128xf32> to vector<1x1x128xf32>
    %298 = vector.broadcast %297 : vector<1x1x128xf32> to vector<8x16x128xf32>
    %299 = arith.mulf %295, %298 : vector<8x16x128xf32>
    %300 = arith.addf %294, %299 : vector<8x16x128xf32>
    %c18_229 = arith.constant 18 : index
    %c9_230 = arith.constant 9 : index
    %c0_231 = arith.constant 0 : index
    %301 = vector.load %arg9[%c18_229, %c9_230, %c0_231] : memref<26x26x128xf32, #tpu.memory_space<vmem>>, vector<8x16x128xf32>
    %c23_232 = arith.constant 23 : index
    %c0_233 = arith.constant 0 : index
    %302 = vector.load %arg2[%c23_232, %c0_233] : memref<25x128xf32, #tpu.memory_space<vmem>>, vector<1x128xf32>
    %303 = vector.shape_cast %302 : vector<1x128xf32> to vector<1x1x128xf32>
    %304 = vector.broadcast %303 : vector<1x1x128xf32> to vector<8x16x128xf32>
    %305 = arith.mulf %301, %304 : vector<8x16x128xf32>
    %306 = arith.addf %300, %305 : vector<8x16x128xf32>
    %c18_234 = arith.constant 18 : index
    %c10_235 = arith.constant 10 : index
    %c0_236 = arith.constant 0 : index
    %307 = vector.load %arg9[%c18_234, %c10_235, %c0_236] : memref<26x26x128xf32, #tpu.memory_space<vmem>>, vector<8x16x128xf32>
    %c24_237 = arith.constant 24 : index
    %c0_238 = arith.constant 0 : index
    %308 = vector.load %arg2[%c24_237, %c0_238] : memref<25x128xf32, #tpu.memory_space<vmem>>, vector<1x128xf32>
    %309 = vector.shape_cast %308 : vector<1x128xf32> to vector<1x1x128xf32>
    %310 = vector.broadcast %309 : vector<1x1x128xf32> to vector<8x16x128xf32>
    %311 = arith.mulf %307, %310 : vector<8x16x128xf32>
    %312 = arith.addf %306, %311 : vector<8x16x128xf32>
    %c0_239 = arith.constant 0 : index
    %c0_240 = arith.constant 0 : index
    %313 = vector.load %arg3[%c0_239, %c0_240] : memref<1x128xf32, #tpu.memory_space<vmem>>, vector<1x128xf32>
    %314 = vector.shape_cast %313 : vector<1x128xf32> to vector<1x1x128xf32>
    %315 = vector.broadcast %314 : vector<1x1x128xf32> to vector<8x16x128xf32>
    %316 = arith.addf %312, %315 : vector<8x16x128xf32>
    %c16_241 = arith.constant 16 : index
    %c8_242 = arith.constant 8 : index
    %c0_243 = arith.constant 0 : index
    %317 = vector.load %arg10[%c16_241, %c8_242, %c0_243] : memref<30x30x128xf32, #tpu.memory_space<vmem>>, vector<8x16x128xf32>
    tpu.vector_store %arg10[%c16_241, %c8_242, %c0_243], %316 {strides = array<i32>} : memref<30x30x128xf32, #tpu.memory_space<vmem>>, vector<8x16x128xf32>,
    %cst_244 = arith.constant 0.000000e+00 : f32
    %318 = vector.broadcast %cst_244 : f32 to vector<8x16x128xf32>
    %c2_245 = arith.constant 2 : index
    %c2_246 = arith.constant 2 : index
    %c0_247 = arith.constant 0 : index
    %319 = vector.load %arg10[%c2_245, %c2_246, %c0_247] : memref<30x30x128xf32, #tpu.memory_space<vmem>>, vector<8x16x128xf32>
    %c0_248 = arith.constant 0 : index
    %c0_249 = arith.constant 0 : index
    %320 = vector.load %arg4[%c0_248, %c0_249] : memref<25x128xf32, #tpu.memory_space<vmem>>, vector<1x128xf32>
    %321 = vector.shape_cast %320 : vector<1x128xf32> to vector<1x1x128xf32>
    %322 = vector.broadcast %321 : vector<1x1x128xf32> to vector<8x16x128xf32>
    %323 = arith.mulf %319, %322 : vector<8x16x128xf32>
    %324 = arith.addf %318, %323 : vector<8x16x128xf32>
    %c2_250 = arith.constant 2 : index
    %c5_251 = arith.constant 5 : index
    %c0_252 = arith.constant 0 : index
    %325 = vector.load %arg10[%c2_250, %c5_251, %c0_252] : memref<30x30x128xf32, #tpu.memory_space<vmem>>, vector<8x16x128xf32>
    %c1_253 = arith.constant 1 : index
    %c0_254 = arith.constant 0 : index
    %326 = vector.load %arg4[%c1_253, %c0_254] : memref<25x128xf32, #tpu.memory_space<vmem>>, vector<1x128xf32>
    %327 = vector.shape_cast %326 : vector<1x128xf32> to vector<1x1x128xf32>
    %328 = vector.broadcast %327 : vector<1x1x128xf32> to vector<8x16x128xf32>
    %329 = arith.mulf %325, %328 : vector<8x16x128xf32>
    %330 = arith.addf %324, %329 : vector<8x16x128xf32>
    %c2_255 = arith.constant 2 : index
    %c8_256 = arith.constant 8 : index
    %c0_257 = arith.constant 0 : index
    %331 = vector.load %arg10[%c2_255, %c8_256, %c0_257] : memref<30x30x128xf32, #tpu.memory_space<vmem>>, vector<8x16x128xf32>
    %c2_258 = arith.constant 2 : index
    %c0_259 = arith.constant 0 : index
    %332 = vector.load %arg4[%c2_258, %c0_259] : memref<25x128xf32, #tpu.memory_space<vmem>>, vector<1x128xf32>
    %333 = vector.shape_cast %332 : vector<1x128xf32> to vector<1x1x128xf32>
    %334 = vector.broadcast %333 : vector<1x1x128xf32> to vector<8x16x128xf32>
    %335 = arith.mulf %331, %334 : vector<8x16x128xf32>
    %336 = arith.addf %330, %335 : vector<8x16x128xf32>
    %c2_260 = arith.constant 2 : index
    %c11_261 = arith.constant 11 : index
    %c0_262 = arith.constant 0 : index
    %337 = vector.load %arg10[%c2_260, %c11_261, %c0_262] : memref<30x30x128xf32, #tpu.memory_space<vmem>>, vector<8x16x128xf32>
    %c3_263 = arith.constant 3 : index
    %c0_264 = arith.constant 0 : index
    %338 = vector.load %arg4[%c3_263, %c0_264] : memref<25x128xf32, #tpu.memory_space<vmem>>, vector<1x128xf32>
    %339 = vector.shape_cast %338 : vector<1x128xf32> to vector<1x1x128xf32>
    %340 = vector.broadcast %339 : vector<1x1x128xf32> to vector<8x16x128xf32>
    %341 = arith.mulf %337, %340 : vector<8x16x128xf32>
    %342 = arith.addf %336, %341 : vector<8x16x128xf32>
    %c2_265 = arith.constant 2 : index
    %c14_266 = arith.constant 14 : index
    %c0_267 = arith.constant 0 : index
    %343 = vector.load %arg10[%c2_265, %c14_266, %c0_267] : memref<30x30x128xf32, #tpu.memory_space<vmem>>, vector<8x16x128xf32>
    %c4_268 = arith.constant 4 : index
    %c0_269 = arith.constant 0 : index
    %344 = vector.load %arg4[%c4_268, %c0_269] : memref<25x128xf32, #tpu.memory_space<vmem>>, vector<1x128xf32>
    %345 = vector.shape_cast %344 : vector<1x128xf32> to vector<1x1x128xf32>
    %346 = vector.broadcast %345 : vector<1x1x128xf32> to vector<8x16x128xf32>
    %347 = arith.mulf %343, %346 : vector<8x16x128xf32>
    %348 = arith.addf %342, %347 : vector<8x16x128xf32>
    %c5_270 = arith.constant 5 : index
    %c2_271 = arith.constant 2 : index
    %c0_272 = arith.constant 0 : index
    %349 = vector.load %arg10[%c5_270, %c2_271, %c0_272] : memref<30x30x128xf32, #tpu.memory_space<vmem>>, vector<8x16x128xf32>
    %c5_273 = arith.constant 5 : index
    %c0_274 = arith.constant 0 : index
    %350 = vector.load %arg4[%c5_273, %c0_274] : memref<25x128xf32, #tpu.memory_space<vmem>>, vector<1x128xf32>
    %351 = vector.shape_cast %350 : vector<1x128xf32> to vector<1x1x128xf32>
    %352 = vector.broadcast %351 : vector<1x1x128xf32> to vector<8x16x128xf32>
    %353 = arith.mulf %349, %352 : vector<8x16x128xf32>
    %354 = arith.addf %348, %353 : vector<8x16x128xf32>
    %c5_275 = arith.constant 5 : index
    %c5_276 = arith.constant 5 : index
    %c0_277 = arith.constant 0 : index
    %355 = vector.load %arg10[%c5_275, %c5_276, %c0_277] : memref<30x30x128xf32, #tpu.memory_space<vmem>>, vector<8x16x128xf32>
    %c6_278 = arith.constant 6 : index
    %c0_279 = arith.constant 0 : index
    %356 = vector.load %arg4[%c6_278, %c0_279] : memref<25x128xf32, #tpu.memory_space<vmem>>, vector<1x128xf32>
    %357 = vector.shape_cast %356 : vector<1x128xf32> to vector<1x1x128xf32>
    %358 = vector.broadcast %357 : vector<1x1x128xf32> to vector<8x16x128xf32>
    %359 = arith.mulf %355, %358 : vector<8x16x128xf32>
    %360 = arith.addf %354, %359 : vector<8x16x128xf32>
    %c5_280 = arith.constant 5 : index
    %c8_281 = arith.constant 8 : index
    %c0_282 = arith.constant 0 : index
    %361 = vector.load %arg10[%c5_280, %c8_281, %c0_282] : memref<30x30x128xf32, #tpu.memory_space<vmem>>, vector<8x16x128xf32>
    %c7_283 = arith.constant 7 : index
    %c0_284 = arith.constant 0 : index
    %362 = vector.load %arg4[%c7_283, %c0_284] : memref<25x128xf32, #tpu.memory_space<vmem>>, vector<1x128xf32>
    %363 = vector.shape_cast %362 : vector<1x128xf32> to vector<1x1x128xf32>
    %364 = vector.broadcast %363 : vector<1x1x128xf32> to vector<8x16x128xf32>
    %365 = arith.mulf %361, %364 : vector<8x16x128xf32>
    %366 = arith.addf %360, %365 : vector<8x16x128xf32>
    %c5_285 = arith.constant 5 : index
    %c11_286 = arith.constant 11 : index
    %c0_287 = arith.constant 0 : index
    %367 = vector.load %arg10[%c5_285, %c11_286, %c0_287] : memref<30x30x128xf32, #tpu.memory_space<vmem>>, vector<8x16x128xf32>
    %c8_288 = arith.constant 8 : index
    %c0_289 = arith.constant 0 : index
    %368 = vector.load %arg4[%c8_288, %c0_289] : memref<25x128xf32, #tpu.memory_space<vmem>>, vector<1x128xf32>
    %369 = vector.shape_cast %368 : vector<1x128xf32> to vector<1x1x128xf32>
    %370 = vector.broadcast %369 : vector<1x1x128xf32> to vector<8x16x128xf32>
    %371 = arith.mulf %367, %370 : vector<8x16x128xf32>
    %372 = arith.addf %366, %371 : vector<8x16x128xf32>
    %c5_290 = arith.constant 5 : index
    %c14_291 = arith.constant 14 : index
    %c0_292 = arith.constant 0 : index
    %373 = vector.load %arg10[%c5_290, %c14_291, %c0_292] : memref<30x30x128xf32, #tpu.memory_space<vmem>>, vector<8x16x128xf32>
    %c9_293 = arith.constant 9 : index
    %c0_294 = arith.constant 0 : index
    %374 = vector.load %arg4[%c9_293, %c0_294] : memref<25x128xf32, #tpu.memory_space<vmem>>, vector<1x128xf32>
    %375 = vector.shape_cast %374 : vector<1x128xf32> to vector<1x1x128xf32>
    %376 = vector.broadcast %375 : vector<1x1x128xf32> to vector<8x16x128xf32>
    %377 = arith.mulf %373, %376 : vector<8x16x128xf32>
    %378 = arith.addf %372, %377 : vector<8x16x128xf32>
    %c8_295 = arith.constant 8 : index
    %c2_296 = arith.constant 2 : index
    %c0_297 = arith.constant 0 : index
    %379 = vector.load %arg10[%c8_295, %c2_296, %c0_297] : memref<30x30x128xf32, #tpu.memory_space<vmem>>, vector<8x16x128xf32>
    %c10_298 = arith.constant 10 : index
    %c0_299 = arith.constant 0 : index
    %380 = vector.load %arg4[%c10_298, %c0_299] : memref<25x128xf32, #tpu.memory_space<vmem>>, vector<1x128xf32>
    %381 = vector.shape_cast %380 : vector<1x128xf32> to vector<1x1x128xf32>
    %382 = vector.broadcast %381 : vector<1x1x128xf32> to vector<8x16x128xf32>
    %383 = arith.mulf %379, %382 : vector<8x16x128xf32>
    %384 = arith.addf %378, %383 : vector<8x16x128xf32>
    %c8_300 = arith.constant 8 : index
    %c5_301 = arith.constant 5 : index
    %c0_302 = arith.constant 0 : index
    %385 = vector.load %arg10[%c8_300, %c5_301, %c0_302] : memref<30x30x128xf32, #tpu.memory_space<vmem>>, vector<8x16x128xf32>
    %c11_303 = arith.constant 11 : index
    %c0_304 = arith.constant 0 : index
    %386 = vector.load %arg4[%c11_303, %c0_304] : memref<25x128xf32, #tpu.memory_space<vmem>>, vector<1x128xf32>
    %387 = vector.shape_cast %386 : vector<1x128xf32> to vector<1x1x128xf32>
    %388 = vector.broadcast %387 : vector<1x1x128xf32> to vector<8x16x128xf32>
    %389 = arith.mulf %385, %388 : vector<8x16x128xf32>
    %390 = arith.addf %384, %389 : vector<8x16x128xf32>
    %c8_305 = arith.constant 8 : index
    %c8_306 = arith.constant 8 : index
    %c0_307 = arith.constant 0 : index
    %391 = vector.load %arg10[%c8_305, %c8_306, %c0_307] : memref<30x30x128xf32, #tpu.memory_space<vmem>>, vector<8x16x128xf32>
    %c12_308 = arith.constant 12 : index
    %c0_309 = arith.constant 0 : index
    %392 = vector.load %arg4[%c12_308, %c0_309] : memref<25x128xf32, #tpu.memory_space<vmem>>, vector<1x128xf32>
    %393 = vector.shape_cast %392 : vector<1x128xf32> to vector<1x1x128xf32>
    %394 = vector.broadcast %393 : vector<1x1x128xf32> to vector<8x16x128xf32>
    %395 = arith.mulf %391, %394 : vector<8x16x128xf32>
    %396 = arith.addf %390, %395 : vector<8x16x128xf32>
    %c8_310 = arith.constant 8 : index
    %c11_311 = arith.constant 11 : index
    %c0_312 = arith.constant 0 : index
    %397 = vector.load %arg10[%c8_310, %c11_311, %c0_312] : memref<30x30x128xf32, #tpu.memory_space<vmem>>, vector<8x16x128xf32>
    %c13_313 = arith.constant 13 : index
    %c0_314 = arith.constant 0 : index
    %398 = vector.load %arg4[%c13_313, %c0_314] : memref<25x128xf32, #tpu.memory_space<vmem>>, vector<1x128xf32>
    %399 = vector.shape_cast %398 : vector<1x128xf32> to vector<1x1x128xf32>
    %400 = vector.broadcast %399 : vector<1x1x128xf32> to vector<8x16x128xf32>
    %401 = arith.mulf %397, %400 : vector<8x16x128xf32>
    %402 = arith.addf %396, %401 : vector<8x16x128xf32>
    %c8_315 = arith.constant 8 : index
    %c14_316 = arith.constant 14 : index
    %c0_317 = arith.constant 0 : index
    %403 = vector.load %arg10[%c8_315, %c14_316, %c0_317] : memref<30x30x128xf32, #tpu.memory_space<vmem>>, vector<8x16x128xf32>
    %c14_318 = arith.constant 14 : index
    %c0_319 = arith.constant 0 : index
    %404 = vector.load %arg4[%c14_318, %c0_319] : memref<25x128xf32, #tpu.memory_space<vmem>>, vector<1x128xf32>
    %405 = vector.shape_cast %404 : vector<1x128xf32> to vector<1x1x128xf32>
    %406 = vector.broadcast %405 : vector<1x1x128xf32> to vector<8x16x128xf32>
    %407 = arith.mulf %403, %406 : vector<8x16x128xf32>
    %408 = arith.addf %402, %407 : vector<8x16x128xf32>
    %c11_320 = arith.constant 11 : index
    %c2_321 = arith.constant 2 : index
    %c0_322 = arith.constant 0 : index
    %409 = vector.load %arg10[%c11_320, %c2_321, %c0_322] : memref<30x30x128xf32, #tpu.memory_space<vmem>>, vector<8x16x128xf32>
    %c15_323 = arith.constant 15 : index
    %c0_324 = arith.constant 0 : index
    %410 = vector.load %arg4[%c15_323, %c0_324] : memref<25x128xf32, #tpu.memory_space<vmem>>, vector<1x128xf32>
    %411 = vector.shape_cast %410 : vector<1x128xf32> to vector<1x1x128xf32>
    %412 = vector.broadcast %411 : vector<1x1x128xf32> to vector<8x16x128xf32>
    %413 = arith.mulf %409, %412 : vector<8x16x128xf32>
    %414 = arith.addf %408, %413 : vector<8x16x128xf32>
    %c11_325 = arith.constant 11 : index
    %c5_326 = arith.constant 5 : index
    %c0_327 = arith.constant 0 : index
    %415 = vector.load %arg10[%c11_325, %c5_326, %c0_327] : memref<30x30x128xf32, #tpu.memory_space<vmem>>, vector<8x16x128xf32>
    %c16_328 = arith.constant 16 : index
    %c0_329 = arith.constant 0 : index
    %416 = vector.load %arg4[%c16_328, %c0_329] : memref<25x128xf32, #tpu.memory_space<vmem>>, vector<1x128xf32>
    %417 = vector.shape_cast %416 : vector<1x128xf32> to vector<1x1x128xf32>
    %418 = vector.broadcast %417 : vector<1x1x128xf32> to vector<8x16x128xf32>
    %419 = arith.mulf %415, %418 : vector<8x16x128xf32>
    %420 = arith.addf %414, %419 : vector<8x16x128xf32>
    %c11_330 = arith.constant 11 : index
    %c8_331 = arith.constant 8 : index
    %c0_332 = arith.constant 0 : index
    %421 = vector.load %arg10[%c11_330, %c8_331, %c0_332] : memref<30x30x128xf32, #tpu.memory_space<vmem>>, vector<8x16x128xf32>
    %c17_333 = arith.constant 17 : index
    %c0_334 = arith.constant 0 : index
    %422 = vector.load %arg4[%c17_333, %c0_334] : memref<25x128xf32, #tpu.memory_space<vmem>>, vector<1x128xf32>
    %423 = vector.shape_cast %422 : vector<1x128xf32> to vector<1x1x128xf32>
    %424 = vector.broadcast %423 : vector<1x1x128xf32> to vector<8x16x128xf32>
    %425 = arith.mulf %421, %424 : vector<8x16x128xf32>
    %426 = arith.addf %420, %425 : vector<8x16x128xf32>
    %c11_335 = arith.constant 11 : index
    %c11_336 = arith.constant 11 : index
    %c0_337 = arith.constant 0 : index
    %427 = vector.load %arg10[%c11_335, %c11_336, %c0_337] : memref<30x30x128xf32, #tpu.memory_space<vmem>>, vector<8x16x128xf32>
    %c18_338 = arith.constant 18 : index
    %c0_339 = arith.constant 0 : index
    %428 = vector.load %arg4[%c18_338, %c0_339] : memref<25x128xf32, #tpu.memory_space<vmem>>, vector<1x128xf32>
    %429 = vector.shape_cast %428 : vector<1x128xf32> to vector<1x1x128xf32>
    %430 = vector.broadcast %429 : vector<1x1x128xf32> to vector<8x16x128xf32>
    %431 = arith.mulf %427, %430 : vector<8x16x128xf32>
    %432 = arith.addf %426, %431 : vector<8x16x128xf32>
    %c11_340 = arith.constant 11 : index
    %c14_341 = arith.constant 14 : index
    %c0_342 = arith.constant 0 : index
    %433 = vector.load %arg10[%c11_340, %c14_341, %c0_342] : memref<30x30x128xf32, #tpu.memory_space<vmem>>, vector<8x16x128xf32>
    %c19_343 = arith.constant 19 : index
    %c0_344 = arith.constant 0 : index
    %434 = vector.load %arg4[%c19_343, %c0_344] : memref<25x128xf32, #tpu.memory_space<vmem>>, vector<1x128xf32>
    %435 = vector.shape_cast %434 : vector<1x128xf32> to vector<1x1x128xf32>
    %436 = vector.broadcast %435 : vector<1x1x128xf32> to vector<8x16x128xf32>
    %437 = arith.mulf %433, %436 : vector<8x16x128xf32>
    %438 = arith.addf %432, %437 : vector<8x16x128xf32>
    %c14_345 = arith.constant 14 : index
    %c2_346 = arith.constant 2 : index
    %c0_347 = arith.constant 0 : index
    %439 = vector.load %arg10[%c14_345, %c2_346, %c0_347] : memref<30x30x128xf32, #tpu.memory_space<vmem>>, vector<8x16x128xf32>
    %c20_348 = arith.constant 20 : index
    %c0_349 = arith.constant 0 : index
    %440 = vector.load %arg4[%c20_348, %c0_349] : memref<25x128xf32, #tpu.memory_space<vmem>>, vector<1x128xf32>
    %441 = vector.shape_cast %440 : vector<1x128xf32> to vector<1x1x128xf32>
    %442 = vector.broadcast %441 : vector<1x1x128xf32> to vector<8x16x128xf32>
    %443 = arith.mulf %439, %442 : vector<8x16x128xf32>
    %444 = arith.addf %438, %443 : vector<8x16x128xf32>
    %c14_350 = arith.constant 14 : index
    %c5_351 = arith.constant 5 : index
    %c0_352 = arith.constant 0 : index
    %445 = vector.load %arg10[%c14_350, %c5_351, %c0_352] : memref<30x30x128xf32, #tpu.memory_space<vmem>>, vector<8x16x128xf32>
    %c21_353 = arith.constant 21 : index
    %c0_354 = arith.constant 0 : index
    %446 = vector.load %arg4[%c21_353, %c0_354] : memref<25x128xf32, #tpu.memory_space<vmem>>, vector<1x128xf32>
    %447 = vector.shape_cast %446 : vector<1x128xf32> to vector<1x1x128xf32>
    %448 = vector.broadcast %447 : vector<1x1x128xf32> to vector<8x16x128xf32>
    %449 = arith.mulf %445, %448 : vector<8x16x128xf32>
    %450 = arith.addf %444, %449 : vector<8x16x128xf32>
    %c14_355 = arith.constant 14 : index
    %c8_356 = arith.constant 8 : index
    %c0_357 = arith.constant 0 : index
    %451 = vector.load %arg10[%c14_355, %c8_356, %c0_357] : memref<30x30x128xf32, #tpu.memory_space<vmem>>, vector<8x16x128xf32>
    %c22_358 = arith.constant 22 : index
    %c0_359 = arith.constant 0 : index
    %452 = vector.load %arg4[%c22_358, %c0_359] : memref<25x128xf32, #tpu.memory_space<vmem>>, vector<1x128xf32>
    %453 = vector.shape_cast %452 : vector<1x128xf32> to vector<1x1x128xf32>
    %454 = vector.broadcast %453 : vector<1x1x128xf32> to vector<8x16x128xf32>
    %455 = arith.mulf %451, %454 : vector<8x16x128xf32>
    %456 = arith.addf %450, %455 : vector<8x16x128xf32>
    %c14_360 = arith.constant 14 : index
    %c11_361 = arith.constant 11 : index
    %c0_362 = arith.constant 0 : index
    %457 = vector.load %arg10[%c14_360, %c11_361, %c0_362] : memref<30x30x128xf32, #tpu.memory_space<vmem>>, vector<8x16x128xf32>
    %c23_363 = arith.constant 23 : index
    %c0_364 = arith.constant 0 : index
    %458 = vector.load %arg4[%c23_363, %c0_364] : memref<25x128xf32, #tpu.memory_space<vmem>>, vector<1x128xf32>
    %459 = vector.shape_cast %458 : vector<1x128xf32> to vector<1x1x128xf32>
    %460 = vector.broadcast %459 : vector<1x1x128xf32> to vector<8x16x128xf32>
    %461 = arith.mulf %457, %460 : vector<8x16x128xf32>
    %462 = arith.addf %456, %461 : vector<8x16x128xf32>
    %c14_365 = arith.constant 14 : index
    %c14_366 = arith.constant 14 : index
    %c0_367 = arith.constant 0 : index
    %463 = vector.load %arg10[%c14_365, %c14_366, %c0_367] : memref<30x30x128xf32, #tpu.memory_space<vmem>>, vector<8x16x128xf32>
    %c24_368 = arith.constant 24 : index
    %c0_369 = arith.constant 0 : index
    %464 = vector.load %arg4[%c24_368, %c0_369] : memref<25x128xf32, #tpu.memory_space<vmem>>, vector<1x128xf32>
    %465 = vector.shape_cast %464 : vector<1x128xf32> to vector<1x1x128xf32>
    %466 = vector.broadcast %465 : vector<1x1x128xf32> to vector<8x16x128xf32>
    %467 = arith.mulf %463, %466 : vector<8x16x128xf32>
    %468 = arith.addf %462, %467 : vector<8x16x128xf32>
    %c0_370 = arith.constant 0 : index
    %c0_371 = arith.constant 0 : index
    %469 = vector.load %arg5[%c0_370, %c0_371] : memref<1x128xf32, #tpu.memory_space<vmem>>, vector<1x128xf32>
    %470 = vector.shape_cast %469 : vector<1x128xf32> to vector<1x1x128xf32>
    %471 = vector.broadcast %470 : vector<1x1x128xf32> to vector<8x16x128xf32>
    %472 = arith.addf %468, %471 : vector<8x16x128xf32>
    %473 = vector.shape_cast %472 : vector<8x16x128xf32> to vector<128x128xf32>
    %474 = arith.truncf %473 : vector<128x128xf32> to vector<128x128xbf16>
    %c0_372 = arith.constant 0 : index
    %c0_373 = arith.constant 0 : index
    %475 = vector.load %arg11[%c0_372, %c0_373] : memref<256x128xbf16, #tpu.memory_space<vmem>>, vector<128x128xbf16>
    tpu.vector_store %arg11[%c0_372, %c0_373], %474 {strides = array<i32>} : memref<256x128xbf16, #tpu.memory_space<vmem>>, vector<128x128xbf16>,
    %cst_374 = arith.constant 0.000000e+00 : f32
    %476 = vector.broadcast %cst_374 : f32 to vector<8x16x128xf32>
    %c10_375 = arith.constant 10 : index
    %c2_376 = arith.constant 2 : index
    %c0_377 = arith.constant 0 : index
    %477 = vector.load %arg10[%c10_375, %c2_376, %c0_377] : memref<30x30x128xf32, #tpu.memory_space<vmem>>, vector<8x16x128xf32>
    %c0_378 = arith.constant 0 : index
    %c0_379 = arith.constant 0 : index
    %478 = vector.load %arg4[%c0_378, %c0_379] : memref<25x128xf32, #tpu.memory_space<vmem>>, vector<1x128xf32>
    %479 = vector.shape_cast %478 : vector<1x128xf32> to vector<1x1x128xf32>
    %480 = vector.broadcast %479 : vector<1x1x128xf32> to vector<8x16x128xf32>
    %481 = arith.mulf %477, %480 : vector<8x16x128xf32>
    %482 = arith.addf %476, %481 : vector<8x16x128xf32>
    %c10_380 = arith.constant 10 : index
    %c5_381 = arith.constant 5 : index
    %c0_382 = arith.constant 0 : index
    %483 = vector.load %arg10[%c10_380, %c5_381, %c0_382] : memref<30x30x128xf32, #tpu.memory_space<vmem>>, vector<8x16x128xf32>
    %c1_383 = arith.constant 1 : index
    %c0_384 = arith.constant 0 : index
    %484 = vector.load %arg4[%c1_383, %c0_384] : memref<25x128xf32, #tpu.memory_space<vmem>>, vector<1x128xf32>
    %485 = vector.shape_cast %484 : vector<1x128xf32> to vector<1x1x128xf32>
    %486 = vector.broadcast %485 : vector<1x1x128xf32> to vector<8x16x128xf32>
    %487 = arith.mulf %483, %486 : vector<8x16x128xf32>
    %488 = arith.addf %482, %487 : vector<8x16x128xf32>
    %c10_385 = arith.constant 10 : index
    %c8_386 = arith.constant 8 : index
    %c0_387 = arith.constant 0 : index
    %489 = vector.load %arg10[%c10_385, %c8_386, %c0_387] : memref<30x30x128xf32, #tpu.memory_space<vmem>>, vector<8x16x128xf32>
    %c2_388 = arith.constant 2 : index
    %c0_389 = arith.constant 0 : index
    %490 = vector.load %arg4[%c2_388, %c0_389] : memref<25x128xf32, #tpu.memory_space<vmem>>, vector<1x128xf32>
    %491 = vector.shape_cast %490 : vector<1x128xf32> to vector<1x1x128xf32>
    %492 = vector.broadcast %491 : vector<1x1x128xf32> to vector<8x16x128xf32>
    %493 = arith.mulf %489, %492 : vector<8x16x128xf32>
    %494 = arith.addf %488, %493 : vector<8x16x128xf32>
    %c10_390 = arith.constant 10 : index
    %c11_391 = arith.constant 11 : index
    %c0_392 = arith.constant 0 : index
    %495 = vector.load %arg10[%c10_390, %c11_391, %c0_392] : memref<30x30x128xf32, #tpu.memory_space<vmem>>, vector<8x16x128xf32>
    %c3_393 = arith.constant 3 : index
    %c0_394 = arith.constant 0 : index
    %496 = vector.load %arg4[%c3_393, %c0_394] : memref<25x128xf32, #tpu.memory_space<vmem>>, vector<1x128xf32>
    %497 = vector.shape_cast %496 : vector<1x128xf32> to vector<1x1x128xf32>
    %498 = vector.broadcast %497 : vector<1x1x128xf32> to vector<8x16x128xf32>
    %499 = arith.mulf %495, %498 : vector<8x16x128xf32>
    %500 = arith.addf %494, %499 : vector<8x16x128xf32>
    %c10_395 = arith.constant 10 : index
    %c14_396 = arith.constant 14 : index
    %c0_397 = arith.constant 0 : index
    %501 = vector.load %arg10[%c10_395, %c14_396, %c0_397] : memref<30x30x128xf32, #tpu.memory_space<vmem>>, vector<8x16x128xf32>
    %c4_398 = arith.constant 4 : index
    %c0_399 = arith.constant 0 : index
    %502 = vector.load %arg4[%c4_398, %c0_399] : memref<25x128xf32, #tpu.memory_space<vmem>>, vector<1x128xf32>
    %503 = vector.shape_cast %502 : vector<1x128xf32> to vector<1x1x128xf32>
    %504 = vector.broadcast %503 : vector<1x1x128xf32> to vector<8x16x128xf32>
    %505 = arith.mulf %501, %504 : vector<8x16x128xf32>
    %506 = arith.addf %500, %505 : vector<8x16x128xf32>
    %c13_400 = arith.constant 13 : index
    %c2_401 = arith.constant 2 : index
    %c0_402 = arith.constant 0 : index
    %507 = vector.load %arg10[%c13_400, %c2_401, %c0_402] : memref<30x30x128xf32, #tpu.memory_space<vmem>>, vector<8x16x128xf32>
    %c5_403 = arith.constant 5 : index
    %c0_404 = arith.constant 0 : index
    %508 = vector.load %arg4[%c5_403, %c0_404] : memref<25x128xf32, #tpu.memory_space<vmem>>, vector<1x128xf32>
    %509 = vector.shape_cast %508 : vector<1x128xf32> to vector<1x1x128xf32>
    %510 = vector.broadcast %509 : vector<1x1x128xf32> to vector<8x16x128xf32>
    %511 = arith.mulf %507, %510 : vector<8x16x128xf32>
    %512 = arith.addf %506, %511 : vector<8x16x128xf32>
    %c13_405 = arith.constant 13 : index
    %c5_406 = arith.constant 5 : index
    %c0_407 = arith.constant 0 : index
    %513 = vector.load %arg10[%c13_405, %c5_406, %c0_407] : memref<30x30x128xf32, #tpu.memory_space<vmem>>, vector<8x16x128xf32>
    %c6_408 = arith.constant 6 : index
    %c0_409 = arith.constant 0 : index
    %514 = vector.load %arg4[%c6_408, %c0_409] : memref<25x128xf32, #tpu.memory_space<vmem>>, vector<1x128xf32>
    %515 = vector.shape_cast %514 : vector<1x128xf32> to vector<1x1x128xf32>
    %516 = vector.broadcast %515 : vector<1x1x128xf32> to vector<8x16x128xf32>
    %517 = arith.mulf %513, %516 : vector<8x16x128xf32>
    %518 = arith.addf %512, %517 : vector<8x16x128xf32>
    %c13_410 = arith.constant 13 : index
    %c8_411 = arith.constant 8 : index
    %c0_412 = arith.constant 0 : index
    %519 = vector.load %arg10[%c13_410, %c8_411, %c0_412] : memref<30x30x128xf32, #tpu.memory_space<vmem>>, vector<8x16x128xf32>
    %c7_413 = arith.constant 7 : index
    %c0_414 = arith.constant 0 : index
    %520 = vector.load %arg4[%c7_413, %c0_414] : memref<25x128xf32, #tpu.memory_space<vmem>>, vector<1x128xf32>
    %521 = vector.shape_cast %520 : vector<1x128xf32> to vector<1x1x128xf32>
    %522 = vector.broadcast %521 : vector<1x1x128xf32> to vector<8x16x128xf32>
    %523 = arith.mulf %519, %522 : vector<8x16x128xf32>
    %524 = arith.addf %518, %523 : vector<8x16x128xf32>
    %c13_415 = arith.constant 13 : index
    %c11_416 = arith.constant 11 : index
    %c0_417 = arith.constant 0 : index
    %525 = vector.load %arg10[%c13_415, %c11_416, %c0_417] : memref<30x30x128xf32, #tpu.memory_space<vmem>>, vector<8x16x128xf32>
    %c8_418 = arith.constant 8 : index
    %c0_419 = arith.constant 0 : index
    %526 = vector.load %arg4[%c8_418, %c0_419] : memref<25x128xf32, #tpu.memory_space<vmem>>, vector<1x128xf32>
    %527 = vector.shape_cast %526 : vector<1x128xf32> to vector<1x1x128xf32>
    %528 = vector.broadcast %527 : vector<1x1x128xf32> to vector<8x16x128xf32>
    %529 = arith.mulf %525, %528 : vector<8x16x128xf32>
    %530 = arith.addf %524, %529 : vector<8x16x128xf32>
    %c13_420 = arith.constant 13 : index
    %c14_421 = arith.constant 14 : index
    %c0_422 = arith.constant 0 : index
    %531 = vector.load %arg10[%c13_420, %c14_421, %c0_422] : memref<30x30x128xf32, #tpu.memory_space<vmem>>, vector<8x16x128xf32>
    %c9_423 = arith.constant 9 : index
    %c0_424 = arith.constant 0 : index
    %532 = vector.load %arg4[%c9_423, %c0_424] : memref<25x128xf32, #tpu.memory_space<vmem>>, vector<1x128xf32>
    %533 = vector.shape_cast %532 : vector<1x128xf32> to vector<1x1x128xf32>
    %534 = vector.broadcast %533 : vector<1x1x128xf32> to vector<8x16x128xf32>
    %535 = arith.mulf %531, %534 : vector<8x16x128xf32>
    %536 = arith.addf %530, %535 : vector<8x16x128xf32>
    %c16_425 = arith.constant 16 : index
    %c2_426 = arith.constant 2 : index
    %c0_427 = arith.constant 0 : index
    %537 = vector.load %arg10[%c16_425, %c2_426, %c0_427] : memref<30x30x128xf32, #tpu.memory_space<vmem>>, vector<8x16x128xf32>
    %c10_428 = arith.constant 10 : index
    %c0_429 = arith.constant 0 : index
    %538 = vector.load %arg4[%c10_428, %c0_429] : memref<25x128xf32, #tpu.memory_space<vmem>>, vector<1x128xf32>
    %539 = vector.shape_cast %538 : vector<1x128xf32> to vector<1x1x128xf32>
    %540 = vector.broadcast %539 : vector<1x1x128xf32> to vector<8x16x128xf32>
    %541 = arith.mulf %537, %540 : vector<8x16x128xf32>
    %542 = arith.addf %536, %541 : vector<8x16x128xf32>
    %c16_430 = arith.constant 16 : index
    %c5_431 = arith.constant 5 : index
    %c0_432 = arith.constant 0 : index
    %543 = vector.load %arg10[%c16_430, %c5_431, %c0_432] : memref<30x30x128xf32, #tpu.memory_space<vmem>>, vector<8x16x128xf32>
    %c11_433 = arith.constant 11 : index
    %c0_434 = arith.constant 0 : index
    %544 = vector.load %arg4[%c11_433, %c0_434] : memref<25x128xf32, #tpu.memory_space<vmem>>, vector<1x128xf32>
    %545 = vector.shape_cast %544 : vector<1x128xf32> to vector<1x1x128xf32>
    %546 = vector.broadcast %545 : vector<1x1x128xf32> to vector<8x16x128xf32>
    %547 = arith.mulf %543, %546 : vector<8x16x128xf32>
    %548 = arith.addf %542, %547 : vector<8x16x128xf32>
    %c16_435 = arith.constant 16 : index
    %c8_436 = arith.constant 8 : index
    %c0_437 = arith.constant 0 : index
    %549 = vector.load %arg10[%c16_435, %c8_436, %c0_437] : memref<30x30x128xf32, #tpu.memory_space<vmem>>, vector<8x16x128xf32>
    %c12_438 = arith.constant 12 : index
    %c0_439 = arith.constant 0 : index
    %550 = vector.load %arg4[%c12_438, %c0_439] : memref<25x128xf32, #tpu.memory_space<vmem>>, vector<1x128xf32>
    %551 = vector.shape_cast %550 : vector<1x128xf32> to vector<1x1x128xf32>
    %552 = vector.broadcast %551 : vector<1x1x128xf32> to vector<8x16x128xf32>
    %553 = arith.mulf %549, %552 : vector<8x16x128xf32>
    %554 = arith.addf %548, %553 : vector<8x16x128xf32>
    %c16_440 = arith.constant 16 : index
    %c11_441 = arith.constant 11 : index
    %c0_442 = arith.constant 0 : index
    %555 = vector.load %arg10[%c16_440, %c11_441, %c0_442] : memref<30x30x128xf32, #tpu.memory_space<vmem>>, vector<8x16x128xf32>
    %c13_443 = arith.constant 13 : index
    %c0_444 = arith.constant 0 : index
    %556 = vector.load %arg4[%c13_443, %c0_444] : memref<25x128xf32, #tpu.memory_space<vmem>>, vector<1x128xf32>
    %557 = vector.shape_cast %556 : vector<1x128xf32> to vector<1x1x128xf32>
    %558 = vector.broadcast %557 : vector<1x1x128xf32> to vector<8x16x128xf32>
    %559 = arith.mulf %555, %558 : vector<8x16x128xf32>
    %560 = arith.addf %554, %559 : vector<8x16x128xf32>
    %c16_445 = arith.constant 16 : index
    %c14_446 = arith.constant 14 : index
    %c0_447 = arith.constant 0 : index
    %561 = vector.load %arg10[%c16_445, %c14_446, %c0_447] : memref<30x30x128xf32, #tpu.memory_space<vmem>>, vector<8x16x128xf32>
    %c14_448 = arith.constant 14 : index
    %c0_449 = arith.constant 0 : index
    %562 = vector.load %arg4[%c14_448, %c0_449] : memref<25x128xf32, #tpu.memory_space<vmem>>, vector<1x128xf32>
    %563 = vector.shape_cast %562 : vector<1x128xf32> to vector<1x1x128xf32>
    %564 = vector.broadcast %563 : vector<1x1x128xf32> to vector<8x16x128xf32>
    %565 = arith.mulf %561, %564 : vector<8x16x128xf32>
    %566 = arith.addf %560, %565 : vector<8x16x128xf32>
    %c19_450 = arith.constant 19 : index
    %c2_451 = arith.constant 2 : index
    %c0_452 = arith.constant 0 : index
    %567 = vector.load %arg10[%c19_450, %c2_451, %c0_452] : memref<30x30x128xf32, #tpu.memory_space<vmem>>, vector<8x16x128xf32>
    %c15_453 = arith.constant 15 : index
    %c0_454 = arith.constant 0 : index
    %568 = vector.load %arg4[%c15_453, %c0_454] : memref<25x128xf32, #tpu.memory_space<vmem>>, vector<1x128xf32>
    %569 = vector.shape_cast %568 : vector<1x128xf32> to vector<1x1x128xf32>
    %570 = vector.broadcast %569 : vector<1x1x128xf32> to vector<8x16x128xf32>
    %571 = arith.mulf %567, %570 : vector<8x16x128xf32>
    %572 = arith.addf %566, %571 : vector<8x16x128xf32>
    %c19_455 = arith.constant 19 : index
    %c5_456 = arith.constant 5 : index
    %c0_457 = arith.constant 0 : index
    %573 = vector.load %arg10[%c19_455, %c5_456, %c0_457] : memref<30x30x128xf32, #tpu.memory_space<vmem>>, vector<8x16x128xf32>
    %c16_458 = arith.constant 16 : index
    %c0_459 = arith.constant 0 : index
    %574 = vector.load %arg4[%c16_458, %c0_459] : memref<25x128xf32, #tpu.memory_space<vmem>>, vector<1x128xf32>
    %575 = vector.shape_cast %574 : vector<1x128xf32> to vector<1x1x128xf32>
    %576 = vector.broadcast %575 : vector<1x1x128xf32> to vector<8x16x128xf32>
    %577 = arith.mulf %573, %576 : vector<8x16x128xf32>
    %578 = arith.addf %572, %577 : vector<8x16x128xf32>
    %c19_460 = arith.constant 19 : index
    %c8_461 = arith.constant 8 : index
    %c0_462 = arith.constant 0 : index
    %579 = vector.load %arg10[%c19_460, %c8_461, %c0_462] : memref<30x30x128xf32, #tpu.memory_space<vmem>>, vector<8x16x128xf32>
    %c17_463 = arith.constant 17 : index
    %c0_464 = arith.constant 0 : index
    %580 = vector.load %arg4[%c17_463, %c0_464] : memref<25x128xf32, #tpu.memory_space<vmem>>, vector<1x128xf32>
    %581 = vector.shape_cast %580 : vector<1x128xf32> to vector<1x1x128xf32>
    %582 = vector.broadcast %581 : vector<1x1x128xf32> to vector<8x16x128xf32>
    %583 = arith.mulf %579, %582 : vector<8x16x128xf32>
    %584 = arith.addf %578, %583 : vector<8x16x128xf32>
    %c19_465 = arith.constant 19 : index
    %c11_466 = arith.constant 11 : index
    %c0_467 = arith.constant 0 : index
    %585 = vector.load %arg10[%c19_465, %c11_466, %c0_467] : memref<30x30x128xf32, #tpu.memory_space<vmem>>, vector<8x16x128xf32>
    %c18_468 = arith.constant 18 : index
    %c0_469 = arith.constant 0 : index
    %586 = vector.load %arg4[%c18_468, %c0_469] : memref<25x128xf32, #tpu.memory_space<vmem>>, vector<1x128xf32>
    %587 = vector.shape_cast %586 : vector<1x128xf32> to vector<1x1x128xf32>
    %588 = vector.broadcast %587 : vector<1x1x128xf32> to vector<8x16x128xf32>
    %589 = arith.mulf %585, %588 : vector<8x16x128xf32>
    %590 = arith.addf %584, %589 : vector<8x16x128xf32>
    %c19_470 = arith.constant 19 : index
    %c14_471 = arith.constant 14 : index
    %c0_472 = arith.constant 0 : index
    %591 = vector.load %arg10[%c19_470, %c14_471, %c0_472] : memref<30x30x128xf32, #tpu.memory_space<vmem>>, vector<8x16x128xf32>
    %c19_473 = arith.constant 19 : index
    %c0_474 = arith.constant 0 : index
    %592 = vector.load %arg4[%c19_473, %c0_474] : memref<25x128xf32, #tpu.memory_space<vmem>>, vector<1x128xf32>
    %593 = vector.shape_cast %592 : vector<1x128xf32> to vector<1x1x128xf32>
    %594 = vector.broadcast %593 : vector<1x1x128xf32> to vector<8x16x128xf32>
    %595 = arith.mulf %591, %594 : vector<8x16x128xf32>
    %596 = arith.addf %590, %595 : vector<8x16x128xf32>
    %c22_475 = arith.constant 22 : index
    %c2_476 = arith.constant 2 : index
    %c0_477 = arith.constant 0 : index
    %597 = vector.load %arg10[%c22_475, %c2_476, %c0_477] : memref<30x30x128xf32, #tpu.memory_space<vmem>>, vector<8x16x128xf32>
    %c20_478 = arith.constant 20 : index
    %c0_479 = arith.constant 0 : index
    %598 = vector.load %arg4[%c20_478, %c0_479] : memref<25x128xf32, #tpu.memory_space<vmem>>, vector<1x128xf32>
    %599 = vector.shape_cast %598 : vector<1x128xf32> to vector<1x1x128xf32>
    %600 = vector.broadcast %599 : vector<1x1x128xf32> to vector<8x16x128xf32>
    %601 = arith.mulf %597, %600 : vector<8x16x128xf32>
    %602 = arith.addf %596, %601 : vector<8x16x128xf32>
    %c22_480 = arith.constant 22 : index
    %c5_481 = arith.constant 5 : index
    %c0_482 = arith.constant 0 : index
    %603 = vector.load %arg10[%c22_480, %c5_481, %c0_482] : memref<30x30x128xf32, #tpu.memory_space<vmem>>, vector<8x16x128xf32>
    %c21_483 = arith.constant 21 : index
    %c0_484 = arith.constant 0 : index
    %604 = vector.load %arg4[%c21_483, %c0_484] : memref<25x128xf32, #tpu.memory_space<vmem>>, vector<1x128xf32>
    %605 = vector.shape_cast %604 : vector<1x128xf32> to vector<1x1x128xf32>
    %606 = vector.broadcast %605 : vector<1x1x128xf32> to vector<8x16x128xf32>
    %607 = arith.mulf %603, %606 : vector<8x16x128xf32>
    %608 = arith.addf %602, %607 : vector<8x16x128xf32>
    %c22_485 = arith.constant 22 : index
    %c8_486 = arith.constant 8 : index
    %c0_487 = arith.constant 0 : index
    %609 = vector.load %arg10[%c22_485, %c8_486, %c0_487] : memref<30x30x128xf32, #tpu.memory_space<vmem>>, vector<8x16x128xf32>
    %c22_488 = arith.constant 22 : index
    %c0_489 = arith.constant 0 : index
    %610 = vector.load %arg4[%c22_488, %c0_489] : memref<25x128xf32, #tpu.memory_space<vmem>>, vector<1x128xf32>
    %611 = vector.shape_cast %610 : vector<1x128xf32> to vector<1x1x128xf32>
    %612 = vector.broadcast %611 : vector<1x1x128xf32> to vector<8x16x128xf32>
    %613 = arith.mulf %609, %612 : vector<8x16x128xf32>
    %614 = arith.addf %608, %613 : vector<8x16x128xf32>
    %c22_490 = arith.constant 22 : index
    %c11_491 = arith.constant 11 : index
    %c0_492 = arith.constant 0 : index
    %615 = vector.load %arg10[%c22_490, %c11_491, %c0_492] : memref<30x30x128xf32, #tpu.memory_space<vmem>>, vector<8x16x128xf32>
    %c23_493 = arith.constant 23 : index
    %c0_494 = arith.constant 0 : index
    %616 = vector.load %arg4[%c23_493, %c0_494] : memref<25x128xf32, #tpu.memory_space<vmem>>, vector<1x128xf32>
    %617 = vector.shape_cast %616 : vector<1x128xf32> to vector<1x1x128xf32>
    %618 = vector.broadcast %617 : vector<1x1x128xf32> to vector<8x16x128xf32>
    %619 = arith.mulf %615, %618 : vector<8x16x128xf32>
    %620 = arith.addf %614, %619 : vector<8x16x128xf32>
    %c22_495 = arith.constant 22 : index
    %c14_496 = arith.constant 14 : index
    %c0_497 = arith.constant 0 : index
    %621 = vector.load %arg10[%c22_495, %c14_496, %c0_497] : memref<30x30x128xf32, #tpu.memory_space<vmem>>, vector<8x16x128xf32>
    %c24_498 = arith.constant 24 : index
    %c0_499 = arith.constant 0 : index
    %622 = vector.load %arg4[%c24_498, %c0_499] : memref<25x128xf32, #tpu.memory_space<vmem>>, vector<1x128xf32>
    %623 = vector.shape_cast %622 : vector<1x128xf32> to vector<1x1x128xf32>
    %624 = vector.broadcast %623 : vector<1x1x128xf32> to vector<8x16x128xf32>
    %625 = arith.mulf %621, %624 : vector<8x16x128xf32>
    %626 = arith.addf %620, %625 : vector<8x16x128xf32>
    %c0_500 = arith.constant 0 : index
    %c0_501 = arith.constant 0 : index
    %627 = vector.load %arg5[%c0_500, %c0_501] : memref<1x128xf32, #tpu.memory_space<vmem>>, vector<1x128xf32>
    %628 = vector.shape_cast %627 : vector<1x128xf32> to vector<1x1x128xf32>
    %629 = vector.broadcast %628 : vector<1x1x128xf32> to vector<8x16x128xf32>
    %630 = arith.addf %626, %629 : vector<8x16x128xf32>
    %631 = vector.shape_cast %630 : vector<8x16x128xf32> to vector<128x128xf32>
    %632 = arith.truncf %631 : vector<128x128xf32> to vector<128x128xbf16>
    %c128 = arith.constant 128 : index
    %c0_502 = arith.constant 0 : index
    %633 = vector.load %arg11[%c128, %c0_502] : memref<256x128xbf16, #tpu.memory_space<vmem>>, vector<128x128xbf16>
    tpu.vector_store %arg11[%c128, %c0_502], %632 {strides = array<i32>} : memref<256x128xbf16, #tpu.memory_space<vmem>>, vector<128x128xbf16>,
    %c0_503 = arith.constant 0 : index
    %c0_504 = arith.constant 0 : index
    %634 = vector.load %arg11[%c0_503, %c0_504] : memref<256x128xbf16, #tpu.memory_space<vmem>>, vector<256x128xbf16>
    %c0_505 = arith.constant 0 : index
    %c0_506 = arith.constant 0 : index
    %635 = vector.load %arg6[%c0_505, %c0_506] : memref<128x128xbf16, #tpu.memory_space<vmem>>, vector<128x128xbf16>
    %cst_507 = arith.constant dense<0.000000e+00> : vector<256x128xf32>
    %636 = tpu.matmul %634, %635, %cst_507 {dimension_numbers = #tpu.dot_dimension_numbers<[1], [0], [0], [1], [0, 0, 1, 1], [], []>} : vector<256x128xbf16>, vector<128x128xbf16>, vector<256x128xf32> -> vector<256x128xf32>
    %c0_508 = arith.constant 0 : index
    %c0_509 = arith.constant 0 : index
    %637 = vector.load %arg7[%c0_508, %c0_509] : memref<1x128xf32, #tpu.memory_space<vmem>>, vector<1x128xf32>
    %638 = vector.broadcast %637 : vector<1x128xf32> to vector<256x128xf32>
    %639 = arith.addf %636, %638 : vector<256x128xf32>
    %c0_510 = arith.constant 0 : index
    %c0_511 = arith.constant 0 : index
    %c0_512 = arith.constant 0 : index
    %c0_513 = arith.constant 0 : index
    %640 = vector.load %arg1[%c0_510, %c0_511, %c0_512, %c0_513] : memref<1x16x16x128xf32, #tpu.memory_space<vmem>>, vector<1x16x16x128xf32>
    %641 = vector.shape_cast %640 : vector<1x16x16x128xf32> to vector<16x16x128xf32>
    %642 = vector.shape_cast %641 : vector<16x16x128xf32> to vector<256x128xf32>
    %643 = arith.mulf %642, %639 : vector<256x128xf32>
    %c0_514 = arith.constant 0 : index
    %c0_515 = arith.constant 0 : index
    %c0_516 = arith.constant 0 : index
    %644 = vector.load %arg8[%c0_514, %c0_515, %c0_516] : memref<1x256x128xf32, #tpu.memory_space<vmem>>, vector<1x256x128xf32>
    %645 = vector.shape_cast %644 : vector<1x256x128xf32> to vector<256x128xf32>
    %646 = vector.shape_cast %643 : vector<256x128xf32> to vector<1x256x128xf32>
    tpu.vector_store %arg8[%c0_514, %c0_515, %c0_516], %646 {strides = array<i32>} : memref<1x256x128xf32, #tpu.memory_space<vmem>>, vector<1x256x128xf32>,
    return
  }
  func.func @transform_0(%arg0: i32) -> (i32, i32, i32, i32) {
    %c0_i32 = arith.constant 0 : i32
    %c0_i32_0 = arith.constant 0 : i32
    %c0_i32_1 = arith.constant 0 : i32
    %c0_i32_2 = arith.constant 0 : i32
    return %arg0, %c0_i32, %c0_i32_0, %c0_i32_1 : i32, i32, i32, i32
  }
  func.func @transform_1(%arg0: i32) -> (i32, i32) {
    %c0_i32 = arith.constant 0 : i32
    %c0_i32_0 = arith.constant 0 : i32
    %c0_i32_1 = arith.constant 0 : i32
    return %c0_i32, %c0_i32_0 : i32, i32
  }
  func.func @transform_2(%arg0: i32) -> (i32, i32) {
    %c0_i32 = arith.constant 0 : i32
    %c0_i32_0 = arith.constant 0 : i32
    %c0_i32_1 = arith.constant 0 : i32
    return %c0_i32, %c0_i32_0 : i32, i32
  }
  func.func @transform_3(%arg0: i32) -> (i32, i32) {
    %c0_i32 = arith.constant 0 : i32
    %c0_i32_0 = arith.constant 0 : i32
    %c0_i32_1 = arith.constant 0 : i32
    return %c0_i32, %c0_i32_0 : i32, i32
  }
  func.func @transform_4(%arg0: i32) -> (i32, i32) {
    %c0_i32 = arith.constant 0 : i32
    %c0_i32_0 = arith.constant 0 : i32
    %c0_i32_1 = arith.constant 0 : i32
    return %c0_i32, %c0_i32_0 : i32, i32
  }
  func.func @transform_5(%arg0: i32) -> (i32, i32) {
    %c0_i32 = arith.constant 0 : i32
    %c0_i32_0 = arith.constant 0 : i32
    %c0_i32_1 = arith.constant 0 : i32
    return %c0_i32, %c0_i32_0 : i32, i32
  }
  func.func @transform_6(%arg0: i32) -> (i32, i32) {
    %c0_i32 = arith.constant 0 : i32
    %c0_i32_0 = arith.constant 0 : i32
    %c0_i32_1 = arith.constant 0 : i32
    return %c0_i32, %c0_i32_0 : i32, i32
  }
  func.func @transform_7(%arg0: i32) -> (i32, i32, i32) {
    %c0_i32 = arith.constant 0 : i32
    %c0_i32_0 = arith.constant 0 : i32
    %c0_i32_1 = arith.constant 0 : i32
    return %arg0, %c0_i32, %c0_i32_0 : i32, i32, i32
  }
}

</mosaic_0001>

<llo_original>
// kernel: lka_forward.1
$region0: #{lka_forward.1}
  #allocation0 [shape = 'u32[]', space=smem, size = 0x4, offset = 0x4, fixed_abs, tag = 'smem constant byte address 0x4 - core index']
  #allocation1 [shape = 'u32[144,128]{1,0:T(1,128)}', space=vmem, size = 0x12000, scoped, tag = 'internal scratch']
  #allocation2 [shape = 'f32[26,26,128]{2,1,0:T(8,128)}', space=vmem, size = 0x68000, scoped, tag = 'scratch operand']
  #allocation3 [shape = 'f32[30,30,128]{2,1,0:T(8,128)}', space=vmem, size = 0x78000, scoped, tag = 'scratch operand']
  #allocation4 [shape = 'bf16[256,128]{1,0:T(8,128)(2,1)}', space=vmem, size = 0x10000, scoped, tag = 'scratch operand']
  %s0 = inlined_call_operand.vmem [shape: f32[1,16,16,128], index: 0, kind: input, shape index: {}]
  %s1 = inlined_call_operand.vmem [shape: f32[25,128], index: 1, kind: input, shape index: {}]
  %s2 = inlined_call_operand.vmem [shape: f32[1,128], index: 2, kind: input, shape index: {}]
  %s3 = inlined_call_operand.vmem [shape: f32[25,128], index: 3, kind: input, shape index: {}]
  %s4 = inlined_call_operand.vmem [shape: f32[1,128], index: 4, kind: input, shape index: {}]
  %s5 = inlined_call_operand.vmem [shape: bf16[128,128], index: 5, kind: input, shape index: {}]
  %s6 = inlined_call_operand.vmem [shape: f32[1,128], index: 6, kind: input, shape index: {}]
  %s7 = inlined_call_operand.vmem [shape: f32[1,256,128], index: 7, kind: output, shape index: {}]
  %s8 = sld [smem:[#allocation0]]
  $region42: #{lka_forward.1} parent=0
    _
  %s10 = ssub.s32 1, %s8
  %s11 = scalar_select 0, %s10, %s8
  // Predicated region
  $region2: #{lka_forward.1} parent=0 // pred_check
    _
  $region3: #{lka_forward.1} parent=0 // pred_check_branch
    %13 = sbr.rel (0) target = $region5
  $region4: #{lka_forward.1} parent=0 // pred_region
    _
  $region5: #{lka_forward.1} parent=0 // pred_fallthru
    _
  // Predicated region
  $region6: #{lka_forward.1} parent=0 // pred_check
    _
  $region7: #{lka_forward.1} parent=0 // pred_check_branch
    %15 = sbr.rel (0) target = $region9
  $region8: #{lka_forward.1} parent=0 // pred_region
    _
  $region9: #{lka_forward.1} parent=0 // pred_fallthru
    _
  // Predicated region
  $region10: #{lka_forward.1} parent=0 // pred_check
    _
  $region11: #{lka_forward.1} parent=0 // pred_check_branch
    %17 = sbr.rel (0) target = $region13
  $region12: #{lka_forward.1} parent=0 // pred_region
    _
  $region13: #{lka_forward.1} parent=0 // pred_fallthru
    _
  // Predicated region
  $region14: #{lka_forward.1} parent=0 // pred_check
    _
  $region15: #{lka_forward.1} parent=0 // pred_check_branch
    %19 = sbr.rel (0) target = $region17
  $region16: #{lka_forward.1} parent=0 // pred_region
    _
  $region17: #{lka_forward.1} parent=0 // pred_fallthru
    _
  // Predicated region
  $region18: #{lka_forward.1} parent=0 // pred_check
    _
  $region19: #{lka_forward.1} parent=0 // pred_check_branch
    %21 = sbr.rel (0) target = $region21
  $region20: #{lka_forward.1} parent=0 // pred_region
    _
  $region21: #{lka_forward.1} parent=0 // pred_fallthru
    _
  // Predicated region
  $region22: #{lka_forward.1} parent=0 // pred_check
    _
  $region23: #{lka_forward.1} parent=0 // pred_check_branch
    %23 = sbr.rel (0) target = $region25
  $region24: #{lka_forward.1} parent=0 // pred_region
    _
  $region25: #{lka_forward.1} parent=0 // pred_fallthru
    _
  // Predicated region
  $region26: #{lka_forward.1} parent=0 // pred_check
    _
  $region27: #{lka_forward.1} parent=0 // pred_check_branch
    %25 = sbr.rel (0) target = $region29
  $region28: #{lka_forward.1} parent=0 // pred_region
    _
  $region29: #{lka_forward.1} parent=0 // pred_fallthru
    _
  %p27 = scmp.eq.s32.totalorder 0, 0
  // Predicated region
  $region30: #{lka_forward.1} parent=0 // pred_check
    %p28 = pneg %p27
  $region31: #{lka_forward.1} parent=0 // pred_check_branch
    %30 = sbr.rel (%p28) target = $region33
  $region32: #{lka_forward.1} parent=0 // pred_region
    %31 = vst [vmem:[#allocation2] sm:$0xff] 0.0
    %32 = vst [vmem:[#allocation2 + $0x8] sm:$0xff] 0.0
    %33 = vst [vmem:[#allocation2 + $0x10] sm:$0xff] 0.0
    %34 = vst [vmem:[#allocation2 + $0x18] sm:$0x3] 0.0
    %35 = vst [vmem:[#allocation2 + $0x20] sm:$0xff] 0.0
    %36 = vst [vmem:[#allocation2 + $0x28] sm:$0xff] 0.0
    %37 = vst [vmem:[#allocation2 + $0x30] sm:$0xff] 0.0
    %38 = vst [vmem:[#allocation2 + $0x38] sm:$0x3] 0.0
    %39 = vst [vmem:[#allocation2 + $0x40] sm:$0xff] 0.0
    %40 = vst [vmem:[#allocation2 + $0x48] sm:$0xff] 0.0
    %41 = vst [vmem:[#allocation2 + $0x50] sm:$0xff] 0.0
    %42 = vst [vmem:[#allocation2 + $0x58] sm:$0x3] 0.0
    %43 = vst [vmem:[#allocation2 + $0x60] sm:$0xff] 0.0
    %44 = vst [vmem:[#allocation2 + $0x68] sm:$0xff] 0.0
    %45 = vst [vmem:[#allocation2 + $0x70] sm:$0xff] 0.0
    %46 = vst [vmem:[#allocation2 + $0x78] sm:$0x3] 0.0
    %47 = vst [vmem:[#allocation2 + $0x80] sm:$0xff] 0.0
    %48 = vst [vmem:[#allocation2 + $0x88] sm:$0xff] 0.0
    %49 = vst [vmem:[#allocation2 + $0x90] sm:$0xff] 0.0
    %50 = vst [vmem:[#allocation2 + $0x98] sm:$0x3] 0.0
    %51 = vst [vmem:[#allocation2 + $0xa0] sm:$0xff] 0.0
    %52 = vst [vmem:[#allocation2 + $0xa8] sm:$0xff] 0.0
    %53 = vst [vmem:[#allocation2 + $0xb0] sm:$0xff] 0.0
    %54 = vst [vmem:[#allocation2 + $0xb8] sm:$0x3] 0.0
    %55 = vst [vmem:[#allocation2 + $0xc0] sm:$0xff] 0.0
    %56 = vst [vmem:[#allocation2 + $0xc8] sm:$0xff] 0.0
    %57 = vst [vmem:[#allocation2 + $0xd0] sm:$0xff] 0.0
    %58 = vst [vmem:[#allocation2 + $0xd8] sm:$0x3] 0.0
    %59 = vst [vmem:[#allocation2 + $0xe0] sm:$0xff] 0.0
    %60 = vst [vmem:[#allocation2 + $0xe8] sm:$0xff] 0.0
    %61 = vst [vmem:[#allocation2 + $0xf0] sm:$0xff] 0.0
    %62 = vst [vmem:[#allocation2 + $0xf8] sm:$0x3] 0.0
    %63 = vst [vmem:[#allocation2 + $0x100] sm:$0xff] 0.0
    %64 = vst [vmem:[#allocation2 + $0x108] sm:$0xff] 0.0
    %65 = vst [vmem:[#allocation2 + $0x110] sm:$0xff] 0.0
    %66 = vst [vmem:[#allocation2 + $0x118] sm:$0x3] 0.0
    %67 = vst [vmem:[#allocation2 + $0x120] sm:$0xff] 0.0
    %68 = vst [vmem:[#allocation2 + $0x128] sm:$0xff] 0.0
    %69 = vst [vmem:[#allocation2 + $0x130] sm:$0xff] 0.0
    %70 = vst [vmem:[#allocation2 + $0x138] sm:$0x3] 0.0
    %71 = vst [vmem:[#allocation2 + $0x140] sm:$0xff] 0.0
    %72 = vst [vmem:[#allocation2 + $0x148] sm:$0xff] 0.0
    %73 = vst [vmem:[#allocation2 + $0x150] sm:$0xff] 0.0
    %74 = vst [vmem:[#allocation2 + $0x158] sm:$0x3] 0.0
    %75 = vst [vmem:[#allocation2 + $0x160] sm:$0xff] 0.0
    %76 = vst [vmem:[#allocation2 + $0x168] sm:$0xff] 0.0
    %77 = vst [vmem:[#allocation2 + $0x170] sm:$0xff] 0.0
    %78 = vst [vmem:[#allocation2 + $0x178] sm:$0x3] 0.0
    %79 = vst [vmem:[#allocation2 + $0x180] sm:$0xff] 0.0
    %80 = vst [vmem:[#allocation2 + $0x188] sm:$0xff] 0.0
    %81 = vst [vmem:[#allocation2 + $0x190] sm:$0xff] 0.0
    %82 = vst [vmem:[#allocation2 + $0x198] sm:$0x3] 0.0
    %83 = vst [vmem:[#allocation2 + $0x1a0] sm:$0xff] 0.0
    %84 = vst [vmem:[#allocation2 + $0x1a8] sm:$0xff] 0.0
    %85 = vst [vmem:[#allocation2 + $0x1b0] sm:$0xff] 0.0
    %86 = vst [vmem:[#allocation2 + $0x1b8] sm:$0x3] 0.0
    %87 = vst [vmem:[#allocation2 + $0x1c0] sm:$0xff] 0.0
    %88 = vst [vmem:[#allocation2 + $0x1c8] sm:$0xff] 0.0
    %89 = vst [vmem:[#allocation2 + $0x1d0] sm:$0xff] 0.0
    %90 = vst [vmem:[#allocation2 + $0x1d8] sm:$0x3] 0.0
    %91 = vst [vmem:[#allocation2 + $0x1e0] sm:$0xff] 0.0
    %92 = vst [vmem:[#allocation2 + $0x1e8] sm:$0xff] 0.0
    %93 = vst [vmem:[#allocation2 + $0x1f0] sm:$0xff] 0.0
    %94 = vst [vmem:[#allocation2 + $0x1f8] sm:$0x3] 0.0
    %95 = vst [vmem:[#allocation2 + $0x200] sm:$0xff] 0.0
    %96 = vst [vmem:[#allocation2 + $0x208] sm:$0xff] 0.0
    %97 = vst [vmem:[#allocation2 + $0x210] sm:$0xff] 0.0
    %98 = vst [vmem:[#allocation2 + $0x218] sm:$0x3] 0.0
    %99 = vst [vmem:[#allocation2 + $0x220] sm:$0xff] 0.0
    %100 = vst [vmem:[#allocation2 + $0x228] sm:$0xff] 0.0
    %101 = vst [vmem:[#allocation2 + $0x230] sm:$0xff] 0.0
    %102 = vst [vmem:[#allocation2 + $0x238] sm:$0x3] 0.0
    %103 = vst [vmem:[#allocation2 + $0x240] sm:$0xff] 0.0
    %104 = vst [vmem:[#allocation2 + $0x248] sm:$0xff] 0.0
    %105 = vst [vmem:[#allocation2 + $0x250] sm:$0xff] 0.0
    %106 = vst [vmem:[#allocation2 + $0x258] sm:$0x3] 0.0
    %107 = vst [vmem:[#allocation2 + $0x260] sm:$0xff] 0.0
    %108 = vst [vmem:[#allocation2 + $0x268] sm:$0xff] 0.0
    %109 = vst [vmem:[#allocation2 + $0x270] sm:$0xff] 0.0
    %110 = vst [vmem:[#allocation2 + $0x278] sm:$0x3] 0.0
    %111 = vst [vmem:[#allocation2 + $0x280] sm:$0xff] 0.0
    %112 = vst [vmem:[#allocation2 + $0x288] sm:$0xff] 0.0
    %113 = vst [vmem:[#allocation2 + $0x290] sm:$0xff] 0.0
    %114 = vst [vmem:[#allocation2 + $0x298] sm:$0x3] 0.0
    %115 = vst [vmem:[#allocation2 + $0x2a0] sm:$0xff] 0.0
    %116 = vst [vmem:[#allocation2 + $0x2a8] sm:$0xff] 0.0
    %117 = vst [vmem:[#allocation2 + $0x2b0] sm:$0xff] 0.0
    %118 = vst [vmem:[#allocation2 + $0x2b8] sm:$0x3] 0.0
    %119 = vst [vmem:[#allocation2 + $0x2c0] sm:$0xff] 0.0
    %120 = vst [vmem:[#allocation2 + $0x2c8] sm:$0xff] 0.0
    %121 = vst [vmem:[#allocation2 + $0x2d0] sm:$0xff] 0.0
    %122 = vst [vmem:[#allocation2 + $0x2d8] sm:$0x3] 0.0
    %123 = vst [vmem:[#allocation2 + $0x2e0] sm:$0xff] 0.0
    %124 = vst [vmem:[#allocation2 + $0x2e8] sm:$0xff] 0.0
    %125 = vst [vmem:[#allocation2 + $0x2f0] sm:$0xff] 0.0
    %126 = vst [vmem:[#allocation2 + $0x2f8] sm:$0x3] 0.0
    %127 = vst [vmem:[#allocation2 + $0x300] sm:$0xff] 0.0
    %128 = vst [vmem:[#allocation2 + $0x308] sm:$0xff] 0.0
    %129 = vst [vmem:[#allocation2 + $0x310] sm:$0xff] 0.0
    %130 = vst [vmem:[#allocation2 + $0x318] sm:$0x3] 0.0
    %131 = vst [vmem:[#allocation2 + $0x320] sm:$0xff] 0.0
    %132 = vst [vmem:[#allocation2 + $0x328] sm:$0xff] 0.0
    %133 = vst [vmem:[#allocation2 + $0x330] sm:$0xff] 0.0
    %134 = vst [vmem:[#allocation2 + $0x338] sm:$0x3] 0.0
    %135 = vst [vmem:[#allocation3] sm:$0xff] 0.0
    %136 = vst [vmem:[#allocation3 + $0x8] sm:$0xff] 0.0
    %137 = vst [vmem:[#allocation3 + $0x10] sm:$0xff] 0.0
    %138 = vst [vmem:[#allocation3 + $0x18] sm:$0x3f] 0.0
    %139 = vst [vmem:[#allocation3 + $0x20] sm:$0xff] 0.0
    %140 = vst [vmem:[#allocation3 + $0x28] sm:$0xff] 0.0
    %141 = vst [vmem:[#allocation3 + $0x30] sm:$0xff] 0.0
    %142 = vst [vmem:[#allocation3 + $0x38] sm:$0x3f] 0.0
    %143 = vst [vmem:[#allocation3 + $0x40] sm:$0xff] 0.0
    %144 = vst [vmem:[#allocation3 + $0x48] sm:$0xff] 0.0
    %145 = vst [vmem:[#allocation3 + $0x50] sm:$0xff] 0.0
    %146 = vst [vmem:[#allocation3 + $0x58] sm:$0x3f] 0.0
    %147 = vst [vmem:[#allocation3 + $0x60] sm:$0xff] 0.0
    %148 = vst [vmem:[#allocation3 + $0x68] sm:$0xff] 0.0
    %149 = vst [vmem:[#allocation3 + $0x70] sm:$0xff] 0.0
    %150 = vst [vmem:[#allocation3 + $0x78] sm:$0x3f] 0.0
    %151 = vst [vmem:[#allocation3 + $0x80] sm:$0xff] 0.0
    %152 = vst [vmem:[#allocation3 + $0x88] sm:$0xff] 0.0
    %153 = vst [vmem:[#allocation3 + $0x90] sm:$0xff] 0.0
    %154 = vst [vmem:[#allocation3 + $0x98] sm:$0x3f] 0.0
    %155 = vst [vmem:[#allocation3 + $0xa0] sm:$0xff] 0.0
    %156 = vst [vmem:[#allocation3 + $0xa8] sm:$0xff] 0.0
    %157 = vst [vmem:[#allocation3 + $0xb0] sm:$0xff] 0.0
    %158 = vst [vmem:[#allocation3 + $0xb8] sm:$0x3f] 0.0
    %159 = vst [vmem:[#allocation3 + $0xc0] sm:$0xff] 0.0
    %160 = vst [vmem:[#allocation3 + $0xc8] sm:$0xff] 0.0
    %161 = vst [vmem:[#allocation3 + $0xd0] sm:$0xff] 0.0
    %162 = vst [vmem:[#allocation3 + $0xd8] sm:$0x3f] 0.0
    %163 = vst [vmem:[#allocation3 + $0xe0] sm:$0xff] 0.0
    %164 = vst [vmem:[#allocation3 + $0xe8] sm:$0xff] 0.0
    %165 = vst [vmem:[#allocation3 + $0xf0] sm:$0xff] 0.0
    %166 = vst [vmem:[#allocation3 + $0xf8] sm:$0x3f] 0.0
    %167 = vst [vmem:[#allocation3 + $0x100] sm:$0xff] 0.0
    %168 = vst [vmem:[#allocation3 + $0x108] sm:$0xff] 0.0
    %169 = vst [vmem:[#allocation3 + $0x110] sm:$0xff] 0.0
    %170 = vst [vmem:[#allocation3 + $0x118] sm:$0x3f] 0.0
    %171 = vst [vmem:[#allocation3 + $0x120] sm:$0xff] 0.0
    %172 = vst [vmem:[#allocation3 + $0x128] sm:$0xff] 0.0
    %173 = vst [vmem:[#allocation3 + $0x130] sm:$0xff] 0.0
    %174 = vst [vmem:[#allocation3 + $0x138] sm:$0x3f] 0.0
    %175 = vst [vmem:[#allocation3 + $0x140] sm:$0xff] 0.0
    %176 = vst [vmem:[#allocation3 + $0x148] sm:$0xff] 0.0
    %177 = vst [vmem:[#allocation3 + $0x150] sm:$0xff] 0.0
    %178 = vst [vmem:[#allocation3 + $0x158] sm:$0x3f] 0.0
    %179 = vst [vmem:[#allocation3 + $0x160] sm:$0xff] 0.0
    %180 = vst [vmem:[#allocation3 + $0x168] sm:$0xff] 0.0
    %181 = vst [vmem:[#allocation3 + $0x170] sm:$0xff] 0.0
    %182 = vst [vmem:[#allocation3 + $0x178] sm:$0x3f] 0.0
    %183 = vst [vmem:[#allocation3 + $0x180] sm:$0xff] 0.0
    %184 = vst [vmem:[#allocation3 + $0x188] sm:$0xff] 0.0
    %185 = vst [vmem:[#allocation3 + $0x190] sm:$0xff] 0.0
    %186 = vst [vmem:[#allocation3 + $0x198] sm:$0x3f] 0.0
    %187 = vst [vmem:[#allocation3 + $0x1a0] sm:$0xff] 0.0
    %188 = vst [vmem:[#allocation3 + $0x1a8] sm:$0xff] 0.0
    %189 = vst [vmem:[#allocation3 + $0x1b0] sm:$0xff] 0.0
    %190 = vst [vmem:[#allocation3 + $0x1b8] sm:$0x3f] 0.0
    %191 = vst [vmem:[#allocation3 + $0x1c0] sm:$0xff] 0.0
    %192 = vst [vmem:[#allocation3 + $0x1c8] sm:$0xff] 0.0
    %193 = vst [vmem:[#allocation3 + $0x1d0] sm:$0xff] 0.0
    %194 = vst [vmem:[#allocation3 + $0x1d8] sm:$0x3f] 0.0
    %195 = vst [vmem:[#allocation3 + $0x1e0] sm:$0xff] 0.0
    %196 = vst [vmem:[#allocation3 + $0x1e8] sm:$0xff] 0.0
    %197 = vst [vmem:[#allocation3 + $0x1f0] sm:$0xff] 0.0
    %198 = vst [vmem:[#allocation3 + $0x1f8] sm:$0x3f] 0.0
    %199 = vst [vmem:[#allocation3 + $0x200] sm:$0xff] 0.0
    %200 = vst [vmem:[#allocation3 + $0x208] sm:$0xff] 0.0
    %201 = vst [vmem:[#allocation3 + $0x210] sm:$0xff] 0.0
    %202 = vst [vmem:[#allocation3 + $0x218] sm:$0x3f] 0.0
    %203 = vst [vmem:[#allocation3 + $0x220] sm:$0xff] 0.0
    %204 = vst [vmem:[#allocation3 + $0x228] sm:$0xff] 0.0
    %205 = vst [vmem:[#allocation3 + $0x230] sm:$0xff] 0.0
    %206 = vst [vmem:[#allocation3 + $0x238] sm:$0x3f] 0.0
    %207 = vst [vmem:[#allocation3 + $0x240] sm:$0xff] 0.0
    %208 = vst [vmem:[#allocation3 + $0x248] sm:$0xff] 0.0
    %209 = vst [vmem:[#allocation3 + $0x250] sm:$0xff] 0.0
    %210 = vst [vmem:[#allocation3 + $0x258] sm:$0x3f] 0.0
    %211 = vst [vmem:[#allocation3 + $0x260] sm:$0xff] 0.0
    %212 = vst [vmem:[#allocation3 + $0x268] sm:$0xff] 0.0
    %213 = vst [vmem:[#allocation3 + $0x270] sm:$0xff] 0.0
    %214 = vst [vmem:[#allocation3 + $0x278] sm:$0x3f] 0.0
    %215 = vst [vmem:[#allocation3 + $0x280] sm:$0xff] 0.0
    %216 = vst [vmem:[#allocation3 + $0x288] sm:$0xff] 0.0
    %217 = vst [vmem:[#allocation3 + $0x290] sm:$0xff] 0.0
    %218 = vst [vmem:[#allocation3 + $0x298] sm:$0x3f] 0.0
    %219 = vst [vmem:[#allocation3 + $0x2a0] sm:$0xff] 0.0
    %220 = vst [vmem:[#allocation3 + $0x2a8] sm:$0xff] 0.0
    %221 = vst [vmem:[#allocation3 + $0x2b0] sm:$0xff] 0.0
    %222 = vst [vmem:[#allocation3 + $0x2b8] sm:$0x3f] 0.0
    %223 = vst [vmem:[#allocation3 + $0x2c0] sm:$0xff] 0.0
    %224 = vst [vmem:[#allocation3 + $0x2c8] sm:$0xff] 0.0
    %225 = vst [vmem:[#allocation3 + $0x2d0] sm:$0xff] 0.0
    %226 = vst [vmem:[#allocation3 + $0x2d8] sm:$0x3f] 0.0
    %227 = vst [vmem:[#allocation3 + $0x2e0] sm:$0xff] 0.0
    %228 = vst [vmem:[#allocation3 + $0x2e8] sm:$0xff] 0.0
    %229 = vst [vmem:[#allocation3 + $0x2f0] sm:$0xff] 0.0
    %230 = vst [vmem:[#allocation3 + $0x2f8] sm:$0x3f] 0.0
    %231 = vst [vmem:[#allocation3 + $0x300] sm:$0xff] 0.0
    %232 = vst [vmem:[#allocation3 + $0x308] sm:$0xff] 0.0
    %233 = vst [vmem:[#allocation3 + $0x310] sm:$0xff] 0.0
    %234 = vst [vmem:[#allocation3 + $0x318] sm:$0x3f] 0.0
    %235 = vst [vmem:[#allocation3 + $0x320] sm:$0xff] 0.0
    %236 = vst [vmem:[#allocation3 + $0x328] sm:$0xff] 0.0
    %237 = vst [vmem:[#allocation3 + $0x330] sm:$0xff] 0.0
    %238 = vst [vmem:[#allocation3 + $0x338] sm:$0x3f] 0.0
    %239 = vst [vmem:[#allocation3 + $0x340] sm:$0xff] 0.0
    %240 = vst [vmem:[#allocation3 + $0x348] sm:$0xff] 0.0
    %241 = vst [vmem:[#allocation3 + $0x350] sm:$0xff] 0.0
    %242 = vst [vmem:[#allocation3 + $0x358] sm:$0x3f] 0.0
    %243 = vst [vmem:[#allocation3 + $0x360] sm:$0xff] 0.0
    %244 = vst [vmem:[#allocation3 + $0x368] sm:$0xff] 0.0
    %245 = vst [vmem:[#allocation3 + $0x370] sm:$0xff] 0.0
    %246 = vst [vmem:[#allocation3 + $0x378] sm:$0x3f] 0.0
    %247 = vst [vmem:[#allocation3 + $0x380] sm:$0xff] 0.0
    %248 = vst [vmem:[#allocation3 + $0x388] sm:$0xff] 0.0
    %249 = vst [vmem:[#allocation3 + $0x390] sm:$0xff] 0.0
    %250 = vst [vmem:[#allocation3 + $0x398] sm:$0x3f] 0.0
    %251 = vst [vmem:[#allocation3 + $0x3a0] sm:$0xff] 0.0
    %252 = vst [vmem:[#allocation3 + $0x3a8] sm:$0xff] 0.0
    %253 = vst [vmem:[#allocation3 + $0x3b0] sm:$0xff] 0.0
    %254 = vst [vmem:[#allocation3 + $0x3b8] sm:$0x3f] 0.0
  $region33: #{lka_forward.1} parent=0 // pred_fallthru
    _
  %v255 = vld [vmem:[%s0] sm:$0xff]
  %v256 = vld [vmem:[%s0 + $0x8] sm:$0xff]
  %v257 = vld [vmem:[%s0 + $0x10] sm:$0xff]
  %v258 = vld [vmem:[%s0 + $0x18] sm:$0xff]
  %v259 = vld [vmem:[%s0 + $0x20] sm:$0xff]
  %v260 = vld [vmem:[%s0 + $0x28] sm:$0xff]
  %v261 = vld [vmem:[%s0 + $0x30] sm:$0xff]
  %v262 = vld [vmem:[%s0 + $0x38] sm:$0xff]
  %v263 = vld [vmem:[%s0 + $0x40] sm:$0xff]
  %v264 = vld [vmem:[%s0 + $0x48] sm:$0xff]
  %v265 = vld [vmem:[%s0 + $0x50] sm:$0xff]
  %v266 = vld [vmem:[%s0 + $0x58] sm:$0xff]
  %v267 = vld [vmem:[%s0 + $0x60] sm:$0xff]
  %v268 = vld [vmem:[%s0 + $0x68] sm:$0xff]
  %v269 = vld [vmem:[%s0 + $0x70] sm:$0xff]
  %v270 = vld [vmem:[%s0 + $0x78] sm:$0xff]
  %v271 = vld [vmem:[%s0 + $0x80] sm:$0xff]
  %v272 = vld [vmem:[%s0 + $0x88] sm:$0xff]
  %v273 = vld [vmem:[%s0 + $0x90] sm:$0xff]
  %v274 = vld [vmem:[%s0 + $0x98] sm:$0xff]
  %v275 = vld [vmem:[%s0 + $0xa0] sm:$0xff]
  %v276 = vld [vmem:[%s0 + $0xa8] sm:$0xff]
  %v277 = vld [vmem:[%s0 + $0xb0] sm:$0xff]
  %v278 = vld [vmem:[%s0 + $0xb8] sm:$0xff]
  %v279 = vld [vmem:[%s0 + $0xc0] sm:$0xff]
  %v280 = vld [vmem:[%s0 + $0xc8] sm:$0xff]
  %v281 = vld [vmem:[%s0 + $0xd0] sm:$0xff]
  %v282 = vld [vmem:[%s0 + $0xd8] sm:$0xff]
  %v283 = vld [vmem:[%s0 + $0xe0] sm:$0xff]
  %v284 = vld [vmem:[%s0 + $0xe8] sm:$0xff]
  %v285 = vld [vmem:[%s0 + $0xf0] sm:$0xff]
  %v286 = vld [vmem:[%s0 + $0xf8] sm:$0xff]
  %s287 = scalar_lea.vmem [#allocation2], 256
  %288 = vst [vmem:[%s287 + $0x8] sm:$0xff] %v255
  %289 = vst [vmem:[%s287 + $0x10] sm:$0xff] %v256
  %290 = vst [vmem:[%s287 + $0x28] sm:$0xff] %v257
  %291 = vst [vmem:[%s287 + $0x30] sm:$0xff] %v258
  %292 = vst [vmem:[%s287 + $0x48] sm:$0xff] %v259
  %293 = vst [vmem:[%s287 + $0x50] sm:$0xff] %v260
  %294 = vst [vmem:[%s287 + $0x68] sm:$0xff] %v261
  %295 = vst [vmem:[%s287 + $0x70] sm:$0xff] %v262
  %296 = vst [vmem:[%s287 + $0x88] sm:$0xff] %v263
  %297 = vst [vmem:[%s287 + $0x90] sm:$0xff] %v264
  %298 = vst [vmem:[%s287 + $0xa8] sm:$0xff] %v265
  %299 = vst [vmem:[%s287 + $0xb0] sm:$0xff] %v266
  %300 = vst [vmem:[%s287 + $0xc8] sm:$0xff] %v267
  %301 = vst [vmem:[%s287 + $0xd0] sm:$0xff] %v268
  %302 = vst [vmem:[%s287 + $0xe8] sm:$0xff] %v269
  %303 = vst [vmem:[%s287 + $0xf0] sm:$0xff] %v270
  %304 = vst [vmem:[%s287 + $0x108] sm:$0xff] %v271
  %305 = vst [vmem:[%s287 + $0x110] sm:$0xff] %v272
  %306 = vst [vmem:[%s287 + $0x128] sm:$0xff] %v273
  %307 = vst [vmem:[%s287 + $0x130] sm:$0xff] %v274
  %308 = vst [vmem:[%s287 + $0x148] sm:$0xff] %v275
  %309 = vst [vmem:[%s287 + $0x150] sm:$0xff] %v276
  %310 = vst [vmem:[%s287 + $0x168] sm:$0xff] %v277
  %311 = vst [vmem:[%s287 + $0x170] sm:$0xff] %v278
  %312 = vst [vmem:[%s287 + $0x188] sm:$0xff] %v279
  %313 = vst [vmem:[%s287 + $0x190] sm:$0xff] %v280
  %314 = vst [vmem:[%s287 + $0x1a8] sm:$0xff] %v281
  %315 = vst [vmem:[%s287 + $0x1b0] sm:$0xff] %v282
  %316 = vst [vmem:[%s287 + $0x1c8] sm:$0xff] %v283
  %317 = vst [vmem:[%s287 + $0x1d0] sm:$0xff] %v284
  %318 = vst [vmem:[%s287 + $0x1e8] sm:$0xff] %v285
  %319 = vst [vmem:[%s287 + $0x1f0] sm:$0xff] %v286
  %s320 = scalar_lea.vmem [#allocation2], 192
  %v321 = vld [vmem:[%s320 + $0x6] sm:$0xff]
  %v322 = vld [vmem:[%s320 + $0xe] sm:$0xff]
  %v323 = vld [vmem:[%s320 + $0x26] sm:$0xff]
  %v324 = vld [vmem:[%s320 + $0x2e] sm:$0xff]
  %v325 = vld [vmem:[%s320 + $0x46] sm:$0xff]
  %v326 = vld [vmem:[%s320 + $0x4e] sm:$0xff]
  %v327 = vld [vmem:[%s320 + $0x66] sm:$0xff]
  %v328 = vld [vmem:[%s320 + $0x6e] sm:$0xff]
  %v329 = vld [vmem:[%s320 + $0x86] sm:$0xff]
  %v330 = vld [vmem:[%s320 + $0x8e] sm:$0xff]
  %v331 = vld [vmem:[%s320 + $0xa6] sm:$0xff]
  %v332 = vld [vmem:[%s320 + $0xae] sm:$0xff]
  %v333 = vld [vmem:[%s320 + $0xc6] sm:$0xff]
  %v334 = vld [vmem:[%s320 + $0xce] sm:$0xff]
  %v335 = vld [vmem:[%s320 + $0xe6] sm:$0xff]
  %v336 = vld [vmem:[%s320 + $0xee] sm:$0xff]
  %v337 = vld [vmem:[%s1] sm:$0x1]
  %v338 = vlaneseq
  %v339 = vshrl.u32 %v338, 7
  %v340 = vsub.s32 0, %v339
  %v341 = vrot.slane %v337, %v340
  %v342 = vmul.f32 %v321, %v341
  %v343 = vmul.f32 %v322, %v341
  %v344 = vmul.f32 %v323, %v341
  %v345 = vmul.f32 %v324, %v341
  %v346 = vmul.f32 %v325, %v341
  %v347 = vmul.f32 %v326, %v341
  %v348 = vmul.f32 %v327, %v341
  %v349 = vmul.f32 %v328, %v341
  %v350 = vmul.f32 %v329, %v341
  %v351 = vmul.f32 %v330, %v341
  %v352 = vmul.f32 %v331, %v341
  %v353 = vmul.f32 %v332, %v341
  %v354 = vmul.f32 %v333, %v341
  %v355 = vmul.f32 %v334, %v341
  %v356 = vmul.f32 %v335, %v341
  %v357 = vmul.f32 %v336, %v341
  %v358 = vadd.f32 %v342, 0.0
  %v359 = vadd.f32 %v343, 0.0
  %v360 = vadd.f32 %v344, 0.0
  %v361 = vadd.f32 %v345, 0.0
  %v362 = vadd.f32 %v346, 0.0
  %v363 = vadd.f32 %v347, 0.0
  %v364 = vadd.f32 %v348, 0.0
  %v365 = vadd.f32 %v349, 0.0
  %v366 = vadd.f32 %v350, 0.0
  %v367 = vadd.f32 %v351, 0.0
  %v368 = vadd.f32 %v352, 0.0
  %v369 = vadd.f32 %v353, 0.0
  %v370 = vadd.f32 %v354, 0.0
  %v371 = vadd.f32 %v355, 0.0
  %v372 = vadd.f32 %v356, 0.0
  %v373 = vadd.f32 %v357, 0.0
  %v374 = vld [vmem:[%s320 + $0x7] sm:$0xff]
  %v375 = vld [vmem:[%s320 + $0xf] sm:$0xff]
  %v376 = vld [vmem:[%s320 + $0x27] sm:$0xff]
  %v377 = vld [vmem:[%s320 + $0x2f] sm:$0xff]
  %v378 = vld [vmem:[%s320 + $0x47] sm:$0xff]
  %v379 = vld [vmem:[%s320 + $0x4f] sm:$0xff]
  %v380 = vld [vmem:[%s320 + $0x67] sm:$0xff]
  %v381 = vld [vmem:[%s320 + $0x6f] sm:$0xff]
  %v382 = vld [vmem:[%s320 + $0x87] sm:$0xff]
  %v383 = vld [vmem:[%s320 + $0x8f] sm:$0xff]
  %v384 = vld [vmem:[%s320 + $0xa7] sm:$0xff]
  %v385 = vld [vmem:[%s320 + $0xaf] sm:$0xff]
  %v386 = vld [vmem:[%s320 + $0xc7] sm:$0xff]
  %v387 = vld [vmem:[%s320 + $0xcf] sm:$0xff]
  %v388 = vld [vmem:[%s320 + $0xe7] sm:$0xff]
  %v389 = vld [vmem:[%s320 + $0xef] sm:$0xff]
  %v390 = vld [vmem:[%s1 + $0x1] sm:$0x1]
  %v391 = vlaneseq
  %v392 = vshrl.u32 %v391, 7
  %v393 = vsub.s32 0, %v392
  %v394 = vrot.slane %v390, %v393
  %v395 = vmul.f32 %v374, %v394
  %v396 = vmul.f32 %v375, %v394
  %v397 = vmul.f32 %v376, %v394
  %v398 = vmul.f32 %v377, %v394
  %v399 = vmul.f32 %v378, %v394
  %v400 = vmul.f32 %v379, %v394
  %v401 = vmul.f32 %v380, %v394
  %v402 = vmul.f32 %v381, %v394
  %v403 = vmul.f32 %v382, %v394
  %v404 = vmul.f32 %v383, %v394
  %v405 = vmul.f32 %v384, %v394
  %v406 = vmul.f32 %v385, %v394
  %v407 = vmul.f32 %v386, %v394
  %v408 = vmul.f32 %v387, %v394
  %v409 = vmul.f32 %v388, %v394
  %v410 = vmul.f32 %v389, %v394
  %v411 = vadd.f32 %v358, %v395
  %v412 = vadd.f32 %v359, %v396
  %v413 = vadd.f32 %v360, %v397
  %v414 = vadd.f32 %v361, %v398
  %v415 = vadd.f32 %v362, %v399
  %v416 = vadd.f32 %v363, %v400
  %v417 = vadd.f32 %v364, %v401
  %v418 = vadd.f32 %v365, %v402
  %v419 = vadd.f32 %v366, %v403
  %v420 = vadd.f32 %v367, %v404
  %v421 = vadd.f32 %v368, %v405
  %v422 = vadd.f32 %v369, %v406
  %v423 = vadd.f32 %v370, %v407
  %v424 = vadd.f32 %v371, %v408
  %v425 = vadd.f32 %v372, %v409
  %v426 = vadd.f32 %v373, %v410
  %v427 = vld [vmem:[%s320 + $0x8] sm:$0xff]
  %v428 = vld [vmem:[%s320 + $0x10] sm:$0xff]
  %v429 = vld [vmem:[%s320 + $0x28] sm:$0xff]
  %v430 = vld [vmem:[%s320 + $0x30] sm:$0xff]
  %v431 = vld [vmem:[%s320 + $0x48] sm:$0xff]
  %v432 = vld [vmem:[%s320 + $0x50] sm:$0xff]
  %v433 = vld [vmem:[%s320 + $0x68] sm:$0xff]
  %v434 = vld [vmem:[%s320 + $0x70] sm:$0xff]
  %v435 = vld [vmem:[%s320 + $0x88] sm:$0xff]
  %v436 = vld [vmem:[%s320 + $0x90] sm:$0xff]
  %v437 = vld [vmem:[%s320 + $0xa8] sm:$0xff]
  %v438 = vld [vmem:[%s320 + $0xb0] sm:$0xff]
  %v439 = vld [vmem:[%s320 + $0xc8] sm:$0xff]
  %v440 = vld [vmem:[%s320 + $0xd0] sm:$0xff]
  %v441 = vld [vmem:[%s320 + $0xe8] sm:$0xff]
  %v442 = vld [vmem:[%s320 + $0xf0] sm:$0xff]
  %v443 = vld [vmem:[%s1 + $0x2] sm:$0x1]
  %v444 = vlaneseq
  %v445 = vshrl.u32 %v444, 7
  %v446 = vsub.s32 0, %v445
  %v447 = vrot.slane %v443, %v446
  %v448 = vmul.f32 %v427, %v447
  %v449 = vmul.f32 %v428, %v447
  %v450 = vmul.f32 %v429, %v447
  %v451 = vmul.f32 %v430, %v447
  %v452 = vmul.f32 %v431, %v447
  %v453 = vmul.f32 %v432, %v447
  %v454 = vmul.f32 %v433, %v447
  %v455 = vmul.f32 %v434, %v447
  %v456 = vmul.f32 %v435, %v447
  %v457 = vmul.f32 %v436, %v447
  %v458 = vmul.f32 %v437, %v447
  %v459 = vmul.f32 %v438, %v447
  %v460 = vmul.f32 %v439, %v447
  %v461 = vmul.f32 %v440, %v447
  %v462 = vmul.f32 %v441, %v447
  %v463 = vmul.f32 %v442, %v447
  %v464 = vadd.f32 %v411, %v448
  %v465 = vadd.f32 %v412, %v449
  %v466 = vadd.f32 %v413, %v450
  %v467 = vadd.f32 %v414, %v451
  %v468 = vadd.f32 %v415, %v452
  %v469 = vadd.f32 %v416, %v453
  %v470 = vadd.f32 %v417, %v454
  %v471 = vadd.f32 %v418, %v455
  %v472 = vadd.f32 %v419, %v456
  %v473 = vadd.f32 %v420, %v457
  %v474 = vadd.f32 %v421, %v458
  %v475 = vadd.f32 %v422, %v459
  %v476 = vadd.f32 %v423, %v460
  %v477 = vadd.f32 %v424, %v461
  %v478 = vadd.f32 %v425, %v462
  %v479 = vadd.f32 %v426, %v463
  %v480 = vld [vmem:[%s320 + $0x9] sm:$0xff]
  %v481 = vld [vmem:[%s320 + $0x11] sm:$0xff]
  %v482 = vld [vmem:[%s320 + $0x29] sm:$0xff]
  %v483 = vld [vmem:[%s320 + $0x31] sm:$0xff]
  %v484 = vld [vmem:[%s320 + $0x49] sm:$0xff]
  %v485 = vld [vmem:[%s320 + $0x51] sm:$0xff]
  %v486 = vld [vmem:[%s320 + $0x69] sm:$0xff]
  %v487 = vld [vmem:[%s320 + $0x71] sm:$0xff]
  %v488 = vld [vmem:[%s320 + $0x89] sm:$0xff]
  %v489 = vld [vmem:[%s320 + $0x91] sm:$0xff]
  %v490 = vld [vmem:[%s320 + $0xa9] sm:$0xff]
  %v491 = vld [vmem:[%s320 + $0xb1] sm:$0xff]
  %v492 = vld [vmem:[%s320 + $0xc9] sm:$0xff]
  %v493 = vld [vmem:[%s320 + $0xd1] sm:$0xff]
  %v494 = vld [vmem:[%s320 + $0xe9] sm:$0xff]
  %v495 = vld [vmem:[%s320 + $0xf1] sm:$0xff]
  %v496 = vld [vmem:[%s1 + $0x3] sm:$0x1]
  %v497 = vlaneseq
  %v498 = vshrl.u32 %v497, 7
  %v499 = vsub.s32 0, %v498
  %v500 = vrot.slane %v496, %v499
  %v501 = vmul.f32 %v480, %v500
  %v502 = vmul.f32 %v481, %v500
  %v503 = vmul.f32 %v482, %v500
  %v504 = vmul.f32 %v483, %v500
  %v505 = vmul.f32 %v484, %v500
  %v506 = vmul.f32 %v485, %v500
  %v507 = vmul.f32 %v486, %v500
  %v508 = vmul.f32 %v487, %v500
  %v509 = vmul.f32 %v488, %v500
  %v510 = vmul.f32 %v489, %v500
  %v511 = vmul.f32 %v490, %v500
  %v512 = vmul.f32 %v491, %v500
  %v513 = vmul.f32 %v492, %v500
  %v514 = vmul.f32 %v493, %v500
  %v515 = vmul.f32 %v494, %v500
  %v516 = vmul.f32 %v495, %v500
  %v517 = vadd.f32 %v464, %v501
  %v518 = vadd.f32 %v465, %v502
  %v519 = vadd.f32 %v466, %v503
  %v520 = vadd.f32 %v467, %v504
  %v521 = vadd.f32 %v468, %v505
  %v522 = vadd.f32 %v469, %v506
  %v523 = vadd.f32 %v470, %v507
  %v524 = vadd.f32 %v471, %v508
  %v525 = vadd.f32 %v472, %v509
  %v526 = vadd.f32 %v473, %v510
  %v527 = vadd.f32 %v474, %v511
  %v528 = vadd.f32 %v475, %v512
  %v529 = vadd.f32 %v476, %v513
  %v530 = vadd.f32 %v477, %v514
  %v531 = vadd.f32 %v478, %v515
  %v532 = vadd.f32 %v479, %v516
  %v533 = vld [vmem:[%s320 + $0xa] sm:$0xff]
  %v534 = vld [vmem:[%s320 + $0x12] sm:$0xff]
  %v535 = vld [vmem:[%s320 + $0x2a] sm:$0xff]
  %v536 = vld [vmem:[%s320 + $0x32] sm:$0xff]
  %v537 = vld [vmem:[%s320 + $0x4a] sm:$0xff]
  %v538 = vld [vmem:[%s320 + $0x52] sm:$0xff]
  %v539 = vld [vmem:[%s320 + $0x6a] sm:$0xff]
  %v540 = vld [vmem:[%s320 + $0x72] sm:$0xff]
  %v541 = vld [vmem:[%s320 + $0x8a] sm:$0xff]
  %v542 = vld [vmem:[%s320 + $0x92] sm:$0xff]
  %v543 = vld [vmem:[%s320 + $0xaa] sm:$0xff]
  %v544 = vld [vmem:[%s320 + $0xb2] sm:$0xff]
  %v545 = vld [vmem:[%s320 + $0xca] sm:$0xff]
  %v546 = vld [vmem:[%s320 + $0xd2] sm:$0xff]
  %v547 = vld [vmem:[%s320 + $0xea] sm:$0xff]
  %v548 = vld [vmem:[%s320 + $0xf2] sm:$0xff]
  %v549 = vld [vmem:[%s1 + $0x4] sm:$0x1]
  %v550 = vlaneseq
  %v551 = vshrl.u32 %v550, 7
  %v552 = vsub.s32 0, %v551
  %v553 = vrot.slane %v549, %v552
  %v554 = vmul.f32 %v533, %v553
  %v555 = vmul.f32 %v534, %v553
  %v556 = vmul.f32 %v535, %v553
  %v557 = vmul.f32 %v536, %v553
  %v558 = vmul.f32 %v537, %v553
  %v559 = vmul.f32 %v538, %v553
  %v560 = vmul.f32 %v539, %v553
  %v561 = vmul.f32 %v540, %v553
  %v562 = vmul.f32 %v541, %v553
  %v563 = vmul.f32 %v542, %v553
  %v564 = vmul.f32 %v543, %v553
  %v565 = vmul.f32 %v544, %v553
  %v566 = vmul.f32 %v545, %v553
  %v567 = vmul.f32 %v546, %v553
  %v568 = vmul.f32 %v547, %v553
  %v569 = vmul.f32 %v548, %v553
  %v570 = vadd.f32 %v517, %v554
  %v571 = vadd.f32 %v518, %v555
  %v572 = vadd.f32 %v519, %v556
  %v573 = vadd.f32 %v520, %v557
  %v574 = vadd.f32 %v521, %v558
  %v575 = vadd.f32 %v522, %v559
  %v576 = vadd.f32 %v523, %v560
  %v577 = vadd.f32 %v524, %v561
  %v578 = vadd.f32 %v525, %v562
  %v579 = vadd.f32 %v526, %v563
  %v580 = vadd.f32 %v527, %v564
  %v581 = vadd.f32 %v528, %v565
  %v582 = vadd.f32 %v529, %v566
  %v583 = vadd.f32 %v530, %v567
  %v584 = vadd.f32 %v531, %v568
  %v585 = vadd.f32 %v532, %v569
  %s586 = scalar_lea.vmem [#allocation2], 224
  %v587 = vld [vmem:[%s586 + $0x6] sm:$0xff]
  %v588 = vld [vmem:[%s586 + $0xe] sm:$0xff]
  %v589 = vld [vmem:[%s586 + $0x26] sm:$0xff]
  %v590 = vld [vmem:[%s586 + $0x2e] sm:$0xff]
  %v591 = vld [vmem:[%s586 + $0x46] sm:$0xff]
  %v592 = vld [vmem:[%s586 + $0x4e] sm:$0xff]
  %v593 = vld [vmem:[%s586 + $0x66] sm:$0xff]
  %v594 = vld [vmem:[%s586 + $0x6e] sm:$0xff]
  %v595 = vld [vmem:[%s586 + $0x86] sm:$0xff]
  %v596 = vld [vmem:[%s586 + $0x8e] sm:$0xff]
  %v597 = vld [vmem:[%s586 + $0xa6] sm:$0xff]
  %v598 = vld [vmem:[%s586 + $0xae] sm:$0xff]
  %v599 = vld [vmem:[%s586 + $0xc6] sm:$0xff]
  %v600 = vld [vmem:[%s586 + $0xce] sm:$0xff]
  %v601 = vld [vmem:[%s586 + $0xe6] sm:$0xff]
  %v602 = vld [vmem:[%s586 + $0xee] sm:$0xff]
  %v603 = vld [vmem:[%s1 + $0x5] sm:$0x1]
  %v604 = vlaneseq
  %v605 = vshrl.u32 %v604, 7
  %v606 = vsub.s32 0, %v605
  %v607 = vrot.slane %v603, %v606
  %v608 = vmul.f32 %v587, %v607
  %v609 = vmul.f32 %v588, %v607
  %v610 = vmul.f32 %v589, %v607
  %v611 = vmul.f32 %v590, %v607
  %v612 = vmul.f32 %v591, %v607
  %v613 = vmul.f32 %v592, %v607
  %v614 = vmul.f32 %v593, %v607
  %v615 = vmul.f32 %v594, %v607
  %v616 = vmul.f32 %v595, %v607
  %v617 = vmul.f32 %v596, %v607
  %v618 = vmul.f32 %v597, %v607
  %v619 = vmul.f32 %v598, %v607
  %v620 = vmul.f32 %v599, %v607
  %v621 = vmul.f32 %v600, %v607
  %v622 = vmul.f32 %v601, %v607
  %v623 = vmul.f32 %v602, %v607
  %v624 = vadd.f32 %v570, %v608
  %v625 = vadd.f32 %v571, %v609
  %v626 = vadd.f32 %v572, %v610
  %v627 = vadd.f32 %v573, %v611
  %v628 = vadd.f32 %v574, %v612
  %v629 = vadd.f32 %v575, %v613
  %v630 = vadd.f32 %v576, %v614
  %v631 = vadd.f32 %v577, %v615
  %v632 = vadd.f32 %v578, %v616
  %v633 = vadd.f32 %v579, %v617
  %v634 = vadd.f32 %v580, %v618
  %v635 = vadd.f32 %v581, %v619
  %v636 = vadd.f32 %v582, %v620
  %v637 = vadd.f32 %v583, %v621
  %v638 = vadd.f32 %v584, %v622
  %v639 = vadd.f32 %v585, %v623
  %v640 = vld [vmem:[%s586 + $0x7] sm:$0xff]
  %v641 = vld [vmem:[%s586 + $0xf] sm:$0xff]
  %v642 = vld [vmem:[%s586 + $0x27] sm:$0xff]
  %v643 = vld [vmem:[%s586 + $0x2f] sm:$0xff]
  %v644 = vld [vmem:[%s586 + $0x47] sm:$0xff]
  %v645 = vld [vmem:[%s586 + $0x4f] sm:$0xff]
  %v646 = vld [vmem:[%s586 + $0x67] sm:$0xff]
  %v647 = vld [vmem:[%s586 + $0x6f] sm:$0xff]
  %v648 = vld [vmem:[%s586 + $0x87] sm:$0xff]
  %v649 = vld [vmem:[%s586 + $0x8f] sm:$0xff]
  %v650 = vld [vmem:[%s586 + $0xa7] sm:$0xff]
  %v651 = vld [vmem:[%s586 + $0xaf] sm:$0xff]
  %v652 = vld [vmem:[%s586 + $0xc7] sm:$0xff]
  %v653 = vld [vmem:[%s586 + $0xcf] sm:$0xff]
  %v654 = vld [vmem:[%s586 + $0xe7] sm:$0xff]
  %v655 = vld [vmem:[%s586 + $0xef] sm:$0xff]
  %v656 = vld [vmem:[%s1 + $0x6] sm:$0x1]
  %v657 = vlaneseq
  %v658 = vshrl.u32 %v657, 7
  %v659 = vsub.s32 0, %v658
  %v660 = vrot.slane %v656, %v659
  %v661 = vmul.f32 %v640, %v660
  %v662 = vmul.f32 %v641, %v660
  %v663 = vmul.f32 %v642, %v660
  %v664 = vmul.f32 %v643, %v660
  %v665 = vmul.f32 %v644, %v660
  %v666 = vmul.f32 %v645, %v660
  %v667 = vmul.f32 %v646, %v660
  %v668 = vmul.f32 %v647, %v660
  %v669 = vmul.f32 %v648, %v660
  %v670 = vmul.f32 %v649, %v660
  %v671 = vmul.f32 %v650, %v660
  %v672 = vmul.f32 %v651, %v660
  %v673 = vmul.f32 %v652, %v660
  %v674 = vmul.f32 %v653, %v660
  %v675 = vmul.f32 %v654, %v660
  %v676 = vmul.f32 %v655, %v660
  %v677 = vadd.f32 %v624, %v661
  %v678 = vadd.f32 %v625, %v662
  %v679 = vadd.f32 %v626, %v663
  %v680 = vadd.f32 %v627, %v664
  %v681 = vadd.f32 %v628, %v665
  %v682 = vadd.f32 %v629, %v666
  %v683 = vadd.f32 %v630, %v667
  %v684 = vadd.f32 %v631, %v668
  %v685 = vadd.f32 %v632, %v669
  %v686 = vadd.f32 %v633, %v670
  %v687 = vadd.f32 %v634, %v671
  %v688 = vadd.f32 %v635, %v672
  %v689 = vadd.f32 %v636, %v673
  %v690 = vadd.f32 %v637, %v674
  %v691 = vadd.f32 %v638, %v675
  %v692 = vadd.f32 %v639, %v676
  %v693 = vld [vmem:[%s586 + $0x8] sm:$0xff]
  %v694 = vld [vmem:[%s586 + $0x10] sm:$0xff]
  %v695 = vld [vmem:[%s586 + $0x28] sm:$0xff]
  %v696 = vld [vmem:[%s586 + $0x30] sm:$0xff]
  %v697 = vld [vmem:[%s586 + $0x48] sm:$0xff]
  %v698 = vld [vmem:[%s586 + $0x50] sm:$0xff]
  %v699 = vld [vmem:[%s586 + $0x68] sm:$0xff]
  %v700 = vld [vmem:[%s586 + $0x70] sm:$0xff]
  %v701 = vld [vmem:[%s586 + $0x88] sm:$0xff]
  %v702 = vld [vmem:[%s586 + $0x90] sm:$0xff]
  %v703 = vld [vmem:[%s586 + $0xa8] sm:$0xff]
  %v704 = vld [vmem:[%s586 + $0xb0] sm:$0xff]
  %v705 = vld [vmem:[%s586 + $0xc8] sm:$0xff]
  %v706 = vld [vmem:[%s586 + $0xd0] sm:$0xff]
  %v707 = vld [vmem:[%s586 + $0xe8] sm:$0xff]
  %v708 = vld [vmem:[%s586 + $0xf0] sm:$0xff]
  %v709 = vld [vmem:[%s1 + $0x7] sm:$0x1]
  %v710 = vlaneseq
  %v711 = vshrl.u32 %v710, 7
  %v712 = vsub.s32 0, %v711
  %v713 = vrot.slane %v709, %v712
  %v714 = vmul.f32 %v693, %v713
  %v715 = vmul.f32 %v694, %v713
  %v716 = vmul.f32 %v695, %v713
  %v717 = vmul.f32 %v696, %v713
  %v718 = vmul.f32 %v697, %v713
  %v719 = vmul.f32 %v698, %v713
  %v720 = vmul.f32 %v699, %v713
  %v721 = vmul.f32 %v700, %v713
  %v722 = vmul.f32 %v701, %v713
  %v723 = vmul.f32 %v702, %v713
  %v724 = vmul.f32 %v703, %v713
  %v725 = vmul.f32 %v704, %v713
  %v726 = vmul.f32 %v705, %v713
  %v727 = vmul.f32 %v706, %v713
  %v728 = vmul.f32 %v707, %v713
  %v729 = vmul.f32 %v708, %v713
  %v730 = vadd.f32 %v677, %v714
  %v731 = vadd.f32 %v678, %v715
  %v732 = vadd.f32 %v679, %v716
  %v733 = vadd.f32 %v680, %v717
  %v734 = vadd.f32 %v681, %v718
  %v735 = vadd.f32 %v682, %v719
  %v736 = vadd.f32 %v683, %v720
  %v737 = vadd.f32 %v684, %v721
  %v738 = vadd.f32 %v685, %v722
  %v739 = vadd.f32 %v686, %v723
  %v740 = vadd.f32 %v687, %v724
  %v741 = vadd.f32 %v688, %v725
  %v742 = vadd.f32 %v689, %v726
  %v743 = vadd.f32 %v690, %v727
  %v744 = vadd.f32 %v691, %v728
  %v745 = vadd.f32 %v692, %v729
  %v746 = vld [vmem:[%s586 + $0x9] sm:$0xff]
  %v747 = vld [vmem:[%s586 + $0x11] sm:$0xff]
  %v748 = vld [vmem:[%s586 + $0x29] sm:$0xff]
  %v749 = vld [vmem:[%s586 + $0x31] sm:$0xff]
  %v750 = vld [vmem:[%s586 + $0x49] sm:$0xff]
  %v751 = vld [vmem:[%s586 + $0x51] sm:$0xff]
  %v752 = vld [vmem:[%s586 + $0x69] sm:$0xff]
  %v753 = vld [vmem:[%s586 + $0x71] sm:$0xff]
  %v754 = vld [vmem:[%s586 + $0x89] sm:$0xff]
  %v755 = vld [vmem:[%s586 + $0x91] sm:$0xff]
  %v756 = vld [vmem:[%s586 + $0xa9] sm:$0xff]
  %v757 = vld [vmem:[%s586 + $0xb1] sm:$0xff]
  %v758 = vld [vmem:[%s586 + $0xc9] sm:$0xff]
  %v759 = vld [vmem:[%s586 + $0xd1] sm:$0xff]
  %v760 = vld [vmem:[%s586 + $0xe9] sm:$0xff]
  %v761 = vld [vmem:[%s586 + $0xf1] sm:$0xff]
  %v762 = vld [vmem:[%s1 + $0x8] sm:$0x1]
  %v763 = vlaneseq
  %v764 = vshrl.u32 %v763, 7
  %v765 = vsub.s32 0, %v764
  %v766 = vrot.slane %v762, %v765
  %v767 = vmul.f32 %v746, %v766
  %v768 = vmul.f32 %v747, %v766
  %v769 = vmul.f32 %v748, %v766
  %v770 = vmul.f32 %v749, %v766
  %v771 = vmul.f32 %v750, %v766
  %v772 = vmul.f32 %v751, %v766
  %v773 = vmul.f32 %v752, %v766
  %v774 = vmul.f32 %v753, %v766
  %v775 = vmul.f32 %v754, %v766
  %v776 = vmul.f32 %v755, %v766
  %v777 = vmul.f32 %v756, %v766
  %v778 = vmul.f32 %v757, %v766
  %v779 = vmul.f32 %v758, %v766
  %v780 = vmul.f32 %v759, %v766
  %v781 = vmul.f32 %v760, %v766
  %v782 = vmul.f32 %v761, %v766
  %v783 = vadd.f32 %v730, %v767
  %v784 = vadd.f32 %v731, %v768
  %v785 = vadd.f32 %v732, %v769
  %v786 = vadd.f32 %v733, %v770
  %v787 = vadd.f32 %v734, %v771
  %v788 = vadd.f32 %v735, %v772
  %v789 = vadd.f32 %v736, %v773
  %v790 = vadd.f32 %v737, %v774
  %v791 = vadd.f32 %v738, %v775
  %v792 = vadd.f32 %v739, %v776
  %v793 = vadd.f32 %v740, %v777
  %v794 = vadd.f32 %v741, %v778
  %v795 = vadd.f32 %v742, %v779
  %v796 = vadd.f32 %v743, %v780
  %v797 = vadd.f32 %v744, %v781
  %v798 = vadd.f32 %v745, %v782
  %v799 = vld [vmem:[%s586 + $0xa] sm:$0xff]
  %v800 = vld [vmem:[%s586 + $0x12] sm:$0xff]
  %v801 = vld [vmem:[%s586 + $0x2a] sm:$0xff]
  %v802 = vld [vmem:[%s586 + $0x32] sm:$0xff]
  %v803 = vld [vmem:[%s586 + $0x4a] sm:$0xff]
  %v804 = vld [vmem:[%s586 + $0x52] sm:$0xff]
  %v805 = vld [vmem:[%s586 + $0x6a] sm:$0xff]
  %v806 = vld [vmem:[%s586 + $0x72] sm:$0xff]
  %v807 = vld [vmem:[%s586 + $0x8a] sm:$0xff]
  %v808 = vld [vmem:[%s586 + $0x92] sm:$0xff]
  %v809 = vld [vmem:[%s586 + $0xaa] sm:$0xff]
  %v810 = vld [vmem:[%s586 + $0xb2] sm:$0xff]
  %v811 = vld [vmem:[%s586 + $0xca] sm:$0xff]
  %v812 = vld [vmem:[%s586 + $0xd2] sm:$0xff]
  %v813 = vld [vmem:[%s586 + $0xea] sm:$0xff]
  %v814 = vld [vmem:[%s586 + $0xf2] sm:$0xff]
  %v815 = vld [vmem:[%s1 + $0x9] sm:$0x1]
  %v816 = vlaneseq
  %v817 = vshrl.u32 %v816, 7
  %v818 = vsub.s32 0, %v817
  %v819 = vrot.slane %v815, %v818
  %v820 = vmul.f32 %v799, %v819
  %v821 = vmul.f32 %v800, %v819
  %v822 = vmul.f32 %v801, %v819
  %v823 = vmul.f32 %v802, %v819
  %v824 = vmul.f32 %v803, %v819
  %v825 = vmul.f32 %v804, %v819
  %v826 = vmul.f32 %v805, %v819
  %v827 = vmul.f32 %v806, %v819
  %v828 = vmul.f32 %v807, %v819
  %v829 = vmul.f32 %v808, %v819
  %v830 = vmul.f32 %v809, %v819
  %v831 = vmul.f32 %v810, %v819
  %v832 = vmul.f32 %v811, %v819
  %v833 = vmul.f32 %v812, %v819
  %v834 = vmul.f32 %v813, %v819
  %v835 = vmul.f32 %v814, %v819
  %v836 = vadd.f32 %v783, %v820
  %v837 = vadd.f32 %v784, %v821
  %v838 = vadd.f32 %v785, %v822
  %v839 = vadd.f32 %v786, %v823
  %v840 = vadd.f32 %v787, %v824
  %v841 = vadd.f32 %v788, %v825
  %v842 = vadd.f32 %v789, %v826
  %v843 = vadd.f32 %v790, %v827
  %v844 = vadd.f32 %v791, %v828
  %v845 = vadd.f32 %v792, %v829
  %v846 = vadd.f32 %v793, %v830
  %v847 = vadd.f32 %v794, %v831
  %v848 = vadd.f32 %v795, %v832
  %v849 = vadd.f32 %v796, %v833
  %v850 = vadd.f32 %v797, %v834
  %v851 = vadd.f32 %v798, %v835
  %v852 = vld [vmem:[%s287 + $0x6] sm:$0xff]
  %v853 = vld [vmem:[%s287 + $0xe] sm:$0xff]
  %v854 = vld [vmem:[%s287 + $0x26] sm:$0xff]
  %v855 = vld [vmem:[%s287 + $0x2e] sm:$0xff]
  %v856 = vld [vmem:[%s287 + $0x46] sm:$0xff]
  %v857 = vld [vmem:[%s287 + $0x4e] sm:$0xff]
  %v858 = vld [vmem:[%s287 + $0x66] sm:$0xff]
  %v859 = vld [vmem:[%s287 + $0x6e] sm:$0xff]
  %v860 = vld [vmem:[%s287 + $0x86] sm:$0xff]
  %v861 = vld [vmem:[%s287 + $0x8e] sm:$0xff]
  %v862 = vld [vmem:[%s287 + $0xa6] sm:$0xff]
  %v863 = vld [vmem:[%s287 + $0xae] sm:$0xff]
  %v864 = vld [vmem:[%s287 + $0xc6] sm:$0xff]
  %v865 = vld [vmem:[%s287 + $0xce] sm:$0xff]
  %v866 = vld [vmem:[%s287 + $0xe6] sm:$0xff]
  %v867 = vld [vmem:[%s287 + $0xee] sm:$0xff]
  %v868 = vld [vmem:[%s1 + $0xa] sm:$0x1]
  %v869 = vlaneseq
  %v870 = vshrl.u32 %v869, 7
  %v871 = vsub.s32 0, %v870
  %v872 = vrot.slane %v868, %v871
  %v873 = vmul.f32 %v852, %v872
  %v874 = vmul.f32 %v853, %v872
  %v875 = vmul.f32 %v854, %v872
  %v876 = vmul.f32 %v855, %v872
  %v877 = vmul.f32 %v856, %v872
  %v878 = vmul.f32 %v857, %v872
  %v879 = vmul.f32 %v858, %v872
  %v880 = vmul.f32 %v859, %v872
  %v881 = vmul.f32 %v860, %v872
  %v882 = vmul.f32 %v861, %v872
  %v883 = vmul.f32 %v862, %v872
  %v884 = vmul.f32 %v863, %v872
  %v885 = vmul.f32 %v864, %v872
  %v886 = vmul.f32 %v865, %v872
  %v887 = vmul.f32 %v866, %v872
  %v888 = vmul.f32 %v867, %v872
  %v889 = vadd.f32 %v836, %v873
  %v890 = vadd.f32 %v837, %v874
  %v891 = vadd.f32 %v838, %v875
  %v892 = vadd.f32 %v839, %v876
  %v893 = vadd.f32 %v840, %v877
  %v894 = vadd.f32 %v841, %v878
  %v895 = vadd.f32 %v842, %v879
  %v896 = vadd.f32 %v843, %v880
  %v897 = vadd.f32 %v844, %v881
  %v898 = vadd.f32 %v845, %v882
  %v899 = vadd.f32 %v846, %v883
  %v900 = vadd.f32 %v847, %v884
  %v901 = vadd.f32 %v848, %v885
  %v902 = vadd.f32 %v849, %v886
  %v903 = vadd.f32 %v850, %v887
  %v904 = vadd.f32 %v851, %v888
  %v905 = vld [vmem:[%s287 + $0x7] sm:$0xff]
  %v906 = vld [vmem:[%s287 + $0xf] sm:$0xff]
  %v907 = vld [vmem:[%s287 + $0x27] sm:$0xff]
  %v908 = vld [vmem:[%s287 + $0x2f] sm:$0xff]
  %v909 = vld [vmem:[%s287 + $0x47] sm:$0xff]
  %v910 = vld [vmem:[%s287 + $0x4f] sm:$0xff]
  %v911 = vld [vmem:[%s287 + $0x67] sm:$0xff]
  %v912 = vld [vmem:[%s287 + $0x6f] sm:$0xff]
  %v913 = vld [vmem:[%s287 + $0x87] sm:$0xff]
  %v914 = vld [vmem:[%s287 + $0x8f] sm:$0xff]
  %v915 = vld [vmem:[%s287 + $0xa7] sm:$0xff]
  %v916 = vld [vmem:[%s287 + $0xaf] sm:$0xff]
  %v917 = vld [vmem:[%s287 + $0xc7] sm:$0xff]
  %v918 = vld [vmem:[%s287 + $0xcf] sm:$0xff]
  %v919 = vld [vmem:[%s287 + $0xe7] sm:$0xff]
  %v920 = vld [vmem:[%s287 + $0xef] sm:$0xff]
  %v921 = vld [vmem:[%s1 + $0xb] sm:$0x1]
  %v922 = vlaneseq
  %v923 = vshrl.u32 %v922, 7
  %v924 = vsub.s32 0, %v923
  %v925 = vrot.slane %v921, %v924
  %v926 = vmul.f32 %v905, %v925
  %v927 = vmul.f32 %v906, %v925
  %v928 = vmul.f32 %v907, %v925
  %v929 = vmul.f32 %v908, %v925
  %v930 = vmul.f32 %v909, %v925
  %v931 = vmul.f32 %v910, %v925
  %v932 = vmul.f32 %v911, %v925
  %v933 = vmul.f32 %v912, %v925
  %v934 = vmul.f32 %v913, %v925
  %v935 = vmul.f32 %v914, %v925
  %v936 = vmul.f32 %v915, %v925
  %v937 = vmul.f32 %v916, %v925
  %v938 = vmul.f32 %v917, %v925
  %v939 = vmul.f32 %v918, %v925
  %v940 = vmul.f32 %v919, %v925
  %v941 = vmul.f32 %v920, %v925
  %v942 = vadd.f32 %v889, %v926
  %v943 = vadd.f32 %v890, %v927
  %v944 = vadd.f32 %v891, %v928
  %v945 = vadd.f32 %v892, %v929
  %v946 = vadd.f32 %v893, %v930
  %v947 = vadd.f32 %v894, %v931
  %v948 = vadd.f32 %v895, %v932
  %v949 = vadd.f32 %v896, %v933
  %v950 = vadd.f32 %v897, %v934
  %v951 = vadd.f32 %v898, %v935
  %v952 = vadd.f32 %v899, %v936
  %v953 = vadd.f32 %v900, %v937
  %v954 = vadd.f32 %v901, %v938
  %v955 = vadd.f32 %v902, %v939
  %v956 = vadd.f32 %v903, %v940
  %v957 = vadd.f32 %v904, %v941
  %v958 = vld [vmem:[%s287 + $0x8] sm:$0xff]
  %v959 = vld [vmem:[%s287 + $0x10] sm:$0xff]
  %v960 = vld [vmem:[%s287 + $0x28] sm:$0xff]
  %v961 = vld [vmem:[%s287 + $0x30] sm:$0xff]
  %v962 = vld [vmem:[%s287 + $0x48] sm:$0xff]
  %v963 = vld [vmem:[%s287 + $0x50] sm:$0xff]
  %v964 = vld [vmem:[%s287 + $0x68] sm:$0xff]
  %v965 = vld [vmem:[%s287 + $0x70] sm:$0xff]
  %v966 = vld [vmem:[%s287 + $0x88] sm:$0xff]
  %v967 = vld [vmem:[%s287 + $0x90] sm:$0xff]
  %v968 = vld [vmem:[%s287 + $0xa8] sm:$0xff]
  %v969 = vld [vmem:[%s287 + $0xb0] sm:$0xff]
  %v970 = vld [vmem:[%s287 + $0xc8] sm:$0xff]
  %v971 = vld [vmem:[%s287 + $0xd0] sm:$0xff]
  %v972 = vld [vmem:[%s287 + $0xe8] sm:$0xff]
  %v973 = vld [vmem:[%s287 + $0xf0] sm:$0xff]
  %v974 = vld [vmem:[%s1 + $0xc] sm:$0x1]
  %v975 = vlaneseq
  %v976 = vshrl.u32 %v975, 7
  %v977 = vsub.s32 0, %v976
  %v978 = vrot.slane %v974, %v977
  %v979 = vmul.f32 %v958, %v978
  %v980 = vmul.f32 %v959, %v978
  %v981 = vmul.f32 %v960, %v978
  %v982 = vmul.f32 %v961, %v978
  %v983 = vmul.f32 %v962, %v978
  %v984 = vmul.f32 %v963, %v978
  %v985 = vmul.f32 %v964, %v978
  %v986 = vmul.f32 %v965, %v978
  %v987 = vmul.f32 %v966, %v978
  %v988 = vmul.f32 %v967, %v978
  %v989 = vmul.f32 %v968, %v978
  %v990 = vmul.f32 %v969, %v978
  %v991 = vmul.f32 %v970, %v978
  %v992 = vmul.f32 %v971, %v978
  %v993 = vmul.f32 %v972, %v978
  %v994 = vmul.f32 %v973, %v978
  %v995 = vadd.f32 %v942, %v979
  %v996 = vadd.f32 %v943, %v980
  %v997 = vadd.f32 %v944, %v981
  %v998 = vadd.f32 %v945, %v982
  %v999 = vadd.f32 %v946, %v983
  %v1000 = vadd.f32 %v947, %v984
  %v1001 = vadd.f32 %v948, %v985
  %v1002 = vadd.f32 %v949, %v986
  %v1003 = vadd.f32 %v950, %v987
  %v1004 = vadd.f32 %v951, %v988
  %v1005 = vadd.f32 %v952, %v989
  %v1006 = vadd.f32 %v953, %v990
  %v1007 = vadd.f32 %v954, %v991
  %v1008 = vadd.f32 %v955, %v992
  %v1009 = vadd.f32 %v956, %v993
  %v1010 = vadd.f32 %v957, %v994
  %v1011 = vld [vmem:[%s287 + $0x9] sm:$0xff]
  %v1012 = vld [vmem:[%s287 + $0x11] sm:$0xff]
  %v1013 = vld [vmem:[%s287 + $0x29] sm:$0xff]
  %v1014 = vld [vmem:[%s287 + $0x31] sm:$0xff]
  %v1015 = vld [vmem:[%s287 + $0x49] sm:$0xff]
  %v1016 = vld [vmem:[%s287 + $0x51] sm:$0xff]
  %v1017 = vld [vmem:[%s287 + $0x69] sm:$0xff]
  %v1018 = vld [vmem:[%s287 + $0x71] sm:$0xff]
  %v1019 = vld [vmem:[%s287 + $0x89] sm:$0xff]
  %v1020 = vld [vmem:[%s287 + $0x91] sm:$0xff]
  %v1021 = vld [vmem:[%s287 + $0xa9] sm:$0xff]
  %v1022 = vld [vmem:[%s287 + $0xb1] sm:$0xff]
  %v1023 = vld [vmem:[%s287 + $0xc9] sm:$0xff]
  %v1024 = vld [vmem:[%s287 + $0xd1] sm:$0xff]
  %v1025 = vld [vmem:[%s287 + $0xe9] sm:$0xff]
  %v1026 = vld [vmem:[%s287 + $0xf1] sm:$0xff]
  %v1027 = vld [vmem:[%s1 + $0xd] sm:$0x1]
  %v1028 = vlaneseq
  %v1029 = vshrl.u32 %v1028, 7
  %v1030 = vsub.s32 0, %v1029
  %v1031 = vrot.slane %v1027, %v1030
  %v1032 = vmul.f32 %v1011, %v1031
  %v1033 = vmul.f32 %v1012, %v1031
  %v1034 = vmul.f32 %v1013, %v1031
  %v1035 = vmul.f32 %v1014, %v1031
  %v1036 = vmul.f32 %v1015, %v1031
  %v1037 = vmul.f32 %v1016, %v1031
  %v1038 = vmul.f32 %v1017, %v1031
  %v1039 = vmul.f32 %v1018, %v1031
  %v1040 = vmul.f32 %v1019, %v1031
  %v1041 = vmul.f32 %v1020, %v1031
  %v1042 = vmul.f32 %v1021, %v1031
  %v1043 = vmul.f32 %v1022, %v1031
  %v1044 = vmul.f32 %v1023, %v1031
  %v1045 = vmul.f32 %v1024, %v1031
  %v1046 = vmul.f32 %v1025, %v1031
  %v1047 = vmul.f32 %v1026, %v1031
  %v1048 = vadd.f32 %v995, %v1032
  %v1049 = vadd.f32 %v996, %v1033
  %v1050 = vadd.f32 %v997, %v1034
  %v1051 = vadd.f32 %v998, %v1035
  %v1052 = vadd.f32 %v999, %v1036
  %v1053 = vadd.f32 %v1000, %v1037
  %v1054 = vadd.f32 %v1001, %v1038
  %v1055 = vadd.f32 %v1002, %v1039
  %v1056 = vadd.f32 %v1003, %v1040
  %v1057 = vadd.f32 %v1004, %v1041
  %v1058 = vadd.f32 %v1005, %v1042
  %v1059 = vadd.f32 %v1006, %v1043
  %v1060 = vadd.f32 %v1007, %v1044
  %v1061 = vadd.f32 %v1008, %v1045
  %v1062 = vadd.f32 %v1009, %v1046
  %v1063 = vadd.f32 %v1010, %v1047
  %v1064 = vld [vmem:[%s287 + $0xa] sm:$0xff]
  %v1065 = vld [vmem:[%s287 + $0x12] sm:$0xff]
  %v1066 = vld [vmem:[%s287 + $0x2a] sm:$0xff]
  %v1067 = vld [vmem:[%s287 + $0x32] sm:$0xff]
  %v1068 = vld [vmem:[%s287 + $0x4a] sm:$0xff]
  %v1069 = vld [vmem:[%s287 + $0x52] sm:$0xff]
  %v1070 = vld [vmem:[%s287 + $0x6a] sm:$0xff]
  %v1071 = vld [vmem:[%s287 + $0x72] sm:$0xff]
  %v1072 = vld [vmem:[%s287 + $0x8a] sm:$0xff]
  %v1073 = vld [vmem:[%s287 + $0x92] sm:$0xff]
  %v1074 = vld [vmem:[%s287 + $0xaa] sm:$0xff]
  %v1075 = vld [vmem:[%s287 + $0xb2] sm:$0xff]
  %v1076 = vld [vmem:[%s287 + $0xca] sm:$0xff]
  %v1077 = vld [vmem:[%s287 + $0xd2] sm:$0xff]
  %v1078 = vld [vmem:[%s287 + $0xea] sm:$0xff]
  %v1079 = vld [vmem:[%s287 + $0xf2] sm:$0xff]
  %v1080 = vld [vmem:[%s1 + $0xe] sm:$0x1]
  %v1081 = vlaneseq
  %v1082 = vshrl.u32 %v1081, 7
  %v1083 = vsub.s32 0, %v1082
  %v1084 = vrot.slane %v1080, %v1083
  %v1085 = vmul.f32 %v1064, %v1084
  %v1086 = vmul.f32 %v1065, %v1084
  %v1087 = vmul.f32 %v1066, %v1084
  %v1088 = vmul.f32 %v1067, %v1084
  %v1089 = vmul.f32 %v1068, %v1084
  %v1090 = vmul.f32 %v1069, %v1084
  %v1091 = vmul.f32 %v1070, %v1084
  %v1092 = vmul.f32 %v1071, %v1084
  %v1093 = vmul.f32 %v1072, %v1084
  %v1094 = vmul.f32 %v1073, %v1084
  %v1095 = vmul.f32 %v1074, %v1084
  %v1096 = vmul.f32 %v1075, %v1084
  %v1097 = vmul.f32 %v1076, %v1084
  %v1098 = vmul.f32 %v1077, %v1084
  %v1099 = vmul.f32 %v1078, %v1084
  %v1100 = vmul.f32 %v1079, %v1084
  %v1101 = vadd.f32 %v1048, %v1085
  %v1102 = vadd.f32 %v1049, %v1086
  %v1103 = vadd.f32 %v1050, %v1087
  %v1104 = vadd.f32 %v1051, %v1088
  %v1105 = vadd.f32 %v1052, %v1089
  %v1106 = vadd.f32 %v1053, %v1090
  %v1107 = vadd.f32 %v1054, %v1091
  %v1108 = vadd.f32 %v1055, %v1092
  %v1109 = vadd.f32 %v1056, %v1093
  %v1110 = vadd.f32 %v1057, %v1094
  %v1111 = vadd.f32 %v1058, %v1095
  %v1112 = vadd.f32 %v1059, %v1096
  %v1113 = vadd.f32 %v1060, %v1097
  %v1114 = vadd.f32 %v1061, %v1098
  %v1115 = vadd.f32 %v1062, %v1099
  %v1116 = vadd.f32 %v1063, %v1100
  %s1117 = scalar_lea.vmem [#allocation2], 288
  %v1118 = vld [vmem:[%s1117 + $0x6] sm:$0xff]
  %v1119 = vld [vmem:[%s1117 + $0xe] sm:$0xff]
  %v1120 = vld [vmem:[%s1117 + $0x26] sm:$0xff]
  %v1121 = vld [vmem:[%s1117 + $0x2e] sm:$0xff]
  %v1122 = vld [vmem:[%s1117 + $0x46] sm:$0xff]
  %v1123 = vld [vmem:[%s1117 + $0x4e] sm:$0xff]
  %v1124 = vld [vmem:[%s1117 + $0x66] sm:$0xff]
  %v1125 = vld [vmem:[%s1117 + $0x6e] sm:$0xff]
  %v1126 = vld [vmem:[%s1117 + $0x86] sm:$0xff]
  %v1127 = vld [vmem:[%s1117 + $0x8e] sm:$0xff]
  %v1128 = vld [vmem:[%s1117 + $0xa6] sm:$0xff]
  %v1129 = vld [vmem:[%s1117 + $0xae] sm:$0xff]
  %v1130 = vld [vmem:[%s1117 + $0xc6] sm:$0xff]
  %v1131 = vld [vmem:[%s1117 + $0xce] sm:$0xff]
  %v1132 = vld [vmem:[%s1117 + $0xe6] sm:$0xff]
  %v1133 = vld [vmem:[%s1117 + $0xee] sm:$0xff]
  %v1134 = vld [vmem:[%s1 + $0xf] sm:$0x1]
  %v1135 = vlaneseq
  %v1136 = vshrl.u32 %v1135, 7
  %v1137 = vsub.s32 0, %v1136
  %v1138 = vrot.slane %v1134, %v1137
  %v1139 = vmul.f32 %v1118, %v1138
  %v1140 = vmul.f32 %v1119, %v1138
  %v1141 = vmul.f32 %v1120, %v1138
  %v1142 = vmul.f32 %v1121, %v1138
  %v1143 = vmul.f32 %v1122, %v1138
  %v1144 = vmul.f32 %v1123, %v1138
  %v1145 = vmul.f32 %v1124, %v1138
  %v1146 = vmul.f32 %v1125, %v1138
  %v1147 = vmul.f32 %v1126, %v1138
  %v1148 = vmul.f32 %v1127, %v1138
  %v1149 = vmul.f32 %v1128, %v1138
  %v1150 = vmul.f32 %v1129, %v1138
  %v1151 = vmul.f32 %v1130, %v1138
  %v1152 = vmul.f32 %v1131, %v1138
  %v1153 = vmul.f32 %v1132, %v1138
  %v1154 = vmul.f32 %v1133, %v1138
  %v1155 = vadd.f32 %v1101, %v1139
  %v1156 = vadd.f32 %v1102, %v1140
  %v1157 = vadd.f32 %v1103, %v1141
  %v1158 = vadd.f32 %v1104, %v1142
  %v1159 = vadd.f32 %v1105, %v1143
  %v1160 = vadd.f32 %v1106, %v1144
  %v1161 = vadd.f32 %v1107, %v1145
  %v1162 = vadd.f32 %v1108, %v1146
  %v1163 = vadd.f32 %v1109, %v1147
  %v1164 = vadd.f32 %v1110, %v1148
  %v1165 = vadd.f32 %v1111, %v1149
  %v1166 = vadd.f32 %v1112, %v1150
  %v1167 = vadd.f32 %v1113, %v1151
  %v1168 = vadd.f32 %v1114, %v1152
  %v1169 = vadd.f32 %v1115, %v1153
  %v1170 = vadd.f32 %v1116, %v1154
  %v1171 = vld [vmem:[%s1117 + $0x7] sm:$0xff]
  %v1172 = vld [vmem:[%s1117 + $0xf] sm:$0xff]
  %v1173 = vld [vmem:[%s1117 + $0x27] sm:$0xff]
  %v1174 = vld [vmem:[%s1117 + $0x2f] sm:$0xff]
  %v1175 = vld [vmem:[%s1117 + $0x47] sm:$0xff]
  %v1176 = vld [vmem:[%s1117 + $0x4f] sm:$0xff]
  %v1177 = vld [vmem:[%s1117 + $0x67] sm:$0xff]
  %v1178 = vld [vmem:[%s1117 + $0x6f] sm:$0xff]
  %v1179 = vld [vmem:[%s1117 + $0x87] sm:$0xff]
  %v1180 = vld [vmem:[%s1117 + $0x8f] sm:$0xff]
  %v1181 = vld [vmem:[%s1117 + $0xa7] sm:$0xff]
  %v1182 = vld [vmem:[%s1117 + $0xaf] sm:$0xff]
  %v1183 = vld [vmem:[%s1117 + $0xc7] sm:$0xff]
  %v1184 = vld [vmem:[%s1117 + $0xcf] sm:$0xff]
  %v1185 = vld [vmem:[%s1117 + $0xe7] sm:$0xff]
  %v1186 = vld [vmem:[%s1117 + $0xef] sm:$0xff]
  %v1187 = vld [vmem:[%s1 + $0x10] sm:$0x1]
  %v1188 = vlaneseq
  %v1189 = vshrl.u32 %v1188, 7
  %v1190 = vsub.s32 0, %v1189
  %v1191 = vrot.slane %v1187, %v1190
  %v1192 = vmul.f32 %v1171, %v1191
  %v1193 = vmul.f32 %v1172, %v1191
  %v1194 = vmul.f32 %v1173, %v1191
  %v1195 = vmul.f32 %v1174, %v1191
  %v1196 = vmul.f32 %v1175, %v1191
  %v1197 = vmul.f32 %v1176, %v1191
  %v1198 = vmul.f32 %v1177, %v1191
  %v1199 = vmul.f32 %v1178, %v1191
  %v1200 = vmul.f32 %v1179, %v1191
  %v1201 = vmul.f32 %v1180, %v1191
  %v1202 = vmul.f32 %v1181, %v1191
  %v1203 = vmul.f32 %v1182, %v1191
  %v1204 = vmul.f32 %v1183, %v1191
  %v1205 = vmul.f32 %v1184, %v1191
  %v1206 = vmul.f32 %v1185, %v1191
  %v1207 = vmul.f32 %v1186, %v1191
  %v1208 = vadd.f32 %v1155, %v1192
  %v1209 = vadd.f32 %v1156, %v1193
  %v1210 = vadd.f32 %v1157, %v1194
  %v1211 = vadd.f32 %v1158, %v1195
  %v1212 = vadd.f32 %v1159, %v1196
  %v1213 = vadd.f32 %v1160, %v1197
  %v1214 = vadd.f32 %v1161, %v1198
  %v1215 = vadd.f32 %v1162, %v1199
  %v1216 = vadd.f32 %v1163, %v1200
  %v1217 = vadd.f32 %v1164, %v1201
  %v1218 = vadd.f32 %v1165, %v1202
  %v1219 = vadd.f32 %v1166, %v1203
  %v1220 = vadd.f32 %v1167, %v1204
  %v1221 = vadd.f32 %v1168, %v1205
  %v1222 = vadd.f32 %v1169, %v1206
  %v1223 = vadd.f32 %v1170, %v1207
  %v1224 = vld [vmem:[%s1117 + $0x8] sm:$0xff]
  %v1225 = vld [vmem:[%s1117 + $0x10] sm:$0xff]
  %v1226 = vld [vmem:[%s1117 + $0x28] sm:$0xff]
  %v1227 = vld [vmem:[%s1117 + $0x30] sm:$0xff]
  %v1228 = vld [vmem:[%s1117 + $0x48] sm:$0xff]
  %v1229 = vld [vmem:[%s1117 + $0x50] sm:$0xff]
  %v1230 = vld [vmem:[%s1117 + $0x68] sm:$0xff]
  %v1231 = vld [vmem:[%s1117 + $0x70] sm:$0xff]
  %v1232 = vld [vmem:[%s1117 + $0x88] sm:$0xff]
  %v1233 = vld [vmem:[%s1117 + $0x90] sm:$0xff]
  %v1234 = vld [vmem:[%s1117 + $0xa8] sm:$0xff]
  %v1235 = vld [vmem:[%s1117 + $0xb0] sm:$0xff]
  %v1236 = vld [vmem:[%s1117 + $0xc8] sm:$0xff]
  %v1237 = vld [vmem:[%s1117 + $0xd0] sm:$0xff]
  %v1238 = vld [vmem:[%s1117 + $0xe8] sm:$0xff]
  %v1239 = vld [vmem:[%s1117 + $0xf0] sm:$0xff]
  %v1240 = vld [vmem:[%s1 + $0x11] sm:$0x1]
  %v1241 = vlaneseq
  %v1242 = vshrl.u32 %v1241, 7
  %v1243 = vsub.s32 0, %v1242
  %v1244 = vrot.slane %v1240, %v1243
  %v1245 = vmul.f32 %v1224, %v1244
  %v1246 = vmul.f32 %v1225, %v1244
  %v1247 = vmul.f32 %v1226, %v1244
  %v1248 = vmul.f32 %v1227, %v1244
  %v1249 = vmul.f32 %v1228, %v1244
  %v1250 = vmul.f32 %v1229, %v1244
  %v1251 = vmul.f32 %v1230, %v1244
  %v1252 = vmul.f32 %v1231, %v1244
  %v1253 = vmul.f32 %v1232, %v1244
  %v1254 = vmul.f32 %v1233, %v1244
  %v1255 = vmul.f32 %v1234, %v1244
  %v1256 = vmul.f32 %v1235, %v1244
  %v1257 = vmul.f32 %v1236, %v1244
  %v1258 = vmul.f32 %v1237, %v1244
  %v1259 = vmul.f32 %v1238, %v1244
  %v1260 = vmul.f32 %v1239, %v1244
  %v1261 = vadd.f32 %v1208, %v1245
  %v1262 = vadd.f32 %v1209, %v1246
  %v1263 = vadd.f32 %v1210, %v1247
  %v1264 = vadd.f32 %v1211, %v1248
  %v1265 = vadd.f32 %v1212, %v1249
  %v1266 = vadd.f32 %v1213, %v1250
  %v1267 = vadd.f32 %v1214, %v1251
  %v1268 = vadd.f32 %v1215, %v1252
  %v1269 = vadd.f32 %v1216, %v1253
  %v1270 = vadd.f32 %v1217, %v1254
  %v1271 = vadd.f32 %v1218, %v1255
  %v1272 = vadd.f32 %v1219, %v1256
  %v1273 = vadd.f32 %v1220, %v1257
  %v1274 = vadd.f32 %v1221, %v1258
  %v1275 = vadd.f32 %v1222, %v1259
  %v1276 = vadd.f32 %v1223, %v1260
  %v1277 = vld [vmem:[%s1117 + $0x9] sm:$0xff]
  %v1278 = vld [vmem:[%s1117 + $0x11] sm:$0xff]
  %v1279 = vld [vmem:[%s1117 + $0x29] sm:$0xff]
  %v1280 = vld [vmem:[%s1117 + $0x31] sm:$0xff]
  %v1281 = vld [vmem:[%s1117 + $0x49] sm:$0xff]
  %v1282 = vld [vmem:[%s1117 + $0x51] sm:$0xff]
  %v1283 = vld [vmem:[%s1117 + $0x69] sm:$0xff]
  %v1284 = vld [vmem:[%s1117 + $0x71] sm:$0xff]
  %v1285 = vld [vmem:[%s1117 + $0x89] sm:$0xff]
  %v1286 = vld [vmem:[%s1117 + $0x91] sm:$0xff]
  %v1287 = vld [vmem:[%s1117 + $0xa9] sm:$0xff]
  %v1288 = vld [vmem:[%s1117 + $0xb1] sm:$0xff]
  %v1289 = vld [vmem:[%s1117 + $0xc9] sm:$0xff]
  %v1290 = vld [vmem:[%s1117 + $0xd1] sm:$0xff]
  %v1291 = vld [vmem:[%s1117 + $0xe9] sm:$0xff]
  %v1292 = vld [vmem:[%s1117 + $0xf1] sm:$0xff]
  %v1293 = vld [vmem:[%s1 + $0x12] sm:$0x1]
  %v1294 = vlaneseq
  %v1295 = vshrl.u32 %v1294, 7
  %v1296 = vsub.s32 0, %v1295
  %v1297 = vrot.slane %v1293, %v1296
  %v1298 = vmul.f32 %v1277, %v1297
  %v1299 = vmul.f32 %v1278, %v1297
  %v1300 = vmul.f32 %v1279, %v1297
  %v1301 = vmul.f32 %v1280, %v1297
  %v1302 = vmul.f32 %v1281, %v1297
  %v1303 = vmul.f32 %v1282, %v1297
  %v1304 = vmul.f32 %v1283, %v1297
  %v1305 = vmul.f32 %v1284, %v1297
  %v1306 = vmul.f32 %v1285, %v1297
  %v1307 = vmul.f32 %v1286, %v1297
  %v1308 = vmul.f32 %v1287, %v1297
  %v1309 = vmul.f32 %v1288, %v1297
  %v1310 = vmul.f32 %v1289, %v1297
  %v1311 = vmul.f32 %v1290, %v1297
  %v1312 = vmul.f32 %v1291, %v1297
  %v1313 = vmul.f32 %v1292, %v1297
  %v1314 = vadd.f32 %v1261, %v1298
  %v1315 = vadd.f32 %v1262, %v1299
  %v1316 = vadd.f32 %v1263, %v1300
  %v1317 = vadd.f32 %v1264, %v1301
  %v1318 = vadd.f32 %v1265, %v1302
  %v1319 = vadd.f32 %v1266, %v1303
  %v1320 = vadd.f32 %v1267, %v1304
  %v1321 = vadd.f32 %v1268, %v1305
  %v1322 = vadd.f32 %v1269, %v1306
  %v1323 = vadd.f32 %v1270, %v1307
  %v1324 = vadd.f32 %v1271, %v1308
  %v1325 = vadd.f32 %v1272, %v1309
  %v1326 = vadd.f32 %v1273, %v1310
  %v1327 = vadd.f32 %v1274, %v1311
  %v1328 = vadd.f32 %v1275, %v1312
  %v1329 = vadd.f32 %v1276, %v1313
  %v1330 = vld [vmem:[%s1117 + $0xa] sm:$0xff]
  %v1331 = vld [vmem:[%s1117 + $0x12] sm:$0xff]
  %v1332 = vld [vmem:[%s1117 + $0x2a] sm:$0xff]
  %v1333 = vld [vmem:[%s1117 + $0x32] sm:$0xff]
  %v1334 = vld [vmem:[%s1117 + $0x4a] sm:$0xff]
  %v1335 = vld [vmem:[%s1117 + $0x52] sm:$0xff]
  %v1336 = vld [vmem:[%s1117 + $0x6a] sm:$0xff]
  %v1337 = vld [vmem:[%s1117 + $0x72] sm:$0xff]
  %v1338 = vld [vmem:[%s1117 + $0x8a] sm:$0xff]
  %v1339 = vld [vmem:[%s1117 + $0x92] sm:$0xff]
  %v1340 = vld [vmem:[%s1117 + $0xaa] sm:$0xff]
  %v1341 = vld [vmem:[%s1117 + $0xb2] sm:$0xff]
  %v1342 = vld [vmem:[%s1117 + $0xca] sm:$0xff]
  %v1343 = vld [vmem:[%s1117 + $0xd2] sm:$0xff]
  %v1344 = vld [vmem:[%s1117 + $0xea] sm:$0xff]
  %v1345 = vld [vmem:[%s1117 + $0xf2] sm:$0xff]
  %v1346 = vld [vmem:[%s1 + $0x13] sm:$0x1]
  %v1347 = vlaneseq
  %v1348 = vshrl.u32 %v1347, 7
  %v1349 = vsub.s32 0, %v1348
  %v1350 = vrot.slane %v1346, %v1349
  %v1351 = vmul.f32 %v1330, %v1350
  %v1352 = vmul.f32 %v1331, %v1350
  %v1353 = vmul.f32 %v1332, %v1350
  %v1354 = vmul.f32 %v1333, %v1350
  %v1355 = vmul.f32 %v1334, %v1350
  %v1356 = vmul.f32 %v1335, %v1350
  %v1357 = vmul.f32 %v1336, %v1350
  %v1358 = vmul.f32 %v1337, %v1350
  %v1359 = vmul.f32 %v1338, %v1350
  %v1360 = vmul.f32 %v1339, %v1350
  %v1361 = vmul.f32 %v1340, %v1350
  %v1362 = vmul.f32 %v1341, %v1350
  %v1363 = vmul.f32 %v1342, %v1350
  %v1364 = vmul.f32 %v1343, %v1350
  %v1365 = vmul.f32 %v1344, %v1350
  %v1366 = vmul.f32 %v1345, %v1350
  %v1367 = vadd.f32 %v1314, %v1351
  %v1368 = vadd.f32 %v1315, %v1352
  %v1369 = vadd.f32 %v1316, %v1353
  %v1370 = vadd.f32 %v1317, %v1354
  %v1371 = vadd.f32 %v1318, %v1355
  %v1372 = vadd.f32 %v1319, %v1356
  %v1373 = vadd.f32 %v1320, %v1357
  %v1374 = vadd.f32 %v1321, %v1358
  %v1375 = vadd.f32 %v1322, %v1359
  %v1376 = vadd.f32 %v1323, %v1360
  %v1377 = vadd.f32 %v1324, %v1361
  %v1378 = vadd.f32 %v1325, %v1362
  %v1379 = vadd.f32 %v1326, %v1363
  %v1380 = vadd.f32 %v1327, %v1364
  %v1381 = vadd.f32 %v1328, %v1365
  %v1382 = vadd.f32 %v1329, %v1366
  %s1383 = scalar_lea.vmem [#allocation2], 320
  %v1384 = vld [vmem:[%s1383 + $0x6] sm:$0xff]
  %v1385 = vld [vmem:[%s1383 + $0xe] sm:$0xff]
  %v1386 = vld [vmem:[%s1383 + $0x26] sm:$0xff]
  %v1387 = vld [vmem:[%s1383 + $0x2e] sm:$0xff]
  %v1388 = vld [vmem:[%s1383 + $0x46] sm:$0xff]
  %v1389 = vld [vmem:[%s1383 + $0x4e] sm:$0xff]
  %v1390 = vld [vmem:[%s1383 + $0x66] sm:$0xff]
  %v1391 = vld [vmem:[%s1383 + $0x6e] sm:$0xff]
  %v1392 = vld [vmem:[%s1383 + $0x86] sm:$0xff]
  %v1393 = vld [vmem:[%s1383 + $0x8e] sm:$0xff]
  %v1394 = vld [vmem:[%s1383 + $0xa6] sm:$0xff]
  %v1395 = vld [vmem:[%s1383 + $0xae] sm:$0xff]
  %v1396 = vld [vmem:[%s1383 + $0xc6] sm:$0xff]
  %v1397 = vld [vmem:[%s1383 + $0xce] sm:$0xff]
  %v1398 = vld [vmem:[%s1383 + $0xe6] sm:$0xff]
  %v1399 = vld [vmem:[%s1383 + $0xee] sm:$0xff]
  %v1400 = vld [vmem:[%s1 + $0x14] sm:$0x1]
  %v1401 = vlaneseq
  %v1402 = vshrl.u32 %v1401, 7
  %v1403 = vsub.s32 0, %v1402
  %v1404 = vrot.slane %v1400, %v1403
  %v1405 = vmul.f32 %v1384, %v1404
  %v1406 = vmul.f32 %v1385, %v1404
  %v1407 = vmul.f32 %v1386, %v1404
  %v1408 = vmul.f32 %v1387, %v1404
  %v1409 = vmul.f32 %v1388, %v1404
  %v1410 = vmul.f32 %v1389, %v1404
  %v1411 = vmul.f32 %v1390, %v1404
  %v1412 = vmul.f32 %v1391, %v1404
  %v1413 = vmul.f32 %v1392, %v1404
  %v1414 = vmul.f32 %v1393, %v1404
  %v1415 = vmul.f32 %v1394, %v1404
  %v1416 = vmul.f32 %v1395, %v1404
  %v1417 = vmul.f32 %v1396, %v1404
  %v1418 = vmul.f32 %v1397, %v1404
  %v1419 = vmul.f32 %v1398, %v1404
  %v1420 = vmul.f32 %v1399, %v1404
  %v1421 = vadd.f32 %v1367, %v1405
  %v1422 = vadd.f32 %v1368, %v1406
  %v1423 = vadd.f32 %v1369, %v1407
  %v1424 = vadd.f32 %v1370, %v1408
  %v1425 = vadd.f32 %v1371, %v1409
  %v1426 = vadd.f32 %v1372, %v1410
  %v1427 = vadd.f32 %v1373, %v1411
  %v1428 = vadd.f32 %v1374, %v1412
  %v1429 = vadd.f32 %v1375, %v1413
  %v1430 = vadd.f32 %v1376, %v1414
  %v1431 = vadd.f32 %v1377, %v1415
  %v1432 = vadd.f32 %v1378, %v1416
  %v1433 = vadd.f32 %v1379, %v1417
  %v1434 = vadd.f32 %v1380, %v1418
  %v1435 = vadd.f32 %v1381, %v1419
  %v1436 = vadd.f32 %v1382, %v1420
  %v1437 = vld [vmem:[%s1383 + $0x7] sm:$0xff]
  %v1438 = vld [vmem:[%s1383 + $0xf] sm:$0xff]
  %v1439 = vld [vmem:[%s1383 + $0x27] sm:$0xff]
  %v1440 = vld [vmem:[%s1383 + $0x2f] sm:$0xff]
  %v1441 = vld [vmem:[%s1383 + $0x47] sm:$0xff]
  %v1442 = vld [vmem:[%s1383 + $0x4f] sm:$0xff]
  %v1443 = vld [vmem:[%s1383 + $0x67] sm:$0xff]
  %v1444 = vld [vmem:[%s1383 + $0x6f] sm:$0xff]
  %v1445 = vld [vmem:[%s1383 + $0x87] sm:$0xff]
  %v1446 = vld [vmem:[%s1383 + $0x8f] sm:$0xff]
  %v1447 = vld [vmem:[%s1383 + $0xa7] sm:$0xff]
  %v1448 = vld [vmem:[%s1383 + $0xaf] sm:$0xff]
  %v1449 = vld [vmem:[%s1383 + $0xc7] sm:$0xff]
  %v1450 = vld [vmem:[%s1383 + $0xcf] sm:$0xff]
  %v1451 = vld [vmem:[%s1383 + $0xe7] sm:$0xff]
  %v1452 = vld [vmem:[%s1383 + $0xef] sm:$0xff]
  %v1453 = vld [vmem:[%s1 + $0x15] sm:$0x1]
  %v1454 = vlaneseq
  %v1455 = vshrl.u32 %v1454, 7
  %v1456 = vsub.s32 0, %v1455
  %v1457 = vrot.slane %v1453, %v1456
  %v1458 = vmul.f32 %v1437, %v1457
  %v1459 = vmul.f32 %v1438, %v1457
  %v1460 = vmul.f32 %v1439, %v1457
  %v1461 = vmul.f32 %v1440, %v1457
  %v1462 = vmul.f32 %v1441, %v1457
  %v1463 = vmul.f32 %v1442, %v1457
  %v1464 = vmul.f32 %v1443, %v1457
  %v1465 = vmul.f32 %v1444, %v1457
  %v1466 = vmul.f32 %v1445, %v1457
  %v1467 = vmul.f32 %v1446, %v1457
  %v1468 = vmul.f32 %v1447, %v1457
  %v1469 = vmul.f32 %v1448, %v1457
  %v1470 = vmul.f32 %v1449, %v1457
  %v1471 = vmul.f32 %v1450, %v1457
  %v1472 = vmul.f32 %v1451, %v1457
  %v1473 = vmul.f32 %v1452, %v1457
  %v1474 = vadd.f32 %v1421, %v1458
  %v1475 = vadd.f32 %v1422, %v1459
  %v1476 = vadd.f32 %v1423, %v1460
  %v1477 = vadd.f32 %v1424, %v1461
  %v1478 = vadd.f32 %v1425, %v1462
  %v1479 = vadd.f32 %v1426, %v1463
  %v1480 = vadd.f32 %v1427, %v1464
  %v1481 = vadd.f32 %v1428, %v1465
  %v1482 = vadd.f32 %v1429, %v1466
  %v1483 = vadd.f32 %v1430, %v1467
  %v1484 = vadd.f32 %v1431, %v1468
  %v1485 = vadd.f32 %v1432, %v1469
  %v1486 = vadd.f32 %v1433, %v1470
  %v1487 = vadd.f32 %v1434, %v1471
  %v1488 = vadd.f32 %v1435, %v1472
  %v1489 = vadd.f32 %v1436, %v1473
  %v1490 = vld [vmem:[%s1383 + $0x8] sm:$0xff]
  %v1491 = vld [vmem:[%s1383 + $0x10] sm:$0xff]
  %v1492 = vld [vmem:[%s1383 + $0x28] sm:$0xff]
  %v1493 = vld [vmem:[%s1383 + $0x30] sm:$0xff]
  %v1494 = vld [vmem:[%s1383 + $0x48] sm:$0xff]
  %v1495 = vld [vmem:[%s1383 + $0x50] sm:$0xff]
  %v1496 = vld [vmem:[%s1383 + $0x68] sm:$0xff]
  %v1497 = vld [vmem:[%s1383 + $0x70] sm:$0xff]
  %v1498 = vld [vmem:[%s1383 + $0x88] sm:$0xff]
  %v1499 = vld [vmem:[%s1383 + $0x90] sm:$0xff]
  %v1500 = vld [vmem:[%s1383 + $0xa8] sm:$0xff]
  %v1501 = vld [vmem:[%s1383 + $0xb0] sm:$0xff]
  %v1502 = vld [vmem:[%s1383 + $0xc8] sm:$0xff]
  %v1503 = vld [vmem:[%s1383 + $0xd0] sm:$0xff]
  %v1504 = vld [vmem:[%s1383 + $0xe8] sm:$0xff]
  %v1505 = vld [vmem:[%s1383 + $0xf0] sm:$0xff]
  %v1506 = vld [vmem:[%s1 + $0x16] sm:$0x1]
  %v1507 = vlaneseq
  %v1508 = vshrl.u32 %v1507, 7
  %v1509 = vsub.s32 0, %v1508
  %v1510 = vrot.slane %v1506, %v1509
  %v1511 = vmul.f32 %v1490, %v1510
  %v1512 = vmul.f32 %v1491, %v1510
  %v1513 = vmul.f32 %v1492, %v1510
  %v1514 = vmul.f32 %v1493, %v1510
  %v1515 = vmul.f32 %v1494, %v1510
  %v1516 = vmul.f32 %v1495, %v1510
  %v1517 = vmul.f32 %v1496, %v1510
  %v1518 = vmul.f32 %v1497, %v1510
  %v1519 = vmul.f32 %v1498, %v1510
  %v1520 = vmul.f32 %v1499, %v1510
  %v1521 = vmul.f32 %v1500, %v1510
  %v1522 = vmul.f32 %v1501, %v1510
  %v1523 = vmul.f32 %v1502, %v1510
  %v1524 = vmul.f32 %v1503, %v1510
  %v1525 = vmul.f32 %v1504, %v1510
  %v1526 = vmul.f32 %v1505, %v1510
  %v1527 = vadd.f32 %v1474, %v1511
  %v1528 = vadd.f32 %v1475, %v1512
  %v1529 = vadd.f32 %v1476, %v1513
  %v1530 = vadd.f32 %v1477, %v1514
  %v1531 = vadd.f32 %v1478, %v1515
  %v1532 = vadd.f32 %v1479, %v1516
  %v1533 = vadd.f32 %v1480, %v1517
  %v1534 = vadd.f32 %v1481, %v1518
  %v1535 = vadd.f32 %v1482, %v1519
  %v1536 = vadd.f32 %v1483, %v1520
  %v1537 = vadd.f32 %v1484, %v1521
  %v1538 = vadd.f32 %v1485, %v1522
  %v1539 = vadd.f32 %v1486, %v1523
  %v1540 = vadd.f32 %v1487, %v1524
  %v1541 = vadd.f32 %v1488, %v1525
  %v1542 = vadd.f32 %v1489, %v1526
  %v1543 = vld [vmem:[%s1383 + $0x9] sm:$0xff]
  %v1544 = vld [vmem:[%s1383 + $0x11] sm:$0xff]
  %v1545 = vld [vmem:[%s1383 + $0x29] sm:$0xff]
  %v1546 = vld [vmem:[%s1383 + $0x31] sm:$0xff]
  %v1547 = vld [vmem:[%s1383 + $0x49] sm:$0xff]
  %v1548 = vld [vmem:[%s1383 + $0x51] sm:$0xff]
  %v1549 = vld [vmem:[%s1383 + $0x69] sm:$0xff]
  %v1550 = vld [vmem:[%s1383 + $0x71] sm:$0xff]
  %v1551 = vld [vmem:[%s1383 + $0x89] sm:$0xff]
  %v1552 = vld [vmem:[%s1383 + $0x91] sm:$0xff]
  %v1553 = vld [vmem:[%s1383 + $0xa9] sm:$0xff]
  %v1554 = vld [vmem:[%s1383 + $0xb1] sm:$0xff]
  %v1555 = vld [vmem:[%s1383 + $0xc9] sm:$0xff]
  %v1556 = vld [vmem:[%s1383 + $0xd1] sm:$0xff]
  %v1557 = vld [vmem:[%s1383 + $0xe9] sm:$0xff]
  %v1558 = vld [vmem:[%s1383 + $0xf1] sm:$0xff]
  %v1559 = vld [vmem:[%s1 + $0x17] sm:$0x1]
  %v1560 = vlaneseq
  %v1561 = vshrl.u32 %v1560, 7
  %v1562 = vsub.s32 0, %v1561
  %v1563 = vrot.slane %v1559, %v1562
  %v1564 = vmul.f32 %v1543, %v1563
  %v1565 = vmul.f32 %v1544, %v1563
  %v1566 = vmul.f32 %v1545, %v1563
  %v1567 = vmul.f32 %v1546, %v1563
  %v1568 = vmul.f32 %v1547, %v1563
  %v1569 = vmul.f32 %v1548, %v1563
  %v1570 = vmul.f32 %v1549, %v1563
  %v1571 = vmul.f32 %v1550, %v1563
  %v1572 = vmul.f32 %v1551, %v1563
  %v1573 = vmul.f32 %v1552, %v1563
  %v1574 = vmul.f32 %v1553, %v1563
  %v1575 = vmul.f32 %v1554, %v1563
  %v1576 = vmul.f32 %v1555, %v1563
  %v1577 = vmul.f32 %v1556, %v1563
  %v1578 = vmul.f32 %v1557, %v1563
  %v1579 = vmul.f32 %v1558, %v1563
  %v1580 = vadd.f32 %v1527, %v1564
  %v1581 = vadd.f32 %v1528, %v1565
  %v1582 = vadd.f32 %v1529, %v1566
  %v1583 = vadd.f32 %v1530, %v1567
  %v1584 = vadd.f32 %v1531, %v1568
  %v1585 = vadd.f32 %v1532, %v1569
  %v1586 = vadd.f32 %v1533, %v1570
  %v1587 = vadd.f32 %v1534, %v1571
  %v1588 = vadd.f32 %v1535, %v1572
  %v1589 = vadd.f32 %v1536, %v1573
  %v1590 = vadd.f32 %v1537, %v1574
  %v1591 = vadd.f32 %v1538, %v1575
  %v1592 = vadd.f32 %v1539, %v1576
  %v1593 = vadd.f32 %v1540, %v1577
  %v1594 = vadd.f32 %v1541, %v1578
  %v1595 = vadd.f32 %v1542, %v1579
  %v1596 = vld [vmem:[%s1383 + $0xa] sm:$0xff]
  %v1597 = vld [vmem:[%s1383 + $0x12] sm:$0xff]
  %v1598 = vld [vmem:[%s1383 + $0x2a] sm:$0xff]
  %v1599 = vld [vmem:[%s1383 + $0x32] sm:$0xff]
  %v1600 = vld [vmem:[%s1383 + $0x4a] sm:$0xff]
  %v1601 = vld [vmem:[%s1383 + $0x52] sm:$0xff]
  %v1602 = vld [vmem:[%s1383 + $0x6a] sm:$0xff]
  %v1603 = vld [vmem:[%s1383 + $0x72] sm:$0xff]
  %v1604 = vld [vmem:[%s1383 + $0x8a] sm:$0xff]
  %v1605 = vld [vmem:[%s1383 + $0x92] sm:$0xff]
  %v1606 = vld [vmem:[%s1383 + $0xaa] sm:$0xff]
  %v1607 = vld [vmem:[%s1383 + $0xb2] sm:$0xff]
  %v1608 = vld [vmem:[%s1383 + $0xca] sm:$0xff]
  %v1609 = vld [vmem:[%s1383 + $0xd2] sm:$0xff]
  %v1610 = vld [vmem:[%s1383 + $0xea] sm:$0xff]
  %v1611 = vld [vmem:[%s1383 + $0xf2] sm:$0xff]
  %v1612 = vld [vmem:[%s1 + $0x18] sm:$0x1]
  %v1613 = vlaneseq
  %v1614 = vshrl.u32 %v1613, 7
  %v1615 = vsub.s32 0, %v1614
  %v1616 = vrot.slane %v1612, %v1615
  %v1617 = vmul.f32 %v1596, %v1616
  %v1618 = vmul.f32 %v1597, %v1616
  %v1619 = vmul.f32 %v1598, %v1616
  %v1620 = vmul.f32 %v1599, %v1616
  %v1621 = vmul.f32 %v1600, %v1616
  %v1622 = vmul.f32 %v1601, %v1616
  %v1623 = vmul.f32 %v1602, %v1616
  %v1624 = vmul.f32 %v1603, %v1616
  %v1625 = vmul.f32 %v1604, %v1616
  %v1626 = vmul.f32 %v1605, %v1616
  %v1627 = vmul.f32 %v1606, %v1616
  %v1628 = vmul.f32 %v1607, %v1616
  %v1629 = vmul.f32 %v1608, %v1616
  %v1630 = vmul.f32 %v1609, %v1616
  %v1631 = vmul.f32 %v1610, %v1616
  %v1632 = vmul.f32 %v1611, %v1616
  %v1633 = vadd.f32 %v1580, %v1617
  %v1634 = vadd.f32 %v1581, %v1618
  %v1635 = vadd.f32 %v1582, %v1619
  %v1636 = vadd.f32 %v1583, %v1620
  %v1637 = vadd.f32 %v1584, %v1621
  %v1638 = vadd.f32 %v1585, %v1622
  %v1639 = vadd.f32 %v1586, %v1623
  %v1640 = vadd.f32 %v1587, %v1624
  %v1641 = vadd.f32 %v1588, %v1625
  %v1642 = vadd.f32 %v1589, %v1626
  %v1643 = vadd.f32 %v1590, %v1627
  %v1644 = vadd.f32 %v1591, %v1628
  %v1645 = vadd.f32 %v1592, %v1629
  %v1646 = vadd.f32 %v1593, %v1630
  %v1647 = vadd.f32 %v1594, %v1631
  %v1648 = vadd.f32 %v1595, %v1632
  %v1649 = vld [vmem:[%s2] sm:$0x1]
  %v1651 = vlaneseq
  %v1652 = vshrl.u32 %v1651, 7
  %v1653 = vsub.s32 0, %v1652
  %v1654 = vrot.slane %v1649, %v1653
  %v1656 = vadd.f32 %v1633, %v1654
  %v1657 = vadd.f32 %v1634, %v1654
  %v1658 = vadd.f32 %v1635, %v1654
  %v1659 = vadd.f32 %v1636, %v1654
  %v1660 = vadd.f32 %v1637, %v1654
  %v1661 = vadd.f32 %v1638, %v1654
  %v1662 = vadd.f32 %v1639, %v1654
  %v1663 = vadd.f32 %v1640, %v1654
  %v1664 = vadd.f32 %v1641, %v1654
  %v1665 = vadd.f32 %v1642, %v1654
  %v1666 = vadd.f32 %v1643, %v1654
  %v1667 = vadd.f32 %v1644, %v1654
  %v1668 = vadd.f32 %v1645, %v1654
  %v1669 = vadd.f32 %v1646, %v1654
  %v1670 = vadd.f32 %v1647, %v1654
  %v1671 = vadd.f32 %v1648, %v1654
  %s1672 = scalar_lea.vmem [#allocation3], 256
  %1673 = vst [vmem:[%s1672 + $0x8] sm:$0xff] %v1656
  %1674 = vst [vmem:[%s1672 + $0x10] sm:$0xff] %v1657
  %1675 = vst [vmem:[%s1672 + $0x28] sm:$0xff] %v1658
  %1676 = vst [vmem:[%s1672 + $0x30] sm:$0xff] %v1659
  %1677 = vst [vmem:[%s1672 + $0x48] sm:$0xff] %v1660
  %1678 = vst [vmem:[%s1672 + $0x50] sm:$0xff] %v1661
  %1679 = vst [vmem:[%s1672 + $0x68] sm:$0xff] %v1662
  %1680 = vst [vmem:[%s1672 + $0x70] sm:$0xff] %v1663
  %1681 = vst [vmem:[%s1672 + $0x88] sm:$0xff] %v1664
  %1682 = vst [vmem:[%s1672 + $0x90] sm:$0xff] %v1665
  %1683 = vst [vmem:[%s1672 + $0xa8] sm:$0xff] %v1666
  %1684 = vst [vmem:[%s1672 + $0xb0] sm:$0xff] %v1667
  %1685 = vst [vmem:[%s1672 + $0xc8] sm:$0xff] %v1668
  %1686 = vst [vmem:[%s1672 + $0xd0] sm:$0xff] %v1669
  %1687 = vst [vmem:[%s1672 + $0xe8] sm:$0xff] %v1670
  %1688 = vst [vmem:[%s1672 + $0xf0] sm:$0xff] %v1671
  %s1689 = scalar_lea.vmem [#allocation2], 448
  %v1690 = vld [vmem:[%s1689 + $0x6] sm:$0xff]
  %v1691 = vld [vmem:[%s1689 + $0xe] sm:$0xff]
  %v1692 = vld [vmem:[%s1689 + $0x26] sm:$0xff]
  %v1693 = vld [vmem:[%s1689 + $0x2e] sm:$0xff]
  %v1694 = vld [vmem:[%s1689 + $0x46] sm:$0xff]
  %v1695 = vld [vmem:[%s1689 + $0x4e] sm:$0xff]
  %v1696 = vld [vmem:[%s1689 + $0x66] sm:$0xff]
  %v1697 = vld [vmem:[%s1689 + $0x6e] sm:$0xff]
  %v1698 = vld [vmem:[%s1689 + $0x86] sm:$0xff]
  %v1699 = vld [vmem:[%s1689 + $0x8e] sm:$0xff]
  %v1700 = vld [vmem:[%s1689 + $0xa6] sm:$0xff]
  %v1701 = vld [vmem:[%s1689 + $0xae] sm:$0xff]
  %v1702 = vld [vmem:[%s1689 + $0xc6] sm:$0xff]
  %v1703 = vld [vmem:[%s1689 + $0xce] sm:$0xff]
  %v1704 = vld [vmem:[%s1689 + $0xe6] sm:$0xff]
  %v1705 = vld [vmem:[%s1689 + $0xee] sm:$0xff]
  %v1706 = vld [vmem:[%s1] sm:$0x1]
  %v1707 = vlaneseq
  %v1708 = vshrl.u32 %v1707, 7
  %v1709 = vsub.s32 0, %v1708
  %v1710 = vrot.slane %v1706, %v1709
  %v1711 = vmul.f32 %v1690, %v1710
  %v1712 = vmul.f32 %v1691, %v1710
  %v1713 = vmul.f32 %v1692, %v1710
  %v1714 = vmul.f32 %v1693, %v1710
  %v1715 = vmul.f32 %v1694, %v1710
  %v1716 = vmul.f32 %v1695, %v1710
  %v1717 = vmul.f32 %v1696, %v1710
  %v1718 = vmul.f32 %v1697, %v1710
  %v1719 = vmul.f32 %v1698, %v1710
  %v1720 = vmul.f32 %v1699, %v1710
  %v1721 = vmul.f32 %v1700, %v1710
  %v1722 = vmul.f32 %v1701, %v1710
  %v1723 = vmul.f32 %v1702, %v1710
  %v1724 = vmul.f32 %v1703, %v1710
  %v1725 = vmul.f32 %v1704, %v1710
  %v1726 = vmul.f32 %v1705, %v1710
  %v1727 = vadd.f32 %v1711, 0.0
  %v1728 = vadd.f32 %v1712, 0.0
  %v1729 = vadd.f32 %v1713, 0.0
  %v1730 = vadd.f32 %v1714, 0.0
  %v1731 = vadd.f32 %v1715, 0.0
  %v1732 = vadd.f32 %v1716, 0.0
  %v1733 = vadd.f32 %v1717, 0.0
  %v1734 = vadd.f32 %v1718, 0.0
  %v1735 = vadd.f32 %v1719, 0.0
  %v1736 = vadd.f32 %v1720, 0.0
  %v1737 = vadd.f32 %v1721, 0.0
  %v1738 = vadd.f32 %v1722, 0.0
  %v1739 = vadd.f32 %v1723, 0.0
  %v1740 = vadd.f32 %v1724, 0.0
  %v1741 = vadd.f32 %v1725, 0.0
  %v1742 = vadd.f32 %v1726, 0.0
  %v1743 = vld [vmem:[%s1689 + $0x7] sm:$0xff]
  %v1744 = vld [vmem:[%s1689 + $0xf] sm:$0xff]
  %v1745 = vld [vmem:[%s1689 + $0x27] sm:$0xff]
  %v1746 = vld [vmem:[%s1689 + $0x2f] sm:$0xff]
  %v1747 = vld [vmem:[%s1689 + $0x47] sm:$0xff]
  %v1748 = vld [vmem:[%s1689 + $0x4f] sm:$0xff]
  %v1749 = vld [vmem:[%s1689 + $0x67] sm:$0xff]
  %v1750 = vld [vmem:[%s1689 + $0x6f] sm:$0xff]
  %v1751 = vld [vmem:[%s1689 + $0x87] sm:$0xff]
  %v1752 = vld [vmem:[%s1689 + $0x8f] sm:$0xff]
  %v1753 = vld [vmem:[%s1689 + $0xa7] sm:$0xff]
  %v1754 = vld [vmem:[%s1689 + $0xaf] sm:$0xff]
  %v1755 = vld [vmem:[%s1689 + $0xc7] sm:$0xff]
  %v1756 = vld [vmem:[%s1689 + $0xcf] sm:$0xff]
  %v1757 = vld [vmem:[%s1689 + $0xe7] sm:$0xff]
  %v1758 = vld [vmem:[%s1689 + $0xef] sm:$0xff]
  %v1759 = vld [vmem:[%s1 + $0x1] sm:$0x1]
  %v1760 = vlaneseq
  %v1761 = vshrl.u32 %v1760, 7
  %v1762 = vsub.s32 0, %v1761
  %v1763 = vrot.slane %v1759, %v1762
  %v1764 = vmul.f32 %v1743, %v1763
  %v1765 = vmul.f32 %v1744, %v1763
  %v1766 = vmul.f32 %v1745, %v1763
  %v1767 = vmul.f32 %v1746, %v1763
  %v1768 = vmul.f32 %v1747, %v1763
  %v1769 = vmul.f32 %v1748, %v1763
  %v1770 = vmul.f32 %v1749, %v1763
  %v1771 = vmul.f32 %v1750, %v1763
  %v1772 = vmul.f32 %v1751, %v1763
  %v1773 = vmul.f32 %v1752, %v1763
  %v1774 = vmul.f32 %v1753, %v1763
  %v1775 = vmul.f32 %v1754, %v1763
  %v1776 = vmul.f32 %v1755, %v1763
  %v1777 = vmul.f32 %v1756, %v1763
  %v1778 = vmul.f32 %v1757, %v1763
  %v1779 = vmul.f32 %v1758, %v1763
  %v1780 = vadd.f32 %v1727, %v1764
  %v1781 = vadd.f32 %v1728, %v1765
  %v1782 = vadd.f32 %v1729, %v1766
  %v1783 = vadd.f32 %v1730, %v1767
  %v1784 = vadd.f32 %v1731, %v1768
  %v1785 = vadd.f32 %v1732, %v1769
  %v1786 = vadd.f32 %v1733, %v1770
  %v1787 = vadd.f32 %v1734, %v1771
  %v1788 = vadd.f32 %v1735, %v1772
  %v1789 = vadd.f32 %v1736, %v1773
  %v1790 = vadd.f32 %v1737, %v1774
  %v1791 = vadd.f32 %v1738, %v1775
  %v1792 = vadd.f32 %v1739, %v1776
  %v1793 = vadd.f32 %v1740, %v1777
  %v1794 = vadd.f32 %v1741, %v1778
  %v1795 = vadd.f32 %v1742, %v1779
  %v1796 = vld [vmem:[%s1689 + $0x8] sm:$0xff]
  %v1797 = vld [vmem:[%s1689 + $0x10] sm:$0xff]
  %v1798 = vld [vmem:[%s1689 + $0x28] sm:$0xff]
  %v1799 = vld [vmem:[%s1689 + $0x30] sm:$0xff]
  %v1800 = vld [vmem:[%s1689 + $0x48] sm:$0xff]
  %v1801 = vld [vmem:[%s1689 + $0x50] sm:$0xff]
  %v1802 = vld [vmem:[%s1689 + $0x68] sm:$0xff]
  %v1803 = vld [vmem:[%s1689 + $0x70] sm:$0xff]
  %v1804 = vld [vmem:[%s1689 + $0x88] sm:$0xff]
  %v1805 = vld [vmem:[%s1689 + $0x90] sm:$0xff]
  %v1806 = vld [vmem:[%s1689 + $0xa8] sm:$0xff]
  %v1807 = vld [vmem:[%s1689 + $0xb0] sm:$0xff]
  %v1808 = vld [vmem:[%s1689 + $0xc8] sm:$0xff]
  %v1809 = vld [vmem:[%s1689 + $0xd0] sm:$0xff]
  %v1810 = vld [vmem:[%s1689 + $0xe8] sm:$0xff]
  %v1811 = vld [vmem:[%s1689 + $0xf0] sm:$0xff]
  %v1812 = vld [vmem:[%s1 + $0x2] sm:$0x1]
  %v1813 = vlaneseq
  %v1814 = vshrl.u32 %v1813, 7
  %v1815 = vsub.s32 0, %v1814
  %v1816 = vrot.slane %v1812, %v1815
  %v1817 = vmul.f32 %v1796, %v1816
  %v1818 = vmul.f32 %v1797, %v1816
  %v1819 = vmul.f32 %v1798, %v1816
  %v1820 = vmul.f32 %v1799, %v1816
  %v1821 = vmul.f32 %v1800, %v1816
  %v1822 = vmul.f32 %v1801, %v1816
  %v1823 = vmul.f32 %v1802, %v1816
  %v1824 = vmul.f32 %v1803, %v1816
  %v1825 = vmul.f32 %v1804, %v1816
  %v1826 = vmul.f32 %v1805, %v1816
  %v1827 = vmul.f32 %v1806, %v1816
  %v1828 = vmul.f32 %v1807, %v1816
  %v1829 = vmul.f32 %v1808, %v1816
  %v1830 = vmul.f32 %v1809, %v1816
  %v1831 = vmul.f32 %v1810, %v1816
  %v1832 = vmul.f32 %v1811, %v1816
  %v1833 = vadd.f32 %v1780, %v1817
  %v1834 = vadd.f32 %v1781, %v1818
  %v1835 = vadd.f32 %v1782, %v1819
  %v1836 = vadd.f32 %v1783, %v1820
  %v1837 = vadd.f32 %v1784, %v1821
  %v1838 = vadd.f32 %v1785, %v1822
  %v1839 = vadd.f32 %v1786, %v1823
  %v1840 = vadd.f32 %v1787, %v1824
  %v1841 = vadd.f32 %v1788, %v1825
  %v1842 = vadd.f32 %v1789, %v1826
  %v1843 = vadd.f32 %v1790, %v1827
  %v1844 = vadd.f32 %v1791, %v1828
  %v1845 = vadd.f32 %v1792, %v1829
  %v1846 = vadd.f32 %v1793, %v1830
  %v1847 = vadd.f32 %v1794, %v1831
  %v1848 = vadd.f32 %v1795, %v1832
  %v1849 = vld [vmem:[%s1689 + $0x9] sm:$0xff]
  %v1850 = vld [vmem:[%s1689 + $0x11] sm:$0xff]
  %v1851 = vld [vmem:[%s1689 + $0x29] sm:$0xff]
  %v1852 = vld [vmem:[%s1689 + $0x31] sm:$0xff]
  %v1853 = vld [vmem:[%s1689 + $0x49] sm:$0xff]
  %v1854 = vld [vmem:[%s1689 + $0x51] sm:$0xff]
  %v1855 = vld [vmem:[%s1689 + $0x69] sm:$0xff]
  %v1856 = vld [vmem:[%s1689 + $0x71] sm:$0xff]
  %v1857 = vld [vmem:[%s1689 + $0x89] sm:$0xff]
  %v1858 = vld [vmem:[%s1689 + $0x91] sm:$0xff]
  %v1859 = vld [vmem:[%s1689 + $0xa9] sm:$0xff]
  %v1860 = vld [vmem:[%s1689 + $0xb1] sm:$0xff]
  %v1861 = vld [vmem:[%s1689 + $0xc9] sm:$0xff]
  %v1862 = vld [vmem:[%s1689 + $0xd1] sm:$0xff]
  %v1863 = vld [vmem:[%s1689 + $0xe9] sm:$0xff]
  %v1864 = vld [vmem:[%s1689 + $0xf1] sm:$0xff]
  %v1865 = vld [vmem:[%s1 + $0x3] sm:$0x1]
  %v1866 = vlaneseq
  %v1867 = vshrl.u32 %v1866, 7
  %v1868 = vsub.s32 0, %v1867
  %v1869 = vrot.slane %v1865, %v1868
  %v1870 = vmul.f32 %v1849, %v1869
  %v1871 = vmul.f32 %v1850, %v1869
  %v1872 = vmul.f32 %v1851, %v1869
  %v1873 = vmul.f32 %v1852, %v1869
  %v1874 = vmul.f32 %v1853, %v1869
  %v1875 = vmul.f32 %v1854, %v1869
  %v1876 = vmul.f32 %v1855, %v1869
  %v1877 = vmul.f32 %v1856, %v1869
  %v1878 = vmul.f32 %v1857, %v1869
  %v1879 = vmul.f32 %v1858, %v1869
  %v1880 = vmul.f32 %v1859, %v1869
  %v1881 = vmul.f32 %v1860, %v1869
  %v1882 = vmul.f32 %v1861, %v1869
  %v1883 = vmul.f32 %v1862, %v1869
  %v1884 = vmul.f32 %v1863, %v1869
  %v1885 = vmul.f32 %v1864, %v1869
  %v1886 = vadd.f32 %v1833, %v1870
  %v1887 = vadd.f32 %v1834, %v1871
  %v1888 = vadd.f32 %v1835, %v1872
  %v1889 = vadd.f32 %v1836, %v1873
  %v1890 = vadd.f32 %v1837, %v1874
  %v1891 = vadd.f32 %v1838, %v1875
  %v1892 = vadd.f32 %v1839, %v1876
  %v1893 = vadd.f32 %v1840, %v1877
  %v1894 = vadd.f32 %v1841, %v1878
  %v1895 = vadd.f32 %v1842, %v1879
  %v1896 = vadd.f32 %v1843, %v1880
  %v1897 = vadd.f32 %v1844, %v1881
  %v1898 = vadd.f32 %v1845, %v1882
  %v1899 = vadd.f32 %v1846, %v1883
  %v1900 = vadd.f32 %v1847, %v1884
  %v1901 = vadd.f32 %v1848, %v1885
  %v1902 = vld [vmem:[%s1689 + $0xa] sm:$0xff]
  %v1903 = vld [vmem:[%s1689 + $0x12] sm:$0xff]
  %v1904 = vld [vmem:[%s1689 + $0x2a] sm:$0xff]
  %v1905 = vld [vmem:[%s1689 + $0x32] sm:$0xff]
  %v1906 = vld [vmem:[%s1689 + $0x4a] sm:$0xff]
  %v1907 = vld [vmem:[%s1689 + $0x52] sm:$0xff]
  %v1908 = vld [vmem:[%s1689 + $0x6a] sm:$0xff]
  %v1909 = vld [vmem:[%s1689 + $0x72] sm:$0xff]
  %v1910 = vld [vmem:[%s1689 + $0x8a] sm:$0xff]
  %v1911 = vld [vmem:[%s1689 + $0x92] sm:$0xff]
  %v1912 = vld [vmem:[%s1689 + $0xaa] sm:$0xff]
  %v1913 = vld [vmem:[%s1689 + $0xb2] sm:$0xff]
  %v1914 = vld [vmem:[%s1689 + $0xca] sm:$0xff]
  %v1915 = vld [vmem:[%s1689 + $0xd2] sm:$0xff]
  %v1916 = vld [vmem:[%s1689 + $0xea] sm:$0xff]
  %v1917 = vld [vmem:[%s1689 + $0xf2] sm:$0xff]
  %v1918 = vld [vmem:[%s1 + $0x4] sm:$0x1]
  %v1919 = vlaneseq
  %v1920 = vshrl.u32 %v1919, 7
  %v1921 = vsub.s32 0, %v1920
  %v1922 = vrot.slane %v1918, %v1921
  %v1923 = vmul.f32 %v1902, %v1922
  %v1924 = vmul.f32 %v1903, %v1922
  %v1925 = vmul.f32 %v1904, %v1922
  %v1926 = vmul.f32 %v1905, %v1922
  %v1927 = vmul.f32 %v1906, %v1922
  %v1928 = vmul.f32 %v1907, %v1922
  %v1929 = vmul.f32 %v1908, %v1922
  %v1930 = vmul.f32 %v1909, %v1922
  %v1931 = vmul.f32 %v1910, %v1922
  %v1932 = vmul.f32 %v1911, %v1922
  %v1933 = vmul.f32 %v1912, %v1922
  %v1934 = vmul.f32 %v1913, %v1922
  %v1935 = vmul.f32 %v1914, %v1922
  %v1936 = vmul.f32 %v1915, %v1922
  %v1937 = vmul.f32 %v1916, %v1922
  %v1938 = vmul.f32 %v1917, %v1922
  %v1939 = vadd.f32 %v1886, %v1923
  %v1940 = vadd.f32 %v1887, %v1924
  %v1941 = vadd.f32 %v1888, %v1925
  %v1942 = vadd.f32 %v1889, %v1926
  %v1943 = vadd.f32 %v1890, %v1927
  %v1944 = vadd.f32 %v1891, %v1928
  %v1945 = vadd.f32 %v1892, %v1929
  %v1946 = vadd.f32 %v1893, %v1930
  %v1947 = vadd.f32 %v1894, %v1931
  %v1948 = vadd.f32 %v1895, %v1932
  %v1949 = vadd.f32 %v1896, %v1933
  %v1950 = vadd.f32 %v1897, %v1934
  %v1951 = vadd.f32 %v1898, %v1935
  %v1952 = vadd.f32 %v1899, %v1936
  %v1953 = vadd.f32 %v1900, %v1937
  %v1954 = vadd.f32 %v1901, %v1938
  %s1955 = scalar_lea.vmem [#allocation2], 480
  %v1956 = vld [vmem:[%s1955 + $0x6] sm:$0xff]
  %v1957 = vld [vmem:[%s1955 + $0xe] sm:$0xff]
  %v1958 = vld [vmem:[%s1955 + $0x26] sm:$0xff]
  %v1959 = vld [vmem:[%s1955 + $0x2e] sm:$0xff]
  %v1960 = vld [vmem:[%s1955 + $0x46] sm:$0xff]
  %v1961 = vld [vmem:[%s1955 + $0x4e] sm:$0xff]
  %v1962 = vld [vmem:[%s1955 + $0x66] sm:$0xff]
  %v1963 = vld [vmem:[%s1955 + $0x6e] sm:$0xff]
  %v1964 = vld [vmem:[%s1955 + $0x86] sm:$0xff]
  %v1965 = vld [vmem:[%s1955 + $0x8e] sm:$0xff]
  %v1966 = vld [vmem:[%s1955 + $0xa6] sm:$0xff]
  %v1967 = vld [vmem:[%s1955 + $0xae] sm:$0xff]
  %v1968 = vld [vmem:[%s1955 + $0xc6] sm:$0xff]
  %v1969 = vld [vmem:[%s1955 + $0xce] sm:$0xff]
  %v1970 = vld [vmem:[%s1955 + $0xe6] sm:$0xff]
  %v1971 = vld [vmem:[%s1955 + $0xee] sm:$0xff]
  %v1972 = vld [vmem:[%s1 + $0x5] sm:$0x1]
  %v1973 = vlaneseq
  %v1974 = vshrl.u32 %v1973, 7
  %v1975 = vsub.s32 0, %v1974
  %v1976 = vrot.slane %v1972, %v1975
  %v1977 = vmul.f32 %v1956, %v1976
  %v1978 = vmul.f32 %v1957, %v1976
  %v1979 = vmul.f32 %v1958, %v1976
  %v1980 = vmul.f32 %v1959, %v1976
  %v1981 = vmul.f32 %v1960, %v1976
  %v1982 = vmul.f32 %v1961, %v1976
  %v1983 = vmul.f32 %v1962, %v1976
  %v1984 = vmul.f32 %v1963, %v1976
  %v1985 = vmul.f32 %v1964, %v1976
  %v1986 = vmul.f32 %v1965, %v1976
  %v1987 = vmul.f32 %v1966, %v1976
  %v1988 = vmul.f32 %v1967, %v1976
  %v1989 = vmul.f32 %v1968, %v1976
  %v1990 = vmul.f32 %v1969, %v1976
  %v1991 = vmul.f32 %v1970, %v1976
  %v1992 = vmul.f32 %v1971, %v1976
  %v1993 = vadd.f32 %v1939, %v1977
  %v1994 = vadd.f32 %v1940, %v1978
  %v1995 = vadd.f32 %v1941, %v1979
  %v1996 = vadd.f32 %v1942, %v1980
  %v1997 = vadd.f32 %v1943, %v1981
  %v1998 = vadd.f32 %v1944, %v1982
  %v1999 = vadd.f32 %v1945, %v1983
  %v2000 = vadd.f32 %v1946, %v1984
  %v2001 = vadd.f32 %v1947, %v1985
  %v2002 = vadd.f32 %v1948, %v1986
  %v2003 = vadd.f32 %v1949, %v1987
  %v2004 = vadd.f32 %v1950, %v1988
  %v2005 = vadd.f32 %v1951, %v1989
  %v2006 = vadd.f32 %v1952, %v1990
  %v2007 = vadd.f32 %v1953, %v1991
  %v2008 = vadd.f32 %v1954, %v1992
  %v2009 = vld [vmem:[%s1955 + $0x7] sm:$0xff]
  %v2010 = vld [vmem:[%s1955 + $0xf] sm:$0xff]
  %v2011 = vld [vmem:[%s1955 + $0x27] sm:$0xff]
  %v2012 = vld [vmem:[%s1955 + $0x2f] sm:$0xff]
  %v2013 = vld [vmem:[%s1955 + $0x47] sm:$0xff]
  %v2014 = vld [vmem:[%s1955 + $0x4f] sm:$0xff]
  %v2015 = vld [vmem:[%s1955 + $0x67] sm:$0xff]
  %v2016 = vld [vmem:[%s1955 + $0x6f] sm:$0xff]
  %v2017 = vld [vmem:[%s1955 + $0x87] sm:$0xff]
  %v2018 = vld [vmem:[%s1955 + $0x8f] sm:$0xff]
  %v2019 = vld [vmem:[%s1955 + $0xa7] sm:$0xff]
  %v2020 = vld [vmem:[%s1955 + $0xaf] sm:$0xff]
  %v2021 = vld [vmem:[%s1955 + $0xc7] sm:$0xff]
  %v2022 = vld [vmem:[%s1955 + $0xcf] sm:$0xff]
  %v2023 = vld [vmem:[%s1955 + $0xe7] sm:$0xff]
  %v2024 = vld [vmem:[%s1955 + $0xef] sm:$0xff]
  %v2025 = vld [vmem:[%s1 + $0x6] sm:$0x1]
  %v2026 = vlaneseq
  %v2027 = vshrl.u32 %v2026, 7
  %v2028 = vsub.s32 0, %v2027
  %v2029 = vrot.slane %v2025, %v2028
  %v2030 = vmul.f32 %v2009, %v2029
  %v2031 = vmul.f32 %v2010, %v2029
  %v2032 = vmul.f32 %v2011, %v2029
  %v2033 = vmul.f32 %v2012, %v2029
  %v2034 = vmul.f32 %v2013, %v2029
  %v2035 = vmul.f32 %v2014, %v2029
  %v2036 = vmul.f32 %v2015, %v2029
  %v2037 = vmul.f32 %v2016, %v2029
  %v2038 = vmul.f32 %v2017, %v2029
  %v2039 = vmul.f32 %v2018, %v2029
  %v2040 = vmul.f32 %v2019, %v2029
  %v2041 = vmul.f32 %v2020, %v2029
  %v2042 = vmul.f32 %v2021, %v2029
  %v2043 = vmul.f32 %v2022, %v2029
  %v2044 = vmul.f32 %v2023, %v2029
  %v2045 = vmul.f32 %v2024, %v2029
  %v2046 = vadd.f32 %v1993, %v2030
  %v2047 = vadd.f32 %v1994, %v2031
  %v2048 = vadd.f32 %v1995, %v2032
  %v2049 = vadd.f32 %v1996, %v2033
  %v2050 = vadd.f32 %v1997, %v2034
  %v2051 = vadd.f32 %v1998, %v2035
  %v2052 = vadd.f32 %v1999, %v2036
  %v2053 = vadd.f32 %v2000, %v2037
  %v2054 = vadd.f32 %v2001, %v2038
  %v2055 = vadd.f32 %v2002, %v2039
  %v2056 = vadd.f32 %v2003, %v2040
  %v2057 = vadd.f32 %v2004, %v2041
  %v2058 = vadd.f32 %v2005, %v2042
  %v2059 = vadd.f32 %v2006, %v2043
  %v2060 = vadd.f32 %v2007, %v2044
  %v2061 = vadd.f32 %v2008, %v2045
  %v2062 = vld [vmem:[%s1955 + $0x8] sm:$0xff]
  %v2063 = vld [vmem:[%s1955 + $0x10] sm:$0xff]
  %v2064 = vld [vmem:[%s1955 + $0x28] sm:$0xff]
  %v2065 = vld [vmem:[%s1955 + $0x30] sm:$0xff]
  %v2066 = vld [vmem:[%s1955 + $0x48] sm:$0xff]
  %v2067 = vld [vmem:[%s1955 + $0x50] sm:$0xff]
  %v2068 = vld [vmem:[%s1955 + $0x68] sm:$0xff]
  %v2069 = vld [vmem:[%s1955 + $0x70] sm:$0xff]
  %v2070 = vld [vmem:[%s1955 + $0x88] sm:$0xff]
  %v2071 = vld [vmem:[%s1955 + $0x90] sm:$0xff]
  %v2072 = vld [vmem:[%s1955 + $0xa8] sm:$0xff]
  %v2073 = vld [vmem:[%s1955 + $0xb0] sm:$0xff]
  %v2074 = vld [vmem:[%s1955 + $0xc8] sm:$0xff]
  %v2075 = vld [vmem:[%s1955 + $0xd0] sm:$0xff]
  %v2076 = vld [vmem:[%s1955 + $0xe8] sm:$0xff]
  %v2077 = vld [vmem:[%s1955 + $0xf0] sm:$0xff]
  %v2078 = vld [vmem:[%s1 + $0x7] sm:$0x1]
  %v2079 = vlaneseq
  %v2080 = vshrl.u32 %v2079, 7
  %v2081 = vsub.s32 0, %v2080
  %v2082 = vrot.slane %v2078, %v2081
  %v2083 = vmul.f32 %v2062, %v2082
  %v2084 = vmul.f32 %v2063, %v2082
  %v2085 = vmul.f32 %v2064, %v2082
  %v2086 = vmul.f32 %v2065, %v2082
  %v2087 = vmul.f32 %v2066, %v2082
  %v2088 = vmul.f32 %v2067, %v2082
  %v2089 = vmul.f32 %v2068, %v2082
  %v2090 = vmul.f32 %v2069, %v2082
  %v2091 = vmul.f32 %v2070, %v2082
  %v2092 = vmul.f32 %v2071, %v2082
  %v2093 = vmul.f32 %v2072, %v2082
  %v2094 = vmul.f32 %v2073, %v2082
  %v2095 = vmul.f32 %v2074, %v2082
  %v2096 = vmul.f32 %v2075, %v2082
  %v2097 = vmul.f32 %v2076, %v2082
  %v2098 = vmul.f32 %v2077, %v2082
  %v2099 = vadd.f32 %v2046, %v2083
  %v2100 = vadd.f32 %v2047, %v2084
  %v2101 = vadd.f32 %v2048, %v2085
  %v2102 = vadd.f32 %v2049, %v2086
  %v2103 = vadd.f32 %v2050, %v2087
  %v2104 = vadd.f32 %v2051, %v2088
  %v2105 = vadd.f32 %v2052, %v2089
  %v2106 = vadd.f32 %v2053, %v2090
  %v2107 = vadd.f32 %v2054, %v2091
  %v2108 = vadd.f32 %v2055, %v2092
  %v2109 = vadd.f32 %v2056, %v2093
  %v2110 = vadd.f32 %v2057, %v2094
  %v2111 = vadd.f32 %v2058, %v2095
  %v2112 = vadd.f32 %v2059, %v2096
  %v2113 = vadd.f32 %v2060, %v2097
  %v2114 = vadd.f32 %v2061, %v2098
  %v2115 = vld [vmem:[%s1955 + $0x9] sm:$0xff]
  %v2116 = vld [vmem:[%s1955 + $0x11] sm:$0xff]
  %v2117 = vld [vmem:[%s1955 + $0x29] sm:$0xff]
  %v2118 = vld [vmem:[%s1955 + $0x31] sm:$0xff]
  %v2119 = vld [vmem:[%s1955 + $0x49] sm:$0xff]
  %v2120 = vld [vmem:[%s1955 + $0x51] sm:$0xff]
  %v2121 = vld [vmem:[%s1955 + $0x69] sm:$0xff]
  %v2122 = vld [vmem:[%s1955 + $0x71] sm:$0xff]
  %v2123 = vld [vmem:[%s1955 + $0x89] sm:$0xff]
  %v2124 = vld [vmem:[%s1955 + $0x91] sm:$0xff]
  %v2125 = vld [vmem:[%s1955 + $0xa9] sm:$0xff]
  %v2126 = vld [vmem:[%s1955 + $0xb1] sm:$0xff]
  %v2127 = vld [vmem:[%s1955 + $0xc9] sm:$0xff]
  %v2128 = vld [vmem:[%s1955 + $0xd1] sm:$0xff]
  %v2129 = vld [vmem:[%s1955 + $0xe9] sm:$0xff]
  %v2130 = vld [vmem:[%s1955 + $0xf1] sm:$0xff]
  %v2131 = vld [vmem:[%s1 + $0x8] sm:$0x1]
  %v2132 = vlaneseq
  %v2133 = vshrl.u32 %v2132, 7
  %v2134 = vsub.s32 0, %v2133
  %v2135 = vrot.slane %v2131, %v2134
  %v2136 = vmul.f32 %v2115, %v2135
  %v2137 = vmul.f32 %v2116, %v2135
  %v2138 = vmul.f32 %v2117, %v2135
  %v2139 = vmul.f32 %v2118, %v2135
  %v2140 = vmul.f32 %v2119, %v2135
  %v2141 = vmul.f32 %v2120, %v2135
  %v2142 = vmul.f32 %v2121, %v2135
  %v2143 = vmul.f32 %v2122, %v2135
  %v2144 = vmul.f32 %v2123, %v2135
  %v2145 = vmul.f32 %v2124, %v2135
  %v2146 = vmul.f32 %v2125, %v2135
  %v2147 = vmul.f32 %v2126, %v2135
  %v2148 = vmul.f32 %v2127, %v2135
  %v2149 = vmul.f32 %v2128, %v2135
  %v2150 = vmul.f32 %v2129, %v2135
  %v2151 = vmul.f32 %v2130, %v2135
  %v2152 = vadd.f32 %v2099, %v2136
  %v2153 = vadd.f32 %v2100, %v2137
  %v2154 = vadd.f32 %v2101, %v2138
  %v2155 = vadd.f32 %v2102, %v2139
  %v2156 = vadd.f32 %v2103, %v2140
  %v2157 = vadd.f32 %v2104, %v2141
  %v2158 = vadd.f32 %v2105, %v2142
  %v2159 = vadd.f32 %v2106, %v2143
  %v2160 = vadd.f32 %v2107, %v2144
  %v2161 = vadd.f32 %v2108, %v2145
  %v2162 = vadd.f32 %v2109, %v2146
  %v2163 = vadd.f32 %v2110, %v2147
  %v2164 = vadd.f32 %v2111, %v2148
  %v2165 = vadd.f32 %v2112, %v2149
  %v2166 = vadd.f32 %v2113, %v2150
  %v2167 = vadd.f32 %v2114, %v2151
  %v2168 = vld [vmem:[%s1955 + $0xa] sm:$0xff]
  %v2169 = vld [vmem:[%s1955 + $0x12] sm:$0xff]
  %v2170 = vld [vmem:[%s1955 + $0x2a] sm:$0xff]
  %v2171 = vld [vmem:[%s1955 + $0x32] sm:$0xff]
  %v2172 = vld [vmem:[%s1955 + $0x4a] sm:$0xff]
  %v2173 = vld [vmem:[%s1955 + $0x52] sm:$0xff]
  %v2174 = vld [vmem:[%s1955 + $0x6a] sm:$0xff]
  %v2175 = vld [vmem:[%s1955 + $0x72] sm:$0xff]
  %v2176 = vld [vmem:[%s1955 + $0x8a] sm:$0xff]
  %v2177 = vld [vmem:[%s1955 + $0x92] sm:$0xff]
  %v2178 = vld [vmem:[%s1955 + $0xaa] sm:$0xff]
  %v2179 = vld [vmem:[%s1955 + $0xb2] sm:$0xff]
  %v2180 = vld [vmem:[%s1955 + $0xca] sm:$0xff]
  %v2181 = vld [vmem:[%s1955 + $0xd2] sm:$0xff]
  %v2182 = vld [vmem:[%s1955 + $0xea] sm:$0xff]
  %v2183 = vld [vmem:[%s1955 + $0xf2] sm:$0xff]
  %v2184 = vld [vmem:[%s1 + $0x9] sm:$0x1]
  %v2185 = vlaneseq
  %v2186 = vshrl.u32 %v2185, 7
  %v2187 = vsub.s32 0, %v2186
  %v2188 = vrot.slane %v2184, %v2187
  %v2189 = vmul.f32 %v2168, %v2188
  %v2190 = vmul.f32 %v2169, %v2188
  %v2191 = vmul.f32 %v2170, %v2188
  %v2192 = vmul.f32 %v2171, %v2188
  %v2193 = vmul.f32 %v2172, %v2188
  %v2194 = vmul.f32 %v2173, %v2188
  %v2195 = vmul.f32 %v2174, %v2188
  %v2196 = vmul.f32 %v2175, %v2188
  %v2197 = vmul.f32 %v2176, %v2188
  %v2198 = vmul.f32 %v2177, %v2188
  %v2199 = vmul.f32 %v2178, %v2188
  %v2200 = vmul.f32 %v2179, %v2188
  %v2201 = vmul.f32 %v2180, %v2188
  %v2202 = vmul.f32 %v2181, %v2188
  %v2203 = vmul.f32 %v2182, %v2188
  %v2204 = vmul.f32 %v2183, %v2188
  %v2205 = vadd.f32 %v2152, %v2189
  %v2206 = vadd.f32 %v2153, %v2190
  %v2207 = vadd.f32 %v2154, %v2191
  %v2208 = vadd.f32 %v2155, %v2192
  %v2209 = vadd.f32 %v2156, %v2193
  %v2210 = vadd.f32 %v2157, %v2194
  %v2211 = vadd.f32 %v2158, %v2195
  %v2212 = vadd.f32 %v2159, %v2196
  %v2213 = vadd.f32 %v2160, %v2197
  %v2214 = vadd.f32 %v2161, %v2198
  %v2215 = vadd.f32 %v2162, %v2199
  %v2216 = vadd.f32 %v2163, %v2200
  %v2217 = vadd.f32 %v2164, %v2201
  %v2218 = vadd.f32 %v2165, %v2202
  %v2219 = vadd.f32 %v2166, %v2203
  %v2220 = vadd.f32 %v2167, %v2204
  %s2221 = scalar_lea.vmem [#allocation2], 512
  %v2222 = vld [vmem:[%s2221 + $0x6] sm:$0xff]
  %v2223 = vld [vmem:[%s2221 + $0xe] sm:$0xff]
  %v2224 = vld [vmem:[%s2221 + $0x26] sm:$0xff]
  %v2225 = vld [vmem:[%s2221 + $0x2e] sm:$0xff]
  %v2226 = vld [vmem:[%s2221 + $0x46] sm:$0xff]
  %v2227 = vld [vmem:[%s2221 + $0x4e] sm:$0xff]
  %v2228 = vld [vmem:[%s2221 + $0x66] sm:$0xff]
  %v2229 = vld [vmem:[%s2221 + $0x6e] sm:$0xff]
  %v2230 = vld [vmem:[%s2221 + $0x86] sm:$0xff]
  %v2231 = vld [vmem:[%s2221 + $0x8e] sm:$0xff]
  %v2232 = vld [vmem:[%s2221 + $0xa6] sm:$0xff]
  %v2233 = vld [vmem:[%s2221 + $0xae] sm:$0xff]
  %v2234 = vld [vmem:[%s2221 + $0xc6] sm:$0xff]
  %v2235 = vld [vmem:[%s2221 + $0xce] sm:$0xff]
  %v2236 = vld [vmem:[%s2221 + $0xe6] sm:$0xff]
  %v2237 = vld [vmem:[%s2221 + $0xee] sm:$0xff]
  %v2238 = vld [vmem:[%s1 + $0xa] sm:$0x1]
  %v2239 = vlaneseq
  %v2240 = vshrl.u32 %v2239, 7
  %v2241 = vsub.s32 0, %v2240
  %v2242 = vrot.slane %v2238, %v2241
  %v2243 = vmul.f32 %v2222, %v2242
  %v2244 = vmul.f32 %v2223, %v2242
  %v2245 = vmul.f32 %v2224, %v2242
  %v2246 = vmul.f32 %v2225, %v2242
  %v2247 = vmul.f32 %v2226, %v2242
  %v2248 = vmul.f32 %v2227, %v2242
  %v2249 = vmul.f32 %v2228, %v2242
  %v2250 = vmul.f32 %v2229, %v2242
  %v2251 = vmul.f32 %v2230, %v2242
  %v2252 = vmul.f32 %v2231, %v2242
  %v2253 = vmul.f32 %v2232, %v2242
  %v2254 = vmul.f32 %v2233, %v2242
  %v2255 = vmul.f32 %v2234, %v2242
  %v2256 = vmul.f32 %v2235, %v2242
  %v2257 = vmul.f32 %v2236, %v2242
  %v2258 = vmul.f32 %v2237, %v2242
  %v2259 = vadd.f32 %v2205, %v2243
  %v2260 = vadd.f32 %v2206, %v2244
  %v2261 = vadd.f32 %v2207, %v2245
  %v2262 = vadd.f32 %v2208, %v2246
  %v2263 = vadd.f32 %v2209, %v2247
  %v2264 = vadd.f32 %v2210, %v2248
  %v2265 = vadd.f32 %v2211, %v2249
  %v2266 = vadd.f32 %v2212, %v2250
  %v2267 = vadd.f32 %v2213, %v2251
  %v2268 = vadd.f32 %v2214, %v2252
  %v2269 = vadd.f32 %v2215, %v2253
  %v2270 = vadd.f32 %v2216, %v2254
  %v2271 = vadd.f32 %v2217, %v2255
  %v2272 = vadd.f32 %v2218, %v2256
  %v2273 = vadd.f32 %v2219, %v2257
  %v2274 = vadd.f32 %v2220, %v2258
  %v2275 = vld [vmem:[%s2221 + $0x7] sm:$0xff]
  %v2276 = vld [vmem:[%s2221 + $0xf] sm:$0xff]
  %v2277 = vld [vmem:[%s2221 + $0x27] sm:$0xff]
  %v2278 = vld [vmem:[%s2221 + $0x2f] sm:$0xff]
  %v2279 = vld [vmem:[%s2221 + $0x47] sm:$0xff]
  %v2280 = vld [vmem:[%s2221 + $0x4f] sm:$0xff]
  %v2281 = vld [vmem:[%s2221 + $0x67] sm:$0xff]
  %v2282 = vld [vmem:[%s2221 + $0x6f] sm:$0xff]
  %v2283 = vld [vmem:[%s2221 + $0x87] sm:$0xff]
  %v2284 = vld [vmem:[%s2221 + $0x8f] sm:$0xff]
  %v2285 = vld [vmem:[%s2221 + $0xa7] sm:$0xff]
  %v2286 = vld [vmem:[%s2221 + $0xaf] sm:$0xff]
  %v2287 = vld [vmem:[%s2221 + $0xc7] sm:$0xff]
  %v2288 = vld [vmem:[%s2221 + $0xcf] sm:$0xff]
  %v2289 = vld [vmem:[%s2221 + $0xe7] sm:$0xff]
  %v2290 = vld [vmem:[%s2221 + $0xef] sm:$0xff]
  %v2291 = vld [vmem:[%s1 + $0xb] sm:$0x1]
  %v2292 = vlaneseq
  %v2293 = vshrl.u32 %v2292, 7
  %v2294 = vsub.s32 0, %v2293
  %v2295 = vrot.slane %v2291, %v2294
  %v2296 = vmul.f32 %v2275, %v2295
  %v2297 = vmul.f32 %v2276, %v2295
  %v2298 = vmul.f32 %v2277, %v2295
  %v2299 = vmul.f32 %v2278, %v2295
  %v2300 = vmul.f32 %v2279, %v2295
  %v2301 = vmul.f32 %v2280, %v2295
  %v2302 = vmul.f32 %v2281, %v2295
  %v2303 = vmul.f32 %v2282, %v2295
  %v2304 = vmul.f32 %v2283, %v2295
  %v2305 = vmul.f32 %v2284, %v2295
  %v2306 = vmul.f32 %v2285, %v2295
  %v2307 = vmul.f32 %v2286, %v2295
  %v2308 = vmul.f32 %v2287, %v2295
  %v2309 = vmul.f32 %v2288, %v2295
  %v2310 = vmul.f32 %v2289, %v2295
  %v2311 = vmul.f32 %v2290, %v2295
  %v2312 = vadd.f32 %v2259, %v2296
  %v2313 = vadd.f32 %v2260, %v2297
  %v2314 = vadd.f32 %v2261, %v2298
  %v2315 = vadd.f32 %v2262, %v2299
  %v2316 = vadd.f32 %v2263, %v2300
  %v2317 = vadd.f32 %v2264, %v2301
  %v2318 = vadd.f32 %v2265, %v2302
  %v2319 = vadd.f32 %v2266, %v2303
  %v2320 = vadd.f32 %v2267, %v2304
  %v2321 = vadd.f32 %v2268, %v2305
  %v2322 = vadd.f32 %v2269, %v2306
  %v2323 = vadd.f32 %v2270, %v2307
  %v2324 = vadd.f32 %v2271, %v2308
  %v2325 = vadd.f32 %v2272, %v2309
  %v2326 = vadd.f32 %v2273, %v2310
  %v2327 = vadd.f32 %v2274, %v2311
  %v2328 = vld [vmem:[%s2221 + $0x8] sm:$0xff]
  %v2329 = vld [vmem:[%s2221 + $0x10] sm:$0xff]
  %v2330 = vld [vmem:[%s2221 + $0x28] sm:$0xff]
  %v2331 = vld [vmem:[%s2221 + $0x30] sm:$0xff]
  %v2332 = vld [vmem:[%s2221 + $0x48] sm:$0xff]
  %v2333 = vld [vmem:[%s2221 + $0x50] sm:$0xff]
  %v2334 = vld [vmem:[%s2221 + $0x68] sm:$0xff]
  %v2335 = vld [vmem:[%s2221 + $0x70] sm:$0xff]
  %v2336 = vld [vmem:[%s2221 + $0x88] sm:$0xff]
  %v2337 = vld [vmem:[%s2221 + $0x90] sm:$0xff]
  %v2338 = vld [vmem:[%s2221 + $0xa8] sm:$0xff]
  %v2339 = vld [vmem:[%s2221 + $0xb0] sm:$0xff]
  %v2340 = vld [vmem:[%s2221 + $0xc8] sm:$0xff]
  %v2341 = vld [vmem:[%s2221 + $0xd0] sm:$0xff]
  %v2342 = vld [vmem:[%s2221 + $0xe8] sm:$0xff]
  %v2343 = vld [vmem:[%s2221 + $0xf0] sm:$0xff]
  %v2344 = vld [vmem:[%s1 + $0xc] sm:$0x1]
  %v2345 = vlaneseq
  %v2346 = vshrl.u32 %v2345, 7
  %v2347 = vsub.s32 0, %v2346
  %v2348 = vrot.slane %v2344, %v2347
  %v2349 = vmul.f32 %v2328, %v2348
  %v2350 = vmul.f32 %v2329, %v2348
  %v2351 = vmul.f32 %v2330, %v2348
  %v2352 = vmul.f32 %v2331, %v2348
  %v2353 = vmul.f32 %v2332, %v2348
  %v2354 = vmul.f32 %v2333, %v2348
  %v2355 = vmul.f32 %v2334, %v2348
  %v2356 = vmul.f32 %v2335, %v2348
  %v2357 = vmul.f32 %v2336, %v2348
  %v2358 = vmul.f32 %v2337, %v2348
  %v2359 = vmul.f32 %v2338, %v2348
  %v2360 = vmul.f32 %v2339, %v2348
  %v2361 = vmul.f32 %v2340, %v2348
  %v2362 = vmul.f32 %v2341, %v2348
  %v2363 = vmul.f32 %v2342, %v2348
  %v2364 = vmul.f32 %v2343, %v2348
  %v2365 = vadd.f32 %v2312, %v2349
  %v2366 = vadd.f32 %v2313, %v2350
  %v2367 = vadd.f32 %v2314, %v2351
  %v2368 = vadd.f32 %v2315, %v2352
  %v2369 = vadd.f32 %v2316, %v2353
  %v2370 = vadd.f32 %v2317, %v2354
  %v2371 = vadd.f32 %v2318, %v2355
  %v2372 = vadd.f32 %v2319, %v2356
  %v2373 = vadd.f32 %v2320, %v2357
  %v2374 = vadd.f32 %v2321, %v2358
  %v2375 = vadd.f32 %v2322, %v2359
  %v2376 = vadd.f32 %v2323, %v2360
  %v2377 = vadd.f32 %v2324, %v2361
  %v2378 = vadd.f32 %v2325, %v2362
  %v2379 = vadd.f32 %v2326, %v2363
  %v2380 = vadd.f32 %v2327, %v2364
  %v2381 = vld [vmem:[%s2221 + $0x9] sm:$0xff]
  %v2382 = vld [vmem:[%s2221 + $0x11] sm:$0xff]
  %v2383 = vld [vmem:[%s2221 + $0x29] sm:$0xff]
  %v2384 = vld [vmem:[%s2221 + $0x31] sm:$0xff]
  %v2385 = vld [vmem:[%s2221 + $0x49] sm:$0xff]
  %v2386 = vld [vmem:[%s2221 + $0x51] sm:$0xff]
  %v2387 = vld [vmem:[%s2221 + $0x69] sm:$0xff]
  %v2388 = vld [vmem:[%s2221 + $0x71] sm:$0xff]
  %v2389 = vld [vmem:[%s2221 + $0x89] sm:$0xff]
  %v2390 = vld [vmem:[%s2221 + $0x91] sm:$0xff]
  %v2391 = vld [vmem:[%s2221 + $0xa9] sm:$0xff]
  %v2392 = vld [vmem:[%s2221 + $0xb1] sm:$0xff]
  %v2393 = vld [vmem:[%s2221 + $0xc9] sm:$0xff]
  %v2394 = vld [vmem:[%s2221 + $0xd1] sm:$0xff]
  %v2395 = vld [vmem:[%s2221 + $0xe9] sm:$0xff]
  %v2396 = vld [vmem:[%s2221 + $0xf1] sm:$0xff]
  %v2397 = vld [vmem:[%s1 + $0xd] sm:$0x1]
  %v2398 = vlaneseq
  %v2399 = vshrl.u32 %v2398, 7
  %v2400 = vsub.s32 0, %v2399
  %v2401 = vrot.slane %v2397, %v2400
  %v2402 = vmul.f32 %v2381, %v2401
  %v2403 = vmul.f32 %v2382, %v2401
  %v2404 = vmul.f32 %v2383, %v2401
  %v2405 = vmul.f32 %v2384, %v2401
  %v2406 = vmul.f32 %v2385, %v2401
  %v2407 = vmul.f32 %v2386, %v2401
  %v2408 = vmul.f32 %v2387, %v2401
  %v2409 = vmul.f32 %v2388, %v2401
  %v2410 = vmul.f32 %v2389, %v2401
  %v2411 = vmul.f32 %v2390, %v2401
  %v2412 = vmul.f32 %v2391, %v2401
  %v2413 = vmul.f32 %v2392, %v2401
  %v2414 = vmul.f32 %v2393, %v2401
  %v2415 = vmul.f32 %v2394, %v2401
  %v2416 = vmul.f32 %v2395, %v2401
  %v2417 = vmul.f32 %v2396, %v2401
  %v2418 = vadd.f32 %v2365, %v2402
  %v2419 = vadd.f32 %v2366, %v2403
  %v2420 = vadd.f32 %v2367, %v2404
  %v2421 = vadd.f32 %v2368, %v2405
  %v2422 = vadd.f32 %v2369, %v2406
  %v2423 = vadd.f32 %v2370, %v2407
  %v2424 = vadd.f32 %v2371, %v2408
  %v2425 = vadd.f32 %v2372, %v2409
  %v2426 = vadd.f32 %v2373, %v2410
  %v2427 = vadd.f32 %v2374, %v2411
  %v2428 = vadd.f32 %v2375, %v2412
  %v2429 = vadd.f32 %v2376, %v2413
  %v2430 = vadd.f32 %v2377, %v2414
  %v2431 = vadd.f32 %v2378, %v2415
  %v2432 = vadd.f32 %v2379, %v2416
  %v2433 = vadd.f32 %v2380, %v2417
  %v2434 = vld [vmem:[%s2221 + $0xa] sm:$0xff]
  %v2435 = vld [vmem:[%s2221 + $0x12] sm:$0xff]
  %v2436 = vld [vmem:[%s2221 + $0x2a] sm:$0xff]
  %v2437 = vld [vmem:[%s2221 + $0x32] sm:$0xff]
  %v2438 = vld [vmem:[%s2221 + $0x4a] sm:$0xff]
  %v2439 = vld [vmem:[%s2221 + $0x52] sm:$0xff]
  %v2440 = vld [vmem:[%s2221 + $0x6a] sm:$0xff]
  %v2441 = vld [vmem:[%s2221 + $0x72] sm:$0xff]
  %v2442 = vld [vmem:[%s2221 + $0x8a] sm:$0xff]
  %v2443 = vld [vmem:[%s2221 + $0x92] sm:$0xff]
  %v2444 = vld [vmem:[%s2221 + $0xaa] sm:$0xff]
  %v2445 = vld [vmem:[%s2221 + $0xb2] sm:$0xff]
  %v2446 = vld [vmem:[%s2221 + $0xca] sm:$0xff]
  %v2447 = vld [vmem:[%s2221 + $0xd2] sm:$0xff]
  %v2448 = vld [vmem:[%s2221 + $0xea] sm:$0xff]
  %v2449 = vld [vmem:[%s2221 + $0xf2] sm:$0xff]
  %v2450 = vld [vmem:[%s1 + $0xe] sm:$0x1]
  %v2451 = vlaneseq
  %v2452 = vshrl.u32 %v2451, 7
  %v2453 = vsub.s32 0, %v2452
  %v2454 = vrot.slane %v2450, %v2453
  %v2455 = vmul.f32 %v2434, %v2454
  %v2456 = vmul.f32 %v2435, %v2454
  %v2457 = vmul.f32 %v2436, %v2454
  %v2458 = vmul.f32 %v2437, %v2454
  %v2459 = vmul.f32 %v2438, %v2454
  %v2460 = vmul.f32 %v2439, %v2454
  %v2461 = vmul.f32 %v2440, %v2454
  %v2462 = vmul.f32 %v2441, %v2454
  %v2463 = vmul.f32 %v2442, %v2454
  %v2464 = vmul.f32 %v2443, %v2454
  %v2465 = vmul.f32 %v2444, %v2454
  %v2466 = vmul.f32 %v2445, %v2454
  %v2467 = vmul.f32 %v2446, %v2454
  %v2468 = vmul.f32 %v2447, %v2454
  %v2469 = vmul.f32 %v2448, %v2454
  %v2470 = vmul.f32 %v2449, %v2454
  %v2471 = vadd.f32 %v2418, %v2455
  %v2472 = vadd.f32 %v2419, %v2456
  %v2473 = vadd.f32 %v2420, %v2457
  %v2474 = vadd.f32 %v2421, %v2458
  %v2475 = vadd.f32 %v2422, %v2459
  %v2476 = vadd.f32 %v2423, %v2460
  %v2477 = vadd.f32 %v2424, %v2461
  %v2478 = vadd.f32 %v2425, %v2462
  %v2479 = vadd.f32 %v2426, %v2463
  %v2480 = vadd.f32 %v2427, %v2464
  %v2481 = vadd.f32 %v2428, %v2465
  %v2482 = vadd.f32 %v2429, %v2466
  %v2483 = vadd.f32 %v2430, %v2467
  %v2484 = vadd.f32 %v2431, %v2468
  %v2485 = vadd.f32 %v2432, %v2469
  %v2486 = vadd.f32 %v2433, %v2470
  %s2487 = scalar_lea.vmem [#allocation2], 544
  %v2488 = vld [vmem:[%s2487 + $0x6] sm:$0xff]
  %v2489 = vld [vmem:[%s2487 + $0xe] sm:$0xff]
  %v2490 = vld [vmem:[%s2487 + $0x26] sm:$0xff]
  %v2491 = vld [vmem:[%s2487 + $0x2e] sm:$0xff]
  %v2492 = vld [vmem:[%s2487 + $0x46] sm:$0xff]
  %v2493 = vld [vmem:[%s2487 + $0x4e] sm:$0xff]
  %v2494 = vld [vmem:[%s2487 + $0x66] sm:$0xff]
  %v2495 = vld [vmem:[%s2487 + $0x6e] sm:$0xff]
  %v2496 = vld [vmem:[%s2487 + $0x86] sm:$0xff]
  %v2497 = vld [vmem:[%s2487 + $0x8e] sm:$0xff]
  %v2498 = vld [vmem:[%s2487 + $0xa6] sm:$0xff]
  %v2499 = vld [vmem:[%s2487 + $0xae] sm:$0xff]
  %v2500 = vld [vmem:[%s2487 + $0xc6] sm:$0xff]
  %v2501 = vld [vmem:[%s2487 + $0xce] sm:$0xff]
  %v2502 = vld [vmem:[%s2487 + $0xe6] sm:$0xff]
  %v2503 = vld [vmem:[%s2487 + $0xee] sm:$0xff]
  %v2504 = vld [vmem:[%s1 + $0xf] sm:$0x1]
  %v2505 = vlaneseq
  %v2506 = vshrl.u32 %v2505, 7
  %v2507 = vsub.s32 0, %v2506
  %v2508 = vrot.slane %v2504, %v2507
  %v2509 = vmul.f32 %v2488, %v2508
  %v2510 = vmul.f32 %v2489, %v2508
  %v2511 = vmul.f32 %v2490, %v2508
  %v2512 = vmul.f32 %v2491, %v2508
  %v2513 = vmul.f32 %v2492, %v2508
  %v2514 = vmul.f32 %v2493, %v2508
  %v2515 = vmul.f32 %v2494, %v2508
  %v2516 = vmul.f32 %v2495, %v2508
  %v2517 = vmul.f32 %v2496, %v2508
  %v2518 = vmul.f32 %v2497, %v2508
  %v2519 = vmul.f32 %v2498, %v2508
  %v2520 = vmul.f32 %v2499, %v2508
  %v2521 = vmul.f32 %v2500, %v2508
  %v2522 = vmul.f32 %v2501, %v2508
  %v2523 = vmul.f32 %v2502, %v2508
  %v2524 = vmul.f32 %v2503, %v2508
  %v2525 = vadd.f32 %v2471, %v2509
  %v2526 = vadd.f32 %v2472, %v2510
  %v2527 = vadd.f32 %v2473, %v2511
  %v2528 = vadd.f32 %v2474, %v2512
  %v2529 = vadd.f32 %v2475, %v2513
  %v2530 = vadd.f32 %v2476, %v2514
  %v2531 = vadd.f32 %v2477, %v2515
  %v2532 = vadd.f32 %v2478, %v2516
  %v2533 = vadd.f32 %v2479, %v2517
  %v2534 = vadd.f32 %v2480, %v2518
  %v2535 = vadd.f32 %v2481, %v2519
  %v2536 = vadd.f32 %v2482, %v2520
  %v2537 = vadd.f32 %v2483, %v2521
  %v2538 = vadd.f32 %v2484, %v2522
  %v2539 = vadd.f32 %v2485, %v2523
  %v2540 = vadd.f32 %v2486, %v2524
  %v2541 = vld [vmem:[%s2487 + $0x7] sm:$0xff]
  %v2542 = vld [vmem:[%s2487 + $0xf] sm:$0xff]
  %v2543 = vld [vmem:[%s2487 + $0x27] sm:$0xff]
  %v2544 = vld [vmem:[%s2487 + $0x2f] sm:$0xff]
  %v2545 = vld [vmem:[%s2487 + $0x47] sm:$0xff]
  %v2546 = vld [vmem:[%s2487 + $0x4f] sm:$0xff]
  %v2547 = vld [vmem:[%s2487 + $0x67] sm:$0xff]
  %v2548 = vld [vmem:[%s2487 + $0x6f] sm:$0xff]
  %v2549 = vld [vmem:[%s2487 + $0x87] sm:$0xff]
  %v2550 = vld [vmem:[%s2487 + $0x8f] sm:$0xff]
  %v2551 = vld [vmem:[%s2487 + $0xa7] sm:$0xff]
  %v2552 = vld [vmem:[%s2487 + $0xaf] sm:$0xff]
  %v2553 = vld [vmem:[%s2487 + $0xc7] sm:$0xff]
  %v2554 = vld [vmem:[%s2487 + $0xcf] sm:$0xff]
  %v2555 = vld [vmem:[%s2487 + $0xe7] sm:$0xff]
  %v2556 = vld [vmem:[%s2487 + $0xef] sm:$0xff]
  %v2557 = vld [vmem:[%s1 + $0x10] sm:$0x1]
  %v2558 = vlaneseq
  %v2559 = vshrl.u32 %v2558, 7
  %v2560 = vsub.s32 0, %v2559
  %v2561 = vrot.slane %v2557, %v2560
  %v2562 = vmul.f32 %v2541, %v2561
  %v2563 = vmul.f32 %v2542, %v2561
  %v2564 = vmul.f32 %v2543, %v2561
  %v2565 = vmul.f32 %v2544, %v2561
  %v2566 = vmul.f32 %v2545, %v2561
  %v2567 = vmul.f32 %v2546, %v2561
  %v2568 = vmul.f32 %v2547, %v2561
  %v2569 = vmul.f32 %v2548, %v2561
  %v2570 = vmul.f32 %v2549, %v2561
  %v2571 = vmul.f32 %v2550, %v2561
  %v2572 = vmul.f32 %v2551, %v2561
  %v2573 = vmul.f32 %v2552, %v2561
  %v2574 = vmul.f32 %v2553, %v2561
  %v2575 = vmul.f32 %v2554, %v2561
  %v2576 = vmul.f32 %v2555, %v2561
  %v2577 = vmul.f32 %v2556, %v2561
  %v2578 = vadd.f32 %v2525, %v2562
  %v2579 = vadd.f32 %v2526, %v2563
  %v2580 = vadd.f32 %v2527, %v2564
  %v2581 = vadd.f32 %v2528, %v2565
  %v2582 = vadd.f32 %v2529, %v2566
  %v2583 = vadd.f32 %v2530, %v2567
  %v2584 = vadd.f32 %v2531, %v2568
  %v2585 = vadd.f32 %v2532, %v2569
  %v2586 = vadd.f32 %v2533, %v2570
  %v2587 = vadd.f32 %v2534, %v2571
  %v2588 = vadd.f32 %v2535, %v2572
  %v2589 = vadd.f32 %v2536, %v2573
  %v2590 = vadd.f32 %v2537, %v2574
  %v2591 = vadd.f32 %v2538, %v2575
  %v2592 = vadd.f32 %v2539, %v2576
  %v2593 = vadd.f32 %v2540, %v2577
  %v2594 = vld [vmem:[%s2487 + $0x8] sm:$0xff]
  %v2595 = vld [vmem:[%s2487 + $0x10] sm:$0xff]
  %v2596 = vld [vmem:[%s2487 + $0x28] sm:$0xff]
  %v2597 = vld [vmem:[%s2487 + $0x30] sm:$0xff]
  %v2598 = vld [vmem:[%s2487 + $0x48] sm:$0xff]
  %v2599 = vld [vmem:[%s2487 + $0x50] sm:$0xff]
  %v2600 = vld [vmem:[%s2487 + $0x68] sm:$0xff]
  %v2601 = vld [vmem:[%s2487 + $0x70] sm:$0xff]
  %v2602 = vld [vmem:[%s2487 + $0x88] sm:$0xff]
  %v2603 = vld [vmem:[%s2487 + $0x90] sm:$0xff]
  %v2604 = vld [vmem:[%s2487 + $0xa8] sm:$0xff]
  %v2605 = vld [vmem:[%s2487 + $0xb0] sm:$0xff]
  %v2606 = vld [vmem:[%s2487 + $0xc8] sm:$0xff]
  %v2607 = vld [vmem:[%s2487 + $0xd0] sm:$0xff]
  %v2608 = vld [vmem:[%s2487 + $0xe8] sm:$0xff]
  %v2609 = vld [vmem:[%s2487 + $0xf0] sm:$0xff]
  %v2610 = vld [vmem:[%s1 + $0x11] sm:$0x1]
  %v2611 = vlaneseq
  %v2612 = vshrl.u32 %v2611, 7
  %v2613 = vsub.s32 0, %v2612
  %v2614 = vrot.slane %v2610, %v2613
  %v2615 = vmul.f32 %v2594, %v2614
  %v2616 = vmul.f32 %v2595, %v2614
  %v2617 = vmul.f32 %v2596, %v2614
  %v2618 = vmul.f32 %v2597, %v2614
  %v2619 = vmul.f32 %v2598, %v2614
  %v2620 = vmul.f32 %v2599, %v2614
  %v2621 = vmul.f32 %v2600, %v2614
  %v2622 = vmul.f32 %v2601, %v2614
  %v2623 = vmul.f32 %v2602, %v2614
  %v2624 = vmul.f32 %v2603, %v2614
  %v2625 = vmul.f32 %v2604, %v2614
  %v2626 = vmul.f32 %v2605, %v2614
  %v2627 = vmul.f32 %v2606, %v2614
  %v2628 = vmul.f32 %v2607, %v2614
  %v2629 = vmul.f32 %v2608, %v2614
  %v2630 = vmul.f32 %v2609, %v2614
  %v2631 = vadd.f32 %v2578, %v2615
  %v2632 = vadd.f32 %v2579, %v2616
  %v2633 = vadd.f32 %v2580, %v2617
  %v2634 = vadd.f32 %v2581, %v2618
  %v2635 = vadd.f32 %v2582, %v2619
  %v2636 = vadd.f32 %v2583, %v2620
  %v2637 = vadd.f32 %v2584, %v2621
  %v2638 = vadd.f32 %v2585, %v2622
  %v2639 = vadd.f32 %v2586, %v2623
  %v2640 = vadd.f32 %v2587, %v2624
  %v2641 = vadd.f32 %v2588, %v2625
  %v2642 = vadd.f32 %v2589, %v2626
  %v2643 = vadd.f32 %v2590, %v2627
  %v2644 = vadd.f32 %v2591, %v2628
  %v2645 = vadd.f32 %v2592, %v2629
  %v2646 = vadd.f32 %v2593, %v2630
  %v2647 = vld [vmem:[%s2487 + $0x9] sm:$0xff]
  %v2648 = vld [vmem:[%s2487 + $0x11] sm:$0xff]
  %v2649 = vld [vmem:[%s2487 + $0x29] sm:$0xff]
  %v2650 = vld [vmem:[%s2487 + $0x31] sm:$0xff]
  %v2651 = vld [vmem:[%s2487 + $0x49] sm:$0xff]
  %v2652 = vld [vmem:[%s2487 + $0x51] sm:$0xff]
  %v2653 = vld [vmem:[%s2487 + $0x69] sm:$0xff]
  %v2654 = vld [vmem:[%s2487 + $0x71] sm:$0xff]
  %v2655 = vld [vmem:[%s2487 + $0x89] sm:$0xff]
  %v2656 = vld [vmem:[%s2487 + $0x91] sm:$0xff]
  %v2657 = vld [vmem:[%s2487 + $0xa9] sm:$0xff]
  %v2658 = vld [vmem:[%s2487 + $0xb1] sm:$0xff]
  %v2659 = vld [vmem:[%s2487 + $0xc9] sm:$0xff]
  %v2660 = vld [vmem:[%s2487 + $0xd1] sm:$0xff]
  %v2661 = vld [vmem:[%s2487 + $0xe9] sm:$0xff]
  %v2662 = vld [vmem:[%s2487 + $0xf1] sm:$0xff]
  %v2663 = vld [vmem:[%s1 + $0x12] sm:$0x1]
  %v2664 = vlaneseq
  %v2665 = vshrl.u32 %v2664, 7
  %v2666 = vsub.s32 0, %v2665
  %v2667 = vrot.slane %v2663, %v2666
  %v2668 = vmul.f32 %v2647, %v2667
  %v2669 = vmul.f32 %v2648, %v2667
  %v2670 = vmul.f32 %v2649, %v2667
  %v2671 = vmul.f32 %v2650, %v2667
  %v2672 = vmul.f32 %v2651, %v2667
  %v2673 = vmul.f32 %v2652, %v2667
  %v2674 = vmul.f32 %v2653, %v2667
  %v2675 = vmul.f32 %v2654, %v2667
  %v2676 = vmul.f32 %v2655, %v2667
  %v2677 = vmul.f32 %v2656, %v2667
  %v2678 = vmul.f32 %v2657, %v2667
  %v2679 = vmul.f32 %v2658, %v2667
  %v2680 = vmul.f32 %v2659, %v2667
  %v2681 = vmul.f32 %v2660, %v2667
  %v2682 = vmul.f32 %v2661, %v2667
  %v2683 = vmul.f32 %v2662, %v2667
  %v2684 = vadd.f32 %v2631, %v2668
  %v2685 = vadd.f32 %v2632, %v2669
  %v2686 = vadd.f32 %v2633, %v2670
  %v2687 = vadd.f32 %v2634, %v2671
  %v2688 = vadd.f32 %v2635, %v2672
  %v2689 = vadd.f32 %v2636, %v2673
  %v2690 = vadd.f32 %v2637, %v2674
  %v2691 = vadd.f32 %v2638, %v2675
  %v2692 = vadd.f32 %v2639, %v2676
  %v2693 = vadd.f32 %v2640, %v2677
  %v2694 = vadd.f32 %v2641, %v2678
  %v2695 = vadd.f32 %v2642, %v2679
  %v2696 = vadd.f32 %v2643, %v2680
  %v2697 = vadd.f32 %v2644, %v2681
  %v2698 = vadd.f32 %v2645, %v2682
  %v2699 = vadd.f32 %v2646, %v2683
  %v2700 = vld [vmem:[%s2487 + $0xa] sm:$0xff]
  %v2701 = vld [vmem:[%s2487 + $0x12] sm:$0xff]
  %v2702 = vld [vmem:[%s2487 + $0x2a] sm:$0xff]
  %v2703 = vld [vmem:[%s2487 + $0x32] sm:$0xff]
  %v2704 = vld [vmem:[%s2487 + $0x4a] sm:$0xff]
  %v2705 = vld [vmem:[%s2487 + $0x52] sm:$0xff]
  %v2706 = vld [vmem:[%s2487 + $0x6a] sm:$0xff]
  %v2707 = vld [vmem:[%s2487 + $0x72] sm:$0xff]
  %v2708 = vld [vmem:[%s2487 + $0x8a] sm:$0xff]
  %v2709 = vld [vmem:[%s2487 + $0x92] sm:$0xff]
  %v2710 = vld [vmem:[%s2487 + $0xaa] sm:$0xff]
  %v2711 = vld [vmem:[%s2487 + $0xb2] sm:$0xff]
  %v2712 = vld [vmem:[%s2487 + $0xca] sm:$0xff]
  %v2713 = vld [vmem:[%s2487 + $0xd2] sm:$0xff]
  %v2714 = vld [vmem:[%s2487 + $0xea] sm:$0xff]
  %v2715 = vld [vmem:[%s2487 + $0xf2] sm:$0xff]
  %v2716 = vld [vmem:[%s1 + $0x13] sm:$0x1]
  %v2717 = vlaneseq
  %v2718 = vshrl.u32 %v2717, 7
  %v2719 = vsub.s32 0, %v2718
  %v2720 = vrot.slane %v2716, %v2719
  %v2721 = vmul.f32 %v2700, %v2720
  %v2722 = vmul.f32 %v2701, %v2720
  %v2723 = vmul.f32 %v2702, %v2720
  %v2724 = vmul.f32 %v2703, %v2720
  %v2725 = vmul.f32 %v2704, %v2720
  %v2726 = vmul.f32 %v2705, %v2720
  %v2727 = vmul.f32 %v2706, %v2720
  %v2728 = vmul.f32 %v2707, %v2720
  %v2729 = vmul.f32 %v2708, %v2720
  %v2730 = vmul.f32 %v2709, %v2720
  %v2731 = vmul.f32 %v2710, %v2720
  %v2732 = vmul.f32 %v2711, %v2720
  %v2733 = vmul.f32 %v2712, %v2720
  %v2734 = vmul.f32 %v2713, %v2720
  %v2735 = vmul.f32 %v2714, %v2720
  %v2736 = vmul.f32 %v2715, %v2720
  %v2737 = vadd.f32 %v2684, %v2721
  %v2738 = vadd.f32 %v2685, %v2722
  %v2739 = vadd.f32 %v2686, %v2723
  %v2740 = vadd.f32 %v2687, %v2724
  %v2741 = vadd.f32 %v2688, %v2725
  %v2742 = vadd.f32 %v2689, %v2726
  %v2743 = vadd.f32 %v2690, %v2727
  %v2744 = vadd.f32 %v2691, %v2728
  %v2745 = vadd.f32 %v2692, %v2729
  %v2746 = vadd.f32 %v2693, %v2730
  %v2747 = vadd.f32 %v2694, %v2731
  %v2748 = vadd.f32 %v2695, %v2732
  %v2749 = vadd.f32 %v2696, %v2733
  %v2750 = vadd.f32 %v2697, %v2734
  %v2751 = vadd.f32 %v2698, %v2735
  %v2752 = vadd.f32 %v2699, %v2736
  %s2753 = scalar_lea.vmem [#allocation2], 576
  %v2754 = vld [vmem:[%s2753 + $0x6] sm:$0xff]
  %v2755 = vld [vmem:[%s2753 + $0xe] sm:$0xff]
  %v2756 = vld [vmem:[%s2753 + $0x26] sm:$0xff]
  %v2757 = vld [vmem:[%s2753 + $0x2e] sm:$0xff]
  %v2758 = vld [vmem:[%s2753 + $0x46] sm:$0xff]
  %v2759 = vld [vmem:[%s2753 + $0x4e] sm:$0xff]
  %v2760 = vld [vmem:[%s2753 + $0x66] sm:$0xff]
  %v2761 = vld [vmem:[%s2753 + $0x6e] sm:$0xff]
  %v2762 = vld [vmem:[%s2753 + $0x86] sm:$0xff]
  %v2763 = vld [vmem:[%s2753 + $0x8e] sm:$0xff]
  %v2764 = vld [vmem:[%s2753 + $0xa6] sm:$0xff]
  %v2765 = vld [vmem:[%s2753 + $0xae] sm:$0xff]
  %v2766 = vld [vmem:[%s2753 + $0xc6] sm:$0xff]
  %v2767 = vld [vmem:[%s2753 + $0xce] sm:$0xff]
  %v2768 = vld [vmem:[%s2753 + $0xe6] sm:$0xff]
  %v2769 = vld [vmem:[%s2753 + $0xee] sm:$0xff]
  %v2770 = vld [vmem:[%s1 + $0x14] sm:$0x1]
  %v2771 = vlaneseq
  %v2772 = vshrl.u32 %v2771, 7
  %v2773 = vsub.s32 0, %v2772
  %v2774 = vrot.slane %v2770, %v2773
  %v2775 = vmul.f32 %v2754, %v2774
  %v2776 = vmul.f32 %v2755, %v2774
  %v2777 = vmul.f32 %v2756, %v2774
  %v2778 = vmul.f32 %v2757, %v2774
  %v2779 = vmul.f32 %v2758, %v2774
  %v2780 = vmul.f32 %v2759, %v2774
  %v2781 = vmul.f32 %v2760, %v2774
  %v2782 = vmul.f32 %v2761, %v2774
  %v2783 = vmul.f32 %v2762, %v2774
  %v2784 = vmul.f32 %v2763, %v2774
  %v2785 = vmul.f32 %v2764, %v2774
  %v2786 = vmul.f32 %v2765, %v2774
  %v2787 = vmul.f32 %v2766, %v2774
  %v2788 = vmul.f32 %v2767, %v2774
  %v2789 = vmul.f32 %v2768, %v2774
  %v2790 = vmul.f32 %v2769, %v2774
  %v2791 = vadd.f32 %v2737, %v2775
  %v2792 = vadd.f32 %v2738, %v2776
  %v2793 = vadd.f32 %v2739, %v2777
  %v2794 = vadd.f32 %v2740, %v2778
  %v2795 = vadd.f32 %v2741, %v2779
  %v2796 = vadd.f32 %v2742, %v2780
  %v2797 = vadd.f32 %v2743, %v2781
  %v2798 = vadd.f32 %v2744, %v2782
  %v2799 = vadd.f32 %v2745, %v2783
  %v2800 = vadd.f32 %v2746, %v2784
  %v2801 = vadd.f32 %v2747, %v2785
  %v2802 = vadd.f32 %v2748, %v2786
  %v2803 = vadd.f32 %v2749, %v2787
  %v2804 = vadd.f32 %v2750, %v2788
  %v2805 = vadd.f32 %v2751, %v2789
  %v2806 = vadd.f32 %v2752, %v2790
  %v2807 = vld [vmem:[%s2753 + $0x7] sm:$0xff]
  %v2808 = vld [vmem:[%s2753 + $0xf] sm:$0xff]
  %v2809 = vld [vmem:[%s2753 + $0x27] sm:$0xff]
  %v2810 = vld [vmem:[%s2753 + $0x2f] sm:$0xff]
  %v2811 = vld [vmem:[%s2753 + $0x47] sm:$0xff]
  %v2812 = vld [vmem:[%s2753 + $0x4f] sm:$0xff]
  %v2813 = vld [vmem:[%s2753 + $0x67] sm:$0xff]
  %v2814 = vld [vmem:[%s2753 + $0x6f] sm:$0xff]
  %v2815 = vld [vmem:[%s2753 + $0x87] sm:$0xff]
  %v2816 = vld [vmem:[%s2753 + $0x8f] sm:$0xff]
  %v2817 = vld [vmem:[%s2753 + $0xa7] sm:$0xff]
  %v2818 = vld [vmem:[%s2753 + $0xaf] sm:$0xff]
  %v2819 = vld [vmem:[%s2753 + $0xc7] sm:$0xff]
  %v2820 = vld [vmem:[%s2753 + $0xcf] sm:$0xff]
  %v2821 = vld [vmem:[%s2753 + $0xe7] sm:$0xff]
  %v2822 = vld [vmem:[%s2753 + $0xef] sm:$0xff]
  %v2823 = vld [vmem:[%s1 + $0x15] sm:$0x1]
  %v2824 = vlaneseq
  %v2825 = vshrl.u32 %v2824, 7
  %v2826 = vsub.s32 0, %v2825
  %v2827 = vrot.slane %v2823, %v2826
  %v2828 = vmul.f32 %v2807, %v2827
  %v2829 = vmul.f32 %v2808, %v2827
  %v2830 = vmul.f32 %v2809, %v2827
  %v2831 = vmul.f32 %v2810, %v2827
  %v2832 = vmul.f32 %v2811, %v2827
  %v2833 = vmul.f32 %v2812, %v2827
  %v2834 = vmul.f32 %v2813, %v2827
  %v2835 = vmul.f32 %v2814, %v2827
  %v2836 = vmul.f32 %v2815, %v2827
  %v2837 = vmul.f32 %v2816, %v2827
  %v2838 = vmul.f32 %v2817, %v2827
  %v2839 = vmul.f32 %v2818, %v2827
  %v2840 = vmul.f32 %v2819, %v2827
  %v2841 = vmul.f32 %v2820, %v2827
  %v2842 = vmul.f32 %v2821, %v2827
  %v2843 = vmul.f32 %v2822, %v2827
  %v2844 = vadd.f32 %v2791, %v2828
  %v2845 = vadd.f32 %v2792, %v2829
  %v2846 = vadd.f32 %v2793, %v2830
  %v2847 = vadd.f32 %v2794, %v2831
  %v2848 = vadd.f32 %v2795, %v2832
  %v2849 = vadd.f32 %v2796, %v2833
  %v2850 = vadd.f32 %v2797, %v2834
  %v2851 = vadd.f32 %v2798, %v2835
  %v2852 = vadd.f32 %v2799, %v2836
  %v2853 = vadd.f32 %v2800, %v2837
  %v2854 = vadd.f32 %v2801, %v2838
  %v2855 = vadd.f32 %v2802, %v2839
  %v2856 = vadd.f32 %v2803, %v2840
  %v2857 = vadd.f32 %v2804, %v2841
  %v2858 = vadd.f32 %v2805, %v2842
  %v2859 = vadd.f32 %v2806, %v2843
  %v2860 = vld [vmem:[%s2753 + $0x8] sm:$0xff]
  %v2861 = vld [vmem:[%s2753 + $0x10] sm:$0xff]
  %v2862 = vld [vmem:[%s2753 + $0x28] sm:$0xff]
  %v2863 = vld [vmem:[%s2753 + $0x30] sm:$0xff]
  %v2864 = vld [vmem:[%s2753 + $0x48] sm:$0xff]
  %v2865 = vld [vmem:[%s2753 + $0x50] sm:$0xff]
  %v2866 = vld [vmem:[%s2753 + $0x68] sm:$0xff]
  %v2867 = vld [vmem:[%s2753 + $0x70] sm:$0xff]
  %v2868 = vld [vmem:[%s2753 + $0x88] sm:$0xff]
  %v2869 = vld [vmem:[%s2753 + $0x90] sm:$0xff]
  %v2870 = vld [vmem:[%s2753 + $0xa8] sm:$0xff]
  %v2871 = vld [vmem:[%s2753 + $0xb0] sm:$0xff]
  %v2872 = vld [vmem:[%s2753 + $0xc8] sm:$0xff]
  %v2873 = vld [vmem:[%s2753 + $0xd0] sm:$0xff]
  %v2874 = vld [vmem:[%s2753 + $0xe8] sm:$0xff]
  %v2875 = vld [vmem:[%s2753 + $0xf0] sm:$0xff]
  %v2876 = vld [vmem:[%s1 + $0x16] sm:$0x1]
  %v2877 = vlaneseq
  %v2878 = vshrl.u32 %v2877, 7
  %v2879 = vsub.s32 0, %v2878
  %v2880 = vrot.slane %v2876, %v2879
  %v2881 = vmul.f32 %v2860, %v2880
  %v2882 = vmul.f32 %v2861, %v2880
  %v2883 = vmul.f32 %v2862, %v2880
  %v2884 = vmul.f32 %v2863, %v2880
  %v2885 = vmul.f32 %v2864, %v2880
  %v2886 = vmul.f32 %v2865, %v2880
  %v2887 = vmul.f32 %v2866, %v2880
  %v2888 = vmul.f32 %v2867, %v2880
  %v2889 = vmul.f32 %v2868, %v2880
  %v2890 = vmul.f32 %v2869, %v2880
  %v2891 = vmul.f32 %v2870, %v2880
  %v2892 = vmul.f32 %v2871, %v2880
  %v2893 = vmul.f32 %v2872, %v2880
  %v2894 = vmul.f32 %v2873, %v2880
  %v2895 = vmul.f32 %v2874, %v2880
  %v2896 = vmul.f32 %v2875, %v2880
  %v2897 = vadd.f32 %v2844, %v2881
  %v2898 = vadd.f32 %v2845, %v2882
  %v2899 = vadd.f32 %v2846, %v2883
  %v2900 = vadd.f32 %v2847, %v2884
  %v2901 = vadd.f32 %v2848, %v2885
  %v2902 = vadd.f32 %v2849, %v2886
  %v2903 = vadd.f32 %v2850, %v2887
  %v2904 = vadd.f32 %v2851, %v2888
  %v2905 = vadd.f32 %v2852, %v2889
  %v2906 = vadd.f32 %v2853, %v2890
  %v2907 = vadd.f32 %v2854, %v2891
  %v2908 = vadd.f32 %v2855, %v2892
  %v2909 = vadd.f32 %v2856, %v2893
  %v2910 = vadd.f32 %v2857, %v2894
  %v2911 = vadd.f32 %v2858, %v2895
  %v2912 = vadd.f32 %v2859, %v2896
  %v2913 = vld [vmem:[%s2753 + $0x9] sm:$0xff]
  %v2914 = vld [vmem:[%s2753 + $0x11] sm:$0xff]
  %v2915 = vld [vmem:[%s2753 + $0x29] sm:$0xff]
  %v2916 = vld [vmem:[%s2753 + $0x31] sm:$0xff]
  %v2917 = vld [vmem:[%s2753 + $0x49] sm:$0xff]
  %v2918 = vld [vmem:[%s2753 + $0x51] sm:$0xff]
  %v2919 = vld [vmem:[%s2753 + $0x69] sm:$0xff]
  %v2920 = vld [vmem:[%s2753 + $0x71] sm:$0xff]
  %v2921 = vld [vmem:[%s2753 + $0x89] sm:$0xff]
  %v2922 = vld [vmem:[%s2753 + $0x91] sm:$0xff]
  %v2923 = vld [vmem:[%s2753 + $0xa9] sm:$0xff]
  %v2924 = vld [vmem:[%s2753 + $0xb1] sm:$0xff]
  %v2925 = vld [vmem:[%s2753 + $0xc9] sm:$0xff]
  %v2926 = vld [vmem:[%s2753 + $0xd1] sm:$0xff]
  %v2927 = vld [vmem:[%s2753 + $0xe9] sm:$0xff]
  %v2928 = vld [vmem:[%s2753 + $0xf1] sm:$0xff]
  %v2929 = vld [vmem:[%s1 + $0x17] sm:$0x1]
  %v2930 = vlaneseq
  %v2931 = vshrl.u32 %v2930, 7
  %v2932 = vsub.s32 0, %v2931
  %v2933 = vrot.slane %v2929, %v2932
  %v2934 = vmul.f32 %v2913, %v2933
  %v2935 = vmul.f32 %v2914, %v2933
  %v2936 = vmul.f32 %v2915, %v2933
  %v2937 = vmul.f32 %v2916, %v2933
  %v2938 = vmul.f32 %v2917, %v2933
  %v2939 = vmul.f32 %v2918, %v2933
  %v2940 = vmul.f32 %v2919, %v2933
  %v2941 = vmul.f32 %v2920, %v2933
  %v2942 = vmul.f32 %v2921, %v2933
  %v2943 = vmul.f32 %v2922, %v2933
  %v2944 = vmul.f32 %v2923, %v2933
  %v2945 = vmul.f32 %v2924, %v2933
  %v2946 = vmul.f32 %v2925, %v2933
  %v2947 = vmul.f32 %v2926, %v2933
  %v2948 = vmul.f32 %v2927, %v2933
  %v2949 = vmul.f32 %v2928, %v2933
  %v2950 = vadd.f32 %v2897, %v2934
  %v2951 = vadd.f32 %v2898, %v2935
  %v2952 = vadd.f32 %v2899, %v2936
  %v2953 = vadd.f32 %v2900, %v2937
  %v2954 = vadd.f32 %v2901, %v2938
  %v2955 = vadd.f32 %v2902, %v2939
  %v2956 = vadd.f32 %v2903, %v2940
  %v2957 = vadd.f32 %v2904, %v2941
  %v2958 = vadd.f32 %v2905, %v2942
  %v2959 = vadd.f32 %v2906, %v2943
  %v2960 = vadd.f32 %v2907, %v2944
  %v2961 = vadd.f32 %v2908, %v2945
  %v2962 = vadd.f32 %v2909, %v2946
  %v2963 = vadd.f32 %v2910, %v2947
  %v2964 = vadd.f32 %v2911, %v2948
  %v2965 = vadd.f32 %v2912, %v2949
  %v2966 = vld [vmem:[%s2753 + $0xa] sm:$0xff]
  %v2967 = vld [vmem:[%s2753 + $0x12] sm:$0xff]
  %v2968 = vld [vmem:[%s2753 + $0x2a] sm:$0xff]
  %v2969 = vld [vmem:[%s2753 + $0x32] sm:$0xff]
  %v2970 = vld [vmem:[%s2753 + $0x4a] sm:$0xff]
  %v2971 = vld [vmem:[%s2753 + $0x52] sm:$0xff]
  %v2972 = vld [vmem:[%s2753 + $0x6a] sm:$0xff]
  %v2973 = vld [vmem:[%s2753 + $0x72] sm:$0xff]
  %v2974 = vld [vmem:[%s2753 + $0x8a] sm:$0xff]
  %v2975 = vld [vmem:[%s2753 + $0x92] sm:$0xff]
  %v2976 = vld [vmem:[%s2753 + $0xaa] sm:$0xff]
  %v2977 = vld [vmem:[%s2753 + $0xb2] sm:$0xff]
  %v2978 = vld [vmem:[%s2753 + $0xca] sm:$0xff]
  %v2979 = vld [vmem:[%s2753 + $0xd2] sm:$0xff]
  %v2980 = vld [vmem:[%s2753 + $0xea] sm:$0xff]
  %v2981 = vld [vmem:[%s2753 + $0xf2] sm:$0xff]
  %v2982 = vld [vmem:[%s1 + $0x18] sm:$0x1]
  %v2983 = vlaneseq
  %v2984 = vshrl.u32 %v2983, 7
  %v2985 = vsub.s32 0, %v2984
  %v2986 = vrot.slane %v2982, %v2985
  %v2987 = vmul.f32 %v2966, %v2986
  %v2988 = vmul.f32 %v2967, %v2986
  %v2989 = vmul.f32 %v2968, %v2986
  %v2990 = vmul.f32 %v2969, %v2986
  %v2991 = vmul.f32 %v2970, %v2986
  %v2992 = vmul.f32 %v2971, %v2986
  %v2993 = vmul.f32 %v2972, %v2986
  %v2994 = vmul.f32 %v2973, %v2986
  %v2995 = vmul.f32 %v2974, %v2986
  %v2996 = vmul.f32 %v2975, %v2986
  %v2997 = vmul.f32 %v2976, %v2986
  %v2998 = vmul.f32 %v2977, %v2986
  %v2999 = vmul.f32 %v2978, %v2986
  %v3000 = vmul.f32 %v2979, %v2986
  %v3001 = vmul.f32 %v2980, %v2986
  %v3002 = vmul.f32 %v2981, %v2986
  %v3003 = vadd.f32 %v2950, %v2987
  %v3004 = vadd.f32 %v2951, %v2988
  %v3005 = vadd.f32 %v2952, %v2989
  %v3006 = vadd.f32 %v2953, %v2990
  %v3007 = vadd.f32 %v2954, %v2991
  %v3008 = vadd.f32 %v2955, %v2992
  %v3009 = vadd.f32 %v2956, %v2993
  %v3010 = vadd.f32 %v2957, %v2994
  %v3011 = vadd.f32 %v2958, %v2995
  %v3012 = vadd.f32 %v2959, %v2996
  %v3013 = vadd.f32 %v2960, %v2997
  %v3014 = vadd.f32 %v2961, %v2998
  %v3015 = vadd.f32 %v2962, %v2999
  %v3016 = vadd.f32 %v2963, %v3000
  %v3017 = vadd.f32 %v2964, %v3001
  %v3018 = vadd.f32 %v2965, %v3002
  %v3019 = vld [vmem:[%s2] sm:$0x1]
  %v3021 = vlaneseq
  %v3022 = vshrl.u32 %v3021, 7
  %v3023 = vsub.s32 0, %v3022
  %v3024 = vrot.slane %v3019, %v3023
  %v3026 = vadd.f32 %v3003, %v3024
  %v3027 = vadd.f32 %v3004, %v3024
  %v3028 = vadd.f32 %v3005, %v3024
  %v3029 = vadd.f32 %v3006, %v3024
  %v3030 = vadd.f32 %v3007, %v3024
  %v3031 = vadd.f32 %v3008, %v3024
  %v3032 = vadd.f32 %v3009, %v3024
  %v3033 = vadd.f32 %v3010, %v3024
  %v3034 = vadd.f32 %v3011, %v3024
  %v3035 = vadd.f32 %v3012, %v3024
  %v3036 = vadd.f32 %v3013, %v3024
  %v3037 = vadd.f32 %v3014, %v3024
  %v3038 = vadd.f32 %v3015, %v3024
  %v3039 = vadd.f32 %v3016, %v3024
  %v3040 = vadd.f32 %v3017, %v3024
  %v3041 = vadd.f32 %v3018, %v3024
  %s3042 = scalar_lea.vmem [#allocation3], 512
  %3043 = vst [vmem:[%s3042 + $0x8] sm:$0xff] %v3026
  %3044 = vst [vmem:[%s3042 + $0x10] sm:$0xff] %v3027
  %3045 = vst [vmem:[%s3042 + $0x28] sm:$0xff] %v3028
  %3046 = vst [vmem:[%s3042 + $0x30] sm:$0xff] %v3029
  %3047 = vst [vmem:[%s3042 + $0x48] sm:$0xff] %v3030
  %3048 = vst [vmem:[%s3042 + $0x50] sm:$0xff] %v3031
  %3049 = vst [vmem:[%s3042 + $0x68] sm:$0xff] %v3032
  %3050 = vst [vmem:[%s3042 + $0x70] sm:$0xff] %v3033
  %3051 = vst [vmem:[%s3042 + $0x88] sm:$0xff] %v3034
  %3052 = vst [vmem:[%s3042 + $0x90] sm:$0xff] %v3035
  %3053 = vst [vmem:[%s3042 + $0xa8] sm:$0xff] %v3036
  %3054 = vst [vmem:[%s3042 + $0xb0] sm:$0xff] %v3037
  %3055 = vst [vmem:[%s3042 + $0xc8] sm:$0xff] %v3038
  %3056 = vst [vmem:[%s3042 + $0xd0] sm:$0xff] %v3039
  %3057 = vst [vmem:[%s3042 + $0xe8] sm:$0xff] %v3040
  %3058 = vst [vmem:[%s3042 + $0xf0] sm:$0xff] %v3041
  %s3059 = scalar_lea.vmem [#allocation3], 64
  %v3060 = vld [vmem:[%s3059 + $0x2] sm:$0xff]
  %v3061 = vld [vmem:[%s3059 + $0xa] sm:$0xff]
  %v3062 = vld [vmem:[%s3059 + $0x22] sm:$0xff]
  %v3063 = vld [vmem:[%s3059 + $0x2a] sm:$0xff]
  %v3064 = vld [vmem:[%s3059 + $0x42] sm:$0xff]
  %v3065 = vld [vmem:[%s3059 + $0x4a] sm:$0xff]
  %v3066 = vld [vmem:[%s3059 + $0x62] sm:$0xff]
  %v3067 = vld [vmem:[%s3059 + $0x6a] sm:$0xff]
  %v3068 = vld [vmem:[%s3059 + $0x82] sm:$0xff]
  %v3069 = vld [vmem:[%s3059 + $0x8a] sm:$0xff]
  %v3070 = vld [vmem:[%s3059 + $0xa2] sm:$0xff]
  %v3071 = vld [vmem:[%s3059 + $0xaa] sm:$0xff]
  %v3072 = vld [vmem:[%s3059 + $0xc2] sm:$0xff]
  %v3073 = vld [vmem:[%s3059 + $0xca] sm:$0xff]
  %v3074 = vld [vmem:[%s3059 + $0xe2] sm:$0xff]
  %v3075 = vld [vmem:[%s3059 + $0xea] sm:$0xff]
  %v3076 = vld [vmem:[%s3] sm:$0x1]
  %v3077 = vlaneseq
  %v3078 = vshrl.u32 %v3077, 7
  %v3079 = vsub.s32 0, %v3078
  %v3080 = vrot.slane %v3076, %v3079
  %v3081 = vmul.f32 %v3060, %v3080
  %v3082 = vmul.f32 %v3061, %v3080
  %v3083 = vmul.f32 %v3062, %v3080
  %v3084 = vmul.f32 %v3063, %v3080
  %v3085 = vmul.f32 %v3064, %v3080
  %v3086 = vmul.f32 %v3065, %v3080
  %v3087 = vmul.f32 %v3066, %v3080
  %v3088 = vmul.f32 %v3067, %v3080
  %v3089 = vmul.f32 %v3068, %v3080
  %v3090 = vmul.f32 %v3069, %v3080
  %v3091 = vmul.f32 %v3070, %v3080
  %v3092 = vmul.f32 %v3071, %v3080
  %v3093 = vmul.f32 %v3072, %v3080
  %v3094 = vmul.f32 %v3073, %v3080
  %v3095 = vmul.f32 %v3074, %v3080
  %v3096 = vmul.f32 %v3075, %v3080
  %v3097 = vadd.f32 %v3081, 0.0
  %v3098 = vadd.f32 %v3082, 0.0
  %v3099 = vadd.f32 %v3083, 0.0
  %v3100 = vadd.f32 %v3084, 0.0
  %v3101 = vadd.f32 %v3085, 0.0
  %v3102 = vadd.f32 %v3086, 0.0
  %v3103 = vadd.f32 %v3087, 0.0
  %v3104 = vadd.f32 %v3088, 0.0
  %v3105 = vadd.f32 %v3089, 0.0
  %v3106 = vadd.f32 %v3090, 0.0
  %v3107 = vadd.f32 %v3091, 0.0
  %v3108 = vadd.f32 %v3092, 0.0
  %v3109 = vadd.f32 %v3093, 0.0
  %v3110 = vadd.f32 %v3094, 0.0
  %v3111 = vadd.f32 %v3095, 0.0
  %v3112 = vadd.f32 %v3096, 0.0
  %v3113 = vld [vmem:[%s3059 + $0x5] sm:$0xff]
  %v3114 = vld [vmem:[%s3059 + $0xd] sm:$0xff]
  %v3115 = vld [vmem:[%s3059 + $0x25] sm:$0xff]
  %v3116 = vld [vmem:[%s3059 + $0x2d] sm:$0xff]
  %v3117 = vld [vmem:[%s3059 + $0x45] sm:$0xff]
  %v3118 = vld [vmem:[%s3059 + $0x4d] sm:$0xff]
  %v3119 = vld [vmem:[%s3059 + $0x65] sm:$0xff]
  %v3120 = vld [vmem:[%s3059 + $0x6d] sm:$0xff]
  %v3121 = vld [vmem:[%s3059 + $0x85] sm:$0xff]
  %v3122 = vld [vmem:[%s3059 + $0x8d] sm:$0xff]
  %v3123 = vld [vmem:[%s3059 + $0xa5] sm:$0xff]
  %v3124 = vld [vmem:[%s3059 + $0xad] sm:$0xff]
  %v3125 = vld [vmem:[%s3059 + $0xc5] sm:$0xff]
  %v3126 = vld [vmem:[%s3059 + $0xcd] sm:$0xff]
  %v3127 = vld [vmem:[%s3059 + $0xe5] sm:$0xff]
  %v3128 = vld [vmem:[%s3059 + $0xed] sm:$0xff]
  %v3129 = vld [vmem:[%s3 + $0x1] sm:$0x1]
  %v3130 = vlaneseq
  %v3131 = vshrl.u32 %v3130, 7
  %v3132 = vsub.s32 0, %v3131
  %v3133 = vrot.slane %v3129, %v3132
  %v3134 = vmul.f32 %v3113, %v3133
  %v3135 = vmul.f32 %v3114, %v3133
  %v3136 = vmul.f32 %v3115, %v3133
  %v3137 = vmul.f32 %v3116, %v3133
  %v3138 = vmul.f32 %v3117, %v3133
  %v3139 = vmul.f32 %v3118, %v3133
  %v3140 = vmul.f32 %v3119, %v3133
  %v3141 = vmul.f32 %v3120, %v3133
  %v3142 = vmul.f32 %v3121, %v3133
  %v3143 = vmul.f32 %v3122, %v3133
  %v3144 = vmul.f32 %v3123, %v3133
  %v3145 = vmul.f32 %v3124, %v3133
  %v3146 = vmul.f32 %v3125, %v3133
  %v3147 = vmul.f32 %v3126, %v3133
  %v3148 = vmul.f32 %v3127, %v3133
  %v3149 = vmul.f32 %v3128, %v3133
  %v3150 = vadd.f32 %v3097, %v3134
  %v3151 = vadd.f32 %v3098, %v3135
  %v3152 = vadd.f32 %v3099, %v3136
  %v3153 = vadd.f32 %v3100, %v3137
  %v3154 = vadd.f32 %v3101, %v3138
  %v3155 = vadd.f32 %v3102, %v3139
  %v3156 = vadd.f32 %v3103, %v3140
  %v3157 = vadd.f32 %v3104, %v3141
  %v3158 = vadd.f32 %v3105, %v3142
  %v3159 = vadd.f32 %v3106, %v3143
  %v3160 = vadd.f32 %v3107, %v3144
  %v3161 = vadd.f32 %v3108, %v3145
  %v3162 = vadd.f32 %v3109, %v3146
  %v3163 = vadd.f32 %v3110, %v3147
  %v3164 = vadd.f32 %v3111, %v3148
  %v3165 = vadd.f32 %v3112, %v3149
  %v3166 = vld [vmem:[%s3059 + $0x8] sm:$0xff]
  %v3167 = vld [vmem:[%s3059 + $0x10] sm:$0xff]
  %v3168 = vld [vmem:[%s3059 + $0x28] sm:$0xff]
  %v3169 = vld [vmem:[%s3059 + $0x30] sm:$0xff]
  %v3170 = vld [vmem:[%s3059 + $0x48] sm:$0xff]
  %v3171 = vld [vmem:[%s3059 + $0x50] sm:$0xff]
  %v3172 = vld [vmem:[%s3059 + $0x68] sm:$0xff]
  %v3173 = vld [vmem:[%s3059 + $0x70] sm:$0xff]
  %v3174 = vld [vmem:[%s3059 + $0x88] sm:$0xff]
  %v3175 = vld [vmem:[%s3059 + $0x90] sm:$0xff]
  %v3176 = vld [vmem:[%s3059 + $0xa8] sm:$0xff]
  %v3177 = vld [vmem:[%s3059 + $0xb0] sm:$0xff]
  %v3178 = vld [vmem:[%s3059 + $0xc8] sm:$0xff]
  %v3179 = vld [vmem:[%s3059 + $0xd0] sm:$0xff]
  %v3180 = vld [vmem:[%s3059 + $0xe8] sm:$0xff]
  %v3181 = vld [vmem:[%s3059 + $0xf0] sm:$0xff]
  %v3182 = vld [vmem:[%s3 + $0x2] sm:$0x1]
  %v3183 = vlaneseq
  %v3184 = vshrl.u32 %v3183, 7
  %v3185 = vsub.s32 0, %v3184
  %v3186 = vrot.slane %v3182, %v3185
  %v3187 = vmul.f32 %v3166, %v3186
  %v3188 = vmul.f32 %v3167, %v3186
  %v3189 = vmul.f32 %v3168, %v3186
  %v3190 = vmul.f32 %v3169, %v3186
  %v3191 = vmul.f32 %v3170, %v3186
  %v3192 = vmul.f32 %v3171, %v3186
  %v3193 = vmul.f32 %v3172, %v3186
  %v3194 = vmul.f32 %v3173, %v3186
  %v3195 = vmul.f32 %v3174, %v3186
  %v3196 = vmul.f32 %v3175, %v3186
  %v3197 = vmul.f32 %v3176, %v3186
  %v3198 = vmul.f32 %v3177, %v3186
  %v3199 = vmul.f32 %v3178, %v3186
  %v3200 = vmul.f32 %v3179, %v3186
  %v3201 = vmul.f32 %v3180, %v3186
  %v3202 = vmul.f32 %v3181, %v3186
  %v3203 = vadd.f32 %v3150, %v3187
  %v3204 = vadd.f32 %v3151, %v3188
  %v3205 = vadd.f32 %v3152, %v3189
  %v3206 = vadd.f32 %v3153, %v3190
  %v3207 = vadd.f32 %v3154, %v3191
  %v3208 = vadd.f32 %v3155, %v3192
  %v3209 = vadd.f32 %v3156, %v3193
  %v3210 = vadd.f32 %v3157, %v3194
  %v3211 = vadd.f32 %v3158, %v3195
  %v3212 = vadd.f32 %v3159, %v3196
  %v3213 = vadd.f32 %v3160, %v3197
  %v3214 = vadd.f32 %v3161, %v3198
  %v3215 = vadd.f32 %v3162, %v3199
  %v3216 = vadd.f32 %v3163, %v3200
  %v3217 = vadd.f32 %v3164, %v3201
  %v3218 = vadd.f32 %v3165, %v3202
  %v3219 = vld [vmem:[%s3059 + $0xb] sm:$0xff]
  %v3220 = vld [vmem:[%s3059 + $0x13] sm:$0xff]
  %v3221 = vld [vmem:[%s3059 + $0x2b] sm:$0xff]
  %v3222 = vld [vmem:[%s3059 + $0x33] sm:$0xff]
  %v3223 = vld [vmem:[%s3059 + $0x4b] sm:$0xff]
  %v3224 = vld [vmem:[%s3059 + $0x53] sm:$0xff]
  %v3225 = vld [vmem:[%s3059 + $0x6b] sm:$0xff]
  %v3226 = vld [vmem:[%s3059 + $0x73] sm:$0xff]
  %v3227 = vld [vmem:[%s3059 + $0x8b] sm:$0xff]
  %v3228 = vld [vmem:[%s3059 + $0x93] sm:$0xff]
  %v3229 = vld [vmem:[%s3059 + $0xab] sm:$0xff]
  %v3230 = vld [vmem:[%s3059 + $0xb3] sm:$0xff]
  %v3231 = vld [vmem:[%s3059 + $0xcb] sm:$0xff]
  %v3232 = vld [vmem:[%s3059 + $0xd3] sm:$0xff]
  %v3233 = vld [vmem:[%s3059 + $0xeb] sm:$0xff]
  %v3234 = vld [vmem:[%s3059 + $0xf3] sm:$0xff]
  %v3235 = vld [vmem:[%s3 + $0x3] sm:$0x1]
  %v3236 = vlaneseq
  %v3237 = vshrl.u32 %v3236, 7
  %v3238 = vsub.s32 0, %v3237
  %v3239 = vrot.slane %v3235, %v3238
  %v3240 = vmul.f32 %v3219, %v3239
  %v3241 = vmul.f32 %v3220, %v3239
  %v3242 = vmul.f32 %v3221, %v3239
  %v3243 = vmul.f32 %v3222, %v3239
  %v3244 = vmul.f32 %v3223, %v3239
  %v3245 = vmul.f32 %v3224, %v3239
  %v3246 = vmul.f32 %v3225, %v3239
  %v3247 = vmul.f32 %v3226, %v3239
  %v3248 = vmul.f32 %v3227, %v3239
  %v3249 = vmul.f32 %v3228, %v3239
  %v3250 = vmul.f32 %v3229, %v3239
  %v3251 = vmul.f32 %v3230, %v3239
  %v3252 = vmul.f32 %v3231, %v3239
  %v3253 = vmul.f32 %v3232, %v3239
  %v3254 = vmul.f32 %v3233, %v3239
  %v3255 = vmul.f32 %v3234, %v3239
  %v3256 = vadd.f32 %v3203, %v3240
  %v3257 = vadd.f32 %v3204, %v3241
  %v3258 = vadd.f32 %v3205, %v3242
  %v3259 = vadd.f32 %v3206, %v3243
  %v3260 = vadd.f32 %v3207, %v3244
  %v3261 = vadd.f32 %v3208, %v3245
  %v3262 = vadd.f32 %v3209, %v3246
  %v3263 = vadd.f32 %v3210, %v3247
  %v3264 = vadd.f32 %v3211, %v3248
  %v3265 = vadd.f32 %v3212, %v3249
  %v3266 = vadd.f32 %v3213, %v3250
  %v3267 = vadd.f32 %v3214, %v3251
  %v3268 = vadd.f32 %v3215, %v3252
  %v3269 = vadd.f32 %v3216, %v3253
  %v3270 = vadd.f32 %v3217, %v3254
  %v3271 = vadd.f32 %v3218, %v3255
  %v3272 = vld [vmem:[%s3059 + $0xe] sm:$0xff]
  %v3273 = vld [vmem:[%s3059 + $0x16] sm:$0xff]
  %v3274 = vld [vmem:[%s3059 + $0x2e] sm:$0xff]
  %v3275 = vld [vmem:[%s3059 + $0x36] sm:$0xff]
  %v3276 = vld [vmem:[%s3059 + $0x4e] sm:$0xff]
  %v3277 = vld [vmem:[%s3059 + $0x56] sm:$0xff]
  %v3278 = vld [vmem:[%s3059 + $0x6e] sm:$0xff]
  %v3279 = vld [vmem:[%s3059 + $0x76] sm:$0xff]
  %v3280 = vld [vmem:[%s3059 + $0x8e] sm:$0xff]
  %v3281 = vld [vmem:[%s3059 + $0x96] sm:$0xff]
  %v3282 = vld [vmem:[%s3059 + $0xae] sm:$0xff]
  %v3283 = vld [vmem:[%s3059 + $0xb6] sm:$0xff]
  %v3284 = vld [vmem:[%s3059 + $0xce] sm:$0xff]
  %v3285 = vld [vmem:[%s3059 + $0xd6] sm:$0xff]
  %v3286 = vld [vmem:[%s3059 + $0xee] sm:$0xff]
  %v3287 = vld [vmem:[%s3059 + $0xf6] sm:$0xff]
  %v3288 = vld [vmem:[%s3 + $0x4] sm:$0x1]
  %v3289 = vlaneseq
  %v3290 = vshrl.u32 %v3289, 7
  %v3291 = vsub.s32 0, %v3290
  %v3292 = vrot.slane %v3288, %v3291
  %v3293 = vmul.f32 %v3272, %v3292
  %v3294 = vmul.f32 %v3273, %v3292
  %v3295 = vmul.f32 %v3274, %v3292
  %v3296 = vmul.f32 %v3275, %v3292
  %v3297 = vmul.f32 %v3276, %v3292
  %v3298 = vmul.f32 %v3277, %v3292
  %v3299 = vmul.f32 %v3278, %v3292
  %v3300 = vmul.f32 %v3279, %v3292
  %v3301 = vmul.f32 %v3280, %v3292
  %v3302 = vmul.f32 %v3281, %v3292
  %v3303 = vmul.f32 %v3282, %v3292
  %v3304 = vmul.f32 %v3283, %v3292
  %v3305 = vmul.f32 %v3284, %v3292
  %v3306 = vmul.f32 %v3285, %v3292
  %v3307 = vmul.f32 %v3286, %v3292
  %v3308 = vmul.f32 %v3287, %v3292
  %v3309 = vadd.f32 %v3256, %v3293
  %v3310 = vadd.f32 %v3257, %v3294
  %v3311 = vadd.f32 %v3258, %v3295
  %v3312 = vadd.f32 %v3259, %v3296
  %v3313 = vadd.f32 %v3260, %v3297
  %v3314 = vadd.f32 %v3261, %v3298
  %v3315 = vadd.f32 %v3262, %v3299
  %v3316 = vadd.f32 %v3263, %v3300
  %v3317 = vadd.f32 %v3264, %v3301
  %v3318 = vadd.f32 %v3265, %v3302
  %v3319 = vadd.f32 %v3266, %v3303
  %v3320 = vadd.f32 %v3267, %v3304
  %v3321 = vadd.f32 %v3268, %v3305
  %v3322 = vadd.f32 %v3269, %v3306
  %v3323 = vadd.f32 %v3270, %v3307
  %v3324 = vadd.f32 %v3271, %v3308
  %s3325 = scalar_lea.vmem [#allocation3], 160
  %v3326 = vld [vmem:[%s3325 + $0x2] sm:$0xff]
  %v3327 = vld [vmem:[%s3325 + $0xa] sm:$0xff]
  %v3328 = vld [vmem:[%s3325 + $0x22] sm:$0xff]
  %v3329 = vld [vmem:[%s3325 + $0x2a] sm:$0xff]
  %v3330 = vld [vmem:[%s3325 + $0x42] sm:$0xff]
  %v3331 = vld [vmem:[%s3325 + $0x4a] sm:$0xff]
  %v3332 = vld [vmem:[%s3325 + $0x62] sm:$0xff]
  %v3333 = vld [vmem:[%s3325 + $0x6a] sm:$0xff]
  %v3334 = vld [vmem:[%s3325 + $0x82] sm:$0xff]
  %v3335 = vld [vmem:[%s3325 + $0x8a] sm:$0xff]
  %v3336 = vld [vmem:[%s3325 + $0xa2] sm:$0xff]
  %v3337 = vld [vmem:[%s3325 + $0xaa] sm:$0xff]
  %v3338 = vld [vmem:[%s3325 + $0xc2] sm:$0xff]
  %v3339 = vld [vmem:[%s3325 + $0xca] sm:$0xff]
  %v3340 = vld [vmem:[%s3325 + $0xe2] sm:$0xff]
  %v3341 = vld [vmem:[%s3325 + $0xea] sm:$0xff]
  %v3342 = vld [vmem:[%s3 + $0x5] sm:$0x1]
  %v3343 = vlaneseq
  %v3344 = vshrl.u32 %v3343, 7
  %v3345 = vsub.s32 0, %v3344
  %v3346 = vrot.slane %v3342, %v3345
  %v3347 = vmul.f32 %v3326, %v3346
  %v3348 = vmul.f32 %v3327, %v3346
  %v3349 = vmul.f32 %v3328, %v3346
  %v3350 = vmul.f32 %v3329, %v3346
  %v3351 = vmul.f32 %v3330, %v3346
  %v3352 = vmul.f32 %v3331, %v3346
  %v3353 = vmul.f32 %v3332, %v3346
  %v3354 = vmul.f32 %v3333, %v3346
  %v3355 = vmul.f32 %v3334, %v3346
  %v3356 = vmul.f32 %v3335, %v3346
  %v3357 = vmul.f32 %v3336, %v3346
  %v3358 = vmul.f32 %v3337, %v3346
  %v3359 = vmul.f32 %v3338, %v3346
  %v3360 = vmul.f32 %v3339, %v3346
  %v3361 = vmul.f32 %v3340, %v3346
  %v3362 = vmul.f32 %v3341, %v3346
  %v3363 = vadd.f32 %v3309, %v3347
  %v3364 = vadd.f32 %v3310, %v3348
  %v3365 = vadd.f32 %v3311, %v3349
  %v3366 = vadd.f32 %v3312, %v3350
  %v3367 = vadd.f32 %v3313, %v3351
  %v3368 = vadd.f32 %v3314, %v3352
  %v3369 = vadd.f32 %v3315, %v3353
  %v3370 = vadd.f32 %v3316, %v3354
  %v3371 = vadd.f32 %v3317, %v3355
  %v3372 = vadd.f32 %v3318, %v3356
  %v3373 = vadd.f32 %v3319, %v3357
  %v3374 = vadd.f32 %v3320, %v3358
  %v3375 = vadd.f32 %v3321, %v3359
  %v3376 = vadd.f32 %v3322, %v3360
  %v3377 = vadd.f32 %v3323, %v3361
  %v3378 = vadd.f32 %v3324, %v3362
  %v3379 = vld [vmem:[%s3325 + $0x5] sm:$0xff]
  %v3380 = vld [vmem:[%s3325 + $0xd] sm:$0xff]
  %v3381 = vld [vmem:[%s3325 + $0x25] sm:$0xff]
  %v3382 = vld [vmem:[%s3325 + $0x2d] sm:$0xff]
  %v3383 = vld [vmem:[%s3325 + $0x45] sm:$0xff]
  %v3384 = vld [vmem:[%s3325 + $0x4d] sm:$0xff]
  %v3385 = vld [vmem:[%s3325 + $0x65] sm:$0xff]
  %v3386 = vld [vmem:[%s3325 + $0x6d] sm:$0xff]
  %v3387 = vld [vmem:[%s3325 + $0x85] sm:$0xff]
  %v3388 = vld [vmem:[%s3325 + $0x8d] sm:$0xff]
  %v3389 = vld [vmem:[%s3325 + $0xa5] sm:$0xff]
  %v3390 = vld [vmem:[%s3325 + $0xad] sm:$0xff]
  %v3391 = vld [vmem:[%s3325 + $0xc5] sm:$0xff]
  %v3392 = vld [vmem:[%s3325 + $0xcd] sm:$0xff]
  %v3393 = vld [vmem:[%s3325 + $0xe5] sm:$0xff]
  %v3394 = vld [vmem:[%s3325 + $0xed] sm:$0xff]
  %v3395 = vld [vmem:[%s3 + $0x6] sm:$0x1]
  %v3396 = vlaneseq
  %v3397 = vshrl.u32 %v3396, 7
  %v3398 = vsub.s32 0, %v3397
  %v3399 = vrot.slane %v3395, %v3398
  %v3400 = vmul.f32 %v3379, %v3399
  %v3401 = vmul.f32 %v3380, %v3399
  %v3402 = vmul.f32 %v3381, %v3399
  %v3403 = vmul.f32 %v3382, %v3399
  %v3404 = vmul.f32 %v3383, %v3399
  %v3405 = vmul.f32 %v3384, %v3399
  %v3406 = vmul.f32 %v3385, %v3399
  %v3407 = vmul.f32 %v3386, %v3399
  %v3408 = vmul.f32 %v3387, %v3399
  %v3409 = vmul.f32 %v3388, %v3399
  %v3410 = vmul.f32 %v3389, %v3399
  %v3411 = vmul.f32 %v3390, %v3399
  %v3412 = vmul.f32 %v3391, %v3399
  %v3413 = vmul.f32 %v3392, %v3399
  %v3414 = vmul.f32 %v3393, %v3399
  %v3415 = vmul.f32 %v3394, %v3399
  %v3416 = vadd.f32 %v3363, %v3400
  %v3417 = vadd.f32 %v3364, %v3401
  %v3418 = vadd.f32 %v3365, %v3402
  %v3419 = vadd.f32 %v3366, %v3403
  %v3420 = vadd.f32 %v3367, %v3404
  %v3421 = vadd.f32 %v3368, %v3405
  %v3422 = vadd.f32 %v3369, %v3406
  %v3423 = vadd.f32 %v3370, %v3407
  %v3424 = vadd.f32 %v3371, %v3408
  %v3425 = vadd.f32 %v3372, %v3409
  %v3426 = vadd.f32 %v3373, %v3410
  %v3427 = vadd.f32 %v3374, %v3411
  %v3428 = vadd.f32 %v3375, %v3412
  %v3429 = vadd.f32 %v3376, %v3413
  %v3430 = vadd.f32 %v3377, %v3414
  %v3431 = vadd.f32 %v3378, %v3415
  %v3432 = vld [vmem:[%s3325 + $0x8] sm:$0xff]
  %v3433 = vld [vmem:[%s3325 + $0x10] sm:$0xff]
  %v3434 = vld [vmem:[%s3325 + $0x28] sm:$0xff]
  %v3435 = vld [vmem:[%s3325 + $0x30] sm:$0xff]
  %v3436 = vld [vmem:[%s3325 + $0x48] sm:$0xff]
  %v3437 = vld [vmem:[%s3325 + $0x50] sm:$0xff]
  %v3438 = vld [vmem:[%s3325 + $0x68] sm:$0xff]
  %v3439 = vld [vmem:[%s3325 + $0x70] sm:$0xff]
  %v3440 = vld [vmem:[%s3325 + $0x88] sm:$0xff]
  %v3441 = vld [vmem:[%s3325 + $0x90] sm:$0xff]
  %v3442 = vld [vmem:[%s3325 + $0xa8] sm:$0xff]
  %v3443 = vld [vmem:[%s3325 + $0xb0] sm:$0xff]
  %v3444 = vld [vmem:[%s3325 + $0xc8] sm:$0xff]
  %v3445 = vld [vmem:[%s3325 + $0xd0] sm:$0xff]
  %v3446 = vld [vmem:[%s3325 + $0xe8] sm:$0xff]
  %v3447 = vld [vmem:[%s3325 + $0xf0] sm:$0xff]
  %v3448 = vld [vmem:[%s3 + $0x7] sm:$0x1]
  %v3449 = vlaneseq
  %v3450 = vshrl.u32 %v3449, 7
  %v3451 = vsub.s32 0, %v3450
  %v3452 = vrot.slane %v3448, %v3451
  %v3453 = vmul.f32 %v3432, %v3452
  %v3454 = vmul.f32 %v3433, %v3452
  %v3455 = vmul.f32 %v3434, %v3452
  %v3456 = vmul.f32 %v3435, %v3452
  %v3457 = vmul.f32 %v3436, %v3452
  %v3458 = vmul.f32 %v3437, %v3452
  %v3459 = vmul.f32 %v3438, %v3452
  %v3460 = vmul.f32 %v3439, %v3452
  %v3461 = vmul.f32 %v3440, %v3452
  %v3462 = vmul.f32 %v3441, %v3452
  %v3463 = vmul.f32 %v3442, %v3452
  %v3464 = vmul.f32 %v3443, %v3452
  %v3465 = vmul.f32 %v3444, %v3452
  %v3466 = vmul.f32 %v3445, %v3452
  %v3467 = vmul.f32 %v3446, %v3452
  %v3468 = vmul.f32 %v3447, %v3452
  %v3469 = vadd.f32 %v3416, %v3453
  %v3470 = vadd.f32 %v3417, %v3454
  %v3471 = vadd.f32 %v3418, %v3455
  %v3472 = vadd.f32 %v3419, %v3456
  %v3473 = vadd.f32 %v3420, %v3457
  %v3474 = vadd.f32 %v3421, %v3458
  %v3475 = vadd.f32 %v3422, %v3459
  %v3476 = vadd.f32 %v3423, %v3460
  %v3477 = vadd.f32 %v3424, %v3461
  %v3478 = vadd.f32 %v3425, %v3462
  %v3479 = vadd.f32 %v3426, %v3463
  %v3480 = vadd.f32 %v3427, %v3464
  %v3481 = vadd.f32 %v3428, %v3465
  %v3482 = vadd.f32 %v3429, %v3466
  %v3483 = vadd.f32 %v3430, %v3467
  %v3484 = vadd.f32 %v3431, %v3468
  %v3485 = vld [vmem:[%s3325 + $0xb] sm:$0xff]
  %v3486 = vld [vmem:[%s3325 + $0x13] sm:$0xff]
  %v3487 = vld [vmem:[%s3325 + $0x2b] sm:$0xff]
  %v3488 = vld [vmem:[%s3325 + $0x33] sm:$0xff]
  %v3489 = vld [vmem:[%s3325 + $0x4b] sm:$0xff]
  %v3490 = vld [vmem:[%s3325 + $0x53] sm:$0xff]
  %v3491 = vld [vmem:[%s3325 + $0x6b] sm:$0xff]
  %v3492 = vld [vmem:[%s3325 + $0x73] sm:$0xff]
  %v3493 = vld [vmem:[%s3325 + $0x8b] sm:$0xff]
  %v3494 = vld [vmem:[%s3325 + $0x93] sm:$0xff]
  %v3495 = vld [vmem:[%s3325 + $0xab] sm:$0xff]
  %v3496 = vld [vmem:[%s3325 + $0xb3] sm:$0xff]
  %v3497 = vld [vmem:[%s3325 + $0xcb] sm:$0xff]
  %v3498 = vld [vmem:[%s3325 + $0xd3] sm:$0xff]
  %v3499 = vld [vmem:[%s3325 + $0xeb] sm:$0xff]
  %v3500 = vld [vmem:[%s3325 + $0xf3] sm:$0xff]
  %v3501 = vld [vmem:[%s3 + $0x8] sm:$0x1]
  %v3502 = vlaneseq
  %v3503 = vshrl.u32 %v3502, 7
  %v3504 = vsub.s32 0, %v3503
  %v3505 = vrot.slane %v3501, %v3504
  %v3506 = vmul.f32 %v3485, %v3505
  %v3507 = vmul.f32 %v3486, %v3505
  %v3508 = vmul.f32 %v3487, %v3505
  %v3509 = vmul.f32 %v3488, %v3505
  %v3510 = vmul.f32 %v3489, %v3505
  %v3511 = vmul.f32 %v3490, %v3505
  %v3512 = vmul.f32 %v3491, %v3505
  %v3513 = vmul.f32 %v3492, %v3505
  %v3514 = vmul.f32 %v3493, %v3505
  %v3515 = vmul.f32 %v3494, %v3505
  %v3516 = vmul.f32 %v3495, %v3505
  %v3517 = vmul.f32 %v3496, %v3505
  %v3518 = vmul.f32 %v3497, %v3505
  %v3519 = vmul.f32 %v3498, %v3505
  %v3520 = vmul.f32 %v3499, %v3505
  %v3521 = vmul.f32 %v3500, %v3505
  %v3522 = vadd.f32 %v3469, %v3506
  %v3523 = vadd.f32 %v3470, %v3507
  %v3524 = vadd.f32 %v3471, %v3508
  %v3525 = vadd.f32 %v3472, %v3509
  %v3526 = vadd.f32 %v3473, %v3510
  %v3527 = vadd.f32 %v3474, %v3511
  %v3528 = vadd.f32 %v3475, %v3512
  %v3529 = vadd.f32 %v3476, %v3513
  %v3530 = vadd.f32 %v3477, %v3514
  %v3531 = vadd.f32 %v3478, %v3515
  %v3532 = vadd.f32 %v3479, %v3516
  %v3533 = vadd.f32 %v3480, %v3517
  %v3534 = vadd.f32 %v3481, %v3518
  %v3535 = vadd.f32 %v3482, %v3519
  %v3536 = vadd.f32 %v3483, %v3520
  %v3537 = vadd.f32 %v3484, %v3521
  %v3538 = vld [vmem:[%s3325 + $0xe] sm:$0xff]
  %v3539 = vld [vmem:[%s3325 + $0x16] sm:$0xff]
  %v3540 = vld [vmem:[%s3325 + $0x2e] sm:$0xff]
  %v3541 = vld [vmem:[%s3325 + $0x36] sm:$0xff]
  %v3542 = vld [vmem:[%s3325 + $0x4e] sm:$0xff]
  %v3543 = vld [vmem:[%s3325 + $0x56] sm:$0xff]
  %v3544 = vld [vmem:[%s3325 + $0x6e] sm:$0xff]
  %v3545 = vld [vmem:[%s3325 + $0x76] sm:$0xff]
  %v3546 = vld [vmem:[%s3325 + $0x8e] sm:$0xff]
  %v3547 = vld [vmem:[%s3325 + $0x96] sm:$0xff]
  %v3548 = vld [vmem:[%s3325 + $0xae] sm:$0xff]
  %v3549 = vld [vmem:[%s3325 + $0xb6] sm:$0xff]
  %v3550 = vld [vmem:[%s3325 + $0xce] sm:$0xff]
  %v3551 = vld [vmem:[%s3325 + $0xd6] sm:$0xff]
  %v3552 = vld [vmem:[%s3325 + $0xee] sm:$0xff]
  %v3553 = vld [vmem:[%s3325 + $0xf6] sm:$0xff]
  %v3554 = vld [vmem:[%s3 + $0x9] sm:$0x1]
  %v3555 = vlaneseq
  %v3556 = vshrl.u32 %v3555, 7
  %v3557 = vsub.s32 0, %v3556
  %v3558 = vrot.slane %v3554, %v3557
  %v3559 = vmul.f32 %v3538, %v3558
  %v3560 = vmul.f32 %v3539, %v3558
  %v3561 = vmul.f32 %v3540, %v3558
  %v3562 = vmul.f32 %v3541, %v3558
  %v3563 = vmul.f32 %v3542, %v3558
  %v3564 = vmul.f32 %v3543, %v3558
  %v3565 = vmul.f32 %v3544, %v3558
  %v3566 = vmul.f32 %v3545, %v3558
  %v3567 = vmul.f32 %v3546, %v3558
  %v3568 = vmul.f32 %v3547, %v3558
  %v3569 = vmul.f32 %v3548, %v3558
  %v3570 = vmul.f32 %v3549, %v3558
  %v3571 = vmul.f32 %v3550, %v3558
  %v3572 = vmul.f32 %v3551, %v3558
  %v3573 = vmul.f32 %v3552, %v3558
  %v3574 = vmul.f32 %v3553, %v3558
  %v3575 = vadd.f32 %v3522, %v3559
  %v3576 = vadd.f32 %v3523, %v3560
  %v3577 = vadd.f32 %v3524, %v3561
  %v3578 = vadd.f32 %v3525, %v3562
  %v3579 = vadd.f32 %v3526, %v3563
  %v3580 = vadd.f32 %v3527, %v3564
  %v3581 = vadd.f32 %v3528, %v3565
  %v3582 = vadd.f32 %v3529, %v3566
  %v3583 = vadd.f32 %v3530, %v3567
  %v3584 = vadd.f32 %v3531, %v3568
  %v3585 = vadd.f32 %v3532, %v3569
  %v3586 = vadd.f32 %v3533, %v3570
  %v3587 = vadd.f32 %v3534, %v3571
  %v3588 = vadd.f32 %v3535, %v3572
  %v3589 = vadd.f32 %v3536, %v3573
  %v3590 = vadd.f32 %v3537, %v3574
  %v3591 = vld [vmem:[%s1672 + $0x2] sm:$0xff]
  %v3592 = vld [vmem:[%s1672 + $0xa] sm:$0xff]
  %v3593 = vld [vmem:[%s1672 + $0x22] sm:$0xff]
  %v3594 = vld [vmem:[%s1672 + $0x2a] sm:$0xff]
  %v3595 = vld [vmem:[%s1672 + $0x42] sm:$0xff]
  %v3596 = vld [vmem:[%s1672 + $0x4a] sm:$0xff]
  %v3597 = vld [vmem:[%s1672 + $0x62] sm:$0xff]
  %v3598 = vld [vmem:[%s1672 + $0x6a] sm:$0xff]
  %v3599 = vld [vmem:[%s1672 + $0x82] sm:$0xff]
  %v3600 = vld [vmem:[%s1672 + $0x8a] sm:$0xff]
  %v3601 = vld [vmem:[%s1672 + $0xa2] sm:$0xff]
  %v3602 = vld [vmem:[%s1672 + $0xaa] sm:$0xff]
  %v3603 = vld [vmem:[%s1672 + $0xc2] sm:$0xff]
  %v3604 = vld [vmem:[%s1672 + $0xca] sm:$0xff]
  %v3605 = vld [vmem:[%s1672 + $0xe2] sm:$0xff]
  %v3606 = vld [vmem:[%s1672 + $0xea] sm:$0xff]
  %v3607 = vld [vmem:[%s3 + $0xa] sm:$0x1]
  %v3608 = vlaneseq
  %v3609 = vshrl.u32 %v3608, 7
  %v3610 = vsub.s32 0, %v3609
  %v3611 = vrot.slane %v3607, %v3610
  %v3612 = vmul.f32 %v3591, %v3611
  %v3613 = vmul.f32 %v3592, %v3611
  %v3614 = vmul.f32 %v3593, %v3611
  %v3615 = vmul.f32 %v3594, %v3611
  %v3616 = vmul.f32 %v3595, %v3611
  %v3617 = vmul.f32 %v3596, %v3611
  %v3618 = vmul.f32 %v3597, %v3611
  %v3619 = vmul.f32 %v3598, %v3611
  %v3620 = vmul.f32 %v3599, %v3611
  %v3621 = vmul.f32 %v3600, %v3611
  %v3622 = vmul.f32 %v3601, %v3611
  %v3623 = vmul.f32 %v3602, %v3611
  %v3624 = vmul.f32 %v3603, %v3611
  %v3625 = vmul.f32 %v3604, %v3611
  %v3626 = vmul.f32 %v3605, %v3611
  %v3627 = vmul.f32 %v3606, %v3611
  %v3628 = vadd.f32 %v3575, %v3612
  %v3629 = vadd.f32 %v3576, %v3613
  %v3630 = vadd.f32 %v3577, %v3614
  %v3631 = vadd.f32 %v3578, %v3615
  %v3632 = vadd.f32 %v3579, %v3616
  %v3633 = vadd.f32 %v3580, %v3617
  %v3634 = vadd.f32 %v3581, %v3618
  %v3635 = vadd.f32 %v3582, %v3619
  %v3636 = vadd.f32 %v3583, %v3620
  %v3637 = vadd.f32 %v3584, %v3621
  %v3638 = vadd.f32 %v3585, %v3622
  %v3639 = vadd.f32 %v3586, %v3623
  %v3640 = vadd.f32 %v3587, %v3624
  %v3641 = vadd.f32 %v3588, %v3625
  %v3642 = vadd.f32 %v3589, %v3626
  %v3643 = vadd.f32 %v3590, %v3627
  %v3644 = vld [vmem:[%s1672 + $0x5] sm:$0xff]
  %v3645 = vld [vmem:[%s1672 + $0xd] sm:$0xff]
  %v3646 = vld [vmem:[%s1672 + $0x25] sm:$0xff]
  %v3647 = vld [vmem:[%s1672 + $0x2d] sm:$0xff]
  %v3648 = vld [vmem:[%s1672 + $0x45] sm:$0xff]
  %v3649 = vld [vmem:[%s1672 + $0x4d] sm:$0xff]
  %v3650 = vld [vmem:[%s1672 + $0x65] sm:$0xff]
  %v3651 = vld [vmem:[%s1672 + $0x6d] sm:$0xff]
  %v3652 = vld [vmem:[%s1672 + $0x85] sm:$0xff]
  %v3653 = vld [vmem:[%s1672 + $0x8d] sm:$0xff]
  %v3654 = vld [vmem:[%s1672 + $0xa5] sm:$0xff]
  %v3655 = vld [vmem:[%s1672 + $0xad] sm:$0xff]
  %v3656 = vld [vmem:[%s1672 + $0xc5] sm:$0xff]
  %v3657 = vld [vmem:[%s1672 + $0xcd] sm:$0xff]
  %v3658 = vld [vmem:[%s1672 + $0xe5] sm:$0xff]
  %v3659 = vld [vmem:[%s1672 + $0xed] sm:$0xff]
  %v3660 = vld [vmem:[%s3 + $0xb] sm:$0x1]
  %v3661 = vlaneseq
  %v3662 = vshrl.u32 %v3661, 7
  %v3663 = vsub.s32 0, %v3662
  %v3664 = vrot.slane %v3660, %v3663
  %v3665 = vmul.f32 %v3644, %v3664
  %v3666 = vmul.f32 %v3645, %v3664
  %v3667 = vmul.f32 %v3646, %v3664
  %v3668 = vmul.f32 %v3647, %v3664
  %v3669 = vmul.f32 %v3648, %v3664
  %v3670 = vmul.f32 %v3649, %v3664
  %v3671 = vmul.f32 %v3650, %v3664
  %v3672 = vmul.f32 %v3651, %v3664
  %v3673 = vmul.f32 %v3652, %v3664
  %v3674 = vmul.f32 %v3653, %v3664
  %v3675 = vmul.f32 %v3654, %v3664
  %v3676 = vmul.f32 %v3655, %v3664
  %v3677 = vmul.f32 %v3656, %v3664
  %v3678 = vmul.f32 %v3657, %v3664
  %v3679 = vmul.f32 %v3658, %v3664
  %v3680 = vmul.f32 %v3659, %v3664
  %v3681 = vadd.f32 %v3628, %v3665
  %v3682 = vadd.f32 %v3629, %v3666
  %v3683 = vadd.f32 %v3630, %v3667
  %v3684 = vadd.f32 %v3631, %v3668
  %v3685 = vadd.f32 %v3632, %v3669
  %v3686 = vadd.f32 %v3633, %v3670
  %v3687 = vadd.f32 %v3634, %v3671
  %v3688 = vadd.f32 %v3635, %v3672
  %v3689 = vadd.f32 %v3636, %v3673
  %v3690 = vadd.f32 %v3637, %v3674
  %v3691 = vadd.f32 %v3638, %v3675
  %v3692 = vadd.f32 %v3639, %v3676
  %v3693 = vadd.f32 %v3640, %v3677
  %v3694 = vadd.f32 %v3641, %v3678
  %v3695 = vadd.f32 %v3642, %v3679
  %v3696 = vadd.f32 %v3643, %v3680
  %v3697 = vld [vmem:[%s1672 + $0x8] sm:$0xff]
  %v3698 = vld [vmem:[%s1672 + $0x10] sm:$0xff]
  %v3699 = vld [vmem:[%s1672 + $0x28] sm:$0xff]
  %v3700 = vld [vmem:[%s1672 + $0x30] sm:$0xff]
  %v3701 = vld [vmem:[%s1672 + $0x48] sm:$0xff]
  %v3702 = vld [vmem:[%s1672 + $0x50] sm:$0xff]
  %v3703 = vld [vmem:[%s1672 + $0x68] sm:$0xff]
  %v3704 = vld [vmem:[%s1672 + $0x70] sm:$0xff]
  %v3705 = vld [vmem:[%s1672 + $0x88] sm:$0xff]
  %v3706 = vld [vmem:[%s1672 + $0x90] sm:$0xff]
  %v3707 = vld [vmem:[%s1672 + $0xa8] sm:$0xff]
  %v3708 = vld [vmem:[%s1672 + $0xb0] sm:$0xff]
  %v3709 = vld [vmem:[%s1672 + $0xc8] sm:$0xff]
  %v3710 = vld [vmem:[%s1672 + $0xd0] sm:$0xff]
  %v3711 = vld [vmem:[%s1672 + $0xe8] sm:$0xff]
  %v3712 = vld [vmem:[%s1672 + $0xf0] sm:$0xff]
  %v3713 = vld [vmem:[%s3 + $0xc] sm:$0x1]
  %v3714 = vlaneseq
  %v3715 = vshrl.u32 %v3714, 7
  %v3716 = vsub.s32 0, %v3715
  %v3717 = vrot.slane %v3713, %v3716
  %v3718 = vmul.f32 %v3697, %v3717
  %v3719 = vmul.f32 %v3698, %v3717
  %v3720 = vmul.f32 %v3699, %v3717
  %v3721 = vmul.f32 %v3700, %v3717
  %v3722 = vmul.f32 %v3701, %v3717
  %v3723 = vmul.f32 %v3702, %v3717
  %v3724 = vmul.f32 %v3703, %v3717
  %v3725 = vmul.f32 %v3704, %v3717
  %v3726 = vmul.f32 %v3705, %v3717
  %v3727 = vmul.f32 %v3706, %v3717
  %v3728 = vmul.f32 %v3707, %v3717
  %v3729 = vmul.f32 %v3708, %v3717
  %v3730 = vmul.f32 %v3709, %v3717
  %v3731 = vmul.f32 %v3710, %v3717
  %v3732 = vmul.f32 %v3711, %v3717
  %v3733 = vmul.f32 %v3712, %v3717
  %v3734 = vadd.f32 %v3681, %v3718
  %v3735 = vadd.f32 %v3682, %v3719
  %v3736 = vadd.f32 %v3683, %v3720
  %v3737 = vadd.f32 %v3684, %v3721
  %v3738 = vadd.f32 %v3685, %v3722
  %v3739 = vadd.f32 %v3686, %v3723
  %v3740 = vadd.f32 %v3687, %v3724
  %v3741 = vadd.f32 %v3688, %v3725
  %v3742 = vadd.f32 %v3689, %v3726
  %v3743 = vadd.f32 %v3690, %v3727
  %v3744 = vadd.f32 %v3691, %v3728
  %v3745 = vadd.f32 %v3692, %v3729
  %v3746 = vadd.f32 %v3693, %v3730
  %v3747 = vadd.f32 %v3694, %v3731
  %v3748 = vadd.f32 %v3695, %v3732
  %v3749 = vadd.f32 %v3696, %v3733
  %v3750 = vld [vmem:[%s1672 + $0xb] sm:$0xff]
  %v3751 = vld [vmem:[%s1672 + $0x13] sm:$0xff]
  %v3752 = vld [vmem:[%s1672 + $0x2b] sm:$0xff]
  %v3753 = vld [vmem:[%s1672 + $0x33] sm:$0xff]
  %v3754 = vld [vmem:[%s1672 + $0x4b] sm:$0xff]
  %v3755 = vld [vmem:[%s1672 + $0x53] sm:$0xff]
  %v3756 = vld [vmem:[%s1672 + $0x6b] sm:$0xff]
  %v3757 = vld [vmem:[%s1672 + $0x73] sm:$0xff]
  %v3758 = vld [vmem:[%s1672 + $0x8b] sm:$0xff]
  %v3759 = vld [vmem:[%s1672 + $0x93] sm:$0xff]
  %v3760 = vld [vmem:[%s1672 + $0xab] sm:$0xff]
  %v3761 = vld [vmem:[%s1672 + $0xb3] sm:$0xff]
  %v3762 = vld [vmem:[%s1672 + $0xcb] sm:$0xff]
  %v3763 = vld [vmem:[%s1672 + $0xd3] sm:$0xff]
  %v3764 = vld [vmem:[%s1672 + $0xeb] sm:$0xff]
  %v3765 = vld [vmem:[%s1672 + $0xf3] sm:$0xff]
  %v3766 = vld [vmem:[%s3 + $0xd] sm:$0x1]
  %v3767 = vlaneseq
  %v3768 = vshrl.u32 %v3767, 7
  %v3769 = vsub.s32 0, %v3768
  %v3770 = vrot.slane %v3766, %v3769
  %v3771 = vmul.f32 %v3750, %v3770
  %v3772 = vmul.f32 %v3751, %v3770
  %v3773 = vmul.f32 %v3752, %v3770
  %v3774 = vmul.f32 %v3753, %v3770
  %v3775 = vmul.f32 %v3754, %v3770
  %v3776 = vmul.f32 %v3755, %v3770
  %v3777 = vmul.f32 %v3756, %v3770
  %v3778 = vmul.f32 %v3757, %v3770
  %v3779 = vmul.f32 %v3758, %v3770
  %v3780 = vmul.f32 %v3759, %v3770
  %v3781 = vmul.f32 %v3760, %v3770
  %v3782 = vmul.f32 %v3761, %v3770
  %v3783 = vmul.f32 %v3762, %v3770
  %v3784 = vmul.f32 %v3763, %v3770
  %v3785 = vmul.f32 %v3764, %v3770
  %v3786 = vmul.f32 %v3765, %v3770
  %v3787 = vadd.f32 %v3734, %v3771
  %v3788 = vadd.f32 %v3735, %v3772
  %v3789 = vadd.f32 %v3736, %v3773
  %v3790 = vadd.f32 %v3737, %v3774
  %v3791 = vadd.f32 %v3738, %v3775
  %v3792 = vadd.f32 %v3739, %v3776
  %v3793 = vadd.f32 %v3740, %v3777
  %v3794 = vadd.f32 %v3741, %v3778
  %v3795 = vadd.f32 %v3742, %v3779
  %v3796 = vadd.f32 %v3743, %v3780
  %v3797 = vadd.f32 %v3744, %v3781
  %v3798 = vadd.f32 %v3745, %v3782
  %v3799 = vadd.f32 %v3746, %v3783
  %v3800 = vadd.f32 %v3747, %v3784
  %v3801 = vadd.f32 %v3748, %v3785
  %v3802 = vadd.f32 %v3749, %v3786
  %v3803 = vld [vmem:[%s1672 + $0xe] sm:$0xff]
  %v3804 = vld [vmem:[%s1672 + $0x16] sm:$0xff]
  %v3805 = vld [vmem:[%s1672 + $0x2e] sm:$0xff]
  %v3806 = vld [vmem:[%s1672 + $0x36] sm:$0xff]
  %v3807 = vld [vmem:[%s1672 + $0x4e] sm:$0xff]
  %v3808 = vld [vmem:[%s1672 + $0x56] sm:$0xff]
  %v3809 = vld [vmem:[%s1672 + $0x6e] sm:$0xff]
  %v3810 = vld [vmem:[%s1672 + $0x76] sm:$0xff]
  %v3811 = vld [vmem:[%s1672 + $0x8e] sm:$0xff]
  %v3812 = vld [vmem:[%s1672 + $0x96] sm:$0xff]
  %v3813 = vld [vmem:[%s1672 + $0xae] sm:$0xff]
  %v3814 = vld [vmem:[%s1672 + $0xb6] sm:$0xff]
  %v3815 = vld [vmem:[%s1672 + $0xce] sm:$0xff]
  %v3816 = vld [vmem:[%s1672 + $0xd6] sm:$0xff]
  %v3817 = vld [vmem:[%s1672 + $0xee] sm:$0xff]
  %v3818 = vld [vmem:[%s1672 + $0xf6] sm:$0xff]
  %v3819 = vld [vmem:[%s3 + $0xe] sm:$0x1]
  %v3820 = vlaneseq
  %v3821 = vshrl.u32 %v3820, 7
  %v3822 = vsub.s32 0, %v3821
  %v3823 = vrot.slane %v3819, %v3822
  %v3824 = vmul.f32 %v3803, %v3823
  %v3825 = vmul.f32 %v3804, %v3823
  %v3826 = vmul.f32 %v3805, %v3823
  %v3827 = vmul.f32 %v3806, %v3823
  %v3828 = vmul.f32 %v3807, %v3823
  %v3829 = vmul.f32 %v3808, %v3823
  %v3830 = vmul.f32 %v3809, %v3823
  %v3831 = vmul.f32 %v3810, %v3823
  %v3832 = vmul.f32 %v3811, %v3823
  %v3833 = vmul.f32 %v3812, %v3823
  %v3834 = vmul.f32 %v3813, %v3823
  %v3835 = vmul.f32 %v3814, %v3823
  %v3836 = vmul.f32 %v3815, %v3823
  %v3837 = vmul.f32 %v3816, %v3823
  %v3838 = vmul.f32 %v3817, %v3823
  %v3839 = vmul.f32 %v3818, %v3823
  %v3840 = vadd.f32 %v3787, %v3824
  %v3841 = vadd.f32 %v3788, %v3825
  %v3842 = vadd.f32 %v3789, %v3826
  %v3843 = vadd.f32 %v3790, %v3827
  %v3844 = vadd.f32 %v3791, %v3828
  %v3845 = vadd.f32 %v3792, %v3829
  %v3846 = vadd.f32 %v3793, %v3830
  %v3847 = vadd.f32 %v3794, %v3831
  %v3848 = vadd.f32 %v3795, %v3832
  %v3849 = vadd.f32 %v3796, %v3833
  %v3850 = vadd.f32 %v3797, %v3834
  %v3851 = vadd.f32 %v3798, %v3835
  %v3852 = vadd.f32 %v3799, %v3836
  %v3853 = vadd.f32 %v3800, %v3837
  %v3854 = vadd.f32 %v3801, %v3838
  %v3855 = vadd.f32 %v3802, %v3839
  %s3856 = scalar_lea.vmem [#allocation3], 352
  %v3857 = vld [vmem:[%s3856 + $0x2] sm:$0xff]
  %v3858 = vld [vmem:[%s3856 + $0xa] sm:$0xff]
  %v3859 = vld [vmem:[%s3856 + $0x22] sm:$0xff]
  %v3860 = vld [vmem:[%s3856 + $0x2a] sm:$0xff]
  %v3861 = vld [vmem:[%s3856 + $0x42] sm:$0xff]
  %v3862 = vld [vmem:[%s3856 + $0x4a] sm:$0xff]
  %v3863 = vld [vmem:[%s3856 + $0x62] sm:$0xff]
  %v3864 = vld [vmem:[%s3856 + $0x6a] sm:$0xff]
  %v3865 = vld [vmem:[%s3856 + $0x82] sm:$0xff]
  %v3866 = vld [vmem:[%s3856 + $0x8a] sm:$0xff]
  %v3867 = vld [vmem:[%s3856 + $0xa2] sm:$0xff]
  %v3868 = vld [vmem:[%s3856 + $0xaa] sm:$0xff]
  %v3869 = vld [vmem:[%s3856 + $0xc2] sm:$0xff]
  %v3870 = vld [vmem:[%s3856 + $0xca] sm:$0xff]
  %v3871 = vld [vmem:[%s3856 + $0xe2] sm:$0xff]
  %v3872 = vld [vmem:[%s3856 + $0xea] sm:$0xff]
  %v3873 = vld [vmem:[%s3 + $0xf] sm:$0x1]
  %v3874 = vlaneseq
  %v3875 = vshrl.u32 %v3874, 7
  %v3876 = vsub.s32 0, %v3875
  %v3877 = vrot.slane %v3873, %v3876
  %v3878 = vmul.f32 %v3857, %v3877
  %v3879 = vmul.f32 %v3858, %v3877
  %v3880 = vmul.f32 %v3859, %v3877
  %v3881 = vmul.f32 %v3860, %v3877
  %v3882 = vmul.f32 %v3861, %v3877
  %v3883 = vmul.f32 %v3862, %v3877
  %v3884 = vmul.f32 %v3863, %v3877
  %v3885 = vmul.f32 %v3864, %v3877
  %v3886 = vmul.f32 %v3865, %v3877
  %v3887 = vmul.f32 %v3866, %v3877
  %v3888 = vmul.f32 %v3867, %v3877
  %v3889 = vmul.f32 %v3868, %v3877
  %v3890 = vmul.f32 %v3869, %v3877
  %v3891 = vmul.f32 %v3870, %v3877
  %v3892 = vmul.f32 %v3871, %v3877
  %v3893 = vmul.f32 %v3872, %v3877
  %v3894 = vadd.f32 %v3840, %v3878
  %v3895 = vadd.f32 %v3841, %v3879
  %v3896 = vadd.f32 %v3842, %v3880
  %v3897 = vadd.f32 %v3843, %v3881
  %v3898 = vadd.f32 %v3844, %v3882
  %v3899 = vadd.f32 %v3845, %v3883
  %v3900 = vadd.f32 %v3846, %v3884
  %v3901 = vadd.f32 %v3847, %v3885
  %v3902 = vadd.f32 %v3848, %v3886
  %v3903 = vadd.f32 %v3849, %v3887
  %v3904 = vadd.f32 %v3850, %v3888
  %v3905 = vadd.f32 %v3851, %v3889
  %v3906 = vadd.f32 %v3852, %v3890
  %v3907 = vadd.f32 %v3853, %v3891
  %v3908 = vadd.f32 %v3854, %v3892
  %v3909 = vadd.f32 %v3855, %v3893
  %v3910 = vld [vmem:[%s3856 + $0x5] sm:$0xff]
  %v3911 = vld [vmem:[%s3856 + $0xd] sm:$0xff]
  %v3912 = vld [vmem:[%s3856 + $0x25] sm:$0xff]
  %v3913 = vld [vmem:[%s3856 + $0x2d] sm:$0xff]
  %v3914 = vld [vmem:[%s3856 + $0x45] sm:$0xff]
  %v3915 = vld [vmem:[%s3856 + $0x4d] sm:$0xff]
  %v3916 = vld [vmem:[%s3856 + $0x65] sm:$0xff]
  %v3917 = vld [vmem:[%s3856 + $0x6d] sm:$0xff]
  %v3918 = vld [vmem:[%s3856 + $0x85] sm:$0xff]
  %v3919 = vld [vmem:[%s3856 + $0x8d] sm:$0xff]
  %v3920 = vld [vmem:[%s3856 + $0xa5] sm:$0xff]
  %v3921 = vld [vmem:[%s3856 + $0xad] sm:$0xff]
  %v3922 = vld [vmem:[%s3856 + $0xc5] sm:$0xff]
  %v3923 = vld [vmem:[%s3856 + $0xcd] sm:$0xff]
  %v3924 = vld [vmem:[%s3856 + $0xe5] sm:$0xff]
  %v3925 = vld [vmem:[%s3856 + $0xed] sm:$0xff]
  %v3926 = vld [vmem:[%s3 + $0x10] sm:$0x1]
  %v3927 = vlaneseq
  %v3928 = vshrl.u32 %v3927, 7
  %v3929 = vsub.s32 0, %v3928
  %v3930 = vrot.slane %v3926, %v3929
  %v3931 = vmul.f32 %v3910, %v3930
  %v3932 = vmul.f32 %v3911, %v3930
  %v3933 = vmul.f32 %v3912, %v3930
  %v3934 = vmul.f32 %v3913, %v3930
  %v3935 = vmul.f32 %v3914, %v3930
  %v3936 = vmul.f32 %v3915, %v3930
  %v3937 = vmul.f32 %v3916, %v3930
  %v3938 = vmul.f32 %v3917, %v3930
  %v3939 = vmul.f32 %v3918, %v3930
  %v3940 = vmul.f32 %v3919, %v3930
  %v3941 = vmul.f32 %v3920, %v3930
  %v3942 = vmul.f32 %v3921, %v3930
  %v3943 = vmul.f32 %v3922, %v3930
  %v3944 = vmul.f32 %v3923, %v3930
  %v3945 = vmul.f32 %v3924, %v3930
  %v3946 = vmul.f32 %v3925, %v3930
  %v3947 = vadd.f32 %v3894, %v3931
  %v3948 = vadd.f32 %v3895, %v3932
  %v3949 = vadd.f32 %v3896, %v3933
  %v3950 = vadd.f32 %v3897, %v3934
  %v3951 = vadd.f32 %v3898, %v3935
  %v3952 = vadd.f32 %v3899, %v3936
  %v3953 = vadd.f32 %v3900, %v3937
  %v3954 = vadd.f32 %v3901, %v3938
  %v3955 = vadd.f32 %v3902, %v3939
  %v3956 = vadd.f32 %v3903, %v3940
  %v3957 = vadd.f32 %v3904, %v3941
  %v3958 = vadd.f32 %v3905, %v3942
  %v3959 = vadd.f32 %v3906, %v3943
  %v3960 = vadd.f32 %v3907, %v3944
  %v3961 = vadd.f32 %v3908, %v3945
  %v3962 = vadd.f32 %v3909, %v3946
  %v3963 = vld [vmem:[%s3856 + $0x8] sm:$0xff]
  %v3964 = vld [vmem:[%s3856 + $0x10] sm:$0xff]
  %v3965 = vld [vmem:[%s3856 + $0x28] sm:$0xff]
  %v3966 = vld [vmem:[%s3856 + $0x30] sm:$0xff]
  %v3967 = vld [vmem:[%s3856 + $0x48] sm:$0xff]
  %v3968 = vld [vmem:[%s3856 + $0x50] sm:$0xff]
  %v3969 = vld [vmem:[%s3856 + $0x68] sm:$0xff]
  %v3970 = vld [vmem:[%s3856 + $0x70] sm:$0xff]
  %v3971 = vld [vmem:[%s3856 + $0x88] sm:$0xff]
  %v3972 = vld [vmem:[%s3856 + $0x90] sm:$0xff]
  %v3973 = vld [vmem:[%s3856 + $0xa8] sm:$0xff]
  %v3974 = vld [vmem:[%s3856 + $0xb0] sm:$0xff]
  %v3975 = vld [vmem:[%s3856 + $0xc8] sm:$0xff]
  %v3976 = vld [vmem:[%s3856 + $0xd0] sm:$0xff]
  %v3977 = vld [vmem:[%s3856 + $0xe8] sm:$0xff]
  %v3978 = vld [vmem:[%s3856 + $0xf0] sm:$0xff]
  %v3979 = vld [vmem:[%s3 + $0x11] sm:$0x1]
  %v3980 = vlaneseq
  %v3981 = vshrl.u32 %v3980, 7
  %v3982 = vsub.s32 0, %v3981
  %v3983 = vrot.slane %v3979, %v3982
  %v3984 = vmul.f32 %v3963, %v3983
  %v3985 = vmul.f32 %v3964, %v3983
  %v3986 = vmul.f32 %v3965, %v3983
  %v3987 = vmul.f32 %v3966, %v3983
  %v3988 = vmul.f32 %v3967, %v3983
  %v3989 = vmul.f32 %v3968, %v3983
  %v3990 = vmul.f32 %v3969, %v3983
  %v3991 = vmul.f32 %v3970, %v3983
  %v3992 = vmul.f32 %v3971, %v3983
  %v3993 = vmul.f32 %v3972, %v3983
  %v3994 = vmul.f32 %v3973, %v3983
  %v3995 = vmul.f32 %v3974, %v3983
  %v3996 = vmul.f32 %v3975, %v3983
  %v3997 = vmul.f32 %v3976, %v3983
  %v3998 = vmul.f32 %v3977, %v3983
  %v3999 = vmul.f32 %v3978, %v3983
  %v4000 = vadd.f32 %v3947, %v3984
  %v4001 = vadd.f32 %v3948, %v3985
  %v4002 = vadd.f32 %v3949, %v3986
  %v4003 = vadd.f32 %v3950, %v3987
  %v4004 = vadd.f32 %v3951, %v3988
  %v4005 = vadd.f32 %v3952, %v3989
  %v4006 = vadd.f32 %v3953, %v3990
  %v4007 = vadd.f32 %v3954, %v3991
  %v4008 = vadd.f32 %v3955, %v3992
  %v4009 = vadd.f32 %v3956, %v3993
  %v4010 = vadd.f32 %v3957, %v3994
  %v4011 = vadd.f32 %v3958, %v3995
  %v4012 = vadd.f32 %v3959, %v3996
  %v4013 = vadd.f32 %v3960, %v3997
  %v4014 = vadd.f32 %v3961, %v3998
  %v4015 = vadd.f32 %v3962, %v3999
  %v4016 = vld [vmem:[%s3856 + $0xb] sm:$0xff]
  %v4017 = vld [vmem:[%s3856 + $0x13] sm:$0xff]
  %v4018 = vld [vmem:[%s3856 + $0x2b] sm:$0xff]
  %v4019 = vld [vmem:[%s3856 + $0x33] sm:$0xff]
  %v4020 = vld [vmem:[%s3856 + $0x4b] sm:$0xff]
  %v4021 = vld [vmem:[%s3856 + $0x53] sm:$0xff]
  %v4022 = vld [vmem:[%s3856 + $0x6b] sm:$0xff]
  %v4023 = vld [vmem:[%s3856 + $0x73] sm:$0xff]
  %v4024 = vld [vmem:[%s3856 + $0x8b] sm:$0xff]
  %v4025 = vld [vmem:[%s3856 + $0x93] sm:$0xff]
  %v4026 = vld [vmem:[%s3856 + $0xab] sm:$0xff]
  %v4027 = vld [vmem:[%s3856 + $0xb3] sm:$0xff]
  %v4028 = vld [vmem:[%s3856 + $0xcb] sm:$0xff]
  %v4029 = vld [vmem:[%s3856 + $0xd3] sm:$0xff]
  %v4030 = vld [vmem:[%s3856 + $0xeb] sm:$0xff]
  %v4031 = vld [vmem:[%s3856 + $0xf3] sm:$0xff]
  %v4032 = vld [vmem:[%s3 + $0x12] sm:$0x1]
  %v4033 = vlaneseq
  %v4034 = vshrl.u32 %v4033, 7
  %v4035 = vsub.s32 0, %v4034
  %v4036 = vrot.slane %v4032, %v4035
  %v4037 = vmul.f32 %v4016, %v4036
  %v4038 = vmul.f32 %v4017, %v4036
  %v4039 = vmul.f32 %v4018, %v4036
  %v4040 = vmul.f32 %v4019, %v4036
  %v4041 = vmul.f32 %v4020, %v4036
  %v4042 = vmul.f32 %v4021, %v4036
  %v4043 = vmul.f32 %v4022, %v4036
  %v4044 = vmul.f32 %v4023, %v4036
  %v4045 = vmul.f32 %v4024, %v4036
  %v4046 = vmul.f32 %v4025, %v4036
  %v4047 = vmul.f32 %v4026, %v4036
  %v4048 = vmul.f32 %v4027, %v4036
  %v4049 = vmul.f32 %v4028, %v4036
  %v4050 = vmul.f32 %v4029, %v4036
  %v4051 = vmul.f32 %v4030, %v4036
  %v4052 = vmul.f32 %v4031, %v4036
  %v4053 = vadd.f32 %v4000, %v4037
  %v4054 = vadd.f32 %v4001, %v4038
  %v4055 = vadd.f32 %v4002, %v4039
  %v4056 = vadd.f32 %v4003, %v4040
  %v4057 = vadd.f32 %v4004, %v4041
  %v4058 = vadd.f32 %v4005, %v4042
  %v4059 = vadd.f32 %v4006, %v4043
  %v4060 = vadd.f32 %v4007, %v4044
  %v4061 = vadd.f32 %v4008, %v4045
  %v4062 = vadd.f32 %v4009, %v4046
  %v4063 = vadd.f32 %v4010, %v4047
  %v4064 = vadd.f32 %v4011, %v4048
  %v4065 = vadd.f32 %v4012, %v4049
  %v4066 = vadd.f32 %v4013, %v4050
  %v4067 = vadd.f32 %v4014, %v4051
  %v4068 = vadd.f32 %v4015, %v4052
  %v4069 = vld [vmem:[%s3856 + $0xe] sm:$0xff]
  %v4070 = vld [vmem:[%s3856 + $0x16] sm:$0xff]
  %v4071 = vld [vmem:[%s3856 + $0x2e] sm:$0xff]
  %v4072 = vld [vmem:[%s3856 + $0x36] sm:$0xff]
  %v4073 = vld [vmem:[%s3856 + $0x4e] sm:$0xff]
  %v4074 = vld [vmem:[%s3856 + $0x56] sm:$0xff]
  %v4075 = vld [vmem:[%s3856 + $0x6e] sm:$0xff]
  %v4076 = vld [vmem:[%s3856 + $0x76] sm:$0xff]
  %v4077 = vld [vmem:[%s3856 + $0x8e] sm:$0xff]
  %v4078 = vld [vmem:[%s3856 + $0x96] sm:$0xff]
  %v4079 = vld [vmem:[%s3856 + $0xae] sm:$0xff]
  %v4080 = vld [vmem:[%s3856 + $0xb6] sm:$0xff]
  %v4081 = vld [vmem:[%s3856 + $0xce] sm:$0xff]
  %v4082 = vld [vmem:[%s3856 + $0xd6] sm:$0xff]
  %v4083 = vld [vmem:[%s3856 + $0xee] sm:$0xff]
  %v4084 = vld [vmem:[%s3856 + $0xf6] sm:$0xff]
  %v4085 = vld [vmem:[%s3 + $0x13] sm:$0x1]
  %v4086 = vlaneseq
  %v4087 = vshrl.u32 %v4086, 7
  %v4088 = vsub.s32 0, %v4087
  %v4089 = vrot.slane %v4085, %v4088
  %v4090 = vmul.f32 %v4069, %v4089
  %v4091 = vmul.f32 %v4070, %v4089
  %v4092 = vmul.f32 %v4071, %v4089
  %v4093 = vmul.f32 %v4072, %v4089
  %v4094 = vmul.f32 %v4073, %v4089
  %v4095 = vmul.f32 %v4074, %v4089
  %v4096 = vmul.f32 %v4075, %v4089
  %v4097 = vmul.f32 %v4076, %v4089
  %v4098 = vmul.f32 %v4077, %v4089
  %v4099 = vmul.f32 %v4078, %v4089
  %v4100 = vmul.f32 %v4079, %v4089
  %v4101 = vmul.f32 %v4080, %v4089
  %v4102 = vmul.f32 %v4081, %v4089
  %v4103 = vmul.f32 %v4082, %v4089
  %v4104 = vmul.f32 %v4083, %v4089
  %v4105 = vmul.f32 %v4084, %v4089
  %v4106 = vadd.f32 %v4053, %v4090
  %v4107 = vadd.f32 %v4054, %v4091
  %v4108 = vadd.f32 %v4055, %v4092
  %v4109 = vadd.f32 %v4056, %v4093
  %v4110 = vadd.f32 %v4057, %v4094
  %v4111 = vadd.f32 %v4058, %v4095
  %v4112 = vadd.f32 %v4059, %v4096
  %v4113 = vadd.f32 %v4060, %v4097
  %v4114 = vadd.f32 %v4061, %v4098
  %v4115 = vadd.f32 %v4062, %v4099
  %v4116 = vadd.f32 %v4063, %v4100
  %v4117 = vadd.f32 %v4064, %v4101
  %v4118 = vadd.f32 %v4065, %v4102
  %v4119 = vadd.f32 %v4066, %v4103
  %v4120 = vadd.f32 %v4067, %v4104
  %v4121 = vadd.f32 %v4068, %v4105
  %s4122 = scalar_lea.vmem [#allocation3], 448
  %v4123 = vld [vmem:[%s4122 + $0x2] sm:$0xff]
  %v4124 = vld [vmem:[%s4122 + $0xa] sm:$0xff]
  %v4125 = vld [vmem:[%s4122 + $0x22] sm:$0xff]
  %v4126 = vld [vmem:[%s4122 + $0x2a] sm:$0xff]
  %v4127 = vld [vmem:[%s4122 + $0x42] sm:$0xff]
  %v4128 = vld [vmem:[%s4122 + $0x4a] sm:$0xff]
  %v4129 = vld [vmem:[%s4122 + $0x62] sm:$0xff]
  %v4130 = vld [vmem:[%s4122 + $0x6a] sm:$0xff]
  %v4131 = vld [vmem:[%s4122 + $0x82] sm:$0xff]
  %v4132 = vld [vmem:[%s4122 + $0x8a] sm:$0xff]
  %v4133 = vld [vmem:[%s4122 + $0xa2] sm:$0xff]
  %v4134 = vld [vmem:[%s4122 + $0xaa] sm:$0xff]
  %v4135 = vld [vmem:[%s4122 + $0xc2] sm:$0xff]
  %v4136 = vld [vmem:[%s4122 + $0xca] sm:$0xff]
  %v4137 = vld [vmem:[%s4122 + $0xe2] sm:$0xff]
  %v4138 = vld [vmem:[%s4122 + $0xea] sm:$0xff]
  %v4139 = vld [vmem:[%s3 + $0x14] sm:$0x1]
  %v4140 = vlaneseq
  %v4141 = vshrl.u32 %v4140, 7
  %v4142 = vsub.s32 0, %v4141
  %v4143 = vrot.slane %v4139, %v4142
  %v4144 = vmul.f32 %v4123, %v4143
  %v4145 = vmul.f32 %v4124, %v4143
  %v4146 = vmul.f32 %v4125, %v4143
  %v4147 = vmul.f32 %v4126, %v4143
  %v4148 = vmul.f32 %v4127, %v4143
  %v4149 = vmul.f32 %v4128, %v4143
  %v4150 = vmul.f32 %v4129, %v4143
  %v4151 = vmul.f32 %v4130, %v4143
  %v4152 = vmul.f32 %v4131, %v4143
  %v4153 = vmul.f32 %v4132, %v4143
  %v4154 = vmul.f32 %v4133, %v4143
  %v4155 = vmul.f32 %v4134, %v4143
  %v4156 = vmul.f32 %v4135, %v4143
  %v4157 = vmul.f32 %v4136, %v4143
  %v4158 = vmul.f32 %v4137, %v4143
  %v4159 = vmul.f32 %v4138, %v4143
  %v4160 = vadd.f32 %v4106, %v4144
  %v4161 = vadd.f32 %v4107, %v4145
  %v4162 = vadd.f32 %v4108, %v4146
  %v4163 = vadd.f32 %v4109, %v4147
  %v4164 = vadd.f32 %v4110, %v4148
  %v4165 = vadd.f32 %v4111, %v4149
  %v4166 = vadd.f32 %v4112, %v4150
  %v4167 = vadd.f32 %v4113, %v4151
  %v4168 = vadd.f32 %v4114, %v4152
  %v4169 = vadd.f32 %v4115, %v4153
  %v4170 = vadd.f32 %v4116, %v4154
  %v4171 = vadd.f32 %v4117, %v4155
  %v4172 = vadd.f32 %v4118, %v4156
  %v4173 = vadd.f32 %v4119, %v4157
  %v4174 = vadd.f32 %v4120, %v4158
  %v4175 = vadd.f32 %v4121, %v4159
  %v4176 = vld [vmem:[%s4122 + $0x5] sm:$0xff]
  %v4177 = vld [vmem:[%s4122 + $0xd] sm:$0xff]
  %v4178 = vld [vmem:[%s4122 + $0x25] sm:$0xff]
  %v4179 = vld [vmem:[%s4122 + $0x2d] sm:$0xff]
  %v4180 = vld [vmem:[%s4122 + $0x45] sm:$0xff]
  %v4181 = vld [vmem:[%s4122 + $0x4d] sm:$0xff]
  %v4182 = vld [vmem:[%s4122 + $0x65] sm:$0xff]
  %v4183 = vld [vmem:[%s4122 + $0x6d] sm:$0xff]
  %v4184 = vld [vmem:[%s4122 + $0x85] sm:$0xff]
  %v4185 = vld [vmem:[%s4122 + $0x8d] sm:$0xff]
  %v4186 = vld [vmem:[%s4122 + $0xa5] sm:$0xff]
  %v4187 = vld [vmem:[%s4122 + $0xad] sm:$0xff]
  %v4188 = vld [vmem:[%s4122 + $0xc5] sm:$0xff]
  %v4189 = vld [vmem:[%s4122 + $0xcd] sm:$0xff]
  %v4190 = vld [vmem:[%s4122 + $0xe5] sm:$0xff]
  %v4191 = vld [vmem:[%s4122 + $0xed] sm:$0xff]
  %v4192 = vld [vmem:[%s3 + $0x15] sm:$0x1]
  %v4193 = vlaneseq
  %v4194 = vshrl.u32 %v4193, 7
  %v4195 = vsub.s32 0, %v4194
  %v4196 = vrot.slane %v4192, %v4195
  %v4197 = vmul.f32 %v4176, %v4196
  %v4198 = vmul.f32 %v4177, %v4196
  %v4199 = vmul.f32 %v4178, %v4196
  %v4200 = vmul.f32 %v4179, %v4196
  %v4201 = vmul.f32 %v4180, %v4196
  %v4202 = vmul.f32 %v4181, %v4196
  %v4203 = vmul.f32 %v4182, %v4196
  %v4204 = vmul.f32 %v4183, %v4196
  %v4205 = vmul.f32 %v4184, %v4196
  %v4206 = vmul.f32 %v4185, %v4196
  %v4207 = vmul.f32 %v4186, %v4196
  %v4208 = vmul.f32 %v4187, %v4196
  %v4209 = vmul.f32 %v4188, %v4196
  %v4210 = vmul.f32 %v4189, %v4196
  %v4211 = vmul.f32 %v4190, %v4196
  %v4212 = vmul.f32 %v4191, %v4196
  %v4213 = vadd.f32 %v4160, %v4197
  %v4214 = vadd.f32 %v4161, %v4198
  %v4215 = vadd.f32 %v4162, %v4199
  %v4216 = vadd.f32 %v4163, %v4200
  %v4217 = vadd.f32 %v4164, %v4201
  %v4218 = vadd.f32 %v4165, %v4202
  %v4219 = vadd.f32 %v4166, %v4203
  %v4220 = vadd.f32 %v4167, %v4204
  %v4221 = vadd.f32 %v4168, %v4205
  %v4222 = vadd.f32 %v4169, %v4206
  %v4223 = vadd.f32 %v4170, %v4207
  %v4224 = vadd.f32 %v4171, %v4208
  %v4225 = vadd.f32 %v4172, %v4209
  %v4226 = vadd.f32 %v4173, %v4210
  %v4227 = vadd.f32 %v4174, %v4211
  %v4228 = vadd.f32 %v4175, %v4212
  %v4229 = vld [vmem:[%s4122 + $0x8] sm:$0xff]
  %v4230 = vld [vmem:[%s4122 + $0x10] sm:$0xff]
  %v4231 = vld [vmem:[%s4122 + $0x28] sm:$0xff]
  %v4232 = vld [vmem:[%s4122 + $0x30] sm:$0xff]
  %v4233 = vld [vmem:[%s4122 + $0x48] sm:$0xff]
  %v4234 = vld [vmem:[%s4122 + $0x50] sm:$0xff]
  %v4235 = vld [vmem:[%s4122 + $0x68] sm:$0xff]
  %v4236 = vld [vmem:[%s4122 + $0x70] sm:$0xff]
  %v4237 = vld [vmem:[%s4122 + $0x88] sm:$0xff]
  %v4238 = vld [vmem:[%s4122 + $0x90] sm:$0xff]
  %v4239 = vld [vmem:[%s4122 + $0xa8] sm:$0xff]
  %v4240 = vld [vmem:[%s4122 + $0xb0] sm:$0xff]
  %v4241 = vld [vmem:[%s4122 + $0xc8] sm:$0xff]
  %v4242 = vld [vmem:[%s4122 + $0xd0] sm:$0xff]
  %v4243 = vld [vmem:[%s4122 + $0xe8] sm:$0xff]
  %v4244 = vld [vmem:[%s4122 + $0xf0] sm:$0xff]
  %v4245 = vld [vmem:[%s3 + $0x16] sm:$0x1]
  %v4246 = vlaneseq
  %v4247 = vshrl.u32 %v4246, 7
  %v4248 = vsub.s32 0, %v4247
  %v4249 = vrot.slane %v4245, %v4248
  %v4250 = vmul.f32 %v4229, %v4249
  %v4251 = vmul.f32 %v4230, %v4249
  %v4252 = vmul.f32 %v4231, %v4249
  %v4253 = vmul.f32 %v4232, %v4249
  %v4254 = vmul.f32 %v4233, %v4249
  %v4255 = vmul.f32 %v4234, %v4249
  %v4256 = vmul.f32 %v4235, %v4249
  %v4257 = vmul.f32 %v4236, %v4249
  %v4258 = vmul.f32 %v4237, %v4249
  %v4259 = vmul.f32 %v4238, %v4249
  %v4260 = vmul.f32 %v4239, %v4249
  %v4261 = vmul.f32 %v4240, %v4249
  %v4262 = vmul.f32 %v4241, %v4249
  %v4263 = vmul.f32 %v4242, %v4249
  %v4264 = vmul.f32 %v4243, %v4249
  %v4265 = vmul.f32 %v4244, %v4249
  %v4266 = vadd.f32 %v4213, %v4250
  %v4267 = vadd.f32 %v4214, %v4251
  %v4268 = vadd.f32 %v4215, %v4252
  %v4269 = vadd.f32 %v4216, %v4253
  %v4270 = vadd.f32 %v4217, %v4254
  %v4271 = vadd.f32 %v4218, %v4255
  %v4272 = vadd.f32 %v4219, %v4256
  %v4273 = vadd.f32 %v4220, %v4257
  %v4274 = vadd.f32 %v4221, %v4258
  %v4275 = vadd.f32 %v4222, %v4259
  %v4276 = vadd.f32 %v4223, %v4260
  %v4277 = vadd.f32 %v4224, %v4261
  %v4278 = vadd.f32 %v4225, %v4262
  %v4279 = vadd.f32 %v4226, %v4263
  %v4280 = vadd.f32 %v4227, %v4264
  %v4281 = vadd.f32 %v4228, %v4265
  %v4282 = vld [vmem:[%s4122 + $0xb] sm:$0xff]
  %v4283 = vld [vmem:[%s4122 + $0x13] sm:$0xff]
  %v4284 = vld [vmem:[%s4122 + $0x2b] sm:$0xff]
  %v4285 = vld [vmem:[%s4122 + $0x33] sm:$0xff]
  %v4286 = vld [vmem:[%s4122 + $0x4b] sm:$0xff]
  %v4287 = vld [vmem:[%s4122 + $0x53] sm:$0xff]
  %v4288 = vld [vmem:[%s4122 + $0x6b] sm:$0xff]
  %v4289 = vld [vmem:[%s4122 + $0x73] sm:$0xff]
  %v4290 = vld [vmem:[%s4122 + $0x8b] sm:$0xff]
  %v4291 = vld [vmem:[%s4122 + $0x93] sm:$0xff]
  %v4292 = vld [vmem:[%s4122 + $0xab] sm:$0xff]
  %v4293 = vld [vmem:[%s4122 + $0xb3] sm:$0xff]
  %v4294 = vld [vmem:[%s4122 + $0xcb] sm:$0xff]
  %v4295 = vld [vmem:[%s4122 + $0xd3] sm:$0xff]
  %v4296 = vld [vmem:[%s4122 + $0xeb] sm:$0xff]
  %v4297 = vld [vmem:[%s4122 + $0xf3] sm:$0xff]
  %v4298 = vld [vmem:[%s3 + $0x17] sm:$0x1]
  %v4299 = vlaneseq
  %v4300 = vshrl.u32 %v4299, 7
  %v4301 = vsub.s32 0, %v4300
  %v4302 = vrot.slane %v4298, %v4301
  %v4303 = vmul.f32 %v4282, %v4302
  %v4304 = vmul.f32 %v4283, %v4302
  %v4305 = vmul.f32 %v4284, %v4302
  %v4306 = vmul.f32 %v4285, %v4302
  %v4307 = vmul.f32 %v4286, %v4302
  %v4308 = vmul.f32 %v4287, %v4302
  %v4309 = vmul.f32 %v4288, %v4302
  %v4310 = vmul.f32 %v4289, %v4302
  %v4311 = vmul.f32 %v4290, %v4302
  %v4312 = vmul.f32 %v4291, %v4302
  %v4313 = vmul.f32 %v4292, %v4302
  %v4314 = vmul.f32 %v4293, %v4302
  %v4315 = vmul.f32 %v4294, %v4302
  %v4316 = vmul.f32 %v4295, %v4302
  %v4317 = vmul.f32 %v4296, %v4302
  %v4318 = vmul.f32 %v4297, %v4302
  %v4319 = vadd.f32 %v4266, %v4303
  %v4320 = vadd.f32 %v4267, %v4304
  %v4321 = vadd.f32 %v4268, %v4305
  %v4322 = vadd.f32 %v4269, %v4306
  %v4323 = vadd.f32 %v4270, %v4307
  %v4324 = vadd.f32 %v4271, %v4308
  %v4325 = vadd.f32 %v4272, %v4309
  %v4326 = vadd.f32 %v4273, %v4310
  %v4327 = vadd.f32 %v4274, %v4311
  %v4328 = vadd.f32 %v4275, %v4312
  %v4329 = vadd.f32 %v4276, %v4313
  %v4330 = vadd.f32 %v4277, %v4314
  %v4331 = vadd.f32 %v4278, %v4315
  %v4332 = vadd.f32 %v4279, %v4316
  %v4333 = vadd.f32 %v4280, %v4317
  %v4334 = vadd.f32 %v4281, %v4318
  %v4335 = vld [vmem:[%s4122 + $0xe] sm:$0xff]
  %v4336 = vld [vmem:[%s4122 + $0x16] sm:$0xff]
  %v4337 = vld [vmem:[%s4122 + $0x2e] sm:$0xff]
  %v4338 = vld [vmem:[%s4122 + $0x36] sm:$0xff]
  %v4339 = vld [vmem:[%s4122 + $0x4e] sm:$0xff]
  %v4340 = vld [vmem:[%s4122 + $0x56] sm:$0xff]
  %v4341 = vld [vmem:[%s4122 + $0x6e] sm:$0xff]
  %v4342 = vld [vmem:[%s4122 + $0x76] sm:$0xff]
  %v4343 = vld [vmem:[%s4122 + $0x8e] sm:$0xff]
  %v4344 = vld [vmem:[%s4122 + $0x96] sm:$0xff]
  %v4345 = vld [vmem:[%s4122 + $0xae] sm:$0xff]
  %v4346 = vld [vmem:[%s4122 + $0xb6] sm:$0xff]
  %v4347 = vld [vmem:[%s4122 + $0xce] sm:$0xff]
  %v4348 = vld [vmem:[%s4122 + $0xd6] sm:$0xff]
  %v4349 = vld [vmem:[%s4122 + $0xee] sm:$0xff]
  %v4350 = vld [vmem:[%s4122 + $0xf6] sm:$0xff]
  %v4351 = vld [vmem:[%s3 + $0x18] sm:$0x1]
  %v4352 = vlaneseq
  %v4353 = vshrl.u32 %v4352, 7
  %v4354 = vsub.s32 0, %v4353
  %v4355 = vrot.slane %v4351, %v4354
  %v4356 = vmul.f32 %v4335, %v4355
  %v4357 = vmul.f32 %v4336, %v4355
  %v4358 = vmul.f32 %v4337, %v4355
  %v4359 = vmul.f32 %v4338, %v4355
  %v4360 = vmul.f32 %v4339, %v4355
  %v4361 = vmul.f32 %v4340, %v4355
  %v4362 = vmul.f32 %v4341, %v4355
  %v4363 = vmul.f32 %v4342, %v4355
  %v4364 = vmul.f32 %v4343, %v4355
  %v4365 = vmul.f32 %v4344, %v4355
  %v4366 = vmul.f32 %v4345, %v4355
  %v4367 = vmul.f32 %v4346, %v4355
  %v4368 = vmul.f32 %v4347, %v4355
  %v4369 = vmul.f32 %v4348, %v4355
  %v4370 = vmul.f32 %v4349, %v4355
  %v4371 = vmul.f32 %v4350, %v4355
  %v4372 = vadd.f32 %v4319, %v4356
  %v4373 = vadd.f32 %v4320, %v4357
  %v4374 = vadd.f32 %v4321, %v4358
  %v4375 = vadd.f32 %v4322, %v4359
  %v4376 = vadd.f32 %v4323, %v4360
  %v4377 = vadd.f32 %v4324, %v4361
  %v4378 = vadd.f32 %v4325, %v4362
  %v4379 = vadd.f32 %v4326, %v4363
  %v4380 = vadd.f32 %v4327, %v4364
  %v4381 = vadd.f32 %v4328, %v4365
  %v4382 = vadd.f32 %v4329, %v4366
  %v4383 = vadd.f32 %v4330, %v4367
  %v4384 = vadd.f32 %v4331, %v4368
  %v4385 = vadd.f32 %v4332, %v4369
  %v4386 = vadd.f32 %v4333, %v4370
  %v4387 = vadd.f32 %v4334, %v4371
  %v4388 = vld [vmem:[%s4] sm:$0x1]
  %v4390 = vlaneseq
  %v4391 = vshrl.u32 %v4390, 7
  %v4392 = vsub.s32 0, %v4391
  %v4393 = vrot.slane %v4388, %v4392
  %v4395 = vadd.f32 %v4372, %v4393
  %v4396 = vadd.f32 %v4373, %v4393
  %v4397 = vadd.f32 %v4374, %v4393
  %v4398 = vadd.f32 %v4375, %v4393
  %v4399 = vadd.f32 %v4376, %v4393
  %v4400 = vadd.f32 %v4377, %v4393
  %v4401 = vadd.f32 %v4378, %v4393
  %v4402 = vadd.f32 %v4379, %v4393
  %v4403 = vadd.f32 %v4380, %v4393
  %v4404 = vadd.f32 %v4381, %v4393
  %v4405 = vadd.f32 %v4382, %v4393
  %v4406 = vadd.f32 %v4383, %v4393
  %v4407 = vadd.f32 %v4384, %v4393
  %v4408 = vadd.f32 %v4385, %v4393
  %v4409 = vadd.f32 %v4386, %v4393
  %v4410 = vadd.f32 %v4387, %v4393
  %v4411 = vpack.c.bf16 %v4396, %v4395
  %v4412 = vpack.c.bf16 %v4398, %v4397
  %v4413 = vpack.c.bf16 %v4400, %v4399
  %v4414 = vpack.c.bf16 %v4402, %v4401
  %v4415 = vpack.c.bf16 %v4404, %v4403
  %v4416 = vpack.c.bf16 %v4406, %v4405
  %v4417 = vpack.c.bf16 %v4408, %v4407
  %v4418 = vpack.c.bf16 %v4410, %v4409
  %v4427 = vunpack.c.l.b16 %v4411
  %v4428 = vunpack.c.h.b16 %v4411
  %v4429 = vunpack.c.l.b16 %v4412
  %v4430 = vunpack.c.h.b16 %v4412
  %v4431 = vunpack.c.l.b16 %v4413
  %v4432 = vunpack.c.h.b16 %v4413
  %v4433 = vunpack.c.l.b16 %v4414
  %v4434 = vunpack.c.h.b16 %v4414
  %v4435 = vunpack.c.l.b16 %v4415
  %v4436 = vunpack.c.h.b16 %v4415
  %v4437 = vunpack.c.l.b16 %v4416
  %v4438 = vunpack.c.h.b16 %v4416
  %v4439 = vunpack.c.l.b16 %v4417
  %v4440 = vunpack.c.h.b16 %v4417
  %v4441 = vunpack.c.l.b16 %v4418
  %v4442 = vunpack.c.h.b16 %v4418
  %v4443 = vpack.c.b16 %v4427, %v4427
  %v4444 = vpack.c.b16 %v4428, %v4428
  %v4445 = vpack.c.b16 %v4429, %v4429
  %v4446 = vpack.c.b16 %v4430, %v4430
  %v4447 = vpack.c.b16 %v4431, %v4431
  %v4448 = vpack.c.b16 %v4432, %v4432
  %v4449 = vpack.c.b16 %v4433, %v4433
  %v4450 = vpack.c.b16 %v4434, %v4434
  %v4451 = vpack.c.b16 %v4435, %v4435
  %v4452 = vpack.c.b16 %v4436, %v4436
  %v4453 = vpack.c.b16 %v4437, %v4437
  %v4454 = vpack.c.b16 %v4438, %v4438
  %v4455 = vpack.c.b16 %v4439, %v4439
  %v4456 = vpack.c.b16 %v4440, %v4440
  %v4457 = vpack.c.b16 %v4441, %v4441
  %v4458 = vpack.c.b16 %v4442, %v4442
  %4475 = vst [vmem:[#allocation4] sm:$0xf] %v4443
  %4476 = vst [vmem:[#allocation4 + $0x4] sm:$0xf] %v4444
  %4477 = vst [vmem:[#allocation4 + $0x8] sm:$0xf] %v4445
  %4478 = vst [vmem:[#allocation4 + $0xc] sm:$0xf] %v4446
  %4479 = vst [vmem:[#allocation4 + $0x10] sm:$0xf] %v4447
  %4480 = vst [vmem:[#allocation4 + $0x14] sm:$0xf] %v4448
  %4481 = vst [vmem:[#allocation4 + $0x18] sm:$0xf] %v4449
  %4482 = vst [vmem:[#allocation4 + $0x1c] sm:$0xf] %v4450
  %4483 = vst [vmem:[#allocation4 + $0x20] sm:$0xf] %v4451
  %4484 = vst [vmem:[#allocation4 + $0x24] sm:$0xf] %v4452
  %4485 = vst [vmem:[#allocation4 + $0x28] sm:$0xf] %v4453
  %4486 = vst [vmem:[#allocation4 + $0x2c] sm:$0xf] %v4454
  %4487 = vst [vmem:[#allocation4 + $0x30] sm:$0xf] %v4455
  %4488 = vst [vmem:[#allocation4 + $0x34] sm:$0xf] %v4456
  %4489 = vst [vmem:[#allocation4 + $0x38] sm:$0xf] %v4457
  %4490 = vst [vmem:[#allocation4 + $0x3c] sm:$0xf] %v4458
  %s4491 = scalar_lea.vmem [#allocation3], 320
  %v4492 = vld [vmem:[%s4491 + $0x2] sm:$0xff]
  %v4493 = vld [vmem:[%s4491 + $0xa] sm:$0xff]
  %v4494 = vld [vmem:[%s4491 + $0x22] sm:$0xff]
  %v4495 = vld [vmem:[%s4491 + $0x2a] sm:$0xff]
  %v4496 = vld [vmem:[%s4491 + $0x42] sm:$0xff]
  %v4497 = vld [vmem:[%s4491 + $0x4a] sm:$0xff]
  %v4498 = vld [vmem:[%s4491 + $0x62] sm:$0xff]
  %v4499 = vld [vmem:[%s4491 + $0x6a] sm:$0xff]
  %v4500 = vld [vmem:[%s4491 + $0x82] sm:$0xff]
  %v4501 = vld [vmem:[%s4491 + $0x8a] sm:$0xff]
  %v4502 = vld [vmem:[%s4491 + $0xa2] sm:$0xff]
  %v4503 = vld [vmem:[%s4491 + $0xaa] sm:$0xff]
  %v4504 = vld [vmem:[%s4491 + $0xc2] sm:$0xff]
  %v4505 = vld [vmem:[%s4491 + $0xca] sm:$0xff]
  %v4506 = vld [vmem:[%s4491 + $0xe2] sm:$0xff]
  %v4507 = vld [vmem:[%s4491 + $0xea] sm:$0xff]
  %v4508 = vld [vmem:[%s3] sm:$0x1]
  %v4509 = vlaneseq
  %v4510 = vshrl.u32 %v4509, 7
  %v4511 = vsub.s32 0, %v4510
  %v4512 = vrot.slane %v4508, %v4511
  %v4513 = vmul.f32 %v4492, %v4512
  %v4514 = vmul.f32 %v4493, %v4512
  %v4515 = vmul.f32 %v4494, %v4512
  %v4516 = vmul.f32 %v4495, %v4512
  %v4517 = vmul.f32 %v4496, %v4512
  %v4518 = vmul.f32 %v4497, %v4512
  %v4519 = vmul.f32 %v4498, %v4512
  %v4520 = vmul.f32 %v4499, %v4512
  %v4521 = vmul.f32 %v4500, %v4512
  %v4522 = vmul.f32 %v4501, %v4512
  %v4523 = vmul.f32 %v4502, %v4512
  %v4524 = vmul.f32 %v4503, %v4512
  %v4525 = vmul.f32 %v4504, %v4512
  %v4526 = vmul.f32 %v4505, %v4512
  %v4527 = vmul.f32 %v4506, %v4512
  %v4528 = vmul.f32 %v4507, %v4512
  %v4529 = vadd.f32 %v4513, 0.0
  %v4530 = vadd.f32 %v4514, 0.0
  %v4531 = vadd.f32 %v4515, 0.0
  %v4532 = vadd.f32 %v4516, 0.0
  %v4533 = vadd.f32 %v4517, 0.0
  %v4534 = vadd.f32 %v4518, 0.0
  %v4535 = vadd.f32 %v4519, 0.0
  %v4536 = vadd.f32 %v4520, 0.0
  %v4537 = vadd.f32 %v4521, 0.0
  %v4538 = vadd.f32 %v4522, 0.0
  %v4539 = vadd.f32 %v4523, 0.0
  %v4540 = vadd.f32 %v4524, 0.0
  %v4541 = vadd.f32 %v4525, 0.0
  %v4542 = vadd.f32 %v4526, 0.0
  %v4543 = vadd.f32 %v4527, 0.0
  %v4544 = vadd.f32 %v4528, 0.0
  %v4545 = vld [vmem:[%s4491 + $0x5] sm:$0xff]
  %v4546 = vld [vmem:[%s4491 + $0xd] sm:$0xff]
  %v4547 = vld [vmem:[%s4491 + $0x25] sm:$0xff]
  %v4548 = vld [vmem:[%s4491 + $0x2d] sm:$0xff]
  %v4549 = vld [vmem:[%s4491 + $0x45] sm:$0xff]
  %v4550 = vld [vmem:[%s4491 + $0x4d] sm:$0xff]
  %v4551 = vld [vmem:[%s4491 + $0x65] sm:$0xff]
  %v4552 = vld [vmem:[%s4491 + $0x6d] sm:$0xff]
  %v4553 = vld [vmem:[%s4491 + $0x85] sm:$0xff]
  %v4554 = vld [vmem:[%s4491 + $0x8d] sm:$0xff]
  %v4555 = vld [vmem:[%s4491 + $0xa5] sm:$0xff]
  %v4556 = vld [vmem:[%s4491 + $0xad] sm:$0xff]
  %v4557 = vld [vmem:[%s4491 + $0xc5] sm:$0xff]
  %v4558 = vld [vmem:[%s4491 + $0xcd] sm:$0xff]
  %v4559 = vld [vmem:[%s4491 + $0xe5] sm:$0xff]
  %v4560 = vld [vmem:[%s4491 + $0xed] sm:$0xff]
  %v4561 = vld [vmem:[%s3 + $0x1] sm:$0x1]
  %v4562 = vlaneseq
  %v4563 = vshrl.u32 %v4562, 7
  %v4564 = vsub.s32 0, %v4563
  %v4565 = vrot.slane %v4561, %v4564
  %v4566 = vmul.f32 %v4545, %v4565
  %v4567 = vmul.f32 %v4546, %v4565
  %v4568 = vmul.f32 %v4547, %v4565
  %v4569 = vmul.f32 %v4548, %v4565
  %v4570 = vmul.f32 %v4549, %v4565
  %v4571 = vmul.f32 %v4550, %v4565
  %v4572 = vmul.f32 %v4551, %v4565
  %v4573 = vmul.f32 %v4552, %v4565
  %v4574 = vmul.f32 %v4553, %v4565
  %v4575 = vmul.f32 %v4554, %v4565
  %v4576 = vmul.f32 %v4555, %v4565
  %v4577 = vmul.f32 %v4556, %v4565
  %v4578 = vmul.f32 %v4557, %v4565
  %v4579 = vmul.f32 %v4558, %v4565
  %v4580 = vmul.f32 %v4559, %v4565
  %v4581 = vmul.f32 %v4560, %v4565
  %v4582 = vadd.f32 %v4529, %v4566
  %v4583 = vadd.f32 %v4530, %v4567
  %v4584 = vadd.f32 %v4531, %v4568
  %v4585 = vadd.f32 %v4532, %v4569
  %v4586 = vadd.f32 %v4533, %v4570
  %v4587 = vadd.f32 %v4534, %v4571
  %v4588 = vadd.f32 %v4535, %v4572
  %v4589 = vadd.f32 %v4536, %v4573
  %v4590 = vadd.f32 %v4537, %v4574
  %v4591 = vadd.f32 %v4538, %v4575
  %v4592 = vadd.f32 %v4539, %v4576
  %v4593 = vadd.f32 %v4540, %v4577
  %v4594 = vadd.f32 %v4541, %v4578
  %v4595 = vadd.f32 %v4542, %v4579
  %v4596 = vadd.f32 %v4543, %v4580
  %v4597 = vadd.f32 %v4544, %v4581
  %v4598 = vld [vmem:[%s4491 + $0x8] sm:$0xff]
  %v4599 = vld [vmem:[%s4491 + $0x10] sm:$0xff]
  %v4600 = vld [vmem:[%s4491 + $0x28] sm:$0xff]
  %v4601 = vld [vmem:[%s4491 + $0x30] sm:$0xff]
  %v4602 = vld [vmem:[%s4491 + $0x48] sm:$0xff]
  %v4603 = vld [vmem:[%s4491 + $0x50] sm:$0xff]
  %v4604 = vld [vmem:[%s4491 + $0x68] sm:$0xff]
  %v4605 = vld [vmem:[%s4491 + $0x70] sm:$0xff]
  %v4606 = vld [vmem:[%s4491 + $0x88] sm:$0xff]
  %v4607 = vld [vmem:[%s4491 + $0x90] sm:$0xff]
  %v4608 = vld [vmem:[%s4491 + $0xa8] sm:$0xff]
  %v4609 = vld [vmem:[%s4491 + $0xb0] sm:$0xff]
  %v4610 = vld [vmem:[%s4491 + $0xc8] sm:$0xff]
  %v4611 = vld [vmem:[%s4491 + $0xd0] sm:$0xff]
  %v4612 = vld [vmem:[%s4491 + $0xe8] sm:$0xff]
  %v4613 = vld [vmem:[%s4491 + $0xf0] sm:$0xff]
  %v4614 = vld [vmem:[%s3 + $0x2] sm:$0x1]
  %v4615 = vlaneseq
  %v4616 = vshrl.u32 %v4615, 7
  %v4617 = vsub.s32 0, %v4616
  %v4618 = vrot.slane %v4614, %v4617
  %v4619 = vmul.f32 %v4598, %v4618
  %v4620 = vmul.f32 %v4599, %v4618
  %v4621 = vmul.f32 %v4600, %v4618
  %v4622 = vmul.f32 %v4601, %v4618
  %v4623 = vmul.f32 %v4602, %v4618
  %v4624 = vmul.f32 %v4603, %v4618
  %v4625 = vmul.f32 %v4604, %v4618
  %v4626 = vmul.f32 %v4605, %v4618
  %v4627 = vmul.f32 %v4606, %v4618
  %v4628 = vmul.f32 %v4607, %v4618
  %v4629 = vmul.f32 %v4608, %v4618
  %v4630 = vmul.f32 %v4609, %v4618
  %v4631 = vmul.f32 %v4610, %v4618
  %v4632 = vmul.f32 %v4611, %v4618
  %v4633 = vmul.f32 %v4612, %v4618
  %v4634 = vmul.f32 %v4613, %v4618
  %v4635 = vadd.f32 %v4582, %v4619
  %v4636 = vadd.f32 %v4583, %v4620
  %v4637 = vadd.f32 %v4584, %v4621
  %v4638 = vadd.f32 %v4585, %v4622
  %v4639 = vadd.f32 %v4586, %v4623
  %v4640 = vadd.f32 %v4587, %v4624
  %v4641 = vadd.f32 %v4588, %v4625
  %v4642 = vadd.f32 %v4589, %v4626
  %v4643 = vadd.f32 %v4590, %v4627
  %v4644 = vadd.f32 %v4591, %v4628
  %v4645 = vadd.f32 %v4592, %v4629
  %v4646 = vadd.f32 %v4593, %v4630
  %v4647 = vadd.f32 %v4594, %v4631
  %v4648 = vadd.f32 %v4595, %v4632
  %v4649 = vadd.f32 %v4596, %v4633
  %v4650 = vadd.f32 %v4597, %v4634
  %v4651 = vld [vmem:[%s4491 + $0xb] sm:$0xff]
  %v4652 = vld [vmem:[%s4491 + $0x13] sm:$0xff]
  %v4653 = vld [vmem:[%s4491 + $0x2b] sm:$0xff]
  %v4654 = vld [vmem:[%s4491 + $0x33] sm:$0xff]
  %v4655 = vld [vmem:[%s4491 + $0x4b] sm:$0xff]
  %v4656 = vld [vmem:[%s4491 + $0x53] sm:$0xff]
  %v4657 = vld [vmem:[%s4491 + $0x6b] sm:$0xff]
  %v4658 = vld [vmem:[%s4491 + $0x73] sm:$0xff]
  %v4659 = vld [vmem:[%s4491 + $0x8b] sm:$0xff]
  %v4660 = vld [vmem:[%s4491 + $0x93] sm:$0xff]
  %v4661 = vld [vmem:[%s4491 + $0xab] sm:$0xff]
  %v4662 = vld [vmem:[%s4491 + $0xb3] sm:$0xff]
  %v4663 = vld [vmem:[%s4491 + $0xcb] sm:$0xff]
  %v4664 = vld [vmem:[%s4491 + $0xd3] sm:$0xff]
  %v4665 = vld [vmem:[%s4491 + $0xeb] sm:$0xff]
  %v4666 = vld [vmem:[%s4491 + $0xf3] sm:$0xff]
  %v4667 = vld [vmem:[%s3 + $0x3] sm:$0x1]
  %v4668 = vlaneseq
  %v4669 = vshrl.u32 %v4668, 7
  %v4670 = vsub.s32 0, %v4669
  %v4671 = vrot.slane %v4667, %v4670
  %v4672 = vmul.f32 %v4651, %v4671
  %v4673 = vmul.f32 %v4652, %v4671
  %v4674 = vmul.f32 %v4653, %v4671
  %v4675 = vmul.f32 %v4654, %v4671
  %v4676 = vmul.f32 %v4655, %v4671
  %v4677 = vmul.f32 %v4656, %v4671
  %v4678 = vmul.f32 %v4657, %v4671
  %v4679 = vmul.f32 %v4658, %v4671
  %v4680 = vmul.f32 %v4659, %v4671
  %v4681 = vmul.f32 %v4660, %v4671
  %v4682 = vmul.f32 %v4661, %v4671
  %v4683 = vmul.f32 %v4662, %v4671
  %v4684 = vmul.f32 %v4663, %v4671
  %v4685 = vmul.f32 %v4664, %v4671
  %v4686 = vmul.f32 %v4665, %v4671
  %v4687 = vmul.f32 %v4666, %v4671
  %v4688 = vadd.f32 %v4635, %v4672
  %v4689 = vadd.f32 %v4636, %v4673
  %v4690 = vadd.f32 %v4637, %v4674
  %v4691 = vadd.f32 %v4638, %v4675
  %v4692 = vadd.f32 %v4639, %v4676
  %v4693 = vadd.f32 %v4640, %v4677
  %v4694 = vadd.f32 %v4641, %v4678
  %v4695 = vadd.f32 %v4642, %v4679
  %v4696 = vadd.f32 %v4643, %v4680
  %v4697 = vadd.f32 %v4644, %v4681
  %v4698 = vadd.f32 %v4645, %v4682
  %v4699 = vadd.f32 %v4646, %v4683
  %v4700 = vadd.f32 %v4647, %v4684
  %v4701 = vadd.f32 %v4648, %v4685
  %v4702 = vadd.f32 %v4649, %v4686
  %v4703 = vadd.f32 %v4650, %v4687
  %v4704 = vld [vmem:[%s4491 + $0xe] sm:$0xff]
  %v4705 = vld [vmem:[%s4491 + $0x16] sm:$0xff]
  %v4706 = vld [vmem:[%s4491 + $0x2e] sm:$0xff]
  %v4707 = vld [vmem:[%s4491 + $0x36] sm:$0xff]
  %v4708 = vld [vmem:[%s4491 + $0x4e] sm:$0xff]
  %v4709 = vld [vmem:[%s4491 + $0x56] sm:$0xff]
  %v4710 = vld [vmem:[%s4491 + $0x6e] sm:$0xff]
  %v4711 = vld [vmem:[%s4491 + $0x76] sm:$0xff]
  %v4712 = vld [vmem:[%s4491 + $0x8e] sm:$0xff]
  %v4713 = vld [vmem:[%s4491 + $0x96] sm:$0xff]
  %v4714 = vld [vmem:[%s4491 + $0xae] sm:$0xff]
  %v4715 = vld [vmem:[%s4491 + $0xb6] sm:$0xff]
  %v4716 = vld [vmem:[%s4491 + $0xce] sm:$0xff]
  %v4717 = vld [vmem:[%s4491 + $0xd6] sm:$0xff]
  %v4718 = vld [vmem:[%s4491 + $0xee] sm:$0xff]
  %v4719 = vld [vmem:[%s4491 + $0xf6] sm:$0xff]
  %v4720 = vld [vmem:[%s3 + $0x4] sm:$0x1]
  %v4721 = vlaneseq
  %v4722 = vshrl.u32 %v4721, 7
  %v4723 = vsub.s32 0, %v4722
  %v4724 = vrot.slane %v4720, %v4723
  %v4725 = vmul.f32 %v4704, %v4724
  %v4726 = vmul.f32 %v4705, %v4724
  %v4727 = vmul.f32 %v4706, %v4724
  %v4728 = vmul.f32 %v4707, %v4724
  %v4729 = vmul.f32 %v4708, %v4724
  %v4730 = vmul.f32 %v4709, %v4724
  %v4731 = vmul.f32 %v4710, %v4724
  %v4732 = vmul.f32 %v4711, %v4724
  %v4733 = vmul.f32 %v4712, %v4724
  %v4734 = vmul.f32 %v4713, %v4724
  %v4735 = vmul.f32 %v4714, %v4724
  %v4736 = vmul.f32 %v4715, %v4724
  %v4737 = vmul.f32 %v4716, %v4724
  %v4738 = vmul.f32 %v4717, %v4724
  %v4739 = vmul.f32 %v4718, %v4724
  %v4740 = vmul.f32 %v4719, %v4724
  %v4741 = vadd.f32 %v4688, %v4725
  %v4742 = vadd.f32 %v4689, %v4726
  %v4743 = vadd.f32 %v4690, %v4727
  %v4744 = vadd.f32 %v4691, %v4728
  %v4745 = vadd.f32 %v4692, %v4729
  %v4746 = vadd.f32 %v4693, %v4730
  %v4747 = vadd.f32 %v4694, %v4731
  %v4748 = vadd.f32 %v4695, %v4732
  %v4749 = vadd.f32 %v4696, %v4733
  %v4750 = vadd.f32 %v4697, %v4734
  %v4751 = vadd.f32 %v4698, %v4735
  %v4752 = vadd.f32 %v4699, %v4736
  %v4753 = vadd.f32 %v4700, %v4737
  %v4754 = vadd.f32 %v4701, %v4738
  %v4755 = vadd.f32 %v4702, %v4739
  %v4756 = vadd.f32 %v4703, %v4740
  %s4757 = scalar_lea.vmem [#allocation3], 416
  %v4758 = vld [vmem:[%s4757 + $0x2] sm:$0xff]
  %v4759 = vld [vmem:[%s4757 + $0xa] sm:$0xff]
  %v4760 = vld [vmem:[%s4757 + $0x22] sm:$0xff]
  %v4761 = vld [vmem:[%s4757 + $0x2a] sm:$0xff]
  %v4762 = vld [vmem:[%s4757 + $0x42] sm:$0xff]
  %v4763 = vld [vmem:[%s4757 + $0x4a] sm:$0xff]
  %v4764 = vld [vmem:[%s4757 + $0x62] sm:$0xff]
  %v4765 = vld [vmem:[%s4757 + $0x6a] sm:$0xff]
  %v4766 = vld [vmem:[%s4757 + $0x82] sm:$0xff]
  %v4767 = vld [vmem:[%s4757 + $0x8a] sm:$0xff]
  %v4768 = vld [vmem:[%s4757 + $0xa2] sm:$0xff]
  %v4769 = vld [vmem:[%s4757 + $0xaa] sm:$0xff]
  %v4770 = vld [vmem:[%s4757 + $0xc2] sm:$0xff]
  %v4771 = vld [vmem:[%s4757 + $0xca] sm:$0xff]
  %v4772 = vld [vmem:[%s4757 + $0xe2] sm:$0xff]
  %v4773 = vld [vmem:[%s4757 + $0xea] sm:$0xff]
  %v4774 = vld [vmem:[%s3 + $0x5] sm:$0x1]
  %v4775 = vlaneseq
  %v4776 = vshrl.u32 %v4775, 7
  %v4777 = vsub.s32 0, %v4776
  %v4778 = vrot.slane %v4774, %v4777
  %v4779 = vmul.f32 %v4758, %v4778
  %v4780 = vmul.f32 %v4759, %v4778
  %v4781 = vmul.f32 %v4760, %v4778
  %v4782 = vmul.f32 %v4761, %v4778
  %v4783 = vmul.f32 %v4762, %v4778
  %v4784 = vmul.f32 %v4763, %v4778
  %v4785 = vmul.f32 %v4764, %v4778
  %v4786 = vmul.f32 %v4765, %v4778
  %v4787 = vmul.f32 %v4766, %v4778
  %v4788 = vmul.f32 %v4767, %v4778
  %v4789 = vmul.f32 %v4768, %v4778
  %v4790 = vmul.f32 %v4769, %v4778
  %v4791 = vmul.f32 %v4770, %v4778
  %v4792 = vmul.f32 %v4771, %v4778
  %v4793 = vmul.f32 %v4772, %v4778
  %v4794 = vmul.f32 %v4773, %v4778
  %v4795 = vadd.f32 %v4741, %v4779
  %v4796 = vadd.f32 %v4742, %v4780
  %v4797 = vadd.f32 %v4743, %v4781
  %v4798 = vadd.f32 %v4744, %v4782
  %v4799 = vadd.f32 %v4745, %v4783
  %v4800 = vadd.f32 %v4746, %v4784
  %v4801 = vadd.f32 %v4747, %v4785
  %v4802 = vadd.f32 %v4748, %v4786
  %v4803 = vadd.f32 %v4749, %v4787
  %v4804 = vadd.f32 %v4750, %v4788
  %v4805 = vadd.f32 %v4751, %v4789
  %v4806 = vadd.f32 %v4752, %v4790
  %v4807 = vadd.f32 %v4753, %v4791
  %v4808 = vadd.f32 %v4754, %v4792
  %v4809 = vadd.f32 %v4755, %v4793
  %v4810 = vadd.f32 %v4756, %v4794
  %v4811 = vld [vmem:[%s4757 + $0x5] sm:$0xff]
  %v4812 = vld [vmem:[%s4757 + $0xd] sm:$0xff]
  %v4813 = vld [vmem:[%s4757 + $0x25] sm:$0xff]
  %v4814 = vld [vmem:[%s4757 + $0x2d] sm:$0xff]
  %v4815 = vld [vmem:[%s4757 + $0x45] sm:$0xff]
  %v4816 = vld [vmem:[%s4757 + $0x4d] sm:$0xff]
  %v4817 = vld [vmem:[%s4757 + $0x65] sm:$0xff]
  %v4818 = vld [vmem:[%s4757 + $0x6d] sm:$0xff]
  %v4819 = vld [vmem:[%s4757 + $0x85] sm:$0xff]
  %v4820 = vld [vmem:[%s4757 + $0x8d] sm:$0xff]
  %v4821 = vld [vmem:[%s4757 + $0xa5] sm:$0xff]
  %v4822 = vld [vmem:[%s4757 + $0xad] sm:$0xff]
  %v4823 = vld [vmem:[%s4757 + $0xc5] sm:$0xff]
  %v4824 = vld [vmem:[%s4757 + $0xcd] sm:$0xff]
  %v4825 = vld [vmem:[%s4757 + $0xe5] sm:$0xff]
  %v4826 = vld [vmem:[%s4757 + $0xed] sm:$0xff]
  %v4827 = vld [vmem:[%s3 + $0x6] sm:$0x1]
  %v4828 = vlaneseq
  %v4829 = vshrl.u32 %v4828, 7
  %v4830 = vsub.s32 0, %v4829
  %v4831 = vrot.slane %v4827, %v4830
  %v4832 = vmul.f32 %v4811, %v4831
  %v4833 = vmul.f32 %v4812, %v4831
  %v4834 = vmul.f32 %v4813, %v4831
  %v4835 = vmul.f32 %v4814, %v4831
  %v4836 = vmul.f32 %v4815, %v4831
  %v4837 = vmul.f32 %v4816, %v4831
  %v4838 = vmul.f32 %v4817, %v4831
  %v4839 = vmul.f32 %v4818, %v4831
  %v4840 = vmul.f32 %v4819, %v4831
  %v4841 = vmul.f32 %v4820, %v4831
  %v4842 = vmul.f32 %v4821, %v4831
  %v4843 = vmul.f32 %v4822, %v4831
  %v4844 = vmul.f32 %v4823, %v4831
  %v4845 = vmul.f32 %v4824, %v4831
  %v4846 = vmul.f32 %v4825, %v4831
  %v4847 = vmul.f32 %v4826, %v4831
  %v4848 = vadd.f32 %v4795, %v4832
  %v4849 = vadd.f32 %v4796, %v4833
  %v4850 = vadd.f32 %v4797, %v4834
  %v4851 = vadd.f32 %v4798, %v4835
  %v4852 = vadd.f32 %v4799, %v4836
  %v4853 = vadd.f32 %v4800, %v4837
  %v4854 = vadd.f32 %v4801, %v4838
  %v4855 = vadd.f32 %v4802, %v4839
  %v4856 = vadd.f32 %v4803, %v4840
  %v4857 = vadd.f32 %v4804, %v4841
  %v4858 = vadd.f32 %v4805, %v4842
  %v4859 = vadd.f32 %v4806, %v4843
  %v4860 = vadd.f32 %v4807, %v4844
  %v4861 = vadd.f32 %v4808, %v4845
  %v4862 = vadd.f32 %v4809, %v4846
  %v4863 = vadd.f32 %v4810, %v4847
  %v4864 = vld [vmem:[%s4757 + $0x8] sm:$0xff]
  %v4865 = vld [vmem:[%s4757 + $0x10] sm:$0xff]
  %v4866 = vld [vmem:[%s4757 + $0x28] sm:$0xff]
  %v4867 = vld [vmem:[%s4757 + $0x30] sm:$0xff]
  %v4868 = vld [vmem:[%s4757 + $0x48] sm:$0xff]
  %v4869 = vld [vmem:[%s4757 + $0x50] sm:$0xff]
  %v4870 = vld [vmem:[%s4757 + $0x68] sm:$0xff]
  %v4871 = vld [vmem:[%s4757 + $0x70] sm:$0xff]
  %v4872 = vld [vmem:[%s4757 + $0x88] sm:$0xff]
  %v4873 = vld [vmem:[%s4757 + $0x90] sm:$0xff]
  %v4874 = vld [vmem:[%s4757 + $0xa8] sm:$0xff]
  %v4875 = vld [vmem:[%s4757 + $0xb0] sm:$0xff]
  %v4876 = vld [vmem:[%s4757 + $0xc8] sm:$0xff]
  %v4877 = vld [vmem:[%s4757 + $0xd0] sm:$0xff]
  %v4878 = vld [vmem:[%s4757 + $0xe8] sm:$0xff]
  %v4879 = vld [vmem:[%s4757 + $0xf0] sm:$0xff]
  %v4880 = vld [vmem:[%s3 + $0x7] sm:$0x1]
  %v4881 = vlaneseq
  %v4882 = vshrl.u32 %v4881, 7
  %v4883 = vsub.s32 0, %v4882
  %v4884 = vrot.slane %v4880, %v4883
  %v4885 = vmul.f32 %v4864, %v4884
  %v4886 = vmul.f32 %v4865, %v4884
  %v4887 = vmul.f32 %v4866, %v4884
  %v4888 = vmul.f32 %v4867, %v4884
  %v4889 = vmul.f32 %v4868, %v4884
  %v4890 = vmul.f32 %v4869, %v4884
  %v4891 = vmul.f32 %v4870, %v4884
  %v4892 = vmul.f32 %v4871, %v4884
  %v4893 = vmul.f32 %v4872, %v4884
  %v4894 = vmul.f32 %v4873, %v4884
  %v4895 = vmul.f32 %v4874, %v4884
  %v4896 = vmul.f32 %v4875, %v4884
  %v4897 = vmul.f32 %v4876, %v4884
  %v4898 = vmul.f32 %v4877, %v4884
  %v4899 = vmul.f32 %v4878, %v4884
  %v4900 = vmul.f32 %v4879, %v4884
  %v4901 = vadd.f32 %v4848, %v4885
  %v4902 = vadd.f32 %v4849, %v4886
  %v4903 = vadd.f32 %v4850, %v4887
  %v4904 = vadd.f32 %v4851, %v4888
  %v4905 = vadd.f32 %v4852, %v4889
  %v4906 = vadd.f32 %v4853, %v4890
  %v4907 = vadd.f32 %v4854, %v4891
  %v4908 = vadd.f32 %v4855, %v4892
  %v4909 = vadd.f32 %v4856, %v4893
  %v4910 = vadd.f32 %v4857, %v4894
  %v4911 = vadd.f32 %v4858, %v4895
  %v4912 = vadd.f32 %v4859, %v4896
  %v4913 = vadd.f32 %v4860, %v4897
  %v4914 = vadd.f32 %v4861, %v4898
  %v4915 = vadd.f32 %v4862, %v4899
  %v4916 = vadd.f32 %v4863, %v4900
  %v4917 = vld [vmem:[%s4757 + $0xb] sm:$0xff]
  %v4918 = vld [vmem:[%s4757 + $0x13] sm:$0xff]
  %v4919 = vld [vmem:[%s4757 + $0x2b] sm:$0xff]
  %v4920 = vld [vmem:[%s4757 + $0x33] sm:$0xff]
  %v4921 = vld [vmem:[%s4757 + $0x4b] sm:$0xff]
  %v4922 = vld [vmem:[%s4757 + $0x53] sm:$0xff]
  %v4923 = vld [vmem:[%s4757 + $0x6b] sm:$0xff]
  %v4924 = vld [vmem:[%s4757 + $0x73] sm:$0xff]
  %v4925 = vld [vmem:[%s4757 + $0x8b] sm:$0xff]
  %v4926 = vld [vmem:[%s4757 + $0x93] sm:$0xff]
  %v4927 = vld [vmem:[%s4757 + $0xab] sm:$0xff]
  %v4928 = vld [vmem:[%s4757 + $0xb3] sm:$0xff]
  %v4929 = vld [vmem:[%s4757 + $0xcb] sm:$0xff]
  %v4930 = vld [vmem:[%s4757 + $0xd3] sm:$0xff]
  %v4931 = vld [vmem:[%s4757 + $0xeb] sm:$0xff]
  %v4932 = vld [vmem:[%s4757 + $0xf3] sm:$0xff]
  %v4933 = vld [vmem:[%s3 + $0x8] sm:$0x1]
  %v4934 = vlaneseq
  %v4935 = vshrl.u32 %v4934, 7
  %v4936 = vsub.s32 0, %v4935
  %v4937 = vrot.slane %v4933, %v4936
  %v4938 = vmul.f32 %v4917, %v4937
  %v4939 = vmul.f32 %v4918, %v4937
  %v4940 = vmul.f32 %v4919, %v4937
  %v4941 = vmul.f32 %v4920, %v4937
  %v4942 = vmul.f32 %v4921, %v4937
  %v4943 = vmul.f32 %v4922, %v4937
  %v4944 = vmul.f32 %v4923, %v4937
  %v4945 = vmul.f32 %v4924, %v4937
  %v4946 = vmul.f32 %v4925, %v4937
  %v4947 = vmul.f32 %v4926, %v4937
  %v4948 = vmul.f32 %v4927, %v4937
  %v4949 = vmul.f32 %v4928, %v4937
  %v4950 = vmul.f32 %v4929, %v4937
  %v4951 = vmul.f32 %v4930, %v4937
  %v4952 = vmul.f32 %v4931, %v4937
  %v4953 = vmul.f32 %v4932, %v4937
  %v4954 = vadd.f32 %v4901, %v4938
  %v4955 = vadd.f32 %v4902, %v4939
  %v4956 = vadd.f32 %v4903, %v4940
  %v4957 = vadd.f32 %v4904, %v4941
  %v4958 = vadd.f32 %v4905, %v4942
  %v4959 = vadd.f32 %v4906, %v4943
  %v4960 = vadd.f32 %v4907, %v4944
  %v4961 = vadd.f32 %v4908, %v4945
  %v4962 = vadd.f32 %v4909, %v4946
  %v4963 = vadd.f32 %v4910, %v4947
  %v4964 = vadd.f32 %v4911, %v4948
  %v4965 = vadd.f32 %v4912, %v4949
  %v4966 = vadd.f32 %v4913, %v4950
  %v4967 = vadd.f32 %v4914, %v4951
  %v4968 = vadd.f32 %v4915, %v4952
  %v4969 = vadd.f32 %v4916, %v4953
  %v4970 = vld [vmem:[%s4757 + $0xe] sm:$0xff]
  %v4971 = vld [vmem:[%s4757 + $0x16] sm:$0xff]
  %v4972 = vld [vmem:[%s4757 + $0x2e] sm:$0xff]
  %v4973 = vld [vmem:[%s4757 + $0x36] sm:$0xff]
  %v4974 = vld [vmem:[%s4757 + $0x4e] sm:$0xff]
  %v4975 = vld [vmem:[%s4757 + $0x56] sm:$0xff]
  %v4976 = vld [vmem:[%s4757 + $0x6e] sm:$0xff]
  %v4977 = vld [vmem:[%s4757 + $0x76] sm:$0xff]
  %v4978 = vld [vmem:[%s4757 + $0x8e] sm:$0xff]
  %v4979 = vld [vmem:[%s4757 + $0x96] sm:$0xff]
  %v4980 = vld [vmem:[%s4757 + $0xae] sm:$0xff]
  %v4981 = vld [vmem:[%s4757 + $0xb6] sm:$0xff]
  %v4982 = vld [vmem:[%s4757 + $0xce] sm:$0xff]
  %v4983 = vld [vmem:[%s4757 + $0xd6] sm:$0xff]
  %v4984 = vld [vmem:[%s4757 + $0xee] sm:$0xff]
  %v4985 = vld [vmem:[%s4757 + $0xf6] sm:$0xff]
  %v4986 = vld [vmem:[%s3 + $0x9] sm:$0x1]
  %v4987 = vlaneseq
  %v4988 = vshrl.u32 %v4987, 7
  %v4989 = vsub.s32 0, %v4988
  %v4990 = vrot.slane %v4986, %v4989
  %v4991 = vmul.f32 %v4970, %v4990
  %v4992 = vmul.f32 %v4971, %v4990
  %v4993 = vmul.f32 %v4972, %v4990
  %v4994 = vmul.f32 %v4973, %v4990
  %v4995 = vmul.f32 %v4974, %v4990
  %v4996 = vmul.f32 %v4975, %v4990
  %v4997 = vmul.f32 %v4976, %v4990
  %v4998 = vmul.f32 %v4977, %v4990
  %v4999 = vmul.f32 %v4978, %v4990
  %v5000 = vmul.f32 %v4979, %v4990
  %v5001 = vmul.f32 %v4980, %v4990
  %v5002 = vmul.f32 %v4981, %v4990
  %v5003 = vmul.f32 %v4982, %v4990
  %v5004 = vmul.f32 %v4983, %v4990
  %v5005 = vmul.f32 %v4984, %v4990
  %v5006 = vmul.f32 %v4985, %v4990
  %v5007 = vadd.f32 %v4954, %v4991
  %v5008 = vadd.f32 %v4955, %v4992
  %v5009 = vadd.f32 %v4956, %v4993
  %v5010 = vadd.f32 %v4957, %v4994
  %v5011 = vadd.f32 %v4958, %v4995
  %v5012 = vadd.f32 %v4959, %v4996
  %v5013 = vadd.f32 %v4960, %v4997
  %v5014 = vadd.f32 %v4961, %v4998
  %v5015 = vadd.f32 %v4962, %v4999
  %v5016 = vadd.f32 %v4963, %v5000
  %v5017 = vadd.f32 %v4964, %v5001
  %v5018 = vadd.f32 %v4965, %v5002
  %v5019 = vadd.f32 %v4966, %v5003
  %v5020 = vadd.f32 %v4967, %v5004
  %v5021 = vadd.f32 %v4968, %v5005
  %v5022 = vadd.f32 %v4969, %v5006
  %v5023 = vld [vmem:[%s3042 + $0x2] sm:$0xff]
  %v5024 = vld [vmem:[%s3042 + $0xa] sm:$0xff]
  %v5025 = vld [vmem:[%s3042 + $0x22] sm:$0xff]
  %v5026 = vld [vmem:[%s3042 + $0x2a] sm:$0xff]
  %v5027 = vld [vmem:[%s3042 + $0x42] sm:$0xff]
  %v5028 = vld [vmem:[%s3042 + $0x4a] sm:$0xff]
  %v5029 = vld [vmem:[%s3042 + $0x62] sm:$0xff]
  %v5030 = vld [vmem:[%s3042 + $0x6a] sm:$0xff]
  %v5031 = vld [vmem:[%s3042 + $0x82] sm:$0xff]
  %v5032 = vld [vmem:[%s3042 + $0x8a] sm:$0xff]
  %v5033 = vld [vmem:[%s3042 + $0xa2] sm:$0xff]
  %v5034 = vld [vmem:[%s3042 + $0xaa] sm:$0xff]
  %v5035 = vld [vmem:[%s3042 + $0xc2] sm:$0xff]
  %v5036 = vld [vmem:[%s3042 + $0xca] sm:$0xff]
  %v5037 = vld [vmem:[%s3042 + $0xe2] sm:$0xff]
  %v5038 = vld [vmem:[%s3042 + $0xea] sm:$0xff]
  %v5039 = vld [vmem:[%s3 + $0xa] sm:$0x1]
  %v5040 = vlaneseq
  %v5041 = vshrl.u32 %v5040, 7
  %v5042 = vsub.s32 0, %v5041
  %v5043 = vrot.slane %v5039, %v5042
  %v5044 = vmul.f32 %v5023, %v5043
  %v5045 = vmul.f32 %v5024, %v5043
  %v5046 = vmul.f32 %v5025, %v5043
  %v5047 = vmul.f32 %v5026, %v5043
  %v5048 = vmul.f32 %v5027, %v5043
  %v5049 = vmul.f32 %v5028, %v5043
  %v5050 = vmul.f32 %v5029, %v5043
  %v5051 = vmul.f32 %v5030, %v5043
  %v5052 = vmul.f32 %v5031, %v5043
  %v5053 = vmul.f32 %v5032, %v5043
  %v5054 = vmul.f32 %v5033, %v5043
  %v5055 = vmul.f32 %v5034, %v5043
  %v5056 = vmul.f32 %v5035, %v5043
  %v5057 = vmul.f32 %v5036, %v5043
  %v5058 = vmul.f32 %v5037, %v5043
  %v5059 = vmul.f32 %v5038, %v5043
  %v5060 = vadd.f32 %v5007, %v5044
  %v5061 = vadd.f32 %v5008, %v5045
  %v5062 = vadd.f32 %v5009, %v5046
  %v5063 = vadd.f32 %v5010, %v5047
  %v5064 = vadd.f32 %v5011, %v5048
  %v5065 = vadd.f32 %v5012, %v5049
  %v5066 = vadd.f32 %v5013, %v5050
  %v5067 = vadd.f32 %v5014, %v5051
  %v5068 = vadd.f32 %v5015, %v5052
  %v5069 = vadd.f32 %v5016, %v5053
  %v5070 = vadd.f32 %v5017, %v5054
  %v5071 = vadd.f32 %v5018, %v5055
  %v5072 = vadd.f32 %v5019, %v5056
  %v5073 = vadd.f32 %v5020, %v5057
  %v5074 = vadd.f32 %v5021, %v5058
  %v5075 = vadd.f32 %v5022, %v5059
  %v5076 = vld [vmem:[%s3042 + $0x5] sm:$0xff]
  %v5077 = vld [vmem:[%s3042 + $0xd] sm:$0xff]
  %v5078 = vld [vmem:[%s3042 + $0x25] sm:$0xff]
  %v5079 = vld [vmem:[%s3042 + $0x2d] sm:$0xff]
  %v5080 = vld [vmem:[%s3042 + $0x45] sm:$0xff]
  %v5081 = vld [vmem:[%s3042 + $0x4d] sm:$0xff]
  %v5082 = vld [vmem:[%s3042 + $0x65] sm:$0xff]
  %v5083 = vld [vmem:[%s3042 + $0x6d] sm:$0xff]
  %v5084 = vld [vmem:[%s3042 + $0x85] sm:$0xff]
  %v5085 = vld [vmem:[%s3042 + $0x8d] sm:$0xff]
  %v5086 = vld [vmem:[%s3042 + $0xa5] sm:$0xff]
  %v5087 = vld [vmem:[%s3042 + $0xad] sm:$0xff]
  %v5088 = vld [vmem:[%s3042 + $0xc5] sm:$0xff]
  %v5089 = vld [vmem:[%s3042 + $0xcd] sm:$0xff]
  %v5090 = vld [vmem:[%s3042 + $0xe5] sm:$0xff]
  %v5091 = vld [vmem:[%s3042 + $0xed] sm:$0xff]
  %v5092 = vld [vmem:[%s3 + $0xb] sm:$0x1]
  %v5093 = vlaneseq
  %v5094 = vshrl.u32 %v5093, 7
  %v5095 = vsub.s32 0, %v5094
  %v5096 = vrot.slane %v5092, %v5095
  %v5097 = vmul.f32 %v5076, %v5096
  %v5098 = vmul.f32 %v5077, %v5096
  %v5099 = vmul.f32 %v5078, %v5096
  %v5100 = vmul.f32 %v5079, %v5096
  %v5101 = vmul.f32 %v5080, %v5096
  %v5102 = vmul.f32 %v5081, %v5096
  %v5103 = vmul.f32 %v5082, %v5096
  %v5104 = vmul.f32 %v5083, %v5096
  %v5105 = vmul.f32 %v5084, %v5096
  %v5106 = vmul.f32 %v5085, %v5096
  %v5107 = vmul.f32 %v5086, %v5096
  %v5108 = vmul.f32 %v5087, %v5096
  %v5109 = vmul.f32 %v5088, %v5096
  %v5110 = vmul.f32 %v5089, %v5096
  %v5111 = vmul.f32 %v5090, %v5096
  %v5112 = vmul.f32 %v5091, %v5096
  %v5113 = vadd.f32 %v5060, %v5097
  %v5114 = vadd.f32 %v5061, %v5098
  %v5115 = vadd.f32 %v5062, %v5099
  %v5116 = vadd.f32 %v5063, %v5100
  %v5117 = vadd.f32 %v5064, %v5101
  %v5118 = vadd.f32 %v5065, %v5102
  %v5119 = vadd.f32 %v5066, %v5103
  %v5120 = vadd.f32 %v5067, %v5104
  %v5121 = vadd.f32 %v5068, %v5105
  %v5122 = vadd.f32 %v5069, %v5106
  %v5123 = vadd.f32 %v5070, %v5107
  %v5124 = vadd.f32 %v5071, %v5108
  %v5125 = vadd.f32 %v5072, %v5109
  %v5126 = vadd.f32 %v5073, %v5110
  %v5127 = vadd.f32 %v5074, %v5111
  %v5128 = vadd.f32 %v5075, %v5112
  %v5129 = vld [vmem:[%s3042 + $0x8] sm:$0xff]
  %v5130 = vld [vmem:[%s3042 + $0x10] sm:$0xff]
  %v5131 = vld [vmem:[%s3042 + $0x28] sm:$0xff]
  %v5132 = vld [vmem:[%s3042 + $0x30] sm:$0xff]
  %v5133 = vld [vmem:[%s3042 + $0x48] sm:$0xff]
  %v5134 = vld [vmem:[%s3042 + $0x50] sm:$0xff]
  %v5135 = vld [vmem:[%s3042 + $0x68] sm:$0xff]
  %v5136 = vld [vmem:[%s3042 + $0x70] sm:$0xff]
  %v5137 = vld [vmem:[%s3042 + $0x88] sm:$0xff]
  %v5138 = vld [vmem:[%s3042 + $0x90] sm:$0xff]
  %v5139 = vld [vmem:[%s3042 + $0xa8] sm:$0xff]
  %v5140 = vld [vmem:[%s3042 + $0xb0] sm:$0xff]
  %v5141 = vld [vmem:[%s3042 + $0xc8] sm:$0xff]
  %v5142 = vld [vmem:[%s3042 + $0xd0] sm:$0xff]
  %v5143 = vld [vmem:[%s3042 + $0xe8] sm:$0xff]
  %v5144 = vld [vmem:[%s3042 + $0xf0] sm:$0xff]
  %v5145 = vld [vmem:[%s3 + $0xc] sm:$0x1]
  %v5146 = vlaneseq
  %v5147 = vshrl.u32 %v5146, 7
  %v5148 = vsub.s32 0, %v5147
  %v5149 = vrot.slane %v5145, %v5148
  %v5150 = vmul.f32 %v5129, %v5149
  %v5151 = vmul.f32 %v5130, %v5149
  %v5152 = vmul.f32 %v5131, %v5149
  %v5153 = vmul.f32 %v5132, %v5149
  %v5154 = vmul.f32 %v5133, %v5149
  %v5155 = vmul.f32 %v5134, %v5149
  %v5156 = vmul.f32 %v5135, %v5149
  %v5157 = vmul.f32 %v5136, %v5149
  %v5158 = vmul.f32 %v5137, %v5149
  %v5159 = vmul.f32 %v5138, %v5149
  %v5160 = vmul.f32 %v5139, %v5149
  %v5161 = vmul.f32 %v5140, %v5149
  %v5162 = vmul.f32 %v5141, %v5149
  %v5163 = vmul.f32 %v5142, %v5149
  %v5164 = vmul.f32 %v5143, %v5149
  %v5165 = vmul.f32 %v5144, %v5149
  %v5166 = vadd.f32 %v5113, %v5150
  %v5167 = vadd.f32 %v5114, %v5151
  %v5168 = vadd.f32 %v5115, %v5152
  %v5169 = vadd.f32 %v5116, %v5153
  %v5170 = vadd.f32 %v5117, %v5154
  %v5171 = vadd.f32 %v5118, %v5155
  %v5172 = vadd.f32 %v5119, %v5156
  %v5173 = vadd.f32 %v5120, %v5157
  %v5174 = vadd.f32 %v5121, %v5158
  %v5175 = vadd.f32 %v5122, %v5159
  %v5176 = vadd.f32 %v5123, %v5160
  %v5177 = vadd.f32 %v5124, %v5161
  %v5178 = vadd.f32 %v5125, %v5162
  %v5179 = vadd.f32 %v5126, %v5163
  %v5180 = vadd.f32 %v5127, %v5164
  %v5181 = vadd.f32 %v5128, %v5165
  %v5182 = vld [vmem:[%s3042 + $0xb] sm:$0xff]
  %v5183 = vld [vmem:[%s3042 + $0x13] sm:$0xff]
  %v5184 = vld [vmem:[%s3042 + $0x2b] sm:$0xff]
  %v5185 = vld [vmem:[%s3042 + $0x33] sm:$0xff]
  %v5186 = vld [vmem:[%s3042 + $0x4b] sm:$0xff]
  %v5187 = vld [vmem:[%s3042 + $0x53] sm:$0xff]
  %v5188 = vld [vmem:[%s3042 + $0x6b] sm:$0xff]
  %v5189 = vld [vmem:[%s3042 + $0x73] sm:$0xff]
  %v5190 = vld [vmem:[%s3042 + $0x8b] sm:$0xff]
  %v5191 = vld [vmem:[%s3042 + $0x93] sm:$0xff]
  %v5192 = vld [vmem:[%s3042 + $0xab] sm:$0xff]
  %v5193 = vld [vmem:[%s3042 + $0xb3] sm:$0xff]
  %v5194 = vld [vmem:[%s3042 + $0xcb] sm:$0xff]
  %v5195 = vld [vmem:[%s3042 + $0xd3] sm:$0xff]
  %v5196 = vld [vmem:[%s3042 + $0xeb] sm:$0xff]
  %v5197 = vld [vmem:[%s3042 + $0xf3] sm:$0xff]
  %v5198 = vld [vmem:[%s3 + $0xd] sm:$0x1]
  %v5199 = vlaneseq
  %v5200 = vshrl.u32 %v5199, 7
  %v5201 = vsub.s32 0, %v5200
  %v5202 = vrot.slane %v5198, %v5201
  %v5203 = vmul.f32 %v5182, %v5202
  %v5204 = vmul.f32 %v5183, %v5202
  %v5205 = vmul.f32 %v5184, %v5202
  %v5206 = vmul.f32 %v5185, %v5202
  %v5207 = vmul.f32 %v5186, %v5202
  %v5208 = vmul.f32 %v5187, %v5202
  %v5209 = vmul.f32 %v5188, %v5202
  %v5210 = vmul.f32 %v5189, %v5202
  %v5211 = vmul.f32 %v5190, %v5202
  %v5212 = vmul.f32 %v5191, %v5202
  %v5213 = vmul.f32 %v5192, %v5202
  %v5214 = vmul.f32 %v5193, %v5202
  %v5215 = vmul.f32 %v5194, %v5202
  %v5216 = vmul.f32 %v5195, %v5202
  %v5217 = vmul.f32 %v5196, %v5202
  %v5218 = vmul.f32 %v5197, %v5202
  %v5219 = vadd.f32 %v5166, %v5203
  %v5220 = vadd.f32 %v5167, %v5204
  %v5221 = vadd.f32 %v5168, %v5205
  %v5222 = vadd.f32 %v5169, %v5206
  %v5223 = vadd.f32 %v5170, %v5207
  %v5224 = vadd.f32 %v5171, %v5208
  %v5225 = vadd.f32 %v5172, %v5209
  %v5226 = vadd.f32 %v5173, %v5210
  %v5227 = vadd.f32 %v5174, %v5211
  %v5228 = vadd.f32 %v5175, %v5212
  %v5229 = vadd.f32 %v5176, %v5213
  %v5230 = vadd.f32 %v5177, %v5214
  %v5231 = vadd.f32 %v5178, %v5215
  %v5232 = vadd.f32 %v5179, %v5216
  %v5233 = vadd.f32 %v5180, %v5217
  %v5234 = vadd.f32 %v5181, %v5218
  %v5235 = vld [vmem:[%s3042 + $0xe] sm:$0xff]
  %v5236 = vld [vmem:[%s3042 + $0x16] sm:$0xff]
  %v5237 = vld [vmem:[%s3042 + $0x2e] sm:$0xff]
  %v5238 = vld [vmem:[%s3042 + $0x36] sm:$0xff]
  %v5239 = vld [vmem:[%s3042 + $0x4e] sm:$0xff]
  %v5240 = vld [vmem:[%s3042 + $0x56] sm:$0xff]
  %v5241 = vld [vmem:[%s3042 + $0x6e] sm:$0xff]
  %v5242 = vld [vmem:[%s3042 + $0x76] sm:$0xff]
  %v5243 = vld [vmem:[%s3042 + $0x8e] sm:$0xff]
  %v5244 = vld [vmem:[%s3042 + $0x96] sm:$0xff]
  %v5245 = vld [vmem:[%s3042 + $0xae] sm:$0xff]
  %v5246 = vld [vmem:[%s3042 + $0xb6] sm:$0xff]
  %v5247 = vld [vmem:[%s3042 + $0xce] sm:$0xff]
  %v5248 = vld [vmem:[%s3042 + $0xd6] sm:$0xff]
  %v5249 = vld [vmem:[%s3042 + $0xee] sm:$0xff]
  %v5250 = vld [vmem:[%s3042 + $0xf6] sm:$0xff]
  %v5251 = vld [vmem:[%s3 + $0xe] sm:$0x1]
  %v5252 = vlaneseq
  %v5253 = vshrl.u32 %v5252, 7
  %v5254 = vsub.s32 0, %v5253
  %v5255 = vrot.slane %v5251, %v5254
  %v5256 = vmul.f32 %v5235, %v5255
  %v5257 = vmul.f32 %v5236, %v5255
  %v5258 = vmul.f32 %v5237, %v5255
  %v5259 = vmul.f32 %v5238, %v5255
  %v5260 = vmul.f32 %v5239, %v5255
  %v5261 = vmul.f32 %v5240, %v5255
  %v5262 = vmul.f32 %v5241, %v5255
  %v5263 = vmul.f32 %v5242, %v5255
  %v5264 = vmul.f32 %v5243, %v5255
  %v5265 = vmul.f32 %v5244, %v5255
  %v5266 = vmul.f32 %v5245, %v5255
  %v5267 = vmul.f32 %v5246, %v5255
  %v5268 = vmul.f32 %v5247, %v5255
  %v5269 = vmul.f32 %v5248, %v5255
  %v5270 = vmul.f32 %v5249, %v5255
  %v5271 = vmul.f32 %v5250, %v5255
  %v5272 = vadd.f32 %v5219, %v5256
  %v5273 = vadd.f32 %v5220, %v5257
  %v5274 = vadd.f32 %v5221, %v5258
  %v5275 = vadd.f32 %v5222, %v5259
  %v5276 = vadd.f32 %v5223, %v5260
  %v5277 = vadd.f32 %v5224, %v5261
  %v5278 = vadd.f32 %v5225, %v5262
  %v5279 = vadd.f32 %v5226, %v5263
  %v5280 = vadd.f32 %v5227, %v5264
  %v5281 = vadd.f32 %v5228, %v5265
  %v5282 = vadd.f32 %v5229, %v5266
  %v5283 = vadd.f32 %v5230, %v5267
  %v5284 = vadd.f32 %v5231, %v5268
  %v5285 = vadd.f32 %v5232, %v5269
  %v5286 = vadd.f32 %v5233, %v5270
  %v5287 = vadd.f32 %v5234, %v5271
  %s5288 = scalar_lea.vmem [#allocation3], 608
  %v5289 = vld [vmem:[%s5288 + $0x2] sm:$0xff]
  %v5290 = vld [vmem:[%s5288 + $0xa] sm:$0xff]
  %v5291 = vld [vmem:[%s5288 + $0x22] sm:$0xff]
  %v5292 = vld [vmem:[%s5288 + $0x2a] sm:$0xff]
  %v5293 = vld [vmem:[%s5288 + $0x42] sm:$0xff]
  %v5294 = vld [vmem:[%s5288 + $0x4a] sm:$0xff]
  %v5295 = vld [vmem:[%s5288 + $0x62] sm:$0xff]
  %v5296 = vld [vmem:[%s5288 + $0x6a] sm:$0xff]
  %v5297 = vld [vmem:[%s5288 + $0x82] sm:$0xff]
  %v5298 = vld [vmem:[%s5288 + $0x8a] sm:$0xff]
  %v5299 = vld [vmem:[%s5288 + $0xa2] sm:$0xff]
  %v5300 = vld [vmem:[%s5288 + $0xaa] sm:$0xff]
  %v5301 = vld [vmem:[%s5288 + $0xc2] sm:$0xff]
  %v5302 = vld [vmem:[%s5288 + $0xca] sm:$0xff]
  %v5303 = vld [vmem:[%s5288 + $0xe2] sm:$0xff]
  %v5304 = vld [vmem:[%s5288 + $0xea] sm:$0xff]
  %v5305 = vld [vmem:[%s3 + $0xf] sm:$0x1]
  %v5306 = vlaneseq
  %v5307 = vshrl.u32 %v5306, 7
  %v5308 = vsub.s32 0, %v5307
  %v5309 = vrot.slane %v5305, %v5308
  %v5310 = vmul.f32 %v5289, %v5309
  %v5311 = vmul.f32 %v5290, %v5309
  %v5312 = vmul.f32 %v5291, %v5309
  %v5313 = vmul.f32 %v5292, %v5309
  %v5314 = vmul.f32 %v5293, %v5309
  %v5315 = vmul.f32 %v5294, %v5309
  %v5316 = vmul.f32 %v5295, %v5309
  %v5317 = vmul.f32 %v5296, %v5309
  %v5318 = vmul.f32 %v5297, %v5309
  %v5319 = vmul.f32 %v5298, %v5309
  %v5320 = vmul.f32 %v5299, %v5309
  %v5321 = vmul.f32 %v5300, %v5309
  %v5322 = vmul.f32 %v5301, %v5309
  %v5323 = vmul.f32 %v5302, %v5309
  %v5324 = vmul.f32 %v5303, %v5309
  %v5325 = vmul.f32 %v5304, %v5309
  %v5326 = vadd.f32 %v5272, %v5310
  %v5327 = vadd.f32 %v5273, %v5311
  %v5328 = vadd.f32 %v5274, %v5312
  %v5329 = vadd.f32 %v5275, %v5313
  %v5330 = vadd.f32 %v5276, %v5314
  %v5331 = vadd.f32 %v5277, %v5315
  %v5332 = vadd.f32 %v5278, %v5316
  %v5333 = vadd.f32 %v5279, %v5317
  %v5334 = vadd.f32 %v5280, %v5318
  %v5335 = vadd.f32 %v5281, %v5319
  %v5336 = vadd.f32 %v5282, %v5320
  %v5337 = vadd.f32 %v5283, %v5321
  %v5338 = vadd.f32 %v5284, %v5322
  %v5339 = vadd.f32 %v5285, %v5323
  %v5340 = vadd.f32 %v5286, %v5324
  %v5341 = vadd.f32 %v5287, %v5325
  %v5342 = vld [vmem:[%s5288 + $0x5] sm:$0xff]
  %v5343 = vld [vmem:[%s5288 + $0xd] sm:$0xff]
  %v5344 = vld [vmem:[%s5288 + $0x25] sm:$0xff]
  %v5345 = vld [vmem:[%s5288 + $0x2d] sm:$0xff]
  %v5346 = vld [vmem:[%s5288 + $0x45] sm:$0xff]
  %v5347 = vld [vmem:[%s5288 + $0x4d] sm:$0xff]
  %v5348 = vld [vmem:[%s5288 + $0x65] sm:$0xff]
  %v5349 = vld [vmem:[%s5288 + $0x6d] sm:$0xff]
  %v5350 = vld [vmem:[%s5288 + $0x85] sm:$0xff]
  %v5351 = vld [vmem:[%s5288 + $0x8d] sm:$0xff]
  %v5352 = vld [vmem:[%s5288 + $0xa5] sm:$0xff]
  %v5353 = vld [vmem:[%s5288 + $0xad] sm:$0xff]
  %v5354 = vld [vmem:[%s5288 + $0xc5] sm:$0xff]
  %v5355 = vld [vmem:[%s5288 + $0xcd] sm:$0xff]
  %v5356 = vld [vmem:[%s5288 + $0xe5] sm:$0xff]
  %v5357 = vld [vmem:[%s5288 + $0xed] sm:$0xff]
  %v5358 = vld [vmem:[%s3 + $0x10] sm:$0x1]
  %v5359 = vlaneseq
  %v5360 = vshrl.u32 %v5359, 7
  %v5361 = vsub.s32 0, %v5360
  %v5362 = vrot.slane %v5358, %v5361
  %v5363 = vmul.f32 %v5342, %v5362
  %v5364 = vmul.f32 %v5343, %v5362
  %v5365 = vmul.f32 %v5344, %v5362
  %v5366 = vmul.f32 %v5345, %v5362
  %v5367 = vmul.f32 %v5346, %v5362
  %v5368 = vmul.f32 %v5347, %v5362
  %v5369 = vmul.f32 %v5348, %v5362
  %v5370 = vmul.f32 %v5349, %v5362
  %v5371 = vmul.f32 %v5350, %v5362
  %v5372 = vmul.f32 %v5351, %v5362
  %v5373 = vmul.f32 %v5352, %v5362
  %v5374 = vmul.f32 %v5353, %v5362
  %v5375 = vmul.f32 %v5354, %v5362
  %v5376 = vmul.f32 %v5355, %v5362
  %v5377 = vmul.f32 %v5356, %v5362
  %v5378 = vmul.f32 %v5357, %v5362
  %v5379 = vadd.f32 %v5326, %v5363
  %v5380 = vadd.f32 %v5327, %v5364
  %v5381 = vadd.f32 %v5328, %v5365
  %v5382 = vadd.f32 %v5329, %v5366
  %v5383 = vadd.f32 %v5330, %v5367
  %v5384 = vadd.f32 %v5331, %v5368
  %v5385 = vadd.f32 %v5332, %v5369
  %v5386 = vadd.f32 %v5333, %v5370
  %v5387 = vadd.f32 %v5334, %v5371
  %v5388 = vadd.f32 %v5335, %v5372
  %v5389 = vadd.f32 %v5336, %v5373
  %v5390 = vadd.f32 %v5337, %v5374
  %v5391 = vadd.f32 %v5338, %v5375
  %v5392 = vadd.f32 %v5339, %v5376
  %v5393 = vadd.f32 %v5340, %v5377
  %v5394 = vadd.f32 %v5341, %v5378
  %v5395 = vld [vmem:[%s5288 + $0x8] sm:$0xff]
  %v5396 = vld [vmem:[%s5288 + $0x10] sm:$0xff]
  %v5397 = vld [vmem:[%s5288 + $0x28] sm:$0xff]
  %v5398 = vld [vmem:[%s5288 + $0x30] sm:$0xff]
  %v5399 = vld [vmem:[%s5288 + $0x48] sm:$0xff]
  %v5400 = vld [vmem:[%s5288 + $0x50] sm:$0xff]
  %v5401 = vld [vmem:[%s5288 + $0x68] sm:$0xff]
  %v5402 = vld [vmem:[%s5288 + $0x70] sm:$0xff]
  %v5403 = vld [vmem:[%s5288 + $0x88] sm:$0xff]
  %v5404 = vld [vmem:[%s5288 + $0x90] sm:$0xff]
  %v5405 = vld [vmem:[%s5288 + $0xa8] sm:$0xff]
  %v5406 = vld [vmem:[%s5288 + $0xb0] sm:$0xff]
  %v5407 = vld [vmem:[%s5288 + $0xc8] sm:$0xff]
  %v5408 = vld [vmem:[%s5288 + $0xd0] sm:$0xff]
  %v5409 = vld [vmem:[%s5288 + $0xe8] sm:$0xff]
  %v5410 = vld [vmem:[%s5288 + $0xf0] sm:$0xff]
  %v5411 = vld [vmem:[%s3 + $0x11] sm:$0x1]
  %v5412 = vlaneseq
  %v5413 = vshrl.u32 %v5412, 7
  %v5414 = vsub.s32 0, %v5413
  %v5415 = vrot.slane %v5411, %v5414
  %v5416 = vmul.f32 %v5395, %v5415
  %v5417 = vmul.f32 %v5396, %v5415
  %v5418 = vmul.f32 %v5397, %v5415
  %v5419 = vmul.f32 %v5398, %v5415
  %v5420 = vmul.f32 %v5399, %v5415
  %v5421 = vmul.f32 %v5400, %v5415
  %v5422 = vmul.f32 %v5401, %v5415
  %v5423 = vmul.f32 %v5402, %v5415
  %v5424 = vmul.f32 %v5403, %v5415
  %v5425 = vmul.f32 %v5404, %v5415
  %v5426 = vmul.f32 %v5405, %v5415
  %v5427 = vmul.f32 %v5406, %v5415
  %v5428 = vmul.f32 %v5407, %v5415
  %v5429 = vmul.f32 %v5408, %v5415
  %v5430 = vmul.f32 %v5409, %v5415
  %v5431 = vmul.f32 %v5410, %v5415
  %v5432 = vadd.f32 %v5379, %v5416
  %v5433 = vadd.f32 %v5380, %v5417
  %v5434 = vadd.f32 %v5381, %v5418
  %v5435 = vadd.f32 %v5382, %v5419
  %v5436 = vadd.f32 %v5383, %v5420
  %v5437 = vadd.f32 %v5384, %v5421
  %v5438 = vadd.f32 %v5385, %v5422
  %v5439 = vadd.f32 %v5386, %v5423
  %v5440 = vadd.f32 %v5387, %v5424
  %v5441 = vadd.f32 %v5388, %v5425
  %v5442 = vadd.f32 %v5389, %v5426
  %v5443 = vadd.f32 %v5390, %v5427
  %v5444 = vadd.f32 %v5391, %v5428
  %v5445 = vadd.f32 %v5392, %v5429
  %v5446 = vadd.f32 %v5393, %v5430
  %v5447 = vadd.f32 %v5394, %v5431
  %v5448 = vld [vmem:[%s5288 + $0xb] sm:$0xff]
  %v5449 = vld [vmem:[%s5288 + $0x13] sm:$0xff]
  %v5450 = vld [vmem:[%s5288 + $0x2b] sm:$0xff]
  %v5451 = vld [vmem:[%s5288 + $0x33] sm:$0xff]
  %v5452 = vld [vmem:[%s5288 + $0x4b] sm:$0xff]
  %v5453 = vld [vmem:[%s5288 + $0x53] sm:$0xff]
  %v5454 = vld [vmem:[%s5288 + $0x6b] sm:$0xff]
  %v5455 = vld [vmem:[%s5288 + $0x73] sm:$0xff]
  %v5456 = vld [vmem:[%s5288 + $0x8b] sm:$0xff]
  %v5457 = vld [vmem:[%s5288 + $0x93] sm:$0xff]
  %v5458 = vld [vmem:[%s5288 + $0xab] sm:$0xff]
  %v5459 = vld [vmem:[%s5288 + $0xb3] sm:$0xff]
  %v5460 = vld [vmem:[%s5288 + $0xcb] sm:$0xff]
  %v5461 = vld [vmem:[%s5288 + $0xd3] sm:$0xff]
  %v5462 = vld [vmem:[%s5288 + $0xeb] sm:$0xff]
  %v5463 = vld [vmem:[%s5288 + $0xf3] sm:$0xff]
  %v5464 = vld [vmem:[%s3 + $0x12] sm:$0x1]
  %v5465 = vlaneseq
  %v5466 = vshrl.u32 %v5465, 7
  %v5467 = vsub.s32 0, %v5466
  %v5468 = vrot.slane %v5464, %v5467
  %v5469 = vmul.f32 %v5448, %v5468
  %v5470 = vmul.f32 %v5449, %v5468
  %v5471 = vmul.f32 %v5450, %v5468
  %v5472 = vmul.f32 %v5451, %v5468
  %v5473 = vmul.f32 %v5452, %v5468
  %v5474 = vmul.f32 %v5453, %v5468
  %v5475 = vmul.f32 %v5454, %v5468
  %v5476 = vmul.f32 %v5455, %v5468
  %v5477 = vmul.f32 %v5456, %v5468
  %v5478 = vmul.f32 %v5457, %v5468
  %v5479 = vmul.f32 %v5458, %v5468
  %v5480 = vmul.f32 %v5459, %v5468
  %v5481 = vmul.f32 %v5460, %v5468
  %v5482 = vmul.f32 %v5461, %v5468
  %v5483 = vmul.f32 %v5462, %v5468
  %v5484 = vmul.f32 %v5463, %v5468
  %v5485 = vadd.f32 %v5432, %v5469
  %v5486 = vadd.f32 %v5433, %v5470
  %v5487 = vadd.f32 %v5434, %v5471
  %v5488 = vadd.f32 %v5435, %v5472
  %v5489 = vadd.f32 %v5436, %v5473
  %v5490 = vadd.f32 %v5437, %v5474
  %v5491 = vadd.f32 %v5438, %v5475
  %v5492 = vadd.f32 %v5439, %v5476
  %v5493 = vadd.f32 %v5440, %v5477
  %v5494 = vadd.f32 %v5441, %v5478
  %v5495 = vadd.f32 %v5442, %v5479
  %v5496 = vadd.f32 %v5443, %v5480
  %v5497 = vadd.f32 %v5444, %v5481
  %v5498 = vadd.f32 %v5445, %v5482
  %v5499 = vadd.f32 %v5446, %v5483
  %v5500 = vadd.f32 %v5447, %v5484
  %v5501 = vld [vmem:[%s5288 + $0xe] sm:$0xff]
  %v5502 = vld [vmem:[%s5288 + $0x16] sm:$0xff]
  %v5503 = vld [vmem:[%s5288 + $0x2e] sm:$0xff]
  %v5504 = vld [vmem:[%s5288 + $0x36] sm:$0xff]
  %v5505 = vld [vmem:[%s5288 + $0x4e] sm:$0xff]
  %v5506 = vld [vmem:[%s5288 + $0x56] sm:$0xff]
  %v5507 = vld [vmem:[%s5288 + $0x6e] sm:$0xff]
  %v5508 = vld [vmem:[%s5288 + $0x76] sm:$0xff]
  %v5509 = vld [vmem:[%s5288 + $0x8e] sm:$0xff]
  %v5510 = vld [vmem:[%s5288 + $0x96] sm:$0xff]
  %v5511 = vld [vmem:[%s5288 + $0xae] sm:$0xff]
  %v5512 = vld [vmem:[%s5288 + $0xb6] sm:$0xff]
  %v5513 = vld [vmem:[%s5288 + $0xce] sm:$0xff]
  %v5514 = vld [vmem:[%s5288 + $0xd6] sm:$0xff]
  %v5515 = vld [vmem:[%s5288 + $0xee] sm:$0xff]
  %v5516 = vld [vmem:[%s5288 + $0xf6] sm:$0xff]
  %v5517 = vld [vmem:[%s3 + $0x13] sm:$0x1]
  %v5518 = vlaneseq
  %v5519 = vshrl.u32 %v5518, 7
  %v5520 = vsub.s32 0, %v5519
  %v5521 = vrot.slane %v5517, %v5520
  %v5522 = vmul.f32 %v5501, %v5521
  %v5523 = vmul.f32 %v5502, %v5521
  %v5524 = vmul.f32 %v5503, %v5521
  %v5525 = vmul.f32 %v5504, %v5521
  %v5526 = vmul.f32 %v5505, %v5521
  %v5527 = vmul.f32 %v5506, %v5521
  %v5528 = vmul.f32 %v5507, %v5521
  %v5529 = vmul.f32 %v5508, %v5521
  %v5530 = vmul.f32 %v5509, %v5521
  %v5531 = vmul.f32 %v5510, %v5521
  %v5532 = vmul.f32 %v5511, %v5521
  %v5533 = vmul.f32 %v5512, %v5521
  %v5534 = vmul.f32 %v5513, %v5521
  %v5535 = vmul.f32 %v5514, %v5521
  %v5536 = vmul.f32 %v5515, %v5521
  %v5537 = vmul.f32 %v5516, %v5521
  %v5538 = vadd.f32 %v5485, %v5522
  %v5539 = vadd.f32 %v5486, %v5523
  %v5540 = vadd.f32 %v5487, %v5524
  %v5541 = vadd.f32 %v5488, %v5525
  %v5542 = vadd.f32 %v5489, %v5526
  %v5543 = vadd.f32 %v5490, %v5527
  %v5544 = vadd.f32 %v5491, %v5528
  %v5545 = vadd.f32 %v5492, %v5529
  %v5546 = vadd.f32 %v5493, %v5530
  %v5547 = vadd.f32 %v5494, %v5531
  %v5548 = vadd.f32 %v5495, %v5532
  %v5549 = vadd.f32 %v5496, %v5533
  %v5550 = vadd.f32 %v5497, %v5534
  %v5551 = vadd.f32 %v5498, %v5535
  %v5552 = vadd.f32 %v5499, %v5536
  %v5553 = vadd.f32 %v5500, %v5537
  %s5554 = scalar_lea.vmem [#allocation3], 704
  %v5555 = vld [vmem:[%s5554 + $0x2] sm:$0xff]
  %v5556 = vld [vmem:[%s5554 + $0xa] sm:$0xff]
  %v5557 = vld [vmem:[%s5554 + $0x22] sm:$0xff]
  %v5558 = vld [vmem:[%s5554 + $0x2a] sm:$0xff]
  %v5559 = vld [vmem:[%s5554 + $0x42] sm:$0xff]
  %v5560 = vld [vmem:[%s5554 + $0x4a] sm:$0xff]
  %v5561 = vld [vmem:[%s5554 + $0x62] sm:$0xff]
  %v5562 = vld [vmem:[%s5554 + $0x6a] sm:$0xff]
  %v5563 = vld [vmem:[%s5554 + $0x82] sm:$0xff]
  %v5564 = vld [vmem:[%s5554 + $0x8a] sm:$0xff]
  %v5565 = vld [vmem:[%s5554 + $0xa2] sm:$0xff]
  %v5566 = vld [vmem:[%s5554 + $0xaa] sm:$0xff]
  %v5567 = vld [vmem:[%s5554 + $0xc2] sm:$0xff]
  %v5568 = vld [vmem:[%s5554 + $0xca] sm:$0xff]
  %v5569 = vld [vmem:[%s5554 + $0xe2] sm:$0xff]
  %v5570 = vld [vmem:[%s5554 + $0xea] sm:$0xff]
  %v5571 = vld [vmem:[%s3 + $0x14] sm:$0x1]
  %v5572 = vlaneseq
  %v5573 = vshrl.u32 %v5572, 7
  %v5574 = vsub.s32 0, %v5573
  %v5575 = vrot.slane %v5571, %v5574
  %v5576 = vmul.f32 %v5555, %v5575
  %v5577 = vmul.f32 %v5556, %v5575
  %v5578 = vmul.f32 %v5557, %v5575
  %v5579 = vmul.f32 %v5558, %v5575
  %v5580 = vmul.f32 %v5559, %v5575
  %v5581 = vmul.f32 %v5560, %v5575
  %v5582 = vmul.f32 %v5561, %v5575
  %v5583 = vmul.f32 %v5562, %v5575
  %v5584 = vmul.f32 %v5563, %v5575
  %v5585 = vmul.f32 %v5564, %v5575
  %v5586 = vmul.f32 %v5565, %v5575
  %v5587 = vmul.f32 %v5566, %v5575
  %v5588 = vmul.f32 %v5567, %v5575
  %v5589 = vmul.f32 %v5568, %v5575
  %v5590 = vmul.f32 %v5569, %v5575
  %v5591 = vmul.f32 %v5570, %v5575
  %v5592 = vadd.f32 %v5538, %v5576
  %v5593 = vadd.f32 %v5539, %v5577
  %v5594 = vadd.f32 %v5540, %v5578
  %v5595 = vadd.f32 %v5541, %v5579
  %v5596 = vadd.f32 %v5542, %v5580
  %v5597 = vadd.f32 %v5543, %v5581
  %v5598 = vadd.f32 %v5544, %v5582
  %v5599 = vadd.f32 %v5545, %v5583
  %v5600 = vadd.f32 %v5546, %v5584
  %v5601 = vadd.f32 %v5547, %v5585
  %v5602 = vadd.f32 %v5548, %v5586
  %v5603 = vadd.f32 %v5549, %v5587
  %v5604 = vadd.f32 %v5550, %v5588
  %v5605 = vadd.f32 %v5551, %v5589
  %v5606 = vadd.f32 %v5552, %v5590
  %v5607 = vadd.f32 %v5553, %v5591
  %v5608 = vld [vmem:[%s5554 + $0x5] sm:$0xff]
  %v5609 = vld [vmem:[%s5554 + $0xd] sm:$0xff]
  %v5610 = vld [vmem:[%s5554 + $0x25] sm:$0xff]
  %v5611 = vld [vmem:[%s5554 + $0x2d] sm:$0xff]
  %v5612 = vld [vmem:[%s5554 + $0x45] sm:$0xff]
  %v5613 = vld [vmem:[%s5554 + $0x4d] sm:$0xff]
  %v5614 = vld [vmem:[%s5554 + $0x65] sm:$0xff]
  %v5615 = vld [vmem:[%s5554 + $0x6d] sm:$0xff]
  %v5616 = vld [vmem:[%s5554 + $0x85] sm:$0xff]
  %v5617 = vld [vmem:[%s5554 + $0x8d] sm:$0xff]
  %v5618 = vld [vmem:[%s5554 + $0xa5] sm:$0xff]
  %v5619 = vld [vmem:[%s5554 + $0xad] sm:$0xff]
  %v5620 = vld [vmem:[%s5554 + $0xc5] sm:$0xff]
  %v5621 = vld [vmem:[%s5554 + $0xcd] sm:$0xff]
  %v5622 = vld [vmem:[%s5554 + $0xe5] sm:$0xff]
  %v5623 = vld [vmem:[%s5554 + $0xed] sm:$0xff]
  %v5624 = vld [vmem:[%s3 + $0x15] sm:$0x1]
  %v5625 = vlaneseq
  %v5626 = vshrl.u32 %v5625, 7
  %v5627 = vsub.s32 0, %v5626
  %v5628 = vrot.slane %v5624, %v5627
  %v5629 = vmul.f32 %v5608, %v5628
  %v5630 = vmul.f32 %v5609, %v5628
  %v5631 = vmul.f32 %v5610, %v5628
  %v5632 = vmul.f32 %v5611, %v5628
  %v5633 = vmul.f32 %v5612, %v5628
  %v5634 = vmul.f32 %v5613, %v5628
  %v5635 = vmul.f32 %v5614, %v5628
  %v5636 = vmul.f32 %v5615, %v5628
  %v5637 = vmul.f32 %v5616, %v5628
  %v5638 = vmul.f32 %v5617, %v5628
  %v5639 = vmul.f32 %v5618, %v5628
  %v5640 = vmul.f32 %v5619, %v5628
  %v5641 = vmul.f32 %v5620, %v5628
  %v5642 = vmul.f32 %v5621, %v5628
  %v5643 = vmul.f32 %v5622, %v5628
  %v5644 = vmul.f32 %v5623, %v5628
  %v5645 = vadd.f32 %v5592, %v5629
  %v5646 = vadd.f32 %v5593, %v5630
  %v5647 = vadd.f32 %v5594, %v5631
  %v5648 = vadd.f32 %v5595, %v5632
  %v5649 = vadd.f32 %v5596, %v5633
  %v5650 = vadd.f32 %v5597, %v5634
  %v5651 = vadd.f32 %v5598, %v5635
  %v5652 = vadd.f32 %v5599, %v5636
  %v5653 = vadd.f32 %v5600, %v5637
  %v5654 = vadd.f32 %v5601, %v5638
  %v5655 = vadd.f32 %v5602, %v5639
  %v5656 = vadd.f32 %v5603, %v5640
  %v5657 = vadd.f32 %v5604, %v5641
  %v5658 = vadd.f32 %v5605, %v5642
  %v5659 = vadd.f32 %v5606, %v5643
  %v5660 = vadd.f32 %v5607, %v5644
  %v5661 = vld [vmem:[%s5554 + $0x8] sm:$0xff]
  %v5662 = vld [vmem:[%s5554 + $0x10] sm:$0xff]
  %v5663 = vld [vmem:[%s5554 + $0x28] sm:$0xff]
  %v5664 = vld [vmem:[%s5554 + $0x30] sm:$0xff]
  %v5665 = vld [vmem:[%s5554 + $0x48] sm:$0xff]
  %v5666 = vld [vmem:[%s5554 + $0x50] sm:$0xff]
  %v5667 = vld [vmem:[%s5554 + $0x68] sm:$0xff]
  %v5668 = vld [vmem:[%s5554 + $0x70] sm:$0xff]
  %v5669 = vld [vmem:[%s5554 + $0x88] sm:$0xff]
  %v5670 = vld [vmem:[%s5554 + $0x90] sm:$0xff]
  %v5671 = vld [vmem:[%s5554 + $0xa8] sm:$0xff]
  %v5672 = vld [vmem:[%s5554 + $0xb0] sm:$0xff]
  %v5673 = vld [vmem:[%s5554 + $0xc8] sm:$0xff]
  %v5674 = vld [vmem:[%s5554 + $0xd0] sm:$0xff]
  %v5675 = vld [vmem:[%s5554 + $0xe8] sm:$0xff]
  %v5676 = vld [vmem:[%s5554 + $0xf0] sm:$0xff]
  %v5677 = vld [vmem:[%s3 + $0x16] sm:$0x1]
  %v5678 = vlaneseq
  %v5679 = vshrl.u32 %v5678, 7
  %v5680 = vsub.s32 0, %v5679
  %v5681 = vrot.slane %v5677, %v5680
  %v5682 = vmul.f32 %v5661, %v5681
  %v5683 = vmul.f32 %v5662, %v5681
  %v5684 = vmul.f32 %v5663, %v5681
  %v5685 = vmul.f32 %v5664, %v5681
  %v5686 = vmul.f32 %v5665, %v5681
  %v5687 = vmul.f32 %v5666, %v5681
  %v5688 = vmul.f32 %v5667, %v5681
  %v5689 = vmul.f32 %v5668, %v5681
  %v5690 = vmul.f32 %v5669, %v5681
  %v5691 = vmul.f32 %v5670, %v5681
  %v5692 = vmul.f32 %v5671, %v5681
  %v5693 = vmul.f32 %v5672, %v5681
  %v5694 = vmul.f32 %v5673, %v5681
  %v5695 = vmul.f32 %v5674, %v5681
  %v5696 = vmul.f32 %v5675, %v5681
  %v5697 = vmul.f32 %v5676, %v5681
  %v5698 = vadd.f32 %v5645, %v5682
  %v5699 = vadd.f32 %v5646, %v5683
  %v5700 = vadd.f32 %v5647, %v5684
  %v5701 = vadd.f32 %v5648, %v5685
  %v5702 = vadd.f32 %v5649, %v5686
  %v5703 = vadd.f32 %v5650, %v5687
  %v5704 = vadd.f32 %v5651, %v5688
  %v5705 = vadd.f32 %v5652, %v5689
  %v5706 = vadd.f32 %v5653, %v5690
  %v5707 = vadd.f32 %v5654, %v5691
  %v5708 = vadd.f32 %v5655, %v5692
  %v5709 = vadd.f32 %v5656, %v5693
  %v5710 = vadd.f32 %v5657, %v5694
  %v5711 = vadd.f32 %v5658, %v5695
  %v5712 = vadd.f32 %v5659, %v5696
  %v5713 = vadd.f32 %v5660, %v5697
  %v5714 = vld [vmem:[%s5554 + $0xb] sm:$0xff]
  %v5715 = vld [vmem:[%s5554 + $0x13] sm:$0xff]
  %v5716 = vld [vmem:[%s5554 + $0x2b] sm:$0xff]
  %v5717 = vld [vmem:[%s5554 + $0x33] sm:$0xff]
  %v5718 = vld [vmem:[%s5554 + $0x4b] sm:$0xff]
  %v5719 = vld [vmem:[%s5554 + $0x53] sm:$0xff]
  %v5720 = vld [vmem:[%s5554 + $0x6b] sm:$0xff]
  %v5721 = vld [vmem:[%s5554 + $0x73] sm:$0xff]
  %v5722 = vld [vmem:[%s5554 + $0x8b] sm:$0xff]
  %v5723 = vld [vmem:[%s5554 + $0x93] sm:$0xff]
  %v5724 = vld [vmem:[%s5554 + $0xab] sm:$0xff]
  %v5725 = vld [vmem:[%s5554 + $0xb3] sm:$0xff]
  %v5726 = vld [vmem:[%s5554 + $0xcb] sm:$0xff]
  %v5727 = vld [vmem:[%s5554 + $0xd3] sm:$0xff]
  %v5728 = vld [vmem:[%s5554 + $0xeb] sm:$0xff]
  %v5729 = vld [vmem:[%s5554 + $0xf3] sm:$0xff]
  %v5730 = vld [vmem:[%s3 + $0x17] sm:$0x1]
  %v5731 = vlaneseq
  %v5732 = vshrl.u32 %v5731, 7
  %v5733 = vsub.s32 0, %v5732
  %v5734 = vrot.slane %v5730, %v5733
  %v5735 = vmul.f32 %v5714, %v5734
  %v5736 = vmul.f32 %v5715, %v5734
  %v5737 = vmul.f32 %v5716, %v5734
  %v5738 = vmul.f32 %v5717, %v5734
  %v5739 = vmul.f32 %v5718, %v5734
  %v5740 = vmul.f32 %v5719, %v5734
  %v5741 = vmul.f32 %v5720, %v5734
  %v5742 = vmul.f32 %v5721, %v5734
  %v5743 = vmul.f32 %v5722, %v5734
  %v5744 = vmul.f32 %v5723, %v5734
  %v5745 = vmul.f32 %v5724, %v5734
  %v5746 = vmul.f32 %v5725, %v5734
  %v5747 = vmul.f32 %v5726, %v5734
  %v5748 = vmul.f32 %v5727, %v5734
  %v5749 = vmul.f32 %v5728, %v5734
  %v5750 = vmul.f32 %v5729, %v5734
  %v5751 = vadd.f32 %v5698, %v5735
  %v5752 = vadd.f32 %v5699, %v5736
  %v5753 = vadd.f32 %v5700, %v5737
  %v5754 = vadd.f32 %v5701, %v5738
  %v5755 = vadd.f32 %v5702, %v5739
  %v5756 = vadd.f32 %v5703, %v5740
  %v5757 = vadd.f32 %v5704, %v5741
  %v5758 = vadd.f32 %v5705, %v5742
  %v5759 = vadd.f32 %v5706, %v5743
  %v5760 = vadd.f32 %v5707, %v5744
  %v5761 = vadd.f32 %v5708, %v5745
  %v5762 = vadd.f32 %v5709, %v5746
  %v5763 = vadd.f32 %v5710, %v5747
  %v5764 = vadd.f32 %v5711, %v5748
  %v5765 = vadd.f32 %v5712, %v5749
  %v5766 = vadd.f32 %v5713, %v5750
  %v5767 = vld [vmem:[%s5554 + $0xe] sm:$0xff]
  %v5768 = vld [vmem:[%s5554 + $0x16] sm:$0xff]
  %v5769 = vld [vmem:[%s5554 + $0x2e] sm:$0xff]
  %v5770 = vld [vmem:[%s5554 + $0x36] sm:$0xff]
  %v5771 = vld [vmem:[%s5554 + $0x4e] sm:$0xff]
  %v5772 = vld [vmem:[%s5554 + $0x56] sm:$0xff]
  %v5773 = vld [vmem:[%s5554 + $0x6e] sm:$0xff]
  %v5774 = vld [vmem:[%s5554 + $0x76] sm:$0xff]
  %v5775 = vld [vmem:[%s5554 + $0x8e] sm:$0xff]
  %v5776 = vld [vmem:[%s5554 + $0x96] sm:$0xff]
  %v5777 = vld [vmem:[%s5554 + $0xae] sm:$0xff]
  %v5778 = vld [vmem:[%s5554 + $0xb6] sm:$0xff]
  %v5779 = vld [vmem:[%s5554 + $0xce] sm:$0xff]
  %v5780 = vld [vmem:[%s5554 + $0xd6] sm:$0xff]
  %v5781 = vld [vmem:[%s5554 + $0xee] sm:$0xff]
  %v5782 = vld [vmem:[%s5554 + $0xf6] sm:$0xff]
  %v5783 = vld [vmem:[%s3 + $0x18] sm:$0x1]
  %v5784 = vlaneseq
  %v5785 = vshrl.u32 %v5784, 7
  %v5786 = vsub.s32 0, %v5785
  %v5787 = vrot.slane %v5783, %v5786
  %v5788 = vmul.f32 %v5767, %v5787
  %v5789 = vmul.f32 %v5768, %v5787
  %v5790 = vmul.f32 %v5769, %v5787
  %v5791 = vmul.f32 %v5770, %v5787
  %v5792 = vmul.f32 %v5771, %v5787
  %v5793 = vmul.f32 %v5772, %v5787
  %v5794 = vmul.f32 %v5773, %v5787
  %v5795 = vmul.f32 %v5774, %v5787
  %v5796 = vmul.f32 %v5775, %v5787
  %v5797 = vmul.f32 %v5776, %v5787
  %v5798 = vmul.f32 %v5777, %v5787
  %v5799 = vmul.f32 %v5778, %v5787
  %v5800 = vmul.f32 %v5779, %v5787
  %v5801 = vmul.f32 %v5780, %v5787
  %v5802 = vmul.f32 %v5781, %v5787
  %v5803 = vmul.f32 %v5782, %v5787
  %v5804 = vadd.f32 %v5751, %v5788
  %v5805 = vadd.f32 %v5752, %v5789
  %v5806 = vadd.f32 %v5753, %v5790
  %v5807 = vadd.f32 %v5754, %v5791
  %v5808 = vadd.f32 %v5755, %v5792
  %v5809 = vadd.f32 %v5756, %v5793
  %v5810 = vadd.f32 %v5757, %v5794
  %v5811 = vadd.f32 %v5758, %v5795
  %v5812 = vadd.f32 %v5759, %v5796
  %v5813 = vadd.f32 %v5760, %v5797
  %v5814 = vadd.f32 %v5761, %v5798
  %v5815 = vadd.f32 %v5762, %v5799
  %v5816 = vadd.f32 %v5763, %v5800
  %v5817 = vadd.f32 %v5764, %v5801
  %v5818 = vadd.f32 %v5765, %v5802
  %v5819 = vadd.f32 %v5766, %v5803
  %v5820 = vld [vmem:[%s4] sm:$0x1]
  %v5822 = vlaneseq
  %v5823 = vshrl.u32 %v5822, 7
  %v5824 = vsub.s32 0, %v5823
  %v5825 = vrot.slane %v5820, %v5824
  %v5827 = vadd.f32 %v5804, %v5825
  %v5828 = vadd.f32 %v5805, %v5825
  %v5829 = vadd.f32 %v5806, %v5825
  %v5830 = vadd.f32 %v5807, %v5825
  %v5831 = vadd.f32 %v5808, %v5825
  %v5832 = vadd.f32 %v5809, %v5825
  %v5833 = vadd.f32 %v5810, %v5825
  %v5834 = vadd.f32 %v5811, %v5825
  %v5835 = vadd.f32 %v5812, %v5825
  %v5836 = vadd.f32 %v5813, %v5825
  %v5837 = vadd.f32 %v5814, %v5825
  %v5838 = vadd.f32 %v5815, %v5825
  %v5839 = vadd.f32 %v5816, %v5825
  %v5840 = vadd.f32 %v5817, %v5825
  %v5841 = vadd.f32 %v5818, %v5825
  %v5842 = vadd.f32 %v5819, %v5825
  %v5843 = vpack.c.bf16 %v5828, %v5827
  %v5844 = vpack.c.bf16 %v5830, %v5829
  %v5845 = vpack.c.bf16 %v5832, %v5831
  %v5846 = vpack.c.bf16 %v5834, %v5833
  %v5847 = vpack.c.bf16 %v5836, %v5835
  %v5848 = vpack.c.bf16 %v5838, %v5837
  %v5849 = vpack.c.bf16 %v5840, %v5839
  %v5850 = vpack.c.bf16 %v5842, %v5841
  %v5859 = vunpack.c.l.b16 %v5843
  %v5860 = vunpack.c.h.b16 %v5843
  %v5861 = vunpack.c.l.b16 %v5844
  %v5862 = vunpack.c.h.b16 %v5844
  %v5863 = vunpack.c.l.b16 %v5845
  %v5864 = vunpack.c.h.b16 %v5845
  %v5865 = vunpack.c.l.b16 %v5846
  %v5866 = vunpack.c.h.b16 %v5846
  %v5867 = vunpack.c.l.b16 %v5847
  %v5868 = vunpack.c.h.b16 %v5847
  %v5869 = vunpack.c.l.b16 %v5848
  %v5870 = vunpack.c.h.b16 %v5848
  %v5871 = vunpack.c.l.b16 %v5849
  %v5872 = vunpack.c.h.b16 %v5849
  %v5873 = vunpack.c.l.b16 %v5850
  %v5874 = vunpack.c.h.b16 %v5850
  %v5875 = vpack.c.b16 %v5859, %v5859
  %v5876 = vpack.c.b16 %v5860, %v5860
  %v5877 = vpack.c.b16 %v5861, %v5861
  %v5878 = vpack.c.b16 %v5862, %v5862
  %v5879 = vpack.c.b16 %v5863, %v5863
  %v5880 = vpack.c.b16 %v5864, %v5864
  %v5881 = vpack.c.b16 %v5865, %v5865
  %v5882 = vpack.c.b16 %v5866, %v5866
  %v5883 = vpack.c.b16 %v5867, %v5867
  %v5884 = vpack.c.b16 %v5868, %v5868
  %v5885 = vpack.c.b16 %v5869, %v5869
  %v5886 = vpack.c.b16 %v5870, %v5870
  %v5887 = vpack.c.b16 %v5871, %v5871
  %v5888 = vpack.c.b16 %v5872, %v5872
  %v5889 = vpack.c.b16 %v5873, %v5873
  %v5890 = vpack.c.b16 %v5874, %v5874
  %5907 = vst [vmem:[#allocation4 + $0x40] sm:$0xf] %v5875
  %5908 = vst [vmem:[#allocation4 + $0x44] sm:$0xf] %v5876
  %5909 = vst [vmem:[#allocation4 + $0x48] sm:$0xf] %v5877
  %5910 = vst [vmem:[#allocation4 + $0x4c] sm:$0xf] %v5878
  %5911 = vst [vmem:[#allocation4 + $0x50] sm:$0xf] %v5879
  %5912 = vst [vmem:[#allocation4 + $0x54] sm:$0xf] %v5880
  %5913 = vst [vmem:[#allocation4 + $0x58] sm:$0xf] %v5881
  %5914 = vst [vmem:[#allocation4 + $0x5c] sm:$0xf] %v5882
  %5915 = vst [vmem:[#allocation4 + $0x60] sm:$0xf] %v5883
  %5916 = vst [vmem:[#allocation4 + $0x64] sm:$0xf] %v5884
  %5917 = vst [vmem:[#allocation4 + $0x68] sm:$0xf] %v5885
  %5918 = vst [vmem:[#allocation4 + $0x6c] sm:$0xf] %v5886
  %5919 = vst [vmem:[#allocation4 + $0x70] sm:$0xf] %v5887
  %5920 = vst [vmem:[#allocation4 + $0x74] sm:$0xf] %v5888
  %5921 = vst [vmem:[#allocation4 + $0x78] sm:$0xf] %v5889
  %5922 = vst [vmem:[#allocation4 + $0x7c] sm:$0xf] %v5890
  %v5923 = vld [vmem:[#allocation4] sm:$0xf]
  %v5924 = vld [vmem:[#allocation4 + $0x4] sm:$0xf]
  %v5925 = vld [vmem:[#allocation4 + $0x8] sm:$0xf]
  %v5926 = vld [vmem:[#allocation4 + $0xc] sm:$0xf]
  %v5927 = vld [vmem:[#allocation4 + $0x10] sm:$0xf]
  %v5928 = vld [vmem:[#allocation4 + $0x14] sm:$0xf]
  %v5929 = vld [vmem:[#allocation4 + $0x18] sm:$0xf]
  %v5930 = vld [vmem:[#allocation4 + $0x1c] sm:$0xf]
  %v5931 = vld [vmem:[#allocation4 + $0x20] sm:$0xf]
  %v5932 = vld [vmem:[#allocation4 + $0x24] sm:$0xf]
  %v5933 = vld [vmem:[#allocation4 + $0x28] sm:$0xf]
  %v5934 = vld [vmem:[#allocation4 + $0x2c] sm:$0xf]
  %v5935 = vld [vmem:[#allocation4 + $0x30] sm:$0xf]
  %v5936 = vld [vmem:[#allocation4 + $0x34] sm:$0xf]
  %v5937 = vld [vmem:[#allocation4 + $0x38] sm:$0xf]
  %v5938 = vld [vmem:[#allocation4 + $0x3c] sm:$0xf]
  %v5939 = vld [vmem:[#allocation4 + $0x40] sm:$0xf]
  %v5940 = vld [vmem:[#allocation4 + $0x44] sm:$0xf]
  %v5941 = vld [vmem:[#allocation4 + $0x48] sm:$0xf]
  %v5942 = vld [vmem:[#allocation4 + $0x4c] sm:$0xf]
  %v5943 = vld [vmem:[#allocation4 + $0x50] sm:$0xf]
  %v5944 = vld [vmem:[#allocation4 + $0x54] sm:$0xf]
  %v5945 = vld [vmem:[#allocation4 + $0x58] sm:$0xf]
  %v5946 = vld [vmem:[#allocation4 + $0x5c] sm:$0xf]
  %v5947 = vld [vmem:[#allocation4 + $0x60] sm:$0xf]
  %v5948 = vld [vmem:[#allocation4 + $0x64] sm:$0xf]
  %v5949 = vld [vmem:[#allocation4 + $0x68] sm:$0xf]
  %v5950 = vld [vmem:[#allocation4 + $0x6c] sm:$0xf]
  %v5951 = vld [vmem:[#allocation4 + $0x70] sm:$0xf]
  %v5952 = vld [vmem:[#allocation4 + $0x74] sm:$0xf]
  %v5953 = vld [vmem:[#allocation4 + $0x78] sm:$0xf]
  %v5954 = vld [vmem:[#allocation4 + $0x7c] sm:$0xf]
  %v5955 = vld [vmem:[%s5] sm:$0xf]
  %v5956 = vld [vmem:[%s5 + $0x4] sm:$0xf]
  %v5957 = vld [vmem:[%s5 + $0x8] sm:$0xf]
  %v5958 = vld [vmem:[%s5 + $0xc] sm:$0xf]
  %v5959 = vld [vmem:[%s5 + $0x10] sm:$0xf]
  %v5960 = vld [vmem:[%s5 + $0x14] sm:$0xf]
  %v5961 = vld [vmem:[%s5 + $0x18] sm:$0xf]
  %v5962 = vld [vmem:[%s5 + $0x1c] sm:$0xf]
  %v5963 = vld [vmem:[%s5 + $0x20] sm:$0xf]
  %v5964 = vld [vmem:[%s5 + $0x24] sm:$0xf]
  %v5965 = vld [vmem:[%s5 + $0x28] sm:$0xf]
  %v5966 = vld [vmem:[%s5 + $0x2c] sm:$0xf]
  %v5967 = vld [vmem:[%s5 + $0x30] sm:$0xf]
  %v5968 = vld [vmem:[%s5 + $0x34] sm:$0xf]
  %v5969 = vld [vmem:[%s5 + $0x38] sm:$0xf]
  %v5970 = vld [vmem:[%s5 + $0x3c] sm:$0xf]
  %v5971 = vld [vmem:[%s6] sm:$0x1]
  %v5973 = vlaneseq
  %v5974 = vshrl.u32 %v5973, 7
  %v5975 = vsub.s32 0, %v5974
  %v5976 = vrot.slane %v5971, %v5975
  %v6010 = vunpack.c.l.b16 %v5923
  %v6011 = vunpack.c.l.b16 %v5924
  %v6012 = vunpack.c.l.b16 %v5925
  %v6013 = vunpack.c.l.b16 %v5926
  %v6014 = vunpack.c.l.b16 %v5927
  %v6015 = vunpack.c.l.b16 %v5928
  %v6016 = vunpack.c.l.b16 %v5929
  %v6017 = vunpack.c.l.b16 %v5930
  %v6018 = vunpack.c.l.b16 %v5931
  %v6019 = vunpack.c.l.b16 %v5932
  %v6020 = vunpack.c.l.b16 %v5933
  %v6021 = vunpack.c.l.b16 %v5934
  %v6022 = vunpack.c.l.b16 %v5935
  %v6023 = vunpack.c.l.b16 %v5936
  %v6024 = vunpack.c.l.b16 %v5937
  %v6025 = vunpack.c.l.b16 %v5938
  %v6026 = vunpack.c.l.b16 %v5939
  %v6027 = vunpack.c.l.b16 %v5940
  %v6028 = vunpack.c.l.b16 %v5941
  %v6029 = vunpack.c.l.b16 %v5942
  %v6030 = vunpack.c.l.b16 %v5943
  %v6031 = vunpack.c.l.b16 %v5944
  %v6032 = vunpack.c.l.b16 %v5945
  %v6033 = vunpack.c.l.b16 %v5946
  %v6034 = vunpack.c.l.b16 %v5947
  %v6035 = vunpack.c.l.b16 %v5948
  %v6036 = vunpack.c.l.b16 %v5949
  %v6037 = vunpack.c.l.b16 %v5950
  %v6038 = vunpack.c.l.b16 %v5951
  %v6039 = vunpack.c.l.b16 %v5952
  %v6040 = vunpack.c.l.b16 %v5953
  %v6041 = vunpack.c.l.b16 %v5954
  %v6042 = vpack.c.b16 %v6011, %v6010
  %v6043 = vpack.c.b16 %v6013, %v6012
  %v6044 = vpack.c.b16 %v6015, %v6014
  %v6045 = vpack.c.b16 %v6017, %v6016
  %v6046 = vpack.c.b16 %v6019, %v6018
  %v6047 = vpack.c.b16 %v6021, %v6020
  %v6048 = vpack.c.b16 %v6023, %v6022
  %v6049 = vpack.c.b16 %v6025, %v6024
  %v6050 = vpack.c.b16 %v6027, %v6026
  %v6051 = vpack.c.b16 %v6029, %v6028
  %v6052 = vpack.c.b16 %v6031, %v6030
  %v6053 = vpack.c.b16 %v6033, %v6032
  %v6054 = vpack.c.b16 %v6035, %v6034
  %v6055 = vpack.c.b16 %v6037, %v6036
  %v6056 = vpack.c.b16 %v6039, %v6038
  %v6057 = vpack.c.b16 %v6041, %v6040
  %v6090 = vunpack.c.l.b16 %v5955
  %v6091 = vunpack.c.l.b16 %v5956
  %v6092 = vunpack.c.l.b16 %v5957
  %v6093 = vunpack.c.l.b16 %v5958
  %v6094 = vunpack.c.l.b16 %v5959
  %v6095 = vunpack.c.l.b16 %v5960
  %v6096 = vunpack.c.l.b16 %v5961
  %v6097 = vunpack.c.l.b16 %v5962
  %v6098 = vunpack.c.l.b16 %v5963
  %v6099 = vunpack.c.l.b16 %v5964
  %v6100 = vunpack.c.l.b16 %v5965
  %v6101 = vunpack.c.l.b16 %v5966
  %v6102 = vunpack.c.l.b16 %v5967
  %v6103 = vunpack.c.l.b16 %v5968
  %v6104 = vunpack.c.l.b16 %v5969
  %v6105 = vunpack.c.l.b16 %v5970
  %v6106 = vpack.c.b16 %v6091, %v6090
  %v6107 = vpack.c.b16 %v6093, %v6092
  %v6108 = vpack.c.b16 %v6095, %v6094
  %v6109 = vpack.c.b16 %v6097, %v6096
  %v6110 = vpack.c.b16 %v6099, %v6098
  %v6111 = vpack.c.b16 %v6101, %v6100
  %v6112 = vpack.c.b16 %v6103, %v6102
  %v6113 = vpack.c.b16 %v6105, %v6104
  %6122 = vmatprep.subr.bf16.mxu0 0
  %6123 = vmatpush1.bf16.msra.mxu0 %v6113
  %6124 = vmatprep.subr.bf16.mxu0 0
  %6125 = vmatpush1.bf16.msra.mxu0 %v6112
  %6126 = vmatprep.subr.bf16.mxu0 0
  %6127 = vmatpush1.bf16.msra.mxu0 %v6111
  %6128 = vmatprep.subr.bf16.mxu0 0
  %6129 = vmatpush1.bf16.msra.mxu0 %v6110
  %6130 = vmatprep.subr.bf16.mxu0 0
  %6131 = vmatpush1.bf16.msra.mxu0 %v6109
  %6132 = vmatprep.subr.bf16.mxu0 0
  %6133 = vmatpush1.bf16.msra.mxu0 %v6108
  %6134 = vmatprep.subr.bf16.mxu0 0
  %6135 = vmatpush1.bf16.msra.mxu0 %v6107
  %6136 = vmatprep.subr.bf16.mxu0 0
  %6137 = vmatpush1.bf16.msra.mxu0 %v6106
  %6138 = vmatprep.subr.bf16.mxu0 0
  %6139 = vmatpush2.bf16.msra.mxu0 0
  %6140 = vmatprep.subr.bf16.mxu0 0
  %6141 = vmatpush2.bf16.msra.mxu0 0
  %6142 = vmatprep.subr.bf16.mxu0 0
  %6143 = vmatpush2.bf16.msra.mxu0 0
  %6144 = vmatprep.subr.bf16.mxu0 0
  %6145 = vmatpush2.bf16.msra.mxu0 0
  %6146 = vmatprep.subr.bf16.mxu0 0
  %6147 = vmatpush2.bf16.msra.mxu0 0
  %6148 = vmatprep.subr.bf16.mxu0 0
  %6149 = vmatpush2.bf16.msra.mxu0 0
  %6150 = vmatprep.subr.bf16.mxu0 0
  %6151 = vmatpush2.bf16.msra.mxu0 0
  %6152 = vmatprep.subr.bf16.mxu0 0
  %6153 = vmatpush2.bf16.msra.mxu0 0
  %6154 = vmatprep.mubr.bf16.mxu0 0
  %6155 = vmatmul.mubr.bf16.gmra.mxu0 %v6042
  %v6156 = vpop.f32.mrf.mxu0
  %v6157 = vadd.f32 %v5976, %v6156
  %v6158 = vpop.f32.mrf.mxu0
  %v6159 = vpop.f32.mrf.mxu0
  %v6160 = vadd.f32 %v5976, %v6159
  %v6161 = vpop.f32.mrf.mxu0
  %6162 = vmatprep.mubr.bf16.mxu0 0
  %6163 = vmatmul.mubr.bf16.gmra.mxu0 %v6043
  %v6164 = vpop.f32.mrf.mxu0
  %v6165 = vadd.f32 %v5976, %v6164
  %v6166 = vpop.f32.mrf.mxu0
  %v6167 = vpop.f32.mrf.mxu0
  %v6168 = vadd.f32 %v5976, %v6167
  %v6169 = vpop.f32.mrf.mxu0
  %6170 = vmatprep.mubr.bf16.mxu0 0
  %6171 = vmatmul.mubr.bf16.gmra.mxu0 %v6044
  %v6172 = vpop.f32.mrf.mxu0
  %v6173 = vadd.f32 %v5976, %v6172
  %v6174 = vpop.f32.mrf.mxu0
  %v6175 = vpop.f32.mrf.mxu0
  %v6176 = vadd.f32 %v5976, %v6175
  %v6177 = vpop.f32.mrf.mxu0
  %6178 = vmatprep.mubr.bf16.mxu0 0
  %6179 = vmatmul.mubr.bf16.gmra.mxu0 %v6045
  %v6180 = vpop.f32.mrf.mxu0
  %v6181 = vadd.f32 %v5976, %v6180
  %v6182 = vpop.f32.mrf.mxu0
  %v6183 = vpop.f32.mrf.mxu0
  %v6184 = vadd.f32 %v5976, %v6183
  %v6185 = vpop.f32.mrf.mxu0
  %6186 = vmatprep.mubr.bf16.mxu0 0
  %6187 = vmatmul.mubr.bf16.gmra.mxu0 %v6046
  %v6188 = vpop.f32.mrf.mxu0
  %v6189 = vadd.f32 %v5976, %v6188
  %v6190 = vpop.f32.mrf.mxu0
  %v6191 = vpop.f32.mrf.mxu0
  %v6192 = vadd.f32 %v5976, %v6191
  %v6193 = vpop.f32.mrf.mxu0
  %6194 = vmatprep.mubr.bf16.mxu0 0
  %6195 = vmatmul.mubr.bf16.gmra.mxu0 %v6047
  %v6196 = vpop.f32.mrf.mxu0
  %v6197 = vadd.f32 %v5976, %v6196
  %v6198 = vpop.f32.mrf.mxu0
  %v6199 = vpop.f32.mrf.mxu0
  %v6200 = vadd.f32 %v5976, %v6199
  %v6201 = vpop.f32.mrf.mxu0
  %6202 = vmatprep.mubr.bf16.mxu0 0
  %6203 = vmatmul.mubr.bf16.gmra.mxu0 %v6048
  %v6204 = vpop.f32.mrf.mxu0
  %v6205 = vadd.f32 %v5976, %v6204
  %v6206 = vpop.f32.mrf.mxu0
  %v6207 = vpop.f32.mrf.mxu0
  %v6208 = vadd.f32 %v5976, %v6207
  %v6209 = vpop.f32.mrf.mxu0
  %6210 = vmatprep.mubr.bf16.mxu0 0
  %6211 = vmatmul.mubr.bf16.gmra.mxu0 %v6049
  %v6212 = vpop.f32.mrf.mxu0
  %v6213 = vadd.f32 %v5976, %v6212
  %v6214 = vpop.f32.mrf.mxu0
  %v6215 = vpop.f32.mrf.mxu0
  %v6216 = vadd.f32 %v5976, %v6215
  %v6217 = vpop.f32.mrf.mxu0
  %6218 = vmatprep.mubr.bf16.mxu0 0
  %6219 = vmatmul.mubr.bf16.gmra.mxu0 %v6050
  %v6220 = vpop.f32.mrf.mxu0
  %v6221 = vadd.f32 %v5976, %v6220
  %v6222 = vpop.f32.mrf.mxu0
  %v6223 = vpop.f32.mrf.mxu0
  %v6224 = vadd.f32 %v5976, %v6223
  %v6225 = vpop.f32.mrf.mxu0
  %6226 = vmatprep.mubr.bf16.mxu0 0
  %6227 = vmatmul.mubr.bf16.gmra.mxu0 %v6051
  %v6228 = vpop.f32.mrf.mxu0
  %v6229 = vadd.f32 %v5976, %v6228
  %v6230 = vpop.f32.mrf.mxu0
  %v6231 = vpop.f32.mrf.mxu0
  %v6232 = vadd.f32 %v5976, %v6231
  %v6233 = vpop.f32.mrf.mxu0
  %6234 = vmatprep.mubr.bf16.mxu0 0
  %6235 = vmatmul.mubr.bf16.gmra.mxu0 %v6052
  %v6236 = vpop.f32.mrf.mxu0
  %v6237 = vadd.f32 %v5976, %v6236
  %v6238 = vpop.f32.mrf.mxu0
  %v6239 = vpop.f32.mrf.mxu0
  %v6240 = vadd.f32 %v5976, %v6239
  %v6241 = vpop.f32.mrf.mxu0
  %6242 = vmatprep.mubr.bf16.mxu0 0
  %6243 = vmatmul.mubr.bf16.gmra.mxu0 %v6053
  %v6244 = vpop.f32.mrf.mxu0
  %v6245 = vadd.f32 %v5976, %v6244
  %v6246 = vpop.f32.mrf.mxu0
  %v6247 = vpop.f32.mrf.mxu0
  %v6248 = vadd.f32 %v5976, %v6247
  %v6249 = vpop.f32.mrf.mxu0
  %6250 = vmatprep.mubr.bf16.mxu0 0
  %6251 = vmatmul.mubr.bf16.gmra.mxu0 %v6054
  %v6252 = vpop.f32.mrf.mxu0
  %v6253 = vadd.f32 %v5976, %v6252
  %v6254 = vpop.f32.mrf.mxu0
  %v6255 = vpop.f32.mrf.mxu0
  %v6256 = vadd.f32 %v5976, %v6255
  %v6257 = vpop.f32.mrf.mxu0
  %6258 = vmatprep.mubr.bf16.mxu0 0
  %6259 = vmatmul.mubr.bf16.gmra.mxu0 %v6055
  %v6260 = vpop.f32.mrf.mxu0
  %v6261 = vadd.f32 %v5976, %v6260
  %v6262 = vpop.f32.mrf.mxu0
  %v6263 = vpop.f32.mrf.mxu0
  %v6264 = vadd.f32 %v5976, %v6263
  %v6265 = vpop.f32.mrf.mxu0
  %6266 = vmatprep.mubr.bf16.mxu0 0
  %6267 = vmatmul.mubr.bf16.gmra.mxu0 %v6056
  %v6268 = vpop.f32.mrf.mxu0
  %v6269 = vadd.f32 %v5976, %v6268
  %v6270 = vpop.f32.mrf.mxu0
  %v6271 = vpop.f32.mrf.mxu0
  %v6272 = vadd.f32 %v5976, %v6271
  %v6273 = vpop.f32.mrf.mxu0
  %6274 = vmatprep.mubr.bf16.mxu0 0
  %6275 = vmatmul.mubr.bf16.gmra.mxu0 %v6057
  %v6276 = vpop.f32.mrf.mxu0
  %v6277 = vadd.f32 %v5976, %v6276
  %v6278 = vpop.f32.mrf.mxu0
  %v6279 = vpop.f32.mrf.mxu0
  %v6280 = vadd.f32 %v5976, %v6279
  %v6281 = vpop.f32.mrf.mxu0
  %6282 = vdwg.mxu0
  %v6283 = vld [vmem:[%s0] sm:$0xff]
  %v6284 = vld [vmem:[%s0 + $0x8] sm:$0xff]
  %v6285 = vld [vmem:[%s0 + $0x10] sm:$0xff]
  %v6286 = vld [vmem:[%s0 + $0x18] sm:$0xff]
  %v6287 = vld [vmem:[%s0 + $0x20] sm:$0xff]
  %v6288 = vld [vmem:[%s0 + $0x28] sm:$0xff]
  %v6289 = vld [vmem:[%s0 + $0x30] sm:$0xff]
  %v6290 = vld [vmem:[%s0 + $0x38] sm:$0xff]
  %v6291 = vld [vmem:[%s0 + $0x40] sm:$0xff]
  %v6292 = vld [vmem:[%s0 + $0x48] sm:$0xff]
  %v6293 = vld [vmem:[%s0 + $0x50] sm:$0xff]
  %v6294 = vld [vmem:[%s0 + $0x58] sm:$0xff]
  %v6295 = vld [vmem:[%s0 + $0x60] sm:$0xff]
  %v6296 = vld [vmem:[%s0 + $0x68] sm:$0xff]
  %v6297 = vld [vmem:[%s0 + $0x70] sm:$0xff]
  %v6298 = vld [vmem:[%s0 + $0x78] sm:$0xff]
  %v6299 = vld [vmem:[%s0 + $0x80] sm:$0xff]
  %v6300 = vld [vmem:[%s0 + $0x88] sm:$0xff]
  %v6301 = vld [vmem:[%s0 + $0x90] sm:$0xff]
  %v6302 = vld [vmem:[%s0 + $0x98] sm:$0xff]
  %v6303 = vld [vmem:[%s0 + $0xa0] sm:$0xff]
  %v6304 = vld [vmem:[%s0 + $0xa8] sm:$0xff]
  %v6305 = vld [vmem:[%s0 + $0xb0] sm:$0xff]
  %v6306 = vld [vmem:[%s0 + $0xb8] sm:$0xff]
  %v6307 = vld [vmem:[%s0 + $0xc0] sm:$0xff]
  %v6308 = vld [vmem:[%s0 + $0xc8] sm:$0xff]
  %v6309 = vld [vmem:[%s0 + $0xd0] sm:$0xff]
  %v6310 = vld [vmem:[%s0 + $0xd8] sm:$0xff]
  %v6311 = vld [vmem:[%s0 + $0xe0] sm:$0xff]
  %v6312 = vld [vmem:[%s0 + $0xe8] sm:$0xff]
  %v6313 = vld [vmem:[%s0 + $0xf0] sm:$0xff]
  %v6314 = vld [vmem:[%s0 + $0xf8] sm:$0xff]
  %v6315 = vmul.f32 %v6283, %v6157
  %v6316 = vmul.f32 %v6284, %v6160
  %v6317 = vmul.f32 %v6285, %v6165
  %v6318 = vmul.f32 %v6286, %v6168
  %v6319 = vmul.f32 %v6287, %v6173
  %v6320 = vmul.f32 %v6288, %v6176
  %v6321 = vmul.f32 %v6289, %v6181
  %v6322 = vmul.f32 %v6290, %v6184
  %v6323 = vmul.f32 %v6291, %v6189
  %v6324 = vmul.f32 %v6292, %v6192
  %v6325 = vmul.f32 %v6293, %v6197
  %v6326 = vmul.f32 %v6294, %v6200
  %v6327 = vmul.f32 %v6295, %v6205
  %v6328 = vmul.f32 %v6296, %v6208
  %v6329 = vmul.f32 %v6297, %v6213
  %v6330 = vmul.f32 %v6298, %v6216
  %v6331 = vmul.f32 %v6299, %v6221
  %v6332 = vmul.f32 %v6300, %v6224
  %v6333 = vmul.f32 %v6301, %v6229
  %v6334 = vmul.f32 %v6302, %v6232
  %v6335 = vmul.f32 %v6303, %v6237
  %v6336 = vmul.f32 %v6304, %v6240
  %v6337 = vmul.f32 %v6305, %v6245
  %v6338 = vmul.f32 %v6306, %v6248
  %v6339 = vmul.f32 %v6307, %v6253
  %v6340 = vmul.f32 %v6308, %v6256
  %v6341 = vmul.f32 %v6309, %v6261
  %v6342 = vmul.f32 %v6310, %v6264
  %v6343 = vmul.f32 %v6311, %v6269
  %v6344 = vmul.f32 %v6312, %v6272
  %v6345 = vmul.f32 %v6313, %v6277
  %v6346 = vmul.f32 %v6314, %v6280
  %6347 = vst [vmem:[%s7] sm:$0xff] %v6315
  %6348 = vst [vmem:[%s7 + $0x8] sm:$0xff] %v6316
  %6349 = vst [vmem:[%s7 + $0x10] sm:$0xff] %v6317
  %6350 = vst [vmem:[%s7 + $0x18] sm:$0xff] %v6318
  %6351 = vst [vmem:[%s7 + $0x20] sm:$0xff] %v6319
  %6352 = vst [vmem:[%s7 + $0x28] sm:$0xff] %v6320
  %6353 = vst [vmem:[%s7 + $0x30] sm:$0xff] %v6321
  %6354 = vst [vmem:[%s7 + $0x38] sm:$0xff] %v6322
  %6355 = vst [vmem:[%s7 + $0x40] sm:$0xff] %v6323
  %6356 = vst [vmem:[%s7 + $0x48] sm:$0xff] %v6324
  %6357 = vst [vmem:[%s7 + $0x50] sm:$0xff] %v6325
  %6358 = vst [vmem:[%s7 + $0x58] sm:$0xff] %v6326
  %6359 = vst [vmem:[%s7 + $0x60] sm:$0xff] %v6327
  %6360 = vst [vmem:[%s7 + $0x68] sm:$0xff] %v6328
  %6361 = vst [vmem:[%s7 + $0x70] sm:$0xff] %v6329
  %6362 = vst [vmem:[%s7 + $0x78] sm:$0xff] %v6330
  %6363 = vst [vmem:[%s7 + $0x80] sm:$0xff] %v6331
  %6364 = vst [vmem:[%s7 + $0x88] sm:$0xff] %v6332
  %6365 = vst [vmem:[%s7 + $0x90] sm:$0xff] %v6333
  %6366 = vst [vmem:[%s7 + $0x98] sm:$0xff] %v6334
  %6367 = vst [vmem:[%s7 + $0xa0] sm:$0xff] %v6335
  %6368 = vst [vmem:[%s7 + $0xa8] sm:$0xff] %v6336
  %6369 = vst [vmem:[%s7 + $0xb0] sm:$0xff] %v6337
  %6370 = vst [vmem:[%s7 + $0xb8] sm:$0xff] %v6338
  %6371 = vst [vmem:[%s7 + $0xc0] sm:$0xff] %v6339
  %6372 = vst [vmem:[%s7 + $0xc8] sm:$0xff] %v6340
  %6373 = vst [vmem:[%s7 + $0xd0] sm:$0xff] %v6341
  %6374 = vst [vmem:[%s7 + $0xd8] sm:$0xff] %v6342
  %6375 = vst [vmem:[%s7 + $0xe0] sm:$0xff] %v6343
  %6376 = vst [vmem:[%s7 + $0xe8] sm:$0xff] %v6344
  %6377 = vst [vmem:[%s7 + $0xf0] sm:$0xff] %v6345
  %6378 = vst [vmem:[%s7 + $0xf8] sm:$0xff] %v6346
  // Predicated region
  $region34: #{lka_forward.1} parent=0 // pred_check
    _
  $region35: #{lka_forward.1} parent=0 // pred_check_branch
    %6380 = sbr.rel (0) target = $region37
  $region36: #{lka_forward.1} parent=0 // pred_region
    _
  $region37: #{lka_forward.1} parent=0 // pred_fallthru
    _
  // Predicated region
  $region38: #{lka_forward.1} parent=0 // pred_check
    _
  $region39: #{lka_forward.1} parent=0 // pred_check_branch
    %6382 = sbr.rel (0) target = $region41
  $region40: #{lka_forward.1} parent=0 // pred_region
    _
  $region41: #{lka_forward.1} parent=0 // pred_fallthru
    _

</llo_original>
